<compile_context>
chip_gen: v6e
topology: v6e:2x2x1
jax: 0.10.0
libtpu: 0.0.40
codegen_flags: <defaults>
</compile_context>

<pallas_src>
import jax
import jax.numpy as jnp
from jax.experimental import pallas as pl
from jax.experimental.pallas import tpu as pltpu

VOCAB_SIZE = 50
EMBEDDING_DIM = 16
HIDDEN_DIM = 32
ENC_N_LAYERS = 2
OUTPUT_CLASSES = 4
SEQ_LEN = 8
BATCH = 2
NUM_TURNS = 3


def _sigmoid(z):
    # EUP-only logistic: 0.5*(tanh(z/2)+1).  Avoids an f32 divide on the VPU
    # inside the recurrent critical path.
    return 0.5 * jnp.tanh(0.5 * z) + 0.5


# ---------------------------------------------------------------------------
# Fully fused forward kernel.
#   tokens_ref : SMEM (NUM_TURNS*T*B,) int32   flattened token ids (turn, t, b)
#   emb_ref    : VMEM (V, E)                   embedding table
#   w0_ref     : VMEM (E+H, 4H)                layer-0 packed [W_ih^T; W_hh^T]
#   b0_ref     : VMEM (1, 4H)                  layer-0 b_ih + b_hh
#   w1_ref     : VMEM (2H, 4H)                 layer-1 packed [W_ih^T; W_hh^T]
#   b1_ref     : VMEM (1, 4H)                  layer-1 b_ih + b_hh
#   h0_ref     : VMEM (L, B, H)                initial hidden (torch.randn equiv)
#   c0_ref     : VMEM (L, B, H)                initial cell
#   wr_ref     : VMEM (2H, H)                  reducer weight (transposed)
#   br_ref     : VMEM (1, H)
#   wo_ref     : VMEM (2H, C)                  output weight (transposed)
#   bo_ref     : VMEM (1, C)
#   out_ref    : VMEM (B, C)                   log-probabilities
# Gate order follows PyTorch LSTM: i, f, g, o.
# ---------------------------------------------------------------------------
def fused_classifier_kernel(tokens_ref, emb_ref, w0_ref, b0_ref, w1_ref, b1_ref,
                            h0_ref, c0_ref, wr_ref, br_ref, wo_ref, bo_ref,
                            out_ref):
    H = HIDDEN_DIM
    T = SEQ_LEN
    B = BATCH

    # Hoist weight / bias loads out of the (unrolled) recurrent loop.
    w0 = w0_ref[...]
    b0 = b0_ref[...]
    w1 = w1_ref[...]
    b1 = b1_ref[...]

    def lstm_cell(xh, c_prev, w, b):
        # Single combined matmul: gates = [x, h] @ [W_ih^T; W_hh^T] + (b_ih+b_hh)
        gates = jnp.dot(xh, w, preferred_element_type=jnp.float32) + b
        i_g = _sigmoid(gates[:, 0:H])
        f_g = _sigmoid(gates[:, H:2 * H])
        g_g = jnp.tanh(gates[:, 2 * H:3 * H])
        o_g = _sigmoid(gates[:, 3 * H:4 * H])
        c_new = f_g * c_prev + i_g * g_g
        h_new = o_g * jnp.tanh(c_new)
        return h_new, c_new

    # Recurrent state stays in registers (loop fully unrolled, no scratch).
    h_l0 = h0_ref[0]
    c_l0 = c0_ref[0]
    h_l1 = h0_ref[1]
    c_l1 = c0_ref[1]

    last_layer_h = []
    for turn in range(NUM_TURNS):
        for t in range(T):
            # In-kernel embedding gather: one dynamic sublane slice per batch row.
            rows = []
            for bb in range(B):
                tok = tokens_ref[turn * T * B + t * B + bb]
                rows.append(emb_ref[pl.ds(tok, 1), :])       # (1, E)
            x_t = jnp.concatenate(rows, axis=0)              # (B, E)

            # Layer 0: input is [x_t, h_l0]
            h_l0, c_l0 = lstm_cell(
                jnp.concatenate([x_t, h_l0], axis=1), c_l0, w0, b0)
            # Layer 1: input is [h_l0, h_l1]
            h_l1, c_l1 = lstm_cell(
                jnp.concatenate([h_l0, h_l1], axis=1), c_l1, w1, b1)
        # hidden[0][1:] == last layer's hidden after this turn
        last_layer_h.append(h_l1)

    h1, h2, h3 = last_layer_h

    wr = wr_ref[...]
    wo = wo_ref[...]
    # reduce_1_2 = relu(cat(h1, h2) @ Wr^T + br)   (split matmul emulates concat)
    r = (jnp.dot(h1, wr[0:H, :], preferred_element_type=jnp.float32)
         + jnp.dot(h2, wr[H:2 * H, :], preferred_element_type=jnp.float32)
         + br_ref[...])
    r = jnp.maximum(r, 0.0)
    # logits = cat(reduce_1_2, h3) @ Wo^T + bo
    logits = (jnp.dot(r, wo[0:H, :], preferred_element_type=jnp.float32)
              + jnp.dot(h3, wo[H:2 * H, :], preferred_element_type=jnp.float32)
              + bo_ref[...])
    # log_softmax along classes
    m = jnp.max(logits, axis=1, keepdims=True)
    s = logits - m
    lse = jnp.log(jnp.sum(jnp.exp(s), axis=1, keepdims=True))
    out_ref[...] = s - lse


def classifier_forward(params, turn1, turn2, turn3, h0, c0):
    """turn*: (T, B) int32 tokens; h0, c0: (num_layers, B, H) float32."""
    tokens = jnp.stack([turn1, turn2, turn3]).reshape(-1).astype(jnp.int32)

    vmem = pl.BlockSpec(memory_space=pltpu.MemorySpace.VMEM)
    smem = pl.BlockSpec(memory_space=pltpu.MemorySpace.SMEM)

    return pl.pallas_call(
        fused_classifier_kernel,
        out_shape=jax.ShapeDtypeStruct((BATCH, OUTPUT_CLASSES), jnp.float32),
        in_specs=[smem] + [vmem] * 11,
        out_specs=vmem,
    )(tokens,
      params["embedding"],
      params["w0"], params["b0"],
      params["w1"], params["b1"],
      h0, c0,
      params["wr_t"], params["br"],
      params["wo_t"], params["bo"])


# ---------------------------------------------------------------------------
# Deterministic parameter construction.
# TODO(synk): original embedding is initialized from GloVe (src.vocab.vectors);
#             random init is used here since no external data is allowed.
# ---------------------------------------------------------------------------
def init_params(key):
    keys = jax.random.split(key, 16)
    ki = iter(keys)
    scale = 0.1
    params = {}
    params["embedding"] = scale * jax.random.normal(
        next(ki), (VOCAB_SIZE, EMBEDDING_DIM), jnp.float32)
    for layer in range(ENC_N_LAYERS):
        in_dim = EMBEDDING_DIM if layer == 0 else HIDDEN_DIM
        w_ih = scale * jax.random.normal(next(ki), (4 * HIDDEN_DIM, in_dim),
                                         jnp.float32)
        w_hh = scale * jax.random.normal(next(ki), (4 * HIDDEN_DIM, HIDDEN_DIM),
                                         jnp.float32)
        b_ih = scale * jax.random.normal(next(ki), (4 * HIDDEN_DIM,), jnp.float32)
        b_hh = scale * jax.random.normal(next(ki), (4 * HIDDEN_DIM,), jnp.float32)
        # Packed combined weight: [W_ih^T; W_hh^T]  -> (in_dim + H, 4H)
        params[f"w{layer}"] = jnp.concatenate([w_ih.T, w_hh.T], axis=0)
        params[f"b{layer}"] = (b_ih + b_hh)[None, :]          # (1, 4H)
    wr = scale * jax.random.normal(next(ki), (HIDDEN_DIM, 2 * HIDDEN_DIM),
                                   jnp.float32)
    br = scale * jax.random.normal(next(ki), (HIDDEN_DIM,), jnp.float32)
    wo = scale * jax.random.normal(next(ki), (OUTPUT_CLASSES, 2 * HIDDEN_DIM),
                                   jnp.float32)
    bo = scale * jax.random.normal(next(ki), (OUTPUT_CLASSES,), jnp.float32)
    params["wr_t"] = wr.T                                      # (2H, H)
    params["br"] = br[None, :]                                 # (1, H)
    params["wo_t"] = wo.T                                      # (2H, C)
    params["bo"] = bo[None, :]                                 # (1, C)
    return params


if __name__ == "__main__":
    key = jax.random.PRNGKey(0)
    k_params, k_t1, k_t2, k_t3, kh, kc = jax.random.split(key, 6)

    params = init_params(k_params)
    turn1 = jax.random.randint(k_t1, (SEQ_LEN, BATCH), 0, VOCAB_SIZE, jnp.int32)
    turn2 = jax.random.randint(k_t2, (SEQ_LEN, BATCH), 0, VOCAB_SIZE, jnp.int32)
    turn3 = jax.random.randint(k_t3, (SEQ_LEN, BATCH), 0, VOCAB_SIZE, jnp.int32)

    # encoder.initHidden uses torch.randn -> deterministic normal here.
    h0 = jax.random.normal(kh, (ENC_N_LAYERS, BATCH, HIDDEN_DIM), jnp.float32)
    c0 = jax.random.normal(kc, (ENC_N_LAYERS, BATCH, HIDDEN_DIM), jnp.float32)

    fwd = jax.jit(classifier_forward)
    result = fwd(params, turn1, turn2, turn3, h0, c0)
    result = jax.block_until_ready(result)

    assert result.shape == (BATCH, OUTPUT_CLASSES)
    # log_softmax rows should exponentiate-sum to ~1
    row_sums = jnp.sum(jnp.exp(result), axis=1)
    assert bool(jnp.all(jnp.abs(row_sums - 1.0) < 1e-4))
    print("KERNEL_OK")
</pallas_src>

<mosaic_0001>
module attributes {stable_mosaic.version = 11 : i64} {
  func.func @fused_classifier_kernel(%arg0: memref<48xi32, #tpu.memory_space<smem>>, %arg1: memref<50x16xf32, #tpu.memory_space<vmem>>, %arg2: memref<48x128xf32, #tpu.memory_space<vmem>>, %arg3: memref<1x128xf32, #tpu.memory_space<vmem>>, %arg4: memref<64x128xf32, #tpu.memory_space<vmem>>, %arg5: memref<1x128xf32, #tpu.memory_space<vmem>>, %arg6: memref<2x2x32xf32, #tpu.memory_space<vmem>>, %arg7: memref<2x2x32xf32, #tpu.memory_space<vmem>>, %arg8: memref<64x32xf32, #tpu.memory_space<vmem>>, %arg9: memref<1x32xf32, #tpu.memory_space<vmem>>, %arg10: memref<64x4xf32, #tpu.memory_space<vmem>>, %arg11: memref<1x4xf32, #tpu.memory_space<vmem>>, %arg12: memref<2x4xf32, #tpu.memory_space<vmem>>) attributes {dimension_semantics = [], scalar_prefetch = 0 : i64, scratch_operands = 0 : i64, tpu.core_type = #tpu.core_type<tc>} {
    %c0 = arith.constant 0 : index
    %c0_0 = arith.constant 0 : index
    %0 = vector.load %arg2[%c0, %c0_0] : memref<48x128xf32, #tpu.memory_space<vmem>>, vector<48x128xf32>
    %c0_1 = arith.constant 0 : index
    %c0_2 = arith.constant 0 : index
    %1 = vector.load %arg3[%c0_1, %c0_2] : memref<1x128xf32, #tpu.memory_space<vmem>>, vector<1x128xf32>
    %c0_3 = arith.constant 0 : index
    %c0_4 = arith.constant 0 : index
    %2 = vector.load %arg4[%c0_3, %c0_4] : memref<64x128xf32, #tpu.memory_space<vmem>>, vector<64x128xf32>
    %c0_5 = arith.constant 0 : index
    %c0_6 = arith.constant 0 : index
    %3 = vector.load %arg5[%c0_5, %c0_6] : memref<1x128xf32, #tpu.memory_space<vmem>>, vector<1x128xf32>
    %c0_7 = arith.constant 0 : index
    %c0_8 = arith.constant 0 : index
    %c0_9 = arith.constant 0 : index
    %4 = vector.load %arg6[%c0_7, %c0_8, %c0_9] : memref<2x2x32xf32, #tpu.memory_space<vmem>>, vector<1x2x32xf32>
    %5 = vector.shape_cast %4 : vector<1x2x32xf32> to vector<2x32xf32>
    %c0_10 = arith.constant 0 : index
    %c0_11 = arith.constant 0 : index
    %c0_12 = arith.constant 0 : index
    %6 = vector.load %arg7[%c0_10, %c0_11, %c0_12] : memref<2x2x32xf32, #tpu.memory_space<vmem>>, vector<1x2x32xf32>
    %7 = vector.shape_cast %6 : vector<1x2x32xf32> to vector<2x32xf32>
    %c1 = arith.constant 1 : index
    %c0_13 = arith.constant 0 : index
    %c0_14 = arith.constant 0 : index
    %8 = vector.load %arg6[%c1, %c0_13, %c0_14] : memref<2x2x32xf32, #tpu.memory_space<vmem>>, vector<1x2x32xf32>
    %9 = vector.shape_cast %8 : vector<1x2x32xf32> to vector<2x32xf32>
    %c1_15 = arith.constant 1 : index
    %c0_16 = arith.constant 0 : index
    %c0_17 = arith.constant 0 : index
    %10 = vector.load %arg7[%c1_15, %c0_16, %c0_17] : memref<2x2x32xf32, #tpu.memory_space<vmem>>, vector<1x2x32xf32>
    %11 = vector.shape_cast %10 : vector<1x2x32xf32> to vector<2x32xf32>
    %c0_18 = arith.constant 0 : index
    %12 = memref.load %arg0[%c0_18] : memref<48xi32, #tpu.memory_space<smem>>
    %13 = arith.index_cast %12 : i32 to index
    %c0_19 = arith.constant 0 : index
    %14 = vector.load %arg1[%13, %c0_19] : memref<50x16xf32, #tpu.memory_space<vmem>>, vector<1x16xf32>
    %c1_20 = arith.constant 1 : index
    %15 = memref.load %arg0[%c1_20] : memref<48xi32, #tpu.memory_space<smem>>
    %16 = arith.index_cast %15 : i32 to index
    %c0_21 = arith.constant 0 : index
    %17 = vector.load %arg1[%16, %c0_21] : memref<50x16xf32, #tpu.memory_space<vmem>>, vector<1x16xf32>
    %18 = tpu.concatenate %14, %17 in 0 : vector<1x16xf32>, vector<1x16xf32> -> vector<2x16xf32>
    %19 = tpu.concatenate %18, %5 in 1 : vector<2x16xf32>, vector<2x32xf32> -> vector<2x48xf32>
    %cst = arith.constant dense<0.000000e+00> : vector<2x128xf32>
    %20 = tpu.matmul %19, %0, %cst {dimension_numbers = #tpu.dot_dimension_numbers<[1], [0], [0], [1], [0, 0, 1, 1], [], []>} : vector<2x48xf32>, vector<48x128xf32>, vector<2x128xf32> -> vector<2x128xf32>
    %21 = vector.broadcast %1 : vector<1x128xf32> to vector<2x128xf32>
    %22 = arith.addf %20, %21 : vector<2x128xf32>
    %23 = vector.extract_strided_slice %22 {offsets = [0, 0], sizes = [2, 32], strides = [1, 1]} : vector<2x128xf32> to vector<2x32xf32>
    %cst_22 = arith.constant 5.000000e-01 : f32
    %24 = vector.broadcast %cst_22 : f32 to vector<2x32xf32>
    %25 = arith.mulf %24, %23 : vector<2x32xf32>
    %26 = math.tanh %25 : vector<2x32xf32>
    %cst_23 = arith.constant 5.000000e-01 : f32
    %27 = vector.broadcast %cst_23 : f32 to vector<2x32xf32>
    %28 = arith.mulf %27, %26 : vector<2x32xf32>
    %cst_24 = arith.constant 5.000000e-01 : f32
    %29 = vector.broadcast %cst_24 : f32 to vector<2x32xf32>
    %30 = arith.addf %28, %29 : vector<2x32xf32>
    %31 = vector.extract_strided_slice %22 {offsets = [0, 32], sizes = [2, 32], strides = [1, 1]} : vector<2x128xf32> to vector<2x32xf32>
    %cst_25 = arith.constant 5.000000e-01 : f32
    %32 = vector.broadcast %cst_25 : f32 to vector<2x32xf32>
    %33 = arith.mulf %32, %31 : vector<2x32xf32>
    %34 = math.tanh %33 : vector<2x32xf32>
    %cst_26 = arith.constant 5.000000e-01 : f32
    %35 = vector.broadcast %cst_26 : f32 to vector<2x32xf32>
    %36 = arith.mulf %35, %34 : vector<2x32xf32>
    %cst_27 = arith.constant 5.000000e-01 : f32
    %37 = vector.broadcast %cst_27 : f32 to vector<2x32xf32>
    %38 = arith.addf %36, %37 : vector<2x32xf32>
    %39 = vector.extract_strided_slice %22 {offsets = [0, 64], sizes = [2, 32], strides = [1, 1]} : vector<2x128xf32> to vector<2x32xf32>
    %40 = math.tanh %39 : vector<2x32xf32>
    %41 = vector.extract_strided_slice %22 {offsets = [0, 96], sizes = [2, 32], strides = [1, 1]} : vector<2x128xf32> to vector<2x32xf32>
    %cst_28 = arith.constant 5.000000e-01 : f32
    %42 = vector.broadcast %cst_28 : f32 to vector<2x32xf32>
    %43 = arith.mulf %42, %41 : vector<2x32xf32>
    %44 = math.tanh %43 : vector<2x32xf32>
    %cst_29 = arith.constant 5.000000e-01 : f32
    %45 = vector.broadcast %cst_29 : f32 to vector<2x32xf32>
    %46 = arith.mulf %45, %44 : vector<2x32xf32>
    %cst_30 = arith.constant 5.000000e-01 : f32
    %47 = vector.broadcast %cst_30 : f32 to vector<2x32xf32>
    %48 = arith.addf %46, %47 : vector<2x32xf32>
    %49 = arith.mulf %38, %7 : vector<2x32xf32>
    %50 = arith.mulf %30, %40 : vector<2x32xf32>
    %51 = arith.addf %49, %50 : vector<2x32xf32>
    %52 = math.tanh %51 : vector<2x32xf32>
    %53 = arith.mulf %48, %52 : vector<2x32xf32>
    %54 = tpu.concatenate %53, %9 in 1 : vector<2x32xf32>, vector<2x32xf32> -> vector<2x64xf32>
    %cst_31 = arith.constant dense<0.000000e+00> : vector<2x128xf32>
    %55 = tpu.matmul %54, %2, %cst_31 {dimension_numbers = #tpu.dot_dimension_numbers<[1], [0], [0], [1], [0, 0, 1, 1], [], []>} : vector<2x64xf32>, vector<64x128xf32>, vector<2x128xf32> -> vector<2x128xf32>
    %56 = vector.broadcast %3 : vector<1x128xf32> to vector<2x128xf32>
    %57 = arith.addf %55, %56 : vector<2x128xf32>
    %58 = vector.extract_strided_slice %57 {offsets = [0, 0], sizes = [2, 32], strides = [1, 1]} : vector<2x128xf32> to vector<2x32xf32>
    %cst_32 = arith.constant 5.000000e-01 : f32
    %59 = vector.broadcast %cst_32 : f32 to vector<2x32xf32>
    %60 = arith.mulf %59, %58 : vector<2x32xf32>
    %61 = math.tanh %60 : vector<2x32xf32>
    %cst_33 = arith.constant 5.000000e-01 : f32
    %62 = vector.broadcast %cst_33 : f32 to vector<2x32xf32>
    %63 = arith.mulf %62, %61 : vector<2x32xf32>
    %cst_34 = arith.constant 5.000000e-01 : f32
    %64 = vector.broadcast %cst_34 : f32 to vector<2x32xf32>
    %65 = arith.addf %63, %64 : vector<2x32xf32>
    %66 = vector.extract_strided_slice %57 {offsets = [0, 32], sizes = [2, 32], strides = [1, 1]} : vector<2x128xf32> to vector<2x32xf32>
    %cst_35 = arith.constant 5.000000e-01 : f32
    %67 = vector.broadcast %cst_35 : f32 to vector<2x32xf32>
    %68 = arith.mulf %67, %66 : vector<2x32xf32>
    %69 = math.tanh %68 : vector<2x32xf32>
    %cst_36 = arith.constant 5.000000e-01 : f32
    %70 = vector.broadcast %cst_36 : f32 to vector<2x32xf32>
    %71 = arith.mulf %70, %69 : vector<2x32xf32>
    %cst_37 = arith.constant 5.000000e-01 : f32
    %72 = vector.broadcast %cst_37 : f32 to vector<2x32xf32>
    %73 = arith.addf %71, %72 : vector<2x32xf32>
    %74 = vector.extract_strided_slice %57 {offsets = [0, 64], sizes = [2, 32], strides = [1, 1]} : vector<2x128xf32> to vector<2x32xf32>
    %75 = math.tanh %74 : vector<2x32xf32>
    %76 = vector.extract_strided_slice %57 {offsets = [0, 96], sizes = [2, 32], strides = [1, 1]} : vector<2x128xf32> to vector<2x32xf32>
    %cst_38 = arith.constant 5.000000e-01 : f32
    %77 = vector.broadcast %cst_38 : f32 to vector<2x32xf32>
    %78 = arith.mulf %77, %76 : vector<2x32xf32>
    %79 = math.tanh %78 : vector<2x32xf32>
    %cst_39 = arith.constant 5.000000e-01 : f32
    %80 = vector.broadcast %cst_39 : f32 to vector<2x32xf32>
    %81 = arith.mulf %80, %79 : vector<2x32xf32>
    %cst_40 = arith.constant 5.000000e-01 : f32
    %82 = vector.broadcast %cst_40 : f32 to vector<2x32xf32>
    %83 = arith.addf %81, %82 : vector<2x32xf32>
    %84 = arith.mulf %73, %11 : vector<2x32xf32>
    %85 = arith.mulf %65, %75 : vector<2x32xf32>
    %86 = arith.addf %84, %85 : vector<2x32xf32>
    %87 = math.tanh %86 : vector<2x32xf32>
    %88 = arith.mulf %83, %87 : vector<2x32xf32>
    %c2 = arith.constant 2 : index
    %89 = memref.load %arg0[%c2] : memref<48xi32, #tpu.memory_space<smem>>
    %90 = arith.index_cast %89 : i32 to index
    %c0_41 = arith.constant 0 : index
    %91 = vector.load %arg1[%90, %c0_41] : memref<50x16xf32, #tpu.memory_space<vmem>>, vector<1x16xf32>
    %c3 = arith.constant 3 : index
    %92 = memref.load %arg0[%c3] : memref<48xi32, #tpu.memory_space<smem>>
    %93 = arith.index_cast %92 : i32 to index
    %c0_42 = arith.constant 0 : index
    %94 = vector.load %arg1[%93, %c0_42] : memref<50x16xf32, #tpu.memory_space<vmem>>, vector<1x16xf32>
    %95 = tpu.concatenate %91, %94 in 0 : vector<1x16xf32>, vector<1x16xf32> -> vector<2x16xf32>
    %96 = tpu.concatenate %95, %53 in 1 : vector<2x16xf32>, vector<2x32xf32> -> vector<2x48xf32>
    %cst_43 = arith.constant dense<0.000000e+00> : vector<2x128xf32>
    %97 = tpu.matmul %96, %0, %cst_43 {dimension_numbers = #tpu.dot_dimension_numbers<[1], [0], [0], [1], [0, 0, 1, 1], [], []>} : vector<2x48xf32>, vector<48x128xf32>, vector<2x128xf32> -> vector<2x128xf32>
    %98 = vector.broadcast %1 : vector<1x128xf32> to vector<2x128xf32>
    %99 = arith.addf %97, %98 : vector<2x128xf32>
    %100 = vector.extract_strided_slice %99 {offsets = [0, 0], sizes = [2, 32], strides = [1, 1]} : vector<2x128xf32> to vector<2x32xf32>
    %cst_44 = arith.constant 5.000000e-01 : f32
    %101 = vector.broadcast %cst_44 : f32 to vector<2x32xf32>
    %102 = arith.mulf %101, %100 : vector<2x32xf32>
    %103 = math.tanh %102 : vector<2x32xf32>
    %cst_45 = arith.constant 5.000000e-01 : f32
    %104 = vector.broadcast %cst_45 : f32 to vector<2x32xf32>
    %105 = arith.mulf %104, %103 : vector<2x32xf32>
    %cst_46 = arith.constant 5.000000e-01 : f32
    %106 = vector.broadcast %cst_46 : f32 to vector<2x32xf32>
    %107 = arith.addf %105, %106 : vector<2x32xf32>
    %108 = vector.extract_strided_slice %99 {offsets = [0, 32], sizes = [2, 32], strides = [1, 1]} : vector<2x128xf32> to vector<2x32xf32>
    %cst_47 = arith.constant 5.000000e-01 : f32
    %109 = vector.broadcast %cst_47 : f32 to vector<2x32xf32>
    %110 = arith.mulf %109, %108 : vector<2x32xf32>
    %111 = math.tanh %110 : vector<2x32xf32>
    %cst_48 = arith.constant 5.000000e-01 : f32
    %112 = vector.broadcast %cst_48 : f32 to vector<2x32xf32>
    %113 = arith.mulf %112, %111 : vector<2x32xf32>
    %cst_49 = arith.constant 5.000000e-01 : f32
    %114 = vector.broadcast %cst_49 : f32 to vector<2x32xf32>
    %115 = arith.addf %113, %114 : vector<2x32xf32>
    %116 = vector.extract_strided_slice %99 {offsets = [0, 64], sizes = [2, 32], strides = [1, 1]} : vector<2x128xf32> to vector<2x32xf32>
    %117 = math.tanh %116 : vector<2x32xf32>
    %118 = vector.extract_strided_slice %99 {offsets = [0, 96], sizes = [2, 32], strides = [1, 1]} : vector<2x128xf32> to vector<2x32xf32>
    %cst_50 = arith.constant 5.000000e-01 : f32
    %119 = vector.broadcast %cst_50 : f32 to vector<2x32xf32>
    %120 = arith.mulf %119, %118 : vector<2x32xf32>
    %121 = math.tanh %120 : vector<2x32xf32>
    %cst_51 = arith.constant 5.000000e-01 : f32
    %122 = vector.broadcast %cst_51 : f32 to vector<2x32xf32>
    %123 = arith.mulf %122, %121 : vector<2x32xf32>
    %cst_52 = arith.constant 5.000000e-01 : f32
    %124 = vector.broadcast %cst_52 : f32 to vector<2x32xf32>
    %125 = arith.addf %123, %124 : vector<2x32xf32>
    %126 = arith.mulf %115, %51 : vector<2x32xf32>
    %127 = arith.mulf %107, %117 : vector<2x32xf32>
    %128 = arith.addf %126, %127 : vector<2x32xf32>
    %129 = math.tanh %128 : vector<2x32xf32>
    %130 = arith.mulf %125, %129 : vector<2x32xf32>
    %131 = tpu.concatenate %130, %88 in 1 : vector<2x32xf32>, vector<2x32xf32> -> vector<2x64xf32>
    %cst_53 = arith.constant dense<0.000000e+00> : vector<2x128xf32>
    %132 = tpu.matmul %131, %2, %cst_53 {dimension_numbers = #tpu.dot_dimension_numbers<[1], [0], [0], [1], [0, 0, 1, 1], [], []>} : vector<2x64xf32>, vector<64x128xf32>, vector<2x128xf32> -> vector<2x128xf32>
    %133 = vector.broadcast %3 : vector<1x128xf32> to vector<2x128xf32>
    %134 = arith.addf %132, %133 : vector<2x128xf32>
    %135 = vector.extract_strided_slice %134 {offsets = [0, 0], sizes = [2, 32], strides = [1, 1]} : vector<2x128xf32> to vector<2x32xf32>
    %cst_54 = arith.constant 5.000000e-01 : f32
    %136 = vector.broadcast %cst_54 : f32 to vector<2x32xf32>
    %137 = arith.mulf %136, %135 : vector<2x32xf32>
    %138 = math.tanh %137 : vector<2x32xf32>
    %cst_55 = arith.constant 5.000000e-01 : f32
    %139 = vector.broadcast %cst_55 : f32 to vector<2x32xf32>
    %140 = arith.mulf %139, %138 : vector<2x32xf32>
    %cst_56 = arith.constant 5.000000e-01 : f32
    %141 = vector.broadcast %cst_56 : f32 to vector<2x32xf32>
    %142 = arith.addf %140, %141 : vector<2x32xf32>
    %143 = vector.extract_strided_slice %134 {offsets = [0, 32], sizes = [2, 32], strides = [1, 1]} : vector<2x128xf32> to vector<2x32xf32>
    %cst_57 = arith.constant 5.000000e-01 : f32
    %144 = vector.broadcast %cst_57 : f32 to vector<2x32xf32>
    %145 = arith.mulf %144, %143 : vector<2x32xf32>
    %146 = math.tanh %145 : vector<2x32xf32>
    %cst_58 = arith.constant 5.000000e-01 : f32
    %147 = vector.broadcast %cst_58 : f32 to vector<2x32xf32>
    %148 = arith.mulf %147, %146 : vector<2x32xf32>
    %cst_59 = arith.constant 5.000000e-01 : f32
    %149 = vector.broadcast %cst_59 : f32 to vector<2x32xf32>
    %150 = arith.addf %148, %149 : vector<2x32xf32>
    %151 = vector.extract_strided_slice %134 {offsets = [0, 64], sizes = [2, 32], strides = [1, 1]} : vector<2x128xf32> to vector<2x32xf32>
    %152 = math.tanh %151 : vector<2x32xf32>
    %153 = vector.extract_strided_slice %134 {offsets = [0, 96], sizes = [2, 32], strides = [1, 1]} : vector<2x128xf32> to vector<2x32xf32>
    %cst_60 = arith.constant 5.000000e-01 : f32
    %154 = vector.broadcast %cst_60 : f32 to vector<2x32xf32>
    %155 = arith.mulf %154, %153 : vector<2x32xf32>
    %156 = math.tanh %155 : vector<2x32xf32>
    %cst_61 = arith.constant 5.000000e-01 : f32
    %157 = vector.broadcast %cst_61 : f32 to vector<2x32xf32>
    %158 = arith.mulf %157, %156 : vector<2x32xf32>
    %cst_62 = arith.constant 5.000000e-01 : f32
    %159 = vector.broadcast %cst_62 : f32 to vector<2x32xf32>
    %160 = arith.addf %158, %159 : vector<2x32xf32>
    %161 = arith.mulf %150, %86 : vector<2x32xf32>
    %162 = arith.mulf %142, %152 : vector<2x32xf32>
    %163 = arith.addf %161, %162 : vector<2x32xf32>
    %164 = math.tanh %163 : vector<2x32xf32>
    %165 = arith.mulf %160, %164 : vector<2x32xf32>
    %c4 = arith.constant 4 : index
    %166 = memref.load %arg0[%c4] : memref<48xi32, #tpu.memory_space<smem>>
    %167 = arith.index_cast %166 : i32 to index
    %c0_63 = arith.constant 0 : index
    %168 = vector.load %arg1[%167, %c0_63] : memref<50x16xf32, #tpu.memory_space<vmem>>, vector<1x16xf32>
    %c5 = arith.constant 5 : index
    %169 = memref.load %arg0[%c5] : memref<48xi32, #tpu.memory_space<smem>>
    %170 = arith.index_cast %169 : i32 to index
    %c0_64 = arith.constant 0 : index
    %171 = vector.load %arg1[%170, %c0_64] : memref<50x16xf32, #tpu.memory_space<vmem>>, vector<1x16xf32>
    %172 = tpu.concatenate %168, %171 in 0 : vector<1x16xf32>, vector<1x16xf32> -> vector<2x16xf32>
    %173 = tpu.concatenate %172, %130 in 1 : vector<2x16xf32>, vector<2x32xf32> -> vector<2x48xf32>
    %cst_65 = arith.constant dense<0.000000e+00> : vector<2x128xf32>
    %174 = tpu.matmul %173, %0, %cst_65 {dimension_numbers = #tpu.dot_dimension_numbers<[1], [0], [0], [1], [0, 0, 1, 1], [], []>} : vector<2x48xf32>, vector<48x128xf32>, vector<2x128xf32> -> vector<2x128xf32>
    %175 = vector.broadcast %1 : vector<1x128xf32> to vector<2x128xf32>
    %176 = arith.addf %174, %175 : vector<2x128xf32>
    %177 = vector.extract_strided_slice %176 {offsets = [0, 0], sizes = [2, 32], strides = [1, 1]} : vector<2x128xf32> to vector<2x32xf32>
    %cst_66 = arith.constant 5.000000e-01 : f32
    %178 = vector.broadcast %cst_66 : f32 to vector<2x32xf32>
    %179 = arith.mulf %178, %177 : vector<2x32xf32>
    %180 = math.tanh %179 : vector<2x32xf32>
    %cst_67 = arith.constant 5.000000e-01 : f32
    %181 = vector.broadcast %cst_67 : f32 to vector<2x32xf32>
    %182 = arith.mulf %181, %180 : vector<2x32xf32>
    %cst_68 = arith.constant 5.000000e-01 : f32
    %183 = vector.broadcast %cst_68 : f32 to vector<2x32xf32>
    %184 = arith.addf %182, %183 : vector<2x32xf32>
    %185 = vector.extract_strided_slice %176 {offsets = [0, 32], sizes = [2, 32], strides = [1, 1]} : vector<2x128xf32> to vector<2x32xf32>
    %cst_69 = arith.constant 5.000000e-01 : f32
    %186 = vector.broadcast %cst_69 : f32 to vector<2x32xf32>
    %187 = arith.mulf %186, %185 : vector<2x32xf32>
    %188 = math.tanh %187 : vector<2x32xf32>
    %cst_70 = arith.constant 5.000000e-01 : f32
    %189 = vector.broadcast %cst_70 : f32 to vector<2x32xf32>
    %190 = arith.mulf %189, %188 : vector<2x32xf32>
    %cst_71 = arith.constant 5.000000e-01 : f32
    %191 = vector.broadcast %cst_71 : f32 to vector<2x32xf32>
    %192 = arith.addf %190, %191 : vector<2x32xf32>
    %193 = vector.extract_strided_slice %176 {offsets = [0, 64], sizes = [2, 32], strides = [1, 1]} : vector<2x128xf32> to vector<2x32xf32>
    %194 = math.tanh %193 : vector<2x32xf32>
    %195 = vector.extract_strided_slice %176 {offsets = [0, 96], sizes = [2, 32], strides = [1, 1]} : vector<2x128xf32> to vector<2x32xf32>
    %cst_72 = arith.constant 5.000000e-01 : f32
    %196 = vector.broadcast %cst_72 : f32 to vector<2x32xf32>
    %197 = arith.mulf %196, %195 : vector<2x32xf32>
    %198 = math.tanh %197 : vector<2x32xf32>
    %cst_73 = arith.constant 5.000000e-01 : f32
    %199 = vector.broadcast %cst_73 : f32 to vector<2x32xf32>
    %200 = arith.mulf %199, %198 : vector<2x32xf32>
    %cst_74 = arith.constant 5.000000e-01 : f32
    %201 = vector.broadcast %cst_74 : f32 to vector<2x32xf32>
    %202 = arith.addf %200, %201 : vector<2x32xf32>
    %203 = arith.mulf %192, %128 : vector<2x32xf32>
    %204 = arith.mulf %184, %194 : vector<2x32xf32>
    %205 = arith.addf %203, %204 : vector<2x32xf32>
    %206 = math.tanh %205 : vector<2x32xf32>
    %207 = arith.mulf %202, %206 : vector<2x32xf32>
    %208 = tpu.concatenate %207, %165 in 1 : vector<2x32xf32>, vector<2x32xf32> -> vector<2x64xf32>
    %cst_75 = arith.constant dense<0.000000e+00> : vector<2x128xf32>
    %209 = tpu.matmul %208, %2, %cst_75 {dimension_numbers = #tpu.dot_dimension_numbers<[1], [0], [0], [1], [0, 0, 1, 1], [], []>} : vector<2x64xf32>, vector<64x128xf32>, vector<2x128xf32> -> vector<2x128xf32>
    %210 = vector.broadcast %3 : vector<1x128xf32> to vector<2x128xf32>
    %211 = arith.addf %209, %210 : vector<2x128xf32>
    %212 = vector.extract_strided_slice %211 {offsets = [0, 0], sizes = [2, 32], strides = [1, 1]} : vector<2x128xf32> to vector<2x32xf32>
    %cst_76 = arith.constant 5.000000e-01 : f32
    %213 = vector.broadcast %cst_76 : f32 to vector<2x32xf32>
    %214 = arith.mulf %213, %212 : vector<2x32xf32>
    %215 = math.tanh %214 : vector<2x32xf32>
    %cst_77 = arith.constant 5.000000e-01 : f32
    %216 = vector.broadcast %cst_77 : f32 to vector<2x32xf32>
    %217 = arith.mulf %216, %215 : vector<2x32xf32>
    %cst_78 = arith.constant 5.000000e-01 : f32
    %218 = vector.broadcast %cst_78 : f32 to vector<2x32xf32>
    %219 = arith.addf %217, %218 : vector<2x32xf32>
    %220 = vector.extract_strided_slice %211 {offsets = [0, 32], sizes = [2, 32], strides = [1, 1]} : vector<2x128xf32> to vector<2x32xf32>
    %cst_79 = arith.constant 5.000000e-01 : f32
    %221 = vector.broadcast %cst_79 : f32 to vector<2x32xf32>
    %222 = arith.mulf %221, %220 : vector<2x32xf32>
    %223 = math.tanh %222 : vector<2x32xf32>
    %cst_80 = arith.constant 5.000000e-01 : f32
    %224 = vector.broadcast %cst_80 : f32 to vector<2x32xf32>
    %225 = arith.mulf %224, %223 : vector<2x32xf32>
    %cst_81 = arith.constant 5.000000e-01 : f32
    %226 = vector.broadcast %cst_81 : f32 to vector<2x32xf32>
    %227 = arith.addf %225, %226 : vector<2x32xf32>
    %228 = vector.extract_strided_slice %211 {offsets = [0, 64], sizes = [2, 32], strides = [1, 1]} : vector<2x128xf32> to vector<2x32xf32>
    %229 = math.tanh %228 : vector<2x32xf32>
    %230 = vector.extract_strided_slice %211 {offsets = [0, 96], sizes = [2, 32], strides = [1, 1]} : vector<2x128xf32> to vector<2x32xf32>
    %cst_82 = arith.constant 5.000000e-01 : f32
    %231 = vector.broadcast %cst_82 : f32 to vector<2x32xf32>
    %232 = arith.mulf %231, %230 : vector<2x32xf32>
    %233 = math.tanh %232 : vector<2x32xf32>
    %cst_83 = arith.constant 5.000000e-01 : f32
    %234 = vector.broadcast %cst_83 : f32 to vector<2x32xf32>
    %235 = arith.mulf %234, %233 : vector<2x32xf32>
    %cst_84 = arith.constant 5.000000e-01 : f32
    %236 = vector.broadcast %cst_84 : f32 to vector<2x32xf32>
    %237 = arith.addf %235, %236 : vector<2x32xf32>
    %238 = arith.mulf %227, %163 : vector<2x32xf32>
    %239 = arith.mulf %219, %229 : vector<2x32xf32>
    %240 = arith.addf %238, %239 : vector<2x32xf32>
    %241 = math.tanh %240 : vector<2x32xf32>
    %242 = arith.mulf %237, %241 : vector<2x32xf32>
    %c6 = arith.constant 6 : index
    %243 = memref.load %arg0[%c6] : memref<48xi32, #tpu.memory_space<smem>>
    %244 = arith.index_cast %243 : i32 to index
    %c0_85 = arith.constant 0 : index
    %245 = vector.load %arg1[%244, %c0_85] : memref<50x16xf32, #tpu.memory_space<vmem>>, vector<1x16xf32>
    %c7 = arith.constant 7 : index
    %246 = memref.load %arg0[%c7] : memref<48xi32, #tpu.memory_space<smem>>
    %247 = arith.index_cast %246 : i32 to index
    %c0_86 = arith.constant 0 : index
    %248 = vector.load %arg1[%247, %c0_86] : memref<50x16xf32, #tpu.memory_space<vmem>>, vector<1x16xf32>
    %249 = tpu.concatenate %245, %248 in 0 : vector<1x16xf32>, vector<1x16xf32> -> vector<2x16xf32>
    %250 = tpu.concatenate %249, %207 in 1 : vector<2x16xf32>, vector<2x32xf32> -> vector<2x48xf32>
    %cst_87 = arith.constant dense<0.000000e+00> : vector<2x128xf32>
    %251 = tpu.matmul %250, %0, %cst_87 {dimension_numbers = #tpu.dot_dimension_numbers<[1], [0], [0], [1], [0, 0, 1, 1], [], []>} : vector<2x48xf32>, vector<48x128xf32>, vector<2x128xf32> -> vector<2x128xf32>
    %252 = vector.broadcast %1 : vector<1x128xf32> to vector<2x128xf32>
    %253 = arith.addf %251, %252 : vector<2x128xf32>
    %254 = vector.extract_strided_slice %253 {offsets = [0, 0], sizes = [2, 32], strides = [1, 1]} : vector<2x128xf32> to vector<2x32xf32>
    %cst_88 = arith.constant 5.000000e-01 : f32
    %255 = vector.broadcast %cst_88 : f32 to vector<2x32xf32>
    %256 = arith.mulf %255, %254 : vector<2x32xf32>
    %257 = math.tanh %256 : vector<2x32xf32>
    %cst_89 = arith.constant 5.000000e-01 : f32
    %258 = vector.broadcast %cst_89 : f32 to vector<2x32xf32>
    %259 = arith.mulf %258, %257 : vector<2x32xf32>
    %cst_90 = arith.constant 5.000000e-01 : f32
    %260 = vector.broadcast %cst_90 : f32 to vector<2x32xf32>
    %261 = arith.addf %259, %260 : vector<2x32xf32>
    %262 = vector.extract_strided_slice %253 {offsets = [0, 32], sizes = [2, 32], strides = [1, 1]} : vector<2x128xf32> to vector<2x32xf32>
    %cst_91 = arith.constant 5.000000e-01 : f32
    %263 = vector.broadcast %cst_91 : f32 to vector<2x32xf32>
    %264 = arith.mulf %263, %262 : vector<2x32xf32>
    %265 = math.tanh %264 : vector<2x32xf32>
    %cst_92 = arith.constant 5.000000e-01 : f32
    %266 = vector.broadcast %cst_92 : f32 to vector<2x32xf32>
    %267 = arith.mulf %266, %265 : vector<2x32xf32>
    %cst_93 = arith.constant 5.000000e-01 : f32
    %268 = vector.broadcast %cst_93 : f32 to vector<2x32xf32>
    %269 = arith.addf %267, %268 : vector<2x32xf32>
    %270 = vector.extract_strided_slice %253 {offsets = [0, 64], sizes = [2, 32], strides = [1, 1]} : vector<2x128xf32> to vector<2x32xf32>
    %271 = math.tanh %270 : vector<2x32xf32>
    %272 = vector.extract_strided_slice %253 {offsets = [0, 96], sizes = [2, 32], strides = [1, 1]} : vector<2x128xf32> to vector<2x32xf32>
    %cst_94 = arith.constant 5.000000e-01 : f32
    %273 = vector.broadcast %cst_94 : f32 to vector<2x32xf32>
    %274 = arith.mulf %273, %272 : vector<2x32xf32>
    %275 = math.tanh %274 : vector<2x32xf32>
    %cst_95 = arith.constant 5.000000e-01 : f32
    %276 = vector.broadcast %cst_95 : f32 to vector<2x32xf32>
    %277 = arith.mulf %276, %275 : vector<2x32xf32>
    %cst_96 = arith.constant 5.000000e-01 : f32
    %278 = vector.broadcast %cst_96 : f32 to vector<2x32xf32>
    %279 = arith.addf %277, %278 : vector<2x32xf32>
    %280 = arith.mulf %269, %205 : vector<2x32xf32>
    %281 = arith.mulf %261, %271 : vector<2x32xf32>
    %282 = arith.addf %280, %281 : vector<2x32xf32>
    %283 = math.tanh %282 : vector<2x32xf32>
    %284 = arith.mulf %279, %283 : vector<2x32xf32>
    %285 = tpu.concatenate %284, %242 in 1 : vector<2x32xf32>, vector<2x32xf32> -> vector<2x64xf32>
    %cst_97 = arith.constant dense<0.000000e+00> : vector<2x128xf32>
    %286 = tpu.matmul %285, %2, %cst_97 {dimension_numbers = #tpu.dot_dimension_numbers<[1], [0], [0], [1], [0, 0, 1, 1], [], []>} : vector<2x64xf32>, vector<64x128xf32>, vector<2x128xf32> -> vector<2x128xf32>
    %287 = vector.broadcast %3 : vector<1x128xf32> to vector<2x128xf32>
    %288 = arith.addf %286, %287 : vector<2x128xf32>
    %289 = vector.extract_strided_slice %288 {offsets = [0, 0], sizes = [2, 32], strides = [1, 1]} : vector<2x128xf32> to vector<2x32xf32>
    %cst_98 = arith.constant 5.000000e-01 : f32
    %290 = vector.broadcast %cst_98 : f32 to vector<2x32xf32>
    %291 = arith.mulf %290, %289 : vector<2x32xf32>
    %292 = math.tanh %291 : vector<2x32xf32>
    %cst_99 = arith.constant 5.000000e-01 : f32
    %293 = vector.broadcast %cst_99 : f32 to vector<2x32xf32>
    %294 = arith.mulf %293, %292 : vector<2x32xf32>
    %cst_100 = arith.constant 5.000000e-01 : f32
    %295 = vector.broadcast %cst_100 : f32 to vector<2x32xf32>
    %296 = arith.addf %294, %295 : vector<2x32xf32>
    %297 = vector.extract_strided_slice %288 {offsets = [0, 32], sizes = [2, 32], strides = [1, 1]} : vector<2x128xf32> to vector<2x32xf32>
    %cst_101 = arith.constant 5.000000e-01 : f32
    %298 = vector.broadcast %cst_101 : f32 to vector<2x32xf32>
    %299 = arith.mulf %298, %297 : vector<2x32xf32>
    %300 = math.tanh %299 : vector<2x32xf32>
    %cst_102 = arith.constant 5.000000e-01 : f32
    %301 = vector.broadcast %cst_102 : f32 to vector<2x32xf32>
    %302 = arith.mulf %301, %300 : vector<2x32xf32>
    %cst_103 = arith.constant 5.000000e-01 : f32
    %303 = vector.broadcast %cst_103 : f32 to vector<2x32xf32>
    %304 = arith.addf %302, %303 : vector<2x32xf32>
    %305 = vector.extract_strided_slice %288 {offsets = [0, 64], sizes = [2, 32], strides = [1, 1]} : vector<2x128xf32> to vector<2x32xf32>
    %306 = math.tanh %305 : vector<2x32xf32>
    %307 = vector.extract_strided_slice %288 {offsets = [0, 96], sizes = [2, 32], strides = [1, 1]} : vector<2x128xf32> to vector<2x32xf32>
    %cst_104 = arith.constant 5.000000e-01 : f32
    %308 = vector.broadcast %cst_104 : f32 to vector<2x32xf32>
    %309 = arith.mulf %308, %307 : vector<2x32xf32>
    %310 = math.tanh %309 : vector<2x32xf32>
    %cst_105 = arith.constant 5.000000e-01 : f32
    %311 = vector.broadcast %cst_105 : f32 to vector<2x32xf32>
    %312 = arith.mulf %311, %310 : vector<2x32xf32>
    %cst_106 = arith.constant 5.000000e-01 : f32
    %313 = vector.broadcast %cst_106 : f32 to vector<2x32xf32>
    %314 = arith.addf %312, %313 : vector<2x32xf32>
    %315 = arith.mulf %304, %240 : vector<2x32xf32>
    %316 = arith.mulf %296, %306 : vector<2x32xf32>
    %317 = arith.addf %315, %316 : vector<2x32xf32>
    %318 = math.tanh %317 : vector<2x32xf32>
    %319 = arith.mulf %314, %318 : vector<2x32xf32>
    %c8 = arith.constant 8 : index
    %320 = memref.load %arg0[%c8] : memref<48xi32, #tpu.memory_space<smem>>
    %321 = arith.index_cast %320 : i32 to index
    %c0_107 = arith.constant 0 : index
    %322 = vector.load %arg1[%321, %c0_107] : memref<50x16xf32, #tpu.memory_space<vmem>>, vector<1x16xf32>
    %c9 = arith.constant 9 : index
    %323 = memref.load %arg0[%c9] : memref<48xi32, #tpu.memory_space<smem>>
    %324 = arith.index_cast %323 : i32 to index
    %c0_108 = arith.constant 0 : index
    %325 = vector.load %arg1[%324, %c0_108] : memref<50x16xf32, #tpu.memory_space<vmem>>, vector<1x16xf32>
    %326 = tpu.concatenate %322, %325 in 0 : vector<1x16xf32>, vector<1x16xf32> -> vector<2x16xf32>
    %327 = tpu.concatenate %326, %284 in 1 : vector<2x16xf32>, vector<2x32xf32> -> vector<2x48xf32>
    %cst_109 = arith.constant dense<0.000000e+00> : vector<2x128xf32>
    %328 = tpu.matmul %327, %0, %cst_109 {dimension_numbers = #tpu.dot_dimension_numbers<[1], [0], [0], [1], [0, 0, 1, 1], [], []>} : vector<2x48xf32>, vector<48x128xf32>, vector<2x128xf32> -> vector<2x128xf32>
    %329 = vector.broadcast %1 : vector<1x128xf32> to vector<2x128xf32>
    %330 = arith.addf %328, %329 : vector<2x128xf32>
    %331 = vector.extract_strided_slice %330 {offsets = [0, 0], sizes = [2, 32], strides = [1, 1]} : vector<2x128xf32> to vector<2x32xf32>
    %cst_110 = arith.constant 5.000000e-01 : f32
    %332 = vector.broadcast %cst_110 : f32 to vector<2x32xf32>
    %333 = arith.mulf %332, %331 : vector<2x32xf32>
    %334 = math.tanh %333 : vector<2x32xf32>
    %cst_111 = arith.constant 5.000000e-01 : f32
    %335 = vector.broadcast %cst_111 : f32 to vector<2x32xf32>
    %336 = arith.mulf %335, %334 : vector<2x32xf32>
    %cst_112 = arith.constant 5.000000e-01 : f32
    %337 = vector.broadcast %cst_112 : f32 to vector<2x32xf32>
    %338 = arith.addf %336, %337 : vector<2x32xf32>
    %339 = vector.extract_strided_slice %330 {offsets = [0, 32], sizes = [2, 32], strides = [1, 1]} : vector<2x128xf32> to vector<2x32xf32>
    %cst_113 = arith.constant 5.000000e-01 : f32
    %340 = vector.broadcast %cst_113 : f32 to vector<2x32xf32>
    %341 = arith.mulf %340, %339 : vector<2x32xf32>
    %342 = math.tanh %341 : vector<2x32xf32>
    %cst_114 = arith.constant 5.000000e-01 : f32
    %343 = vector.broadcast %cst_114 : f32 to vector<2x32xf32>
    %344 = arith.mulf %343, %342 : vector<2x32xf32>
    %cst_115 = arith.constant 5.000000e-01 : f32
    %345 = vector.broadcast %cst_115 : f32 to vector<2x32xf32>
    %346 = arith.addf %344, %345 : vector<2x32xf32>
    %347 = vector.extract_strided_slice %330 {offsets = [0, 64], sizes = [2, 32], strides = [1, 1]} : vector<2x128xf32> to vector<2x32xf32>
    %348 = math.tanh %347 : vector<2x32xf32>
    %349 = vector.extract_strided_slice %330 {offsets = [0, 96], sizes = [2, 32], strides = [1, 1]} : vector<2x128xf32> to vector<2x32xf32>
    %cst_116 = arith.constant 5.000000e-01 : f32
    %350 = vector.broadcast %cst_116 : f32 to vector<2x32xf32>
    %351 = arith.mulf %350, %349 : vector<2x32xf32>
    %352 = math.tanh %351 : vector<2x32xf32>
    %cst_117 = arith.constant 5.000000e-01 : f32
    %353 = vector.broadcast %cst_117 : f32 to vector<2x32xf32>
    %354 = arith.mulf %353, %352 : vector<2x32xf32>
    %cst_118 = arith.constant 5.000000e-01 : f32
    %355 = vector.broadcast %cst_118 : f32 to vector<2x32xf32>
    %356 = arith.addf %354, %355 : vector<2x32xf32>
    %357 = arith.mulf %346, %282 : vector<2x32xf32>
    %358 = arith.mulf %338, %348 : vector<2x32xf32>
    %359 = arith.addf %357, %358 : vector<2x32xf32>
    %360 = math.tanh %359 : vector<2x32xf32>
    %361 = arith.mulf %356, %360 : vector<2x32xf32>
    %362 = tpu.concatenate %361, %319 in 1 : vector<2x32xf32>, vector<2x32xf32> -> vector<2x64xf32>
    %cst_119 = arith.constant dense<0.000000e+00> : vector<2x128xf32>
    %363 = tpu.matmul %362, %2, %cst_119 {dimension_numbers = #tpu.dot_dimension_numbers<[1], [0], [0], [1], [0, 0, 1, 1], [], []>} : vector<2x64xf32>, vector<64x128xf32>, vector<2x128xf32> -> vector<2x128xf32>
    %364 = vector.broadcast %3 : vector<1x128xf32> to vector<2x128xf32>
    %365 = arith.addf %363, %364 : vector<2x128xf32>
    %366 = vector.extract_strided_slice %365 {offsets = [0, 0], sizes = [2, 32], strides = [1, 1]} : vector<2x128xf32> to vector<2x32xf32>
    %cst_120 = arith.constant 5.000000e-01 : f32
    %367 = vector.broadcast %cst_120 : f32 to vector<2x32xf32>
    %368 = arith.mulf %367, %366 : vector<2x32xf32>
    %369 = math.tanh %368 : vector<2x32xf32>
    %cst_121 = arith.constant 5.000000e-01 : f32
    %370 = vector.broadcast %cst_121 : f32 to vector<2x32xf32>
    %371 = arith.mulf %370, %369 : vector<2x32xf32>
    %cst_122 = arith.constant 5.000000e-01 : f32
    %372 = vector.broadcast %cst_122 : f32 to vector<2x32xf32>
    %373 = arith.addf %371, %372 : vector<2x32xf32>
    %374 = vector.extract_strided_slice %365 {offsets = [0, 32], sizes = [2, 32], strides = [1, 1]} : vector<2x128xf32> to vector<2x32xf32>
    %cst_123 = arith.constant 5.000000e-01 : f32
    %375 = vector.broadcast %cst_123 : f32 to vector<2x32xf32>
    %376 = arith.mulf %375, %374 : vector<2x32xf32>
    %377 = math.tanh %376 : vector<2x32xf32>
    %cst_124 = arith.constant 5.000000e-01 : f32
    %378 = vector.broadcast %cst_124 : f32 to vector<2x32xf32>
    %379 = arith.mulf %378, %377 : vector<2x32xf32>
    %cst_125 = arith.constant 5.000000e-01 : f32
    %380 = vector.broadcast %cst_125 : f32 to vector<2x32xf32>
    %381 = arith.addf %379, %380 : vector<2x32xf32>
    %382 = vector.extract_strided_slice %365 {offsets = [0, 64], sizes = [2, 32], strides = [1, 1]} : vector<2x128xf32> to vector<2x32xf32>
    %383 = math.tanh %382 : vector<2x32xf32>
    %384 = vector.extract_strided_slice %365 {offsets = [0, 96], sizes = [2, 32], strides = [1, 1]} : vector<2x128xf32> to vector<2x32xf32>
    %cst_126 = arith.constant 5.000000e-01 : f32
    %385 = vector.broadcast %cst_126 : f32 to vector<2x32xf32>
    %386 = arith.mulf %385, %384 : vector<2x32xf32>
    %387 = math.tanh %386 : vector<2x32xf32>
    %cst_127 = arith.constant 5.000000e-01 : f32
    %388 = vector.broadcast %cst_127 : f32 to vector<2x32xf32>
    %389 = arith.mulf %388, %387 : vector<2x32xf32>
    %cst_128 = arith.constant 5.000000e-01 : f32
    %390 = vector.broadcast %cst_128 : f32 to vector<2x32xf32>
    %391 = arith.addf %389, %390 : vector<2x32xf32>
    %392 = arith.mulf %381, %317 : vector<2x32xf32>
    %393 = arith.mulf %373, %383 : vector<2x32xf32>
    %394 = arith.addf %392, %393 : vector<2x32xf32>
    %395 = math.tanh %394 : vector<2x32xf32>
    %396 = arith.mulf %391, %395 : vector<2x32xf32>
    %c10 = arith.constant 10 : index
    %397 = memref.load %arg0[%c10] : memref<48xi32, #tpu.memory_space<smem>>
    %398 = arith.index_cast %397 : i32 to index
    %c0_129 = arith.constant 0 : index
    %399 = vector.load %arg1[%398, %c0_129] : memref<50x16xf32, #tpu.memory_space<vmem>>, vector<1x16xf32>
    %c11 = arith.constant 11 : index
    %400 = memref.load %arg0[%c11] : memref<48xi32, #tpu.memory_space<smem>>
    %401 = arith.index_cast %400 : i32 to index
    %c0_130 = arith.constant 0 : index
    %402 = vector.load %arg1[%401, %c0_130] : memref<50x16xf32, #tpu.memory_space<vmem>>, vector<1x16xf32>
    %403 = tpu.concatenate %399, %402 in 0 : vector<1x16xf32>, vector<1x16xf32> -> vector<2x16xf32>
    %404 = tpu.concatenate %403, %361 in 1 : vector<2x16xf32>, vector<2x32xf32> -> vector<2x48xf32>
    %cst_131 = arith.constant dense<0.000000e+00> : vector<2x128xf32>
    %405 = tpu.matmul %404, %0, %cst_131 {dimension_numbers = #tpu.dot_dimension_numbers<[1], [0], [0], [1], [0, 0, 1, 1], [], []>} : vector<2x48xf32>, vector<48x128xf32>, vector<2x128xf32> -> vector<2x128xf32>
    %406 = vector.broadcast %1 : vector<1x128xf32> to vector<2x128xf32>
    %407 = arith.addf %405, %406 : vector<2x128xf32>
    %408 = vector.extract_strided_slice %407 {offsets = [0, 0], sizes = [2, 32], strides = [1, 1]} : vector<2x128xf32> to vector<2x32xf32>
    %cst_132 = arith.constant 5.000000e-01 : f32
    %409 = vector.broadcast %cst_132 : f32 to vector<2x32xf32>
    %410 = arith.mulf %409, %408 : vector<2x32xf32>
    %411 = math.tanh %410 : vector<2x32xf32>
    %cst_133 = arith.constant 5.000000e-01 : f32
    %412 = vector.broadcast %cst_133 : f32 to vector<2x32xf32>
    %413 = arith.mulf %412, %411 : vector<2x32xf32>
    %cst_134 = arith.constant 5.000000e-01 : f32
    %414 = vector.broadcast %cst_134 : f32 to vector<2x32xf32>
    %415 = arith.addf %413, %414 : vector<2x32xf32>
    %416 = vector.extract_strided_slice %407 {offsets = [0, 32], sizes = [2, 32], strides = [1, 1]} : vector<2x128xf32> to vector<2x32xf32>
    %cst_135 = arith.constant 5.000000e-01 : f32
    %417 = vector.broadcast %cst_135 : f32 to vector<2x32xf32>
    %418 = arith.mulf %417, %416 : vector<2x32xf32>
    %419 = math.tanh %418 : vector<2x32xf32>
    %cst_136 = arith.constant 5.000000e-01 : f32
    %420 = vector.broadcast %cst_136 : f32 to vector<2x32xf32>
    %421 = arith.mulf %420, %419 : vector<2x32xf32>
    %cst_137 = arith.constant 5.000000e-01 : f32
    %422 = vector.broadcast %cst_137 : f32 to vector<2x32xf32>
    %423 = arith.addf %421, %422 : vector<2x32xf32>
    %424 = vector.extract_strided_slice %407 {offsets = [0, 64], sizes = [2, 32], strides = [1, 1]} : vector<2x128xf32> to vector<2x32xf32>
    %425 = math.tanh %424 : vector<2x32xf32>
    %426 = vector.extract_strided_slice %407 {offsets = [0, 96], sizes = [2, 32], strides = [1, 1]} : vector<2x128xf32> to vector<2x32xf32>
    %cst_138 = arith.constant 5.000000e-01 : f32
    %427 = vector.broadcast %cst_138 : f32 to vector<2x32xf32>
    %428 = arith.mulf %427, %426 : vector<2x32xf32>
    %429 = math.tanh %428 : vector<2x32xf32>
    %cst_139 = arith.constant 5.000000e-01 : f32
    %430 = vector.broadcast %cst_139 : f32 to vector<2x32xf32>
    %431 = arith.mulf %430, %429 : vector<2x32xf32>
    %cst_140 = arith.constant 5.000000e-01 : f32
    %432 = vector.broadcast %cst_140 : f32 to vector<2x32xf32>
    %433 = arith.addf %431, %432 : vector<2x32xf32>
    %434 = arith.mulf %423, %359 : vector<2x32xf32>
    %435 = arith.mulf %415, %425 : vector<2x32xf32>
    %436 = arith.addf %434, %435 : vector<2x32xf32>
    %437 = math.tanh %436 : vector<2x32xf32>
    %438 = arith.mulf %433, %437 : vector<2x32xf32>
    %439 = tpu.concatenate %438, %396 in 1 : vector<2x32xf32>, vector<2x32xf32> -> vector<2x64xf32>
    %cst_141 = arith.constant dense<0.000000e+00> : vector<2x128xf32>
    %440 = tpu.matmul %439, %2, %cst_141 {dimension_numbers = #tpu.dot_dimension_numbers<[1], [0], [0], [1], [0, 0, 1, 1], [], []>} : vector<2x64xf32>, vector<64x128xf32>, vector<2x128xf32> -> vector<2x128xf32>
    %441 = vector.broadcast %3 : vector<1x128xf32> to vector<2x128xf32>
    %442 = arith.addf %440, %441 : vector<2x128xf32>
    %443 = vector.extract_strided_slice %442 {offsets = [0, 0], sizes = [2, 32], strides = [1, 1]} : vector<2x128xf32> to vector<2x32xf32>
    %cst_142 = arith.constant 5.000000e-01 : f32
    %444 = vector.broadcast %cst_142 : f32 to vector<2x32xf32>
    %445 = arith.mulf %444, %443 : vector<2x32xf32>
    %446 = math.tanh %445 : vector<2x32xf32>
    %cst_143 = arith.constant 5.000000e-01 : f32
    %447 = vector.broadcast %cst_143 : f32 to vector<2x32xf32>
    %448 = arith.mulf %447, %446 : vector<2x32xf32>
    %cst_144 = arith.constant 5.000000e-01 : f32
    %449 = vector.broadcast %cst_144 : f32 to vector<2x32xf32>
    %450 = arith.addf %448, %449 : vector<2x32xf32>
    %451 = vector.extract_strided_slice %442 {offsets = [0, 32], sizes = [2, 32], strides = [1, 1]} : vector<2x128xf32> to vector<2x32xf32>
    %cst_145 = arith.constant 5.000000e-01 : f32
    %452 = vector.broadcast %cst_145 : f32 to vector<2x32xf32>
    %453 = arith.mulf %452, %451 : vector<2x32xf32>
    %454 = math.tanh %453 : vector<2x32xf32>
    %cst_146 = arith.constant 5.000000e-01 : f32
    %455 = vector.broadcast %cst_146 : f32 to vector<2x32xf32>
    %456 = arith.mulf %455, %454 : vector<2x32xf32>
    %cst_147 = arith.constant 5.000000e-01 : f32
    %457 = vector.broadcast %cst_147 : f32 to vector<2x32xf32>
    %458 = arith.addf %456, %457 : vector<2x32xf32>
    %459 = vector.extract_strided_slice %442 {offsets = [0, 64], sizes = [2, 32], strides = [1, 1]} : vector<2x128xf32> to vector<2x32xf32>
    %460 = math.tanh %459 : vector<2x32xf32>
    %461 = vector.extract_strided_slice %442 {offsets = [0, 96], sizes = [2, 32], strides = [1, 1]} : vector<2x128xf32> to vector<2x32xf32>
    %cst_148 = arith.constant 5.000000e-01 : f32
    %462 = vector.broadcast %cst_148 : f32 to vector<2x32xf32>
    %463 = arith.mulf %462, %461 : vector<2x32xf32>
    %464 = math.tanh %463 : vector<2x32xf32>
    %cst_149 = arith.constant 5.000000e-01 : f32
    %465 = vector.broadcast %cst_149 : f32 to vector<2x32xf32>
    %466 = arith.mulf %465, %464 : vector<2x32xf32>
    %cst_150 = arith.constant 5.000000e-01 : f32
    %467 = vector.broadcast %cst_150 : f32 to vector<2x32xf32>
    %468 = arith.addf %466, %467 : vector<2x32xf32>
    %469 = arith.mulf %458, %394 : vector<2x32xf32>
    %470 = arith.mulf %450, %460 : vector<2x32xf32>
    %471 = arith.addf %469, %470 : vector<2x32xf32>
    %472 = math.tanh %471 : vector<2x32xf32>
    %473 = arith.mulf %468, %472 : vector<2x32xf32>
    %c12 = arith.constant 12 : index
    %474 = memref.load %arg0[%c12] : memref<48xi32, #tpu.memory_space<smem>>
    %475 = arith.index_cast %474 : i32 to index
    %c0_151 = arith.constant 0 : index
    %476 = vector.load %arg1[%475, %c0_151] : memref<50x16xf32, #tpu.memory_space<vmem>>, vector<1x16xf32>
    %c13 = arith.constant 13 : index
    %477 = memref.load %arg0[%c13] : memref<48xi32, #tpu.memory_space<smem>>
    %478 = arith.index_cast %477 : i32 to index
    %c0_152 = arith.constant 0 : index
    %479 = vector.load %arg1[%478, %c0_152] : memref<50x16xf32, #tpu.memory_space<vmem>>, vector<1x16xf32>
    %480 = tpu.concatenate %476, %479 in 0 : vector<1x16xf32>, vector<1x16xf32> -> vector<2x16xf32>
    %481 = tpu.concatenate %480, %438 in 1 : vector<2x16xf32>, vector<2x32xf32> -> vector<2x48xf32>
    %cst_153 = arith.constant dense<0.000000e+00> : vector<2x128xf32>
    %482 = tpu.matmul %481, %0, %cst_153 {dimension_numbers = #tpu.dot_dimension_numbers<[1], [0], [0], [1], [0, 0, 1, 1], [], []>} : vector<2x48xf32>, vector<48x128xf32>, vector<2x128xf32> -> vector<2x128xf32>
    %483 = vector.broadcast %1 : vector<1x128xf32> to vector<2x128xf32>
    %484 = arith.addf %482, %483 : vector<2x128xf32>
    %485 = vector.extract_strided_slice %484 {offsets = [0, 0], sizes = [2, 32], strides = [1, 1]} : vector<2x128xf32> to vector<2x32xf32>
    %cst_154 = arith.constant 5.000000e-01 : f32
    %486 = vector.broadcast %cst_154 : f32 to vector<2x32xf32>
    %487 = arith.mulf %486, %485 : vector<2x32xf32>
    %488 = math.tanh %487 : vector<2x32xf32>
    %cst_155 = arith.constant 5.000000e-01 : f32
    %489 = vector.broadcast %cst_155 : f32 to vector<2x32xf32>
    %490 = arith.mulf %489, %488 : vector<2x32xf32>
    %cst_156 = arith.constant 5.000000e-01 : f32
    %491 = vector.broadcast %cst_156 : f32 to vector<2x32xf32>
    %492 = arith.addf %490, %491 : vector<2x32xf32>
    %493 = vector.extract_strided_slice %484 {offsets = [0, 32], sizes = [2, 32], strides = [1, 1]} : vector<2x128xf32> to vector<2x32xf32>
    %cst_157 = arith.constant 5.000000e-01 : f32
    %494 = vector.broadcast %cst_157 : f32 to vector<2x32xf32>
    %495 = arith.mulf %494, %493 : vector<2x32xf32>
    %496 = math.tanh %495 : vector<2x32xf32>
    %cst_158 = arith.constant 5.000000e-01 : f32
    %497 = vector.broadcast %cst_158 : f32 to vector<2x32xf32>
    %498 = arith.mulf %497, %496 : vector<2x32xf32>
    %cst_159 = arith.constant 5.000000e-01 : f32
    %499 = vector.broadcast %cst_159 : f32 to vector<2x32xf32>
    %500 = arith.addf %498, %499 : vector<2x32xf32>
    %501 = vector.extract_strided_slice %484 {offsets = [0, 64], sizes = [2, 32], strides = [1, 1]} : vector<2x128xf32> to vector<2x32xf32>
    %502 = math.tanh %501 : vector<2x32xf32>
    %503 = vector.extract_strided_slice %484 {offsets = [0, 96], sizes = [2, 32], strides = [1, 1]} : vector<2x128xf32> to vector<2x32xf32>
    %cst_160 = arith.constant 5.000000e-01 : f32
    %504 = vector.broadcast %cst_160 : f32 to vector<2x32xf32>
    %505 = arith.mulf %504, %503 : vector<2x32xf32>
    %506 = math.tanh %505 : vector<2x32xf32>
    %cst_161 = arith.constant 5.000000e-01 : f32
    %507 = vector.broadcast %cst_161 : f32 to vector<2x32xf32>
    %508 = arith.mulf %507, %506 : vector<2x32xf32>
    %cst_162 = arith.constant 5.000000e-01 : f32
    %509 = vector.broadcast %cst_162 : f32 to vector<2x32xf32>
    %510 = arith.addf %508, %509 : vector<2x32xf32>
    %511 = arith.mulf %500, %436 : vector<2x32xf32>
    %512 = arith.mulf %492, %502 : vector<2x32xf32>
    %513 = arith.addf %511, %512 : vector<2x32xf32>
    %514 = math.tanh %513 : vector<2x32xf32>
    %515 = arith.mulf %510, %514 : vector<2x32xf32>
    %516 = tpu.concatenate %515, %473 in 1 : vector<2x32xf32>, vector<2x32xf32> -> vector<2x64xf32>
    %cst_163 = arith.constant dense<0.000000e+00> : vector<2x128xf32>
    %517 = tpu.matmul %516, %2, %cst_163 {dimension_numbers = #tpu.dot_dimension_numbers<[1], [0], [0], [1], [0, 0, 1, 1], [], []>} : vector<2x64xf32>, vector<64x128xf32>, vector<2x128xf32> -> vector<2x128xf32>
    %518 = vector.broadcast %3 : vector<1x128xf32> to vector<2x128xf32>
    %519 = arith.addf %517, %518 : vector<2x128xf32>
    %520 = vector.extract_strided_slice %519 {offsets = [0, 0], sizes = [2, 32], strides = [1, 1]} : vector<2x128xf32> to vector<2x32xf32>
    %cst_164 = arith.constant 5.000000e-01 : f32
    %521 = vector.broadcast %cst_164 : f32 to vector<2x32xf32>
    %522 = arith.mulf %521, %520 : vector<2x32xf32>
    %523 = math.tanh %522 : vector<2x32xf32>
    %cst_165 = arith.constant 5.000000e-01 : f32
    %524 = vector.broadcast %cst_165 : f32 to vector<2x32xf32>
    %525 = arith.mulf %524, %523 : vector<2x32xf32>
    %cst_166 = arith.constant 5.000000e-01 : f32
    %526 = vector.broadcast %cst_166 : f32 to vector<2x32xf32>
    %527 = arith.addf %525, %526 : vector<2x32xf32>
    %528 = vector.extract_strided_slice %519 {offsets = [0, 32], sizes = [2, 32], strides = [1, 1]} : vector<2x128xf32> to vector<2x32xf32>
    %cst_167 = arith.constant 5.000000e-01 : f32
    %529 = vector.broadcast %cst_167 : f32 to vector<2x32xf32>
    %530 = arith.mulf %529, %528 : vector<2x32xf32>
    %531 = math.tanh %530 : vector<2x32xf32>
    %cst_168 = arith.constant 5.000000e-01 : f32
    %532 = vector.broadcast %cst_168 : f32 to vector<2x32xf32>
    %533 = arith.mulf %532, %531 : vector<2x32xf32>
    %cst_169 = arith.constant 5.000000e-01 : f32
    %534 = vector.broadcast %cst_169 : f32 to vector<2x32xf32>
    %535 = arith.addf %533, %534 : vector<2x32xf32>
    %536 = vector.extract_strided_slice %519 {offsets = [0, 64], sizes = [2, 32], strides = [1, 1]} : vector<2x128xf32> to vector<2x32xf32>
    %537 = math.tanh %536 : vector<2x32xf32>
    %538 = vector.extract_strided_slice %519 {offsets = [0, 96], sizes = [2, 32], strides = [1, 1]} : vector<2x128xf32> to vector<2x32xf32>
    %cst_170 = arith.constant 5.000000e-01 : f32
    %539 = vector.broadcast %cst_170 : f32 to vector<2x32xf32>
    %540 = arith.mulf %539, %538 : vector<2x32xf32>
    %541 = math.tanh %540 : vector<2x32xf32>
    %cst_171 = arith.constant 5.000000e-01 : f32
    %542 = vector.broadcast %cst_171 : f32 to vector<2x32xf32>
    %543 = arith.mulf %542, %541 : vector<2x32xf32>
    %cst_172 = arith.constant 5.000000e-01 : f32
    %544 = vector.broadcast %cst_172 : f32 to vector<2x32xf32>
    %545 = arith.addf %543, %544 : vector<2x32xf32>
    %546 = arith.mulf %535, %471 : vector<2x32xf32>
    %547 = arith.mulf %527, %537 : vector<2x32xf32>
    %548 = arith.addf %546, %547 : vector<2x32xf32>
    %549 = math.tanh %548 : vector<2x32xf32>
    %550 = arith.mulf %545, %549 : vector<2x32xf32>
    %c14 = arith.constant 14 : index
    %551 = memref.load %arg0[%c14] : memref<48xi32, #tpu.memory_space<smem>>
    %552 = arith.index_cast %551 : i32 to index
    %c0_173 = arith.constant 0 : index
    %553 = vector.load %arg1[%552, %c0_173] : memref<50x16xf32, #tpu.memory_space<vmem>>, vector<1x16xf32>
    %c15 = arith.constant 15 : index
    %554 = memref.load %arg0[%c15] : memref<48xi32, #tpu.memory_space<smem>>
    %555 = arith.index_cast %554 : i32 to index
    %c0_174 = arith.constant 0 : index
    %556 = vector.load %arg1[%555, %c0_174] : memref<50x16xf32, #tpu.memory_space<vmem>>, vector<1x16xf32>
    %557 = tpu.concatenate %553, %556 in 0 : vector<1x16xf32>, vector<1x16xf32> -> vector<2x16xf32>
    %558 = tpu.concatenate %557, %515 in 1 : vector<2x16xf32>, vector<2x32xf32> -> vector<2x48xf32>
    %cst_175 = arith.constant dense<0.000000e+00> : vector<2x128xf32>
    %559 = tpu.matmul %558, %0, %cst_175 {dimension_numbers = #tpu.dot_dimension_numbers<[1], [0], [0], [1], [0, 0, 1, 1], [], []>} : vector<2x48xf32>, vector<48x128xf32>, vector<2x128xf32> -> vector<2x128xf32>
    %560 = vector.broadcast %1 : vector<1x128xf32> to vector<2x128xf32>
    %561 = arith.addf %559, %560 : vector<2x128xf32>
    %562 = vector.extract_strided_slice %561 {offsets = [0, 0], sizes = [2, 32], strides = [1, 1]} : vector<2x128xf32> to vector<2x32xf32>
    %cst_176 = arith.constant 5.000000e-01 : f32
    %563 = vector.broadcast %cst_176 : f32 to vector<2x32xf32>
    %564 = arith.mulf %563, %562 : vector<2x32xf32>
    %565 = math.tanh %564 : vector<2x32xf32>
    %cst_177 = arith.constant 5.000000e-01 : f32
    %566 = vector.broadcast %cst_177 : f32 to vector<2x32xf32>
    %567 = arith.mulf %566, %565 : vector<2x32xf32>
    %cst_178 = arith.constant 5.000000e-01 : f32
    %568 = vector.broadcast %cst_178 : f32 to vector<2x32xf32>
    %569 = arith.addf %567, %568 : vector<2x32xf32>
    %570 = vector.extract_strided_slice %561 {offsets = [0, 32], sizes = [2, 32], strides = [1, 1]} : vector<2x128xf32> to vector<2x32xf32>
    %cst_179 = arith.constant 5.000000e-01 : f32
    %571 = vector.broadcast %cst_179 : f32 to vector<2x32xf32>
    %572 = arith.mulf %571, %570 : vector<2x32xf32>
    %573 = math.tanh %572 : vector<2x32xf32>
    %cst_180 = arith.constant 5.000000e-01 : f32
    %574 = vector.broadcast %cst_180 : f32 to vector<2x32xf32>
    %575 = arith.mulf %574, %573 : vector<2x32xf32>
    %cst_181 = arith.constant 5.000000e-01 : f32
    %576 = vector.broadcast %cst_181 : f32 to vector<2x32xf32>
    %577 = arith.addf %575, %576 : vector<2x32xf32>
    %578 = vector.extract_strided_slice %561 {offsets = [0, 64], sizes = [2, 32], strides = [1, 1]} : vector<2x128xf32> to vector<2x32xf32>
    %579 = math.tanh %578 : vector<2x32xf32>
    %580 = vector.extract_strided_slice %561 {offsets = [0, 96], sizes = [2, 32], strides = [1, 1]} : vector<2x128xf32> to vector<2x32xf32>
    %cst_182 = arith.constant 5.000000e-01 : f32
    %581 = vector.broadcast %cst_182 : f32 to vector<2x32xf32>
    %582 = arith.mulf %581, %580 : vector<2x32xf32>
    %583 = math.tanh %582 : vector<2x32xf32>
    %cst_183 = arith.constant 5.000000e-01 : f32
    %584 = vector.broadcast %cst_183 : f32 to vector<2x32xf32>
    %585 = arith.mulf %584, %583 : vector<2x32xf32>
    %cst_184 = arith.constant 5.000000e-01 : f32
    %586 = vector.broadcast %cst_184 : f32 to vector<2x32xf32>
    %587 = arith.addf %585, %586 : vector<2x32xf32>
    %588 = arith.mulf %577, %513 : vector<2x32xf32>
    %589 = arith.mulf %569, %579 : vector<2x32xf32>
    %590 = arith.addf %588, %589 : vector<2x32xf32>
    %591 = math.tanh %590 : vector<2x32xf32>
    %592 = arith.mulf %587, %591 : vector<2x32xf32>
    %593 = tpu.concatenate %592, %550 in 1 : vector<2x32xf32>, vector<2x32xf32> -> vector<2x64xf32>
    %cst_185 = arith.constant dense<0.000000e+00> : vector<2x128xf32>
    %594 = tpu.matmul %593, %2, %cst_185 {dimension_numbers = #tpu.dot_dimension_numbers<[1], [0], [0], [1], [0, 0, 1, 1], [], []>} : vector<2x64xf32>, vector<64x128xf32>, vector<2x128xf32> -> vector<2x128xf32>
    %595 = vector.broadcast %3 : vector<1x128xf32> to vector<2x128xf32>
    %596 = arith.addf %594, %595 : vector<2x128xf32>
    %597 = vector.extract_strided_slice %596 {offsets = [0, 0], sizes = [2, 32], strides = [1, 1]} : vector<2x128xf32> to vector<2x32xf32>
    %cst_186 = arith.constant 5.000000e-01 : f32
    %598 = vector.broadcast %cst_186 : f32 to vector<2x32xf32>
    %599 = arith.mulf %598, %597 : vector<2x32xf32>
    %600 = math.tanh %599 : vector<2x32xf32>
    %cst_187 = arith.constant 5.000000e-01 : f32
    %601 = vector.broadcast %cst_187 : f32 to vector<2x32xf32>
    %602 = arith.mulf %601, %600 : vector<2x32xf32>
    %cst_188 = arith.constant 5.000000e-01 : f32
    %603 = vector.broadcast %cst_188 : f32 to vector<2x32xf32>
    %604 = arith.addf %602, %603 : vector<2x32xf32>
    %605 = vector.extract_strided_slice %596 {offsets = [0, 32], sizes = [2, 32], strides = [1, 1]} : vector<2x128xf32> to vector<2x32xf32>
    %cst_189 = arith.constant 5.000000e-01 : f32
    %606 = vector.broadcast %cst_189 : f32 to vector<2x32xf32>
    %607 = arith.mulf %606, %605 : vector<2x32xf32>
    %608 = math.tanh %607 : vector<2x32xf32>
    %cst_190 = arith.constant 5.000000e-01 : f32
    %609 = vector.broadcast %cst_190 : f32 to vector<2x32xf32>
    %610 = arith.mulf %609, %608 : vector<2x32xf32>
    %cst_191 = arith.constant 5.000000e-01 : f32
    %611 = vector.broadcast %cst_191 : f32 to vector<2x32xf32>
    %612 = arith.addf %610, %611 : vector<2x32xf32>
    %613 = vector.extract_strided_slice %596 {offsets = [0, 64], sizes = [2, 32], strides = [1, 1]} : vector<2x128xf32> to vector<2x32xf32>
    %614 = math.tanh %613 : vector<2x32xf32>
    %615 = vector.extract_strided_slice %596 {offsets = [0, 96], sizes = [2, 32], strides = [1, 1]} : vector<2x128xf32> to vector<2x32xf32>
    %cst_192 = arith.constant 5.000000e-01 : f32
    %616 = vector.broadcast %cst_192 : f32 to vector<2x32xf32>
    %617 = arith.mulf %616, %615 : vector<2x32xf32>
    %618 = math.tanh %617 : vector<2x32xf32>
    %cst_193 = arith.constant 5.000000e-01 : f32
    %619 = vector.broadcast %cst_193 : f32 to vector<2x32xf32>
    %620 = arith.mulf %619, %618 : vector<2x32xf32>
    %cst_194 = arith.constant 5.000000e-01 : f32
    %621 = vector.broadcast %cst_194 : f32 to vector<2x32xf32>
    %622 = arith.addf %620, %621 : vector<2x32xf32>
    %623 = arith.mulf %612, %548 : vector<2x32xf32>
    %624 = arith.mulf %604, %614 : vector<2x32xf32>
    %625 = arith.addf %623, %624 : vector<2x32xf32>
    %626 = math.tanh %625 : vector<2x32xf32>
    %627 = arith.mulf %622, %626 : vector<2x32xf32>
    %c16 = arith.constant 16 : index
    %628 = memref.load %arg0[%c16] : memref<48xi32, #tpu.memory_space<smem>>
    %629 = arith.index_cast %628 : i32 to index
    %c0_195 = arith.constant 0 : index
    %630 = vector.load %arg1[%629, %c0_195] : memref<50x16xf32, #tpu.memory_space<vmem>>, vector<1x16xf32>
    %c17 = arith.constant 17 : index
    %631 = memref.load %arg0[%c17] : memref<48xi32, #tpu.memory_space<smem>>
    %632 = arith.index_cast %631 : i32 to index
    %c0_196 = arith.constant 0 : index
    %633 = vector.load %arg1[%632, %c0_196] : memref<50x16xf32, #tpu.memory_space<vmem>>, vector<1x16xf32>
    %634 = tpu.concatenate %630, %633 in 0 : vector<1x16xf32>, vector<1x16xf32> -> vector<2x16xf32>
    %635 = tpu.concatenate %634, %592 in 1 : vector<2x16xf32>, vector<2x32xf32> -> vector<2x48xf32>
    %cst_197 = arith.constant dense<0.000000e+00> : vector<2x128xf32>
    %636 = tpu.matmul %635, %0, %cst_197 {dimension_numbers = #tpu.dot_dimension_numbers<[1], [0], [0], [1], [0, 0, 1, 1], [], []>} : vector<2x48xf32>, vector<48x128xf32>, vector<2x128xf32> -> vector<2x128xf32>
    %637 = vector.broadcast %1 : vector<1x128xf32> to vector<2x128xf32>
    %638 = arith.addf %636, %637 : vector<2x128xf32>
    %639 = vector.extract_strided_slice %638 {offsets = [0, 0], sizes = [2, 32], strides = [1, 1]} : vector<2x128xf32> to vector<2x32xf32>
    %cst_198 = arith.constant 5.000000e-01 : f32
    %640 = vector.broadcast %cst_198 : f32 to vector<2x32xf32>
    %641 = arith.mulf %640, %639 : vector<2x32xf32>
    %642 = math.tanh %641 : vector<2x32xf32>
    %cst_199 = arith.constant 5.000000e-01 : f32
    %643 = vector.broadcast %cst_199 : f32 to vector<2x32xf32>
    %644 = arith.mulf %643, %642 : vector<2x32xf32>
    %cst_200 = arith.constant 5.000000e-01 : f32
    %645 = vector.broadcast %cst_200 : f32 to vector<2x32xf32>
    %646 = arith.addf %644, %645 : vector<2x32xf32>
    %647 = vector.extract_strided_slice %638 {offsets = [0, 32], sizes = [2, 32], strides = [1, 1]} : vector<2x128xf32> to vector<2x32xf32>
    %cst_201 = arith.constant 5.000000e-01 : f32
    %648 = vector.broadcast %cst_201 : f32 to vector<2x32xf32>
    %649 = arith.mulf %648, %647 : vector<2x32xf32>
    %650 = math.tanh %649 : vector<2x32xf32>
    %cst_202 = arith.constant 5.000000e-01 : f32
    %651 = vector.broadcast %cst_202 : f32 to vector<2x32xf32>
    %652 = arith.mulf %651, %650 : vector<2x32xf32>
    %cst_203 = arith.constant 5.000000e-01 : f32
    %653 = vector.broadcast %cst_203 : f32 to vector<2x32xf32>
    %654 = arith.addf %652, %653 : vector<2x32xf32>
    %655 = vector.extract_strided_slice %638 {offsets = [0, 64], sizes = [2, 32], strides = [1, 1]} : vector<2x128xf32> to vector<2x32xf32>
    %656 = math.tanh %655 : vector<2x32xf32>
    %657 = vector.extract_strided_slice %638 {offsets = [0, 96], sizes = [2, 32], strides = [1, 1]} : vector<2x128xf32> to vector<2x32xf32>
    %cst_204 = arith.constant 5.000000e-01 : f32
    %658 = vector.broadcast %cst_204 : f32 to vector<2x32xf32>
    %659 = arith.mulf %658, %657 : vector<2x32xf32>
    %660 = math.tanh %659 : vector<2x32xf32>
    %cst_205 = arith.constant 5.000000e-01 : f32
    %661 = vector.broadcast %cst_205 : f32 to vector<2x32xf32>
    %662 = arith.mulf %661, %660 : vector<2x32xf32>
    %cst_206 = arith.constant 5.000000e-01 : f32
    %663 = vector.broadcast %cst_206 : f32 to vector<2x32xf32>
    %664 = arith.addf %662, %663 : vector<2x32xf32>
    %665 = arith.mulf %654, %590 : vector<2x32xf32>
    %666 = arith.mulf %646, %656 : vector<2x32xf32>
    %667 = arith.addf %665, %666 : vector<2x32xf32>
    %668 = math.tanh %667 : vector<2x32xf32>
    %669 = arith.mulf %664, %668 : vector<2x32xf32>
    %670 = tpu.concatenate %669, %627 in 1 : vector<2x32xf32>, vector<2x32xf32> -> vector<2x64xf32>
    %cst_207 = arith.constant dense<0.000000e+00> : vector<2x128xf32>
    %671 = tpu.matmul %670, %2, %cst_207 {dimension_numbers = #tpu.dot_dimension_numbers<[1], [0], [0], [1], [0, 0, 1, 1], [], []>} : vector<2x64xf32>, vector<64x128xf32>, vector<2x128xf32> -> vector<2x128xf32>
    %672 = vector.broadcast %3 : vector<1x128xf32> to vector<2x128xf32>
    %673 = arith.addf %671, %672 : vector<2x128xf32>
    %674 = vector.extract_strided_slice %673 {offsets = [0, 0], sizes = [2, 32], strides = [1, 1]} : vector<2x128xf32> to vector<2x32xf32>
    %cst_208 = arith.constant 5.000000e-01 : f32
    %675 = vector.broadcast %cst_208 : f32 to vector<2x32xf32>
    %676 = arith.mulf %675, %674 : vector<2x32xf32>
    %677 = math.tanh %676 : vector<2x32xf32>
    %cst_209 = arith.constant 5.000000e-01 : f32
    %678 = vector.broadcast %cst_209 : f32 to vector<2x32xf32>
    %679 = arith.mulf %678, %677 : vector<2x32xf32>
    %cst_210 = arith.constant 5.000000e-01 : f32
    %680 = vector.broadcast %cst_210 : f32 to vector<2x32xf32>
    %681 = arith.addf %679, %680 : vector<2x32xf32>
    %682 = vector.extract_strided_slice %673 {offsets = [0, 32], sizes = [2, 32], strides = [1, 1]} : vector<2x128xf32> to vector<2x32xf32>
    %cst_211 = arith.constant 5.000000e-01 : f32
    %683 = vector.broadcast %cst_211 : f32 to vector<2x32xf32>
    %684 = arith.mulf %683, %682 : vector<2x32xf32>
    %685 = math.tanh %684 : vector<2x32xf32>
    %cst_212 = arith.constant 5.000000e-01 : f32
    %686 = vector.broadcast %cst_212 : f32 to vector<2x32xf32>
    %687 = arith.mulf %686, %685 : vector<2x32xf32>
    %cst_213 = arith.constant 5.000000e-01 : f32
    %688 = vector.broadcast %cst_213 : f32 to vector<2x32xf32>
    %689 = arith.addf %687, %688 : vector<2x32xf32>
    %690 = vector.extract_strided_slice %673 {offsets = [0, 64], sizes = [2, 32], strides = [1, 1]} : vector<2x128xf32> to vector<2x32xf32>
    %691 = math.tanh %690 : vector<2x32xf32>
    %692 = vector.extract_strided_slice %673 {offsets = [0, 96], sizes = [2, 32], strides = [1, 1]} : vector<2x128xf32> to vector<2x32xf32>
    %cst_214 = arith.constant 5.000000e-01 : f32
    %693 = vector.broadcast %cst_214 : f32 to vector<2x32xf32>
    %694 = arith.mulf %693, %692 : vector<2x32xf32>
    %695 = math.tanh %694 : vector<2x32xf32>
    %cst_215 = arith.constant 5.000000e-01 : f32
    %696 = vector.broadcast %cst_215 : f32 to vector<2x32xf32>
    %697 = arith.mulf %696, %695 : vector<2x32xf32>
    %cst_216 = arith.constant 5.000000e-01 : f32
    %698 = vector.broadcast %cst_216 : f32 to vector<2x32xf32>
    %699 = arith.addf %697, %698 : vector<2x32xf32>
    %700 = arith.mulf %689, %625 : vector<2x32xf32>
    %701 = arith.mulf %681, %691 : vector<2x32xf32>
    %702 = arith.addf %700, %701 : vector<2x32xf32>
    %703 = math.tanh %702 : vector<2x32xf32>
    %704 = arith.mulf %699, %703 : vector<2x32xf32>
    %c18 = arith.constant 18 : index
    %705 = memref.load %arg0[%c18] : memref<48xi32, #tpu.memory_space<smem>>
    %706 = arith.index_cast %705 : i32 to index
    %c0_217 = arith.constant 0 : index
    %707 = vector.load %arg1[%706, %c0_217] : memref<50x16xf32, #tpu.memory_space<vmem>>, vector<1x16xf32>
    %c19 = arith.constant 19 : index
    %708 = memref.load %arg0[%c19] : memref<48xi32, #tpu.memory_space<smem>>
    %709 = arith.index_cast %708 : i32 to index
    %c0_218 = arith.constant 0 : index
    %710 = vector.load %arg1[%709, %c0_218] : memref<50x16xf32, #tpu.memory_space<vmem>>, vector<1x16xf32>
    %711 = tpu.concatenate %707, %710 in 0 : vector<1x16xf32>, vector<1x16xf32> -> vector<2x16xf32>
    %712 = tpu.concatenate %711, %669 in 1 : vector<2x16xf32>, vector<2x32xf32> -> vector<2x48xf32>
    %cst_219 = arith.constant dense<0.000000e+00> : vector<2x128xf32>
    %713 = tpu.matmul %712, %0, %cst_219 {dimension_numbers = #tpu.dot_dimension_numbers<[1], [0], [0], [1], [0, 0, 1, 1], [], []>} : vector<2x48xf32>, vector<48x128xf32>, vector<2x128xf32> -> vector<2x128xf32>
    %714 = vector.broadcast %1 : vector<1x128xf32> to vector<2x128xf32>
    %715 = arith.addf %713, %714 : vector<2x128xf32>
    %716 = vector.extract_strided_slice %715 {offsets = [0, 0], sizes = [2, 32], strides = [1, 1]} : vector<2x128xf32> to vector<2x32xf32>
    %cst_220 = arith.constant 5.000000e-01 : f32
    %717 = vector.broadcast %cst_220 : f32 to vector<2x32xf32>
    %718 = arith.mulf %717, %716 : vector<2x32xf32>
    %719 = math.tanh %718 : vector<2x32xf32>
    %cst_221 = arith.constant 5.000000e-01 : f32
    %720 = vector.broadcast %cst_221 : f32 to vector<2x32xf32>
    %721 = arith.mulf %720, %719 : vector<2x32xf32>
    %cst_222 = arith.constant 5.000000e-01 : f32
    %722 = vector.broadcast %cst_222 : f32 to vector<2x32xf32>
    %723 = arith.addf %721, %722 : vector<2x32xf32>
    %724 = vector.extract_strided_slice %715 {offsets = [0, 32], sizes = [2, 32], strides = [1, 1]} : vector<2x128xf32> to vector<2x32xf32>
    %cst_223 = arith.constant 5.000000e-01 : f32
    %725 = vector.broadcast %cst_223 : f32 to vector<2x32xf32>
    %726 = arith.mulf %725, %724 : vector<2x32xf32>
    %727 = math.tanh %726 : vector<2x32xf32>
    %cst_224 = arith.constant 5.000000e-01 : f32
    %728 = vector.broadcast %cst_224 : f32 to vector<2x32xf32>
    %729 = arith.mulf %728, %727 : vector<2x32xf32>
    %cst_225 = arith.constant 5.000000e-01 : f32
    %730 = vector.broadcast %cst_225 : f32 to vector<2x32xf32>
    %731 = arith.addf %729, %730 : vector<2x32xf32>
    %732 = vector.extract_strided_slice %715 {offsets = [0, 64], sizes = [2, 32], strides = [1, 1]} : vector<2x128xf32> to vector<2x32xf32>
    %733 = math.tanh %732 : vector<2x32xf32>
    %734 = vector.extract_strided_slice %715 {offsets = [0, 96], sizes = [2, 32], strides = [1, 1]} : vector<2x128xf32> to vector<2x32xf32>
    %cst_226 = arith.constant 5.000000e-01 : f32
    %735 = vector.broadcast %cst_226 : f32 to vector<2x32xf32>
    %736 = arith.mulf %735, %734 : vector<2x32xf32>
    %737 = math.tanh %736 : vector<2x32xf32>
    %cst_227 = arith.constant 5.000000e-01 : f32
    %738 = vector.broadcast %cst_227 : f32 to vector<2x32xf32>
    %739 = arith.mulf %738, %737 : vector<2x32xf32>
    %cst_228 = arith.constant 5.000000e-01 : f32
    %740 = vector.broadcast %cst_228 : f32 to vector<2x32xf32>
    %741 = arith.addf %739, %740 : vector<2x32xf32>
    %742 = arith.mulf %731, %667 : vector<2x32xf32>
    %743 = arith.mulf %723, %733 : vector<2x32xf32>
    %744 = arith.addf %742, %743 : vector<2x32xf32>
    %745 = math.tanh %744 : vector<2x32xf32>
    %746 = arith.mulf %741, %745 : vector<2x32xf32>
    %747 = tpu.concatenate %746, %704 in 1 : vector<2x32xf32>, vector<2x32xf32> -> vector<2x64xf32>
    %cst_229 = arith.constant dense<0.000000e+00> : vector<2x128xf32>
    %748 = tpu.matmul %747, %2, %cst_229 {dimension_numbers = #tpu.dot_dimension_numbers<[1], [0], [0], [1], [0, 0, 1, 1], [], []>} : vector<2x64xf32>, vector<64x128xf32>, vector<2x128xf32> -> vector<2x128xf32>
    %749 = vector.broadcast %3 : vector<1x128xf32> to vector<2x128xf32>
    %750 = arith.addf %748, %749 : vector<2x128xf32>
    %751 = vector.extract_strided_slice %750 {offsets = [0, 0], sizes = [2, 32], strides = [1, 1]} : vector<2x128xf32> to vector<2x32xf32>
    %cst_230 = arith.constant 5.000000e-01 : f32
    %752 = vector.broadcast %cst_230 : f32 to vector<2x32xf32>
    %753 = arith.mulf %752, %751 : vector<2x32xf32>
    %754 = math.tanh %753 : vector<2x32xf32>
    %cst_231 = arith.constant 5.000000e-01 : f32
    %755 = vector.broadcast %cst_231 : f32 to vector<2x32xf32>
    %756 = arith.mulf %755, %754 : vector<2x32xf32>
    %cst_232 = arith.constant 5.000000e-01 : f32
    %757 = vector.broadcast %cst_232 : f32 to vector<2x32xf32>
    %758 = arith.addf %756, %757 : vector<2x32xf32>
    %759 = vector.extract_strided_slice %750 {offsets = [0, 32], sizes = [2, 32], strides = [1, 1]} : vector<2x128xf32> to vector<2x32xf32>
    %cst_233 = arith.constant 5.000000e-01 : f32
    %760 = vector.broadcast %cst_233 : f32 to vector<2x32xf32>
    %761 = arith.mulf %760, %759 : vector<2x32xf32>
    %762 = math.tanh %761 : vector<2x32xf32>
    %cst_234 = arith.constant 5.000000e-01 : f32
    %763 = vector.broadcast %cst_234 : f32 to vector<2x32xf32>
    %764 = arith.mulf %763, %762 : vector<2x32xf32>
    %cst_235 = arith.constant 5.000000e-01 : f32
    %765 = vector.broadcast %cst_235 : f32 to vector<2x32xf32>
    %766 = arith.addf %764, %765 : vector<2x32xf32>
    %767 = vector.extract_strided_slice %750 {offsets = [0, 64], sizes = [2, 32], strides = [1, 1]} : vector<2x128xf32> to vector<2x32xf32>
    %768 = math.tanh %767 : vector<2x32xf32>
    %769 = vector.extract_strided_slice %750 {offsets = [0, 96], sizes = [2, 32], strides = [1, 1]} : vector<2x128xf32> to vector<2x32xf32>
    %cst_236 = arith.constant 5.000000e-01 : f32
    %770 = vector.broadcast %cst_236 : f32 to vector<2x32xf32>
    %771 = arith.mulf %770, %769 : vector<2x32xf32>
    %772 = math.tanh %771 : vector<2x32xf32>
    %cst_237 = arith.constant 5.000000e-01 : f32
    %773 = vector.broadcast %cst_237 : f32 to vector<2x32xf32>
    %774 = arith.mulf %773, %772 : vector<2x32xf32>
    %cst_238 = arith.constant 5.000000e-01 : f32
    %775 = vector.broadcast %cst_238 : f32 to vector<2x32xf32>
    %776 = arith.addf %774, %775 : vector<2x32xf32>
    %777 = arith.mulf %766, %702 : vector<2x32xf32>
    %778 = arith.mulf %758, %768 : vector<2x32xf32>
    %779 = arith.addf %777, %778 : vector<2x32xf32>
    %780 = math.tanh %779 : vector<2x32xf32>
    %781 = arith.mulf %776, %780 : vector<2x32xf32>
    %c20 = arith.constant 20 : index
    %782 = memref.load %arg0[%c20] : memref<48xi32, #tpu.memory_space<smem>>
    %783 = arith.index_cast %782 : i32 to index
    %c0_239 = arith.constant 0 : index
    %784 = vector.load %arg1[%783, %c0_239] : memref<50x16xf32, #tpu.memory_space<vmem>>, vector<1x16xf32>
    %c21 = arith.constant 21 : index
    %785 = memref.load %arg0[%c21] : memref<48xi32, #tpu.memory_space<smem>>
    %786 = arith.index_cast %785 : i32 to index
    %c0_240 = arith.constant 0 : index
    %787 = vector.load %arg1[%786, %c0_240] : memref<50x16xf32, #tpu.memory_space<vmem>>, vector<1x16xf32>
    %788 = tpu.concatenate %784, %787 in 0 : vector<1x16xf32>, vector<1x16xf32> -> vector<2x16xf32>
    %789 = tpu.concatenate %788, %746 in 1 : vector<2x16xf32>, vector<2x32xf32> -> vector<2x48xf32>
    %cst_241 = arith.constant dense<0.000000e+00> : vector<2x128xf32>
    %790 = tpu.matmul %789, %0, %cst_241 {dimension_numbers = #tpu.dot_dimension_numbers<[1], [0], [0], [1], [0, 0, 1, 1], [], []>} : vector<2x48xf32>, vector<48x128xf32>, vector<2x128xf32> -> vector<2x128xf32>
    %791 = vector.broadcast %1 : vector<1x128xf32> to vector<2x128xf32>
    %792 = arith.addf %790, %791 : vector<2x128xf32>
    %793 = vector.extract_strided_slice %792 {offsets = [0, 0], sizes = [2, 32], strides = [1, 1]} : vector<2x128xf32> to vector<2x32xf32>
    %cst_242 = arith.constant 5.000000e-01 : f32
    %794 = vector.broadcast %cst_242 : f32 to vector<2x32xf32>
    %795 = arith.mulf %794, %793 : vector<2x32xf32>
    %796 = math.tanh %795 : vector<2x32xf32>
    %cst_243 = arith.constant 5.000000e-01 : f32
    %797 = vector.broadcast %cst_243 : f32 to vector<2x32xf32>
    %798 = arith.mulf %797, %796 : vector<2x32xf32>
    %cst_244 = arith.constant 5.000000e-01 : f32
    %799 = vector.broadcast %cst_244 : f32 to vector<2x32xf32>
    %800 = arith.addf %798, %799 : vector<2x32xf32>
    %801 = vector.extract_strided_slice %792 {offsets = [0, 32], sizes = [2, 32], strides = [1, 1]} : vector<2x128xf32> to vector<2x32xf32>
    %cst_245 = arith.constant 5.000000e-01 : f32
    %802 = vector.broadcast %cst_245 : f32 to vector<2x32xf32>
    %803 = arith.mulf %802, %801 : vector<2x32xf32>
    %804 = math.tanh %803 : vector<2x32xf32>
    %cst_246 = arith.constant 5.000000e-01 : f32
    %805 = vector.broadcast %cst_246 : f32 to vector<2x32xf32>
    %806 = arith.mulf %805, %804 : vector<2x32xf32>
    %cst_247 = arith.constant 5.000000e-01 : f32
    %807 = vector.broadcast %cst_247 : f32 to vector<2x32xf32>
    %808 = arith.addf %806, %807 : vector<2x32xf32>
    %809 = vector.extract_strided_slice %792 {offsets = [0, 64], sizes = [2, 32], strides = [1, 1]} : vector<2x128xf32> to vector<2x32xf32>
    %810 = math.tanh %809 : vector<2x32xf32>
    %811 = vector.extract_strided_slice %792 {offsets = [0, 96], sizes = [2, 32], strides = [1, 1]} : vector<2x128xf32> to vector<2x32xf32>
    %cst_248 = arith.constant 5.000000e-01 : f32
    %812 = vector.broadcast %cst_248 : f32 to vector<2x32xf32>
    %813 = arith.mulf %812, %811 : vector<2x32xf32>
    %814 = math.tanh %813 : vector<2x32xf32>
    %cst_249 = arith.constant 5.000000e-01 : f32
    %815 = vector.broadcast %cst_249 : f32 to vector<2x32xf32>
    %816 = arith.mulf %815, %814 : vector<2x32xf32>
    %cst_250 = arith.constant 5.000000e-01 : f32
    %817 = vector.broadcast %cst_250 : f32 to vector<2x32xf32>
    %818 = arith.addf %816, %817 : vector<2x32xf32>
    %819 = arith.mulf %808, %744 : vector<2x32xf32>
    %820 = arith.mulf %800, %810 : vector<2x32xf32>
    %821 = arith.addf %819, %820 : vector<2x32xf32>
    %822 = math.tanh %821 : vector<2x32xf32>
    %823 = arith.mulf %818, %822 : vector<2x32xf32>
    %824 = tpu.concatenate %823, %781 in 1 : vector<2x32xf32>, vector<2x32xf32> -> vector<2x64xf32>
    %cst_251 = arith.constant dense<0.000000e+00> : vector<2x128xf32>
    %825 = tpu.matmul %824, %2, %cst_251 {dimension_numbers = #tpu.dot_dimension_numbers<[1], [0], [0], [1], [0, 0, 1, 1], [], []>} : vector<2x64xf32>, vector<64x128xf32>, vector<2x128xf32> -> vector<2x128xf32>
    %826 = vector.broadcast %3 : vector<1x128xf32> to vector<2x128xf32>
    %827 = arith.addf %825, %826 : vector<2x128xf32>
    %828 = vector.extract_strided_slice %827 {offsets = [0, 0], sizes = [2, 32], strides = [1, 1]} : vector<2x128xf32> to vector<2x32xf32>
    %cst_252 = arith.constant 5.000000e-01 : f32
    %829 = vector.broadcast %cst_252 : f32 to vector<2x32xf32>
    %830 = arith.mulf %829, %828 : vector<2x32xf32>
    %831 = math.tanh %830 : vector<2x32xf32>
    %cst_253 = arith.constant 5.000000e-01 : f32
    %832 = vector.broadcast %cst_253 : f32 to vector<2x32xf32>
    %833 = arith.mulf %832, %831 : vector<2x32xf32>
    %cst_254 = arith.constant 5.000000e-01 : f32
    %834 = vector.broadcast %cst_254 : f32 to vector<2x32xf32>
    %835 = arith.addf %833, %834 : vector<2x32xf32>
    %836 = vector.extract_strided_slice %827 {offsets = [0, 32], sizes = [2, 32], strides = [1, 1]} : vector<2x128xf32> to vector<2x32xf32>
    %cst_255 = arith.constant 5.000000e-01 : f32
    %837 = vector.broadcast %cst_255 : f32 to vector<2x32xf32>
    %838 = arith.mulf %837, %836 : vector<2x32xf32>
    %839 = math.tanh %838 : vector<2x32xf32>
    %cst_256 = arith.constant 5.000000e-01 : f32
    %840 = vector.broadcast %cst_256 : f32 to vector<2x32xf32>
    %841 = arith.mulf %840, %839 : vector<2x32xf32>
    %cst_257 = arith.constant 5.000000e-01 : f32
    %842 = vector.broadcast %cst_257 : f32 to vector<2x32xf32>
    %843 = arith.addf %841, %842 : vector<2x32xf32>
    %844 = vector.extract_strided_slice %827 {offsets = [0, 64], sizes = [2, 32], strides = [1, 1]} : vector<2x128xf32> to vector<2x32xf32>
    %845 = math.tanh %844 : vector<2x32xf32>
    %846 = vector.extract_strided_slice %827 {offsets = [0, 96], sizes = [2, 32], strides = [1, 1]} : vector<2x128xf32> to vector<2x32xf32>
    %cst_258 = arith.constant 5.000000e-01 : f32
    %847 = vector.broadcast %cst_258 : f32 to vector<2x32xf32>
    %848 = arith.mulf %847, %846 : vector<2x32xf32>
    %849 = math.tanh %848 : vector<2x32xf32>
    %cst_259 = arith.constant 5.000000e-01 : f32
    %850 = vector.broadcast %cst_259 : f32 to vector<2x32xf32>
    %851 = arith.mulf %850, %849 : vector<2x32xf32>
    %cst_260 = arith.constant 5.000000e-01 : f32
    %852 = vector.broadcast %cst_260 : f32 to vector<2x32xf32>
    %853 = arith.addf %851, %852 : vector<2x32xf32>
    %854 = arith.mulf %843, %779 : vector<2x32xf32>
    %855 = arith.mulf %835, %845 : vector<2x32xf32>
    %856 = arith.addf %854, %855 : vector<2x32xf32>
    %857 = math.tanh %856 : vector<2x32xf32>
    %858 = arith.mulf %853, %857 : vector<2x32xf32>
    %c22 = arith.constant 22 : index
    %859 = memref.load %arg0[%c22] : memref<48xi32, #tpu.memory_space<smem>>
    %860 = arith.index_cast %859 : i32 to index
    %c0_261 = arith.constant 0 : index
    %861 = vector.load %arg1[%860, %c0_261] : memref<50x16xf32, #tpu.memory_space<vmem>>, vector<1x16xf32>
    %c23 = arith.constant 23 : index
    %862 = memref.load %arg0[%c23] : memref<48xi32, #tpu.memory_space<smem>>
    %863 = arith.index_cast %862 : i32 to index
    %c0_262 = arith.constant 0 : index
    %864 = vector.load %arg1[%863, %c0_262] : memref<50x16xf32, #tpu.memory_space<vmem>>, vector<1x16xf32>
    %865 = tpu.concatenate %861, %864 in 0 : vector<1x16xf32>, vector<1x16xf32> -> vector<2x16xf32>
    %866 = tpu.concatenate %865, %823 in 1 : vector<2x16xf32>, vector<2x32xf32> -> vector<2x48xf32>
    %cst_263 = arith.constant dense<0.000000e+00> : vector<2x128xf32>
    %867 = tpu.matmul %866, %0, %cst_263 {dimension_numbers = #tpu.dot_dimension_numbers<[1], [0], [0], [1], [0, 0, 1, 1], [], []>} : vector<2x48xf32>, vector<48x128xf32>, vector<2x128xf32> -> vector<2x128xf32>
    %868 = vector.broadcast %1 : vector<1x128xf32> to vector<2x128xf32>
    %869 = arith.addf %867, %868 : vector<2x128xf32>
    %870 = vector.extract_strided_slice %869 {offsets = [0, 0], sizes = [2, 32], strides = [1, 1]} : vector<2x128xf32> to vector<2x32xf32>
    %cst_264 = arith.constant 5.000000e-01 : f32
    %871 = vector.broadcast %cst_264 : f32 to vector<2x32xf32>
    %872 = arith.mulf %871, %870 : vector<2x32xf32>
    %873 = math.tanh %872 : vector<2x32xf32>
    %cst_265 = arith.constant 5.000000e-01 : f32
    %874 = vector.broadcast %cst_265 : f32 to vector<2x32xf32>
    %875 = arith.mulf %874, %873 : vector<2x32xf32>
    %cst_266 = arith.constant 5.000000e-01 : f32
    %876 = vector.broadcast %cst_266 : f32 to vector<2x32xf32>
    %877 = arith.addf %875, %876 : vector<2x32xf32>
    %878 = vector.extract_strided_slice %869 {offsets = [0, 32], sizes = [2, 32], strides = [1, 1]} : vector<2x128xf32> to vector<2x32xf32>
    %cst_267 = arith.constant 5.000000e-01 : f32
    %879 = vector.broadcast %cst_267 : f32 to vector<2x32xf32>
    %880 = arith.mulf %879, %878 : vector<2x32xf32>
    %881 = math.tanh %880 : vector<2x32xf32>
    %cst_268 = arith.constant 5.000000e-01 : f32
    %882 = vector.broadcast %cst_268 : f32 to vector<2x32xf32>
    %883 = arith.mulf %882, %881 : vector<2x32xf32>
    %cst_269 = arith.constant 5.000000e-01 : f32
    %884 = vector.broadcast %cst_269 : f32 to vector<2x32xf32>
    %885 = arith.addf %883, %884 : vector<2x32xf32>
    %886 = vector.extract_strided_slice %869 {offsets = [0, 64], sizes = [2, 32], strides = [1, 1]} : vector<2x128xf32> to vector<2x32xf32>
    %887 = math.tanh %886 : vector<2x32xf32>
    %888 = vector.extract_strided_slice %869 {offsets = [0, 96], sizes = [2, 32], strides = [1, 1]} : vector<2x128xf32> to vector<2x32xf32>
    %cst_270 = arith.constant 5.000000e-01 : f32
    %889 = vector.broadcast %cst_270 : f32 to vector<2x32xf32>
    %890 = arith.mulf %889, %888 : vector<2x32xf32>
    %891 = math.tanh %890 : vector<2x32xf32>
    %cst_271 = arith.constant 5.000000e-01 : f32
    %892 = vector.broadcast %cst_271 : f32 to vector<2x32xf32>
    %893 = arith.mulf %892, %891 : vector<2x32xf32>
    %cst_272 = arith.constant 5.000000e-01 : f32
    %894 = vector.broadcast %cst_272 : f32 to vector<2x32xf32>
    %895 = arith.addf %893, %894 : vector<2x32xf32>
    %896 = arith.mulf %885, %821 : vector<2x32xf32>
    %897 = arith.mulf %877, %887 : vector<2x32xf32>
    %898 = arith.addf %896, %897 : vector<2x32xf32>
    %899 = math.tanh %898 : vector<2x32xf32>
    %900 = arith.mulf %895, %899 : vector<2x32xf32>
    %901 = tpu.concatenate %900, %858 in 1 : vector<2x32xf32>, vector<2x32xf32> -> vector<2x64xf32>
    %cst_273 = arith.constant dense<0.000000e+00> : vector<2x128xf32>
    %902 = tpu.matmul %901, %2, %cst_273 {dimension_numbers = #tpu.dot_dimension_numbers<[1], [0], [0], [1], [0, 0, 1, 1], [], []>} : vector<2x64xf32>, vector<64x128xf32>, vector<2x128xf32> -> vector<2x128xf32>
    %903 = vector.broadcast %3 : vector<1x128xf32> to vector<2x128xf32>
    %904 = arith.addf %902, %903 : vector<2x128xf32>
    %905 = vector.extract_strided_slice %904 {offsets = [0, 0], sizes = [2, 32], strides = [1, 1]} : vector<2x128xf32> to vector<2x32xf32>
    %cst_274 = arith.constant 5.000000e-01 : f32
    %906 = vector.broadcast %cst_274 : f32 to vector<2x32xf32>
    %907 = arith.mulf %906, %905 : vector<2x32xf32>
    %908 = math.tanh %907 : vector<2x32xf32>
    %cst_275 = arith.constant 5.000000e-01 : f32
    %909 = vector.broadcast %cst_275 : f32 to vector<2x32xf32>
    %910 = arith.mulf %909, %908 : vector<2x32xf32>
    %cst_276 = arith.constant 5.000000e-01 : f32
    %911 = vector.broadcast %cst_276 : f32 to vector<2x32xf32>
    %912 = arith.addf %910, %911 : vector<2x32xf32>
    %913 = vector.extract_strided_slice %904 {offsets = [0, 32], sizes = [2, 32], strides = [1, 1]} : vector<2x128xf32> to vector<2x32xf32>
    %cst_277 = arith.constant 5.000000e-01 : f32
    %914 = vector.broadcast %cst_277 : f32 to vector<2x32xf32>
    %915 = arith.mulf %914, %913 : vector<2x32xf32>
    %916 = math.tanh %915 : vector<2x32xf32>
    %cst_278 = arith.constant 5.000000e-01 : f32
    %917 = vector.broadcast %cst_278 : f32 to vector<2x32xf32>
    %918 = arith.mulf %917, %916 : vector<2x32xf32>
    %cst_279 = arith.constant 5.000000e-01 : f32
    %919 = vector.broadcast %cst_279 : f32 to vector<2x32xf32>
    %920 = arith.addf %918, %919 : vector<2x32xf32>
    %921 = vector.extract_strided_slice %904 {offsets = [0, 64], sizes = [2, 32], strides = [1, 1]} : vector<2x128xf32> to vector<2x32xf32>
    %922 = math.tanh %921 : vector<2x32xf32>
    %923 = vector.extract_strided_slice %904 {offsets = [0, 96], sizes = [2, 32], strides = [1, 1]} : vector<2x128xf32> to vector<2x32xf32>
    %cst_280 = arith.constant 5.000000e-01 : f32
    %924 = vector.broadcast %cst_280 : f32 to vector<2x32xf32>
    %925 = arith.mulf %924, %923 : vector<2x32xf32>
    %926 = math.tanh %925 : vector<2x32xf32>
    %cst_281 = arith.constant 5.000000e-01 : f32
    %927 = vector.broadcast %cst_281 : f32 to vector<2x32xf32>
    %928 = arith.mulf %927, %926 : vector<2x32xf32>
    %cst_282 = arith.constant 5.000000e-01 : f32
    %929 = vector.broadcast %cst_282 : f32 to vector<2x32xf32>
    %930 = arith.addf %928, %929 : vector<2x32xf32>
    %931 = arith.mulf %920, %856 : vector<2x32xf32>
    %932 = arith.mulf %912, %922 : vector<2x32xf32>
    %933 = arith.addf %931, %932 : vector<2x32xf32>
    %934 = math.tanh %933 : vector<2x32xf32>
    %935 = arith.mulf %930, %934 : vector<2x32xf32>
    %c24 = arith.constant 24 : index
    %936 = memref.load %arg0[%c24] : memref<48xi32, #tpu.memory_space<smem>>
    %937 = arith.index_cast %936 : i32 to index
    %c0_283 = arith.constant 0 : index
    %938 = vector.load %arg1[%937, %c0_283] : memref<50x16xf32, #tpu.memory_space<vmem>>, vector<1x16xf32>
    %c25 = arith.constant 25 : index
    %939 = memref.load %arg0[%c25] : memref<48xi32, #tpu.memory_space<smem>>
    %940 = arith.index_cast %939 : i32 to index
    %c0_284 = arith.constant 0 : index
    %941 = vector.load %arg1[%940, %c0_284] : memref<50x16xf32, #tpu.memory_space<vmem>>, vector<1x16xf32>
    %942 = tpu.concatenate %938, %941 in 0 : vector<1x16xf32>, vector<1x16xf32> -> vector<2x16xf32>
    %943 = tpu.concatenate %942, %900 in 1 : vector<2x16xf32>, vector<2x32xf32> -> vector<2x48xf32>
    %cst_285 = arith.constant dense<0.000000e+00> : vector<2x128xf32>
    %944 = tpu.matmul %943, %0, %cst_285 {dimension_numbers = #tpu.dot_dimension_numbers<[1], [0], [0], [1], [0, 0, 1, 1], [], []>} : vector<2x48xf32>, vector<48x128xf32>, vector<2x128xf32> -> vector<2x128xf32>
    %945 = vector.broadcast %1 : vector<1x128xf32> to vector<2x128xf32>
    %946 = arith.addf %944, %945 : vector<2x128xf32>
    %947 = vector.extract_strided_slice %946 {offsets = [0, 0], sizes = [2, 32], strides = [1, 1]} : vector<2x128xf32> to vector<2x32xf32>
    %cst_286 = arith.constant 5.000000e-01 : f32
    %948 = vector.broadcast %cst_286 : f32 to vector<2x32xf32>
    %949 = arith.mulf %948, %947 : vector<2x32xf32>
    %950 = math.tanh %949 : vector<2x32xf32>
    %cst_287 = arith.constant 5.000000e-01 : f32
    %951 = vector.broadcast %cst_287 : f32 to vector<2x32xf32>
    %952 = arith.mulf %951, %950 : vector<2x32xf32>
    %cst_288 = arith.constant 5.000000e-01 : f32
    %953 = vector.broadcast %cst_288 : f32 to vector<2x32xf32>
    %954 = arith.addf %952, %953 : vector<2x32xf32>
    %955 = vector.extract_strided_slice %946 {offsets = [0, 32], sizes = [2, 32], strides = [1, 1]} : vector<2x128xf32> to vector<2x32xf32>
    %cst_289 = arith.constant 5.000000e-01 : f32
    %956 = vector.broadcast %cst_289 : f32 to vector<2x32xf32>
    %957 = arith.mulf %956, %955 : vector<2x32xf32>
    %958 = math.tanh %957 : vector<2x32xf32>
    %cst_290 = arith.constant 5.000000e-01 : f32
    %959 = vector.broadcast %cst_290 : f32 to vector<2x32xf32>
    %960 = arith.mulf %959, %958 : vector<2x32xf32>
    %cst_291 = arith.constant 5.000000e-01 : f32
    %961 = vector.broadcast %cst_291 : f32 to vector<2x32xf32>
    %962 = arith.addf %960, %961 : vector<2x32xf32>
    %963 = vector.extract_strided_slice %946 {offsets = [0, 64], sizes = [2, 32], strides = [1, 1]} : vector<2x128xf32> to vector<2x32xf32>
    %964 = math.tanh %963 : vector<2x32xf32>
    %965 = vector.extract_strided_slice %946 {offsets = [0, 96], sizes = [2, 32], strides = [1, 1]} : vector<2x128xf32> to vector<2x32xf32>
    %cst_292 = arith.constant 5.000000e-01 : f32
    %966 = vector.broadcast %cst_292 : f32 to vector<2x32xf32>
    %967 = arith.mulf %966, %965 : vector<2x32xf32>
    %968 = math.tanh %967 : vector<2x32xf32>
    %cst_293 = arith.constant 5.000000e-01 : f32
    %969 = vector.broadcast %cst_293 : f32 to vector<2x32xf32>
    %970 = arith.mulf %969, %968 : vector<2x32xf32>
    %cst_294 = arith.constant 5.000000e-01 : f32
    %971 = vector.broadcast %cst_294 : f32 to vector<2x32xf32>
    %972 = arith.addf %970, %971 : vector<2x32xf32>
    %973 = arith.mulf %962, %898 : vector<2x32xf32>
    %974 = arith.mulf %954, %964 : vector<2x32xf32>
    %975 = arith.addf %973, %974 : vector<2x32xf32>
    %976 = math.tanh %975 : vector<2x32xf32>
    %977 = arith.mulf %972, %976 : vector<2x32xf32>
    %978 = tpu.concatenate %977, %935 in 1 : vector<2x32xf32>, vector<2x32xf32> -> vector<2x64xf32>
    %cst_295 = arith.constant dense<0.000000e+00> : vector<2x128xf32>
    %979 = tpu.matmul %978, %2, %cst_295 {dimension_numbers = #tpu.dot_dimension_numbers<[1], [0], [0], [1], [0, 0, 1, 1], [], []>} : vector<2x64xf32>, vector<64x128xf32>, vector<2x128xf32> -> vector<2x128xf32>
    %980 = vector.broadcast %3 : vector<1x128xf32> to vector<2x128xf32>
    %981 = arith.addf %979, %980 : vector<2x128xf32>
    %982 = vector.extract_strided_slice %981 {offsets = [0, 0], sizes = [2, 32], strides = [1, 1]} : vector<2x128xf32> to vector<2x32xf32>
    %cst_296 = arith.constant 5.000000e-01 : f32
    %983 = vector.broadcast %cst_296 : f32 to vector<2x32xf32>
    %984 = arith.mulf %983, %982 : vector<2x32xf32>
    %985 = math.tanh %984 : vector<2x32xf32>
    %cst_297 = arith.constant 5.000000e-01 : f32
    %986 = vector.broadcast %cst_297 : f32 to vector<2x32xf32>
    %987 = arith.mulf %986, %985 : vector<2x32xf32>
    %cst_298 = arith.constant 5.000000e-01 : f32
    %988 = vector.broadcast %cst_298 : f32 to vector<2x32xf32>
    %989 = arith.addf %987, %988 : vector<2x32xf32>
    %990 = vector.extract_strided_slice %981 {offsets = [0, 32], sizes = [2, 32], strides = [1, 1]} : vector<2x128xf32> to vector<2x32xf32>
    %cst_299 = arith.constant 5.000000e-01 : f32
    %991 = vector.broadcast %cst_299 : f32 to vector<2x32xf32>
    %992 = arith.mulf %991, %990 : vector<2x32xf32>
    %993 = math.tanh %992 : vector<2x32xf32>
    %cst_300 = arith.constant 5.000000e-01 : f32
    %994 = vector.broadcast %cst_300 : f32 to vector<2x32xf32>
    %995 = arith.mulf %994, %993 : vector<2x32xf32>
    %cst_301 = arith.constant 5.000000e-01 : f32
    %996 = vector.broadcast %cst_301 : f32 to vector<2x32xf32>
    %997 = arith.addf %995, %996 : vector<2x32xf32>
    %998 = vector.extract_strided_slice %981 {offsets = [0, 64], sizes = [2, 32], strides = [1, 1]} : vector<2x128xf32> to vector<2x32xf32>
    %999 = math.tanh %998 : vector<2x32xf32>
    %1000 = vector.extract_strided_slice %981 {offsets = [0, 96], sizes = [2, 32], strides = [1, 1]} : vector<2x128xf32> to vector<2x32xf32>
    %cst_302 = arith.constant 5.000000e-01 : f32
    %1001 = vector.broadcast %cst_302 : f32 to vector<2x32xf32>
    %1002 = arith.mulf %1001, %1000 : vector<2x32xf32>
    %1003 = math.tanh %1002 : vector<2x32xf32>
    %cst_303 = arith.constant 5.000000e-01 : f32
    %1004 = vector.broadcast %cst_303 : f32 to vector<2x32xf32>
    %1005 = arith.mulf %1004, %1003 : vector<2x32xf32>
    %cst_304 = arith.constant 5.000000e-01 : f32
    %1006 = vector.broadcast %cst_304 : f32 to vector<2x32xf32>
    %1007 = arith.addf %1005, %1006 : vector<2x32xf32>
    %1008 = arith.mulf %997, %933 : vector<2x32xf32>
    %1009 = arith.mulf %989, %999 : vector<2x32xf32>
    %1010 = arith.addf %1008, %1009 : vector<2x32xf32>
    %1011 = math.tanh %1010 : vector<2x32xf32>
    %1012 = arith.mulf %1007, %1011 : vector<2x32xf32>
    %c26 = arith.constant 26 : index
    %1013 = memref.load %arg0[%c26] : memref<48xi32, #tpu.memory_space<smem>>
    %1014 = arith.index_cast %1013 : i32 to index
    %c0_305 = arith.constant 0 : index
    %1015 = vector.load %arg1[%1014, %c0_305] : memref<50x16xf32, #tpu.memory_space<vmem>>, vector<1x16xf32>
    %c27 = arith.constant 27 : index
    %1016 = memref.load %arg0[%c27] : memref<48xi32, #tpu.memory_space<smem>>
    %1017 = arith.index_cast %1016 : i32 to index
    %c0_306 = arith.constant 0 : index
    %1018 = vector.load %arg1[%1017, %c0_306] : memref<50x16xf32, #tpu.memory_space<vmem>>, vector<1x16xf32>
    %1019 = tpu.concatenate %1015, %1018 in 0 : vector<1x16xf32>, vector<1x16xf32> -> vector<2x16xf32>
    %1020 = tpu.concatenate %1019, %977 in 1 : vector<2x16xf32>, vector<2x32xf32> -> vector<2x48xf32>
    %cst_307 = arith.constant dense<0.000000e+00> : vector<2x128xf32>
    %1021 = tpu.matmul %1020, %0, %cst_307 {dimension_numbers = #tpu.dot_dimension_numbers<[1], [0], [0], [1], [0, 0, 1, 1], [], []>} : vector<2x48xf32>, vector<48x128xf32>, vector<2x128xf32> -> vector<2x128xf32>
    %1022 = vector.broadcast %1 : vector<1x128xf32> to vector<2x128xf32>
    %1023 = arith.addf %1021, %1022 : vector<2x128xf32>
    %1024 = vector.extract_strided_slice %1023 {offsets = [0, 0], sizes = [2, 32], strides = [1, 1]} : vector<2x128xf32> to vector<2x32xf32>
    %cst_308 = arith.constant 5.000000e-01 : f32
    %1025 = vector.broadcast %cst_308 : f32 to vector<2x32xf32>
    %1026 = arith.mulf %1025, %1024 : vector<2x32xf32>
    %1027 = math.tanh %1026 : vector<2x32xf32>
    %cst_309 = arith.constant 5.000000e-01 : f32
    %1028 = vector.broadcast %cst_309 : f32 to vector<2x32xf32>
    %1029 = arith.mulf %1028, %1027 : vector<2x32xf32>
    %cst_310 = arith.constant 5.000000e-01 : f32
    %1030 = vector.broadcast %cst_310 : f32 to vector<2x32xf32>
    %1031 = arith.addf %1029, %1030 : vector<2x32xf32>
    %1032 = vector.extract_strided_slice %1023 {offsets = [0, 32], sizes = [2, 32], strides = [1, 1]} : vector<2x128xf32> to vector<2x32xf32>
    %cst_311 = arith.constant 5.000000e-01 : f32
    %1033 = vector.broadcast %cst_311 : f32 to vector<2x32xf32>
    %1034 = arith.mulf %1033, %1032 : vector<2x32xf32>
    %1035 = math.tanh %1034 : vector<2x32xf32>
    %cst_312 = arith.constant 5.000000e-01 : f32
    %1036 = vector.broadcast %cst_312 : f32 to vector<2x32xf32>
    %1037 = arith.mulf %1036, %1035 : vector<2x32xf32>
    %cst_313 = arith.constant 5.000000e-01 : f32
    %1038 = vector.broadcast %cst_313 : f32 to vector<2x32xf32>
    %1039 = arith.addf %1037, %1038 : vector<2x32xf32>
    %1040 = vector.extract_strided_slice %1023 {offsets = [0, 64], sizes = [2, 32], strides = [1, 1]} : vector<2x128xf32> to vector<2x32xf32>
    %1041 = math.tanh %1040 : vector<2x32xf32>
    %1042 = vector.extract_strided_slice %1023 {offsets = [0, 96], sizes = [2, 32], strides = [1, 1]} : vector<2x128xf32> to vector<2x32xf32>
    %cst_314 = arith.constant 5.000000e-01 : f32
    %1043 = vector.broadcast %cst_314 : f32 to vector<2x32xf32>
    %1044 = arith.mulf %1043, %1042 : vector<2x32xf32>
    %1045 = math.tanh %1044 : vector<2x32xf32>
    %cst_315 = arith.constant 5.000000e-01 : f32
    %1046 = vector.broadcast %cst_315 : f32 to vector<2x32xf32>
    %1047 = arith.mulf %1046, %1045 : vector<2x32xf32>
    %cst_316 = arith.constant 5.000000e-01 : f32
    %1048 = vector.broadcast %cst_316 : f32 to vector<2x32xf32>
    %1049 = arith.addf %1047, %1048 : vector<2x32xf32>
    %1050 = arith.mulf %1039, %975 : vector<2x32xf32>
    %1051 = arith.mulf %1031, %1041 : vector<2x32xf32>
    %1052 = arith.addf %1050, %1051 : vector<2x32xf32>
    %1053 = math.tanh %1052 : vector<2x32xf32>
    %1054 = arith.mulf %1049, %1053 : vector<2x32xf32>
    %1055 = tpu.concatenate %1054, %1012 in 1 : vector<2x32xf32>, vector<2x32xf32> -> vector<2x64xf32>
    %cst_317 = arith.constant dense<0.000000e+00> : vector<2x128xf32>
    %1056 = tpu.matmul %1055, %2, %cst_317 {dimension_numbers = #tpu.dot_dimension_numbers<[1], [0], [0], [1], [0, 0, 1, 1], [], []>} : vector<2x64xf32>, vector<64x128xf32>, vector<2x128xf32> -> vector<2x128xf32>
    %1057 = vector.broadcast %3 : vector<1x128xf32> to vector<2x128xf32>
    %1058 = arith.addf %1056, %1057 : vector<2x128xf32>
    %1059 = vector.extract_strided_slice %1058 {offsets = [0, 0], sizes = [2, 32], strides = [1, 1]} : vector<2x128xf32> to vector<2x32xf32>
    %cst_318 = arith.constant 5.000000e-01 : f32
    %1060 = vector.broadcast %cst_318 : f32 to vector<2x32xf32>
    %1061 = arith.mulf %1060, %1059 : vector<2x32xf32>
    %1062 = math.tanh %1061 : vector<2x32xf32>
    %cst_319 = arith.constant 5.000000e-01 : f32
    %1063 = vector.broadcast %cst_319 : f32 to vector<2x32xf32>
    %1064 = arith.mulf %1063, %1062 : vector<2x32xf32>
    %cst_320 = arith.constant 5.000000e-01 : f32
    %1065 = vector.broadcast %cst_320 : f32 to vector<2x32xf32>
    %1066 = arith.addf %1064, %1065 : vector<2x32xf32>
    %1067 = vector.extract_strided_slice %1058 {offsets = [0, 32], sizes = [2, 32], strides = [1, 1]} : vector<2x128xf32> to vector<2x32xf32>
    %cst_321 = arith.constant 5.000000e-01 : f32
    %1068 = vector.broadcast %cst_321 : f32 to vector<2x32xf32>
    %1069 = arith.mulf %1068, %1067 : vector<2x32xf32>
    %1070 = math.tanh %1069 : vector<2x32xf32>
    %cst_322 = arith.constant 5.000000e-01 : f32
    %1071 = vector.broadcast %cst_322 : f32 to vector<2x32xf32>
    %1072 = arith.mulf %1071, %1070 : vector<2x32xf32>
    %cst_323 = arith.constant 5.000000e-01 : f32
    %1073 = vector.broadcast %cst_323 : f32 to vector<2x32xf32>
    %1074 = arith.addf %1072, %1073 : vector<2x32xf32>
    %1075 = vector.extract_strided_slice %1058 {offsets = [0, 64], sizes = [2, 32], strides = [1, 1]} : vector<2x128xf32> to vector<2x32xf32>
    %1076 = math.tanh %1075 : vector<2x32xf32>
    %1077 = vector.extract_strided_slice %1058 {offsets = [0, 96], sizes = [2, 32], strides = [1, 1]} : vector<2x128xf32> to vector<2x32xf32>
    %cst_324 = arith.constant 5.000000e-01 : f32
    %1078 = vector.broadcast %cst_324 : f32 to vector<2x32xf32>
    %1079 = arith.mulf %1078, %1077 : vector<2x32xf32>
    %1080 = math.tanh %1079 : vector<2x32xf32>
    %cst_325 = arith.constant 5.000000e-01 : f32
    %1081 = vector.broadcast %cst_325 : f32 to vector<2x32xf32>
    %1082 = arith.mulf %1081, %1080 : vector<2x32xf32>
    %cst_326 = arith.constant 5.000000e-01 : f32
    %1083 = vector.broadcast %cst_326 : f32 to vector<2x32xf32>
    %1084 = arith.addf %1082, %1083 : vector<2x32xf32>
    %1085 = arith.mulf %1074, %1010 : vector<2x32xf32>
    %1086 = arith.mulf %1066, %1076 : vector<2x32xf32>
    %1087 = arith.addf %1085, %1086 : vector<2x32xf32>
    %1088 = math.tanh %1087 : vector<2x32xf32>
    %1089 = arith.mulf %1084, %1088 : vector<2x32xf32>
    %c28 = arith.constant 28 : index
    %1090 = memref.load %arg0[%c28] : memref<48xi32, #tpu.memory_space<smem>>
    %1091 = arith.index_cast %1090 : i32 to index
    %c0_327 = arith.constant 0 : index
    %1092 = vector.load %arg1[%1091, %c0_327] : memref<50x16xf32, #tpu.memory_space<vmem>>, vector<1x16xf32>
    %c29 = arith.constant 29 : index
    %1093 = memref.load %arg0[%c29] : memref<48xi32, #tpu.memory_space<smem>>
    %1094 = arith.index_cast %1093 : i32 to index
    %c0_328 = arith.constant 0 : index
    %1095 = vector.load %arg1[%1094, %c0_328] : memref<50x16xf32, #tpu.memory_space<vmem>>, vector<1x16xf32>
    %1096 = tpu.concatenate %1092, %1095 in 0 : vector<1x16xf32>, vector<1x16xf32> -> vector<2x16xf32>
    %1097 = tpu.concatenate %1096, %1054 in 1 : vector<2x16xf32>, vector<2x32xf32> -> vector<2x48xf32>
    %cst_329 = arith.constant dense<0.000000e+00> : vector<2x128xf32>
    %1098 = tpu.matmul %1097, %0, %cst_329 {dimension_numbers = #tpu.dot_dimension_numbers<[1], [0], [0], [1], [0, 0, 1, 1], [], []>} : vector<2x48xf32>, vector<48x128xf32>, vector<2x128xf32> -> vector<2x128xf32>
    %1099 = vector.broadcast %1 : vector<1x128xf32> to vector<2x128xf32>
    %1100 = arith.addf %1098, %1099 : vector<2x128xf32>
    %1101 = vector.extract_strided_slice %1100 {offsets = [0, 0], sizes = [2, 32], strides = [1, 1]} : vector<2x128xf32> to vector<2x32xf32>
    %cst_330 = arith.constant 5.000000e-01 : f32
    %1102 = vector.broadcast %cst_330 : f32 to vector<2x32xf32>
    %1103 = arith.mulf %1102, %1101 : vector<2x32xf32>
    %1104 = math.tanh %1103 : vector<2x32xf32>
    %cst_331 = arith.constant 5.000000e-01 : f32
    %1105 = vector.broadcast %cst_331 : f32 to vector<2x32xf32>
    %1106 = arith.mulf %1105, %1104 : vector<2x32xf32>
    %cst_332 = arith.constant 5.000000e-01 : f32
    %1107 = vector.broadcast %cst_332 : f32 to vector<2x32xf32>
    %1108 = arith.addf %1106, %1107 : vector<2x32xf32>
    %1109 = vector.extract_strided_slice %1100 {offsets = [0, 32], sizes = [2, 32], strides = [1, 1]} : vector<2x128xf32> to vector<2x32xf32>
    %cst_333 = arith.constant 5.000000e-01 : f32
    %1110 = vector.broadcast %cst_333 : f32 to vector<2x32xf32>
    %1111 = arith.mulf %1110, %1109 : vector<2x32xf32>
    %1112 = math.tanh %1111 : vector<2x32xf32>
    %cst_334 = arith.constant 5.000000e-01 : f32
    %1113 = vector.broadcast %cst_334 : f32 to vector<2x32xf32>
    %1114 = arith.mulf %1113, %1112 : vector<2x32xf32>
    %cst_335 = arith.constant 5.000000e-01 : f32
    %1115 = vector.broadcast %cst_335 : f32 to vector<2x32xf32>
    %1116 = arith.addf %1114, %1115 : vector<2x32xf32>
    %1117 = vector.extract_strided_slice %1100 {offsets = [0, 64], sizes = [2, 32], strides = [1, 1]} : vector<2x128xf32> to vector<2x32xf32>
    %1118 = math.tanh %1117 : vector<2x32xf32>
    %1119 = vector.extract_strided_slice %1100 {offsets = [0, 96], sizes = [2, 32], strides = [1, 1]} : vector<2x128xf32> to vector<2x32xf32>
    %cst_336 = arith.constant 5.000000e-01 : f32
    %1120 = vector.broadcast %cst_336 : f32 to vector<2x32xf32>
    %1121 = arith.mulf %1120, %1119 : vector<2x32xf32>
    %1122 = math.tanh %1121 : vector<2x32xf32>
    %cst_337 = arith.constant 5.000000e-01 : f32
    %1123 = vector.broadcast %cst_337 : f32 to vector<2x32xf32>
    %1124 = arith.mulf %1123, %1122 : vector<2x32xf32>
    %cst_338 = arith.constant 5.000000e-01 : f32
    %1125 = vector.broadcast %cst_338 : f32 to vector<2x32xf32>
    %1126 = arith.addf %1124, %1125 : vector<2x32xf32>
    %1127 = arith.mulf %1116, %1052 : vector<2x32xf32>
    %1128 = arith.mulf %1108, %1118 : vector<2x32xf32>
    %1129 = arith.addf %1127, %1128 : vector<2x32xf32>
    %1130 = math.tanh %1129 : vector<2x32xf32>
    %1131 = arith.mulf %1126, %1130 : vector<2x32xf32>
    %1132 = tpu.concatenate %1131, %1089 in 1 : vector<2x32xf32>, vector<2x32xf32> -> vector<2x64xf32>
    %cst_339 = arith.constant dense<0.000000e+00> : vector<2x128xf32>
    %1133 = tpu.matmul %1132, %2, %cst_339 {dimension_numbers = #tpu.dot_dimension_numbers<[1], [0], [0], [1], [0, 0, 1, 1], [], []>} : vector<2x64xf32>, vector<64x128xf32>, vector<2x128xf32> -> vector<2x128xf32>
    %1134 = vector.broadcast %3 : vector<1x128xf32> to vector<2x128xf32>
    %1135 = arith.addf %1133, %1134 : vector<2x128xf32>
    %1136 = vector.extract_strided_slice %1135 {offsets = [0, 0], sizes = [2, 32], strides = [1, 1]} : vector<2x128xf32> to vector<2x32xf32>
    %cst_340 = arith.constant 5.000000e-01 : f32
    %1137 = vector.broadcast %cst_340 : f32 to vector<2x32xf32>
    %1138 = arith.mulf %1137, %1136 : vector<2x32xf32>
    %1139 = math.tanh %1138 : vector<2x32xf32>
    %cst_341 = arith.constant 5.000000e-01 : f32
    %1140 = vector.broadcast %cst_341 : f32 to vector<2x32xf32>
    %1141 = arith.mulf %1140, %1139 : vector<2x32xf32>
    %cst_342 = arith.constant 5.000000e-01 : f32
    %1142 = vector.broadcast %cst_342 : f32 to vector<2x32xf32>
    %1143 = arith.addf %1141, %1142 : vector<2x32xf32>
    %1144 = vector.extract_strided_slice %1135 {offsets = [0, 32], sizes = [2, 32], strides = [1, 1]} : vector<2x128xf32> to vector<2x32xf32>
    %cst_343 = arith.constant 5.000000e-01 : f32
    %1145 = vector.broadcast %cst_343 : f32 to vector<2x32xf32>
    %1146 = arith.mulf %1145, %1144 : vector<2x32xf32>
    %1147 = math.tanh %1146 : vector<2x32xf32>
    %cst_344 = arith.constant 5.000000e-01 : f32
    %1148 = vector.broadcast %cst_344 : f32 to vector<2x32xf32>
    %1149 = arith.mulf %1148, %1147 : vector<2x32xf32>
    %cst_345 = arith.constant 5.000000e-01 : f32
    %1150 = vector.broadcast %cst_345 : f32 to vector<2x32xf32>
    %1151 = arith.addf %1149, %1150 : vector<2x32xf32>
    %1152 = vector.extract_strided_slice %1135 {offsets = [0, 64], sizes = [2, 32], strides = [1, 1]} : vector<2x128xf32> to vector<2x32xf32>
    %1153 = math.tanh %1152 : vector<2x32xf32>
    %1154 = vector.extract_strided_slice %1135 {offsets = [0, 96], sizes = [2, 32], strides = [1, 1]} : vector<2x128xf32> to vector<2x32xf32>
    %cst_346 = arith.constant 5.000000e-01 : f32
    %1155 = vector.broadcast %cst_346 : f32 to vector<2x32xf32>
    %1156 = arith.mulf %1155, %1154 : vector<2x32xf32>
    %1157 = math.tanh %1156 : vector<2x32xf32>
    %cst_347 = arith.constant 5.000000e-01 : f32
    %1158 = vector.broadcast %cst_347 : f32 to vector<2x32xf32>
    %1159 = arith.mulf %1158, %1157 : vector<2x32xf32>
    %cst_348 = arith.constant 5.000000e-01 : f32
    %1160 = vector.broadcast %cst_348 : f32 to vector<2x32xf32>
    %1161 = arith.addf %1159, %1160 : vector<2x32xf32>
    %1162 = arith.mulf %1151, %1087 : vector<2x32xf32>
    %1163 = arith.mulf %1143, %1153 : vector<2x32xf32>
    %1164 = arith.addf %1162, %1163 : vector<2x32xf32>
    %1165 = math.tanh %1164 : vector<2x32xf32>
    %1166 = arith.mulf %1161, %1165 : vector<2x32xf32>
    %c30 = arith.constant 30 : index
    %1167 = memref.load %arg0[%c30] : memref<48xi32, #tpu.memory_space<smem>>
    %1168 = arith.index_cast %1167 : i32 to index
    %c0_349 = arith.constant 0 : index
    %1169 = vector.load %arg1[%1168, %c0_349] : memref<50x16xf32, #tpu.memory_space<vmem>>, vector<1x16xf32>
    %c31 = arith.constant 31 : index
    %1170 = memref.load %arg0[%c31] : memref<48xi32, #tpu.memory_space<smem>>
    %1171 = arith.index_cast %1170 : i32 to index
    %c0_350 = arith.constant 0 : index
    %1172 = vector.load %arg1[%1171, %c0_350] : memref<50x16xf32, #tpu.memory_space<vmem>>, vector<1x16xf32>
    %1173 = tpu.concatenate %1169, %1172 in 0 : vector<1x16xf32>, vector<1x16xf32> -> vector<2x16xf32>
    %1174 = tpu.concatenate %1173, %1131 in 1 : vector<2x16xf32>, vector<2x32xf32> -> vector<2x48xf32>
    %cst_351 = arith.constant dense<0.000000e+00> : vector<2x128xf32>
    %1175 = tpu.matmul %1174, %0, %cst_351 {dimension_numbers = #tpu.dot_dimension_numbers<[1], [0], [0], [1], [0, 0, 1, 1], [], []>} : vector<2x48xf32>, vector<48x128xf32>, vector<2x128xf32> -> vector<2x128xf32>
    %1176 = vector.broadcast %1 : vector<1x128xf32> to vector<2x128xf32>
    %1177 = arith.addf %1175, %1176 : vector<2x128xf32>
    %1178 = vector.extract_strided_slice %1177 {offsets = [0, 0], sizes = [2, 32], strides = [1, 1]} : vector<2x128xf32> to vector<2x32xf32>
    %cst_352 = arith.constant 5.000000e-01 : f32
    %1179 = vector.broadcast %cst_352 : f32 to vector<2x32xf32>
    %1180 = arith.mulf %1179, %1178 : vector<2x32xf32>
    %1181 = math.tanh %1180 : vector<2x32xf32>
    %cst_353 = arith.constant 5.000000e-01 : f32
    %1182 = vector.broadcast %cst_353 : f32 to vector<2x32xf32>
    %1183 = arith.mulf %1182, %1181 : vector<2x32xf32>
    %cst_354 = arith.constant 5.000000e-01 : f32
    %1184 = vector.broadcast %cst_354 : f32 to vector<2x32xf32>
    %1185 = arith.addf %1183, %1184 : vector<2x32xf32>
    %1186 = vector.extract_strided_slice %1177 {offsets = [0, 32], sizes = [2, 32], strides = [1, 1]} : vector<2x128xf32> to vector<2x32xf32>
    %cst_355 = arith.constant 5.000000e-01 : f32
    %1187 = vector.broadcast %cst_355 : f32 to vector<2x32xf32>
    %1188 = arith.mulf %1187, %1186 : vector<2x32xf32>
    %1189 = math.tanh %1188 : vector<2x32xf32>
    %cst_356 = arith.constant 5.000000e-01 : f32
    %1190 = vector.broadcast %cst_356 : f32 to vector<2x32xf32>
    %1191 = arith.mulf %1190, %1189 : vector<2x32xf32>
    %cst_357 = arith.constant 5.000000e-01 : f32
    %1192 = vector.broadcast %cst_357 : f32 to vector<2x32xf32>
    %1193 = arith.addf %1191, %1192 : vector<2x32xf32>
    %1194 = vector.extract_strided_slice %1177 {offsets = [0, 64], sizes = [2, 32], strides = [1, 1]} : vector<2x128xf32> to vector<2x32xf32>
    %1195 = math.tanh %1194 : vector<2x32xf32>
    %1196 = vector.extract_strided_slice %1177 {offsets = [0, 96], sizes = [2, 32], strides = [1, 1]} : vector<2x128xf32> to vector<2x32xf32>
    %cst_358 = arith.constant 5.000000e-01 : f32
    %1197 = vector.broadcast %cst_358 : f32 to vector<2x32xf32>
    %1198 = arith.mulf %1197, %1196 : vector<2x32xf32>
    %1199 = math.tanh %1198 : vector<2x32xf32>
    %cst_359 = arith.constant 5.000000e-01 : f32
    %1200 = vector.broadcast %cst_359 : f32 to vector<2x32xf32>
    %1201 = arith.mulf %1200, %1199 : vector<2x32xf32>
    %cst_360 = arith.constant 5.000000e-01 : f32
    %1202 = vector.broadcast %cst_360 : f32 to vector<2x32xf32>
    %1203 = arith.addf %1201, %1202 : vector<2x32xf32>
    %1204 = arith.mulf %1193, %1129 : vector<2x32xf32>
    %1205 = arith.mulf %1185, %1195 : vector<2x32xf32>
    %1206 = arith.addf %1204, %1205 : vector<2x32xf32>
    %1207 = math.tanh %1206 : vector<2x32xf32>
    %1208 = arith.mulf %1203, %1207 : vector<2x32xf32>
    %1209 = tpu.concatenate %1208, %1166 in 1 : vector<2x32xf32>, vector<2x32xf32> -> vector<2x64xf32>
    %cst_361 = arith.constant dense<0.000000e+00> : vector<2x128xf32>
    %1210 = tpu.matmul %1209, %2, %cst_361 {dimension_numbers = #tpu.dot_dimension_numbers<[1], [0], [0], [1], [0, 0, 1, 1], [], []>} : vector<2x64xf32>, vector<64x128xf32>, vector<2x128xf32> -> vector<2x128xf32>
    %1211 = vector.broadcast %3 : vector<1x128xf32> to vector<2x128xf32>
    %1212 = arith.addf %1210, %1211 : vector<2x128xf32>
    %1213 = vector.extract_strided_slice %1212 {offsets = [0, 0], sizes = [2, 32], strides = [1, 1]} : vector<2x128xf32> to vector<2x32xf32>
    %cst_362 = arith.constant 5.000000e-01 : f32
    %1214 = vector.broadcast %cst_362 : f32 to vector<2x32xf32>
    %1215 = arith.mulf %1214, %1213 : vector<2x32xf32>
    %1216 = math.tanh %1215 : vector<2x32xf32>
    %cst_363 = arith.constant 5.000000e-01 : f32
    %1217 = vector.broadcast %cst_363 : f32 to vector<2x32xf32>
    %1218 = arith.mulf %1217, %1216 : vector<2x32xf32>
    %cst_364 = arith.constant 5.000000e-01 : f32
    %1219 = vector.broadcast %cst_364 : f32 to vector<2x32xf32>
    %1220 = arith.addf %1218, %1219 : vector<2x32xf32>
    %1221 = vector.extract_strided_slice %1212 {offsets = [0, 32], sizes = [2, 32], strides = [1, 1]} : vector<2x128xf32> to vector<2x32xf32>
    %cst_365 = arith.constant 5.000000e-01 : f32
    %1222 = vector.broadcast %cst_365 : f32 to vector<2x32xf32>
    %1223 = arith.mulf %1222, %1221 : vector<2x32xf32>
    %1224 = math.tanh %1223 : vector<2x32xf32>
    %cst_366 = arith.constant 5.000000e-01 : f32
    %1225 = vector.broadcast %cst_366 : f32 to vector<2x32xf32>
    %1226 = arith.mulf %1225, %1224 : vector<2x32xf32>
    %cst_367 = arith.constant 5.000000e-01 : f32
    %1227 = vector.broadcast %cst_367 : f32 to vector<2x32xf32>
    %1228 = arith.addf %1226, %1227 : vector<2x32xf32>
    %1229 = vector.extract_strided_slice %1212 {offsets = [0, 64], sizes = [2, 32], strides = [1, 1]} : vector<2x128xf32> to vector<2x32xf32>
    %1230 = math.tanh %1229 : vector<2x32xf32>
    %1231 = vector.extract_strided_slice %1212 {offsets = [0, 96], sizes = [2, 32], strides = [1, 1]} : vector<2x128xf32> to vector<2x32xf32>
    %cst_368 = arith.constant 5.000000e-01 : f32
    %1232 = vector.broadcast %cst_368 : f32 to vector<2x32xf32>
    %1233 = arith.mulf %1232, %1231 : vector<2x32xf32>
    %1234 = math.tanh %1233 : vector<2x32xf32>
    %cst_369 = arith.constant 5.000000e-01 : f32
    %1235 = vector.broadcast %cst_369 : f32 to vector<2x32xf32>
    %1236 = arith.mulf %1235, %1234 : vector<2x32xf32>
    %cst_370 = arith.constant 5.000000e-01 : f32
    %1237 = vector.broadcast %cst_370 : f32 to vector<2x32xf32>
    %1238 = arith.addf %1236, %1237 : vector<2x32xf32>
    %1239 = arith.mulf %1228, %1164 : vector<2x32xf32>
    %1240 = arith.mulf %1220, %1230 : vector<2x32xf32>
    %1241 = arith.addf %1239, %1240 : vector<2x32xf32>
    %1242 = math.tanh %1241 : vector<2x32xf32>
    %1243 = arith.mulf %1238, %1242 : vector<2x32xf32>
    %c32 = arith.constant 32 : index
    %1244 = memref.load %arg0[%c32] : memref<48xi32, #tpu.memory_space<smem>>
    %1245 = arith.index_cast %1244 : i32 to index
    %c0_371 = arith.constant 0 : index
    %1246 = vector.load %arg1[%1245, %c0_371] : memref<50x16xf32, #tpu.memory_space<vmem>>, vector<1x16xf32>
    %c33 = arith.constant 33 : index
    %1247 = memref.load %arg0[%c33] : memref<48xi32, #tpu.memory_space<smem>>
    %1248 = arith.index_cast %1247 : i32 to index
    %c0_372 = arith.constant 0 : index
    %1249 = vector.load %arg1[%1248, %c0_372] : memref<50x16xf32, #tpu.memory_space<vmem>>, vector<1x16xf32>
    %1250 = tpu.concatenate %1246, %1249 in 0 : vector<1x16xf32>, vector<1x16xf32> -> vector<2x16xf32>
    %1251 = tpu.concatenate %1250, %1208 in 1 : vector<2x16xf32>, vector<2x32xf32> -> vector<2x48xf32>
    %cst_373 = arith.constant dense<0.000000e+00> : vector<2x128xf32>
    %1252 = tpu.matmul %1251, %0, %cst_373 {dimension_numbers = #tpu.dot_dimension_numbers<[1], [0], [0], [1], [0, 0, 1, 1], [], []>} : vector<2x48xf32>, vector<48x128xf32>, vector<2x128xf32> -> vector<2x128xf32>
    %1253 = vector.broadcast %1 : vector<1x128xf32> to vector<2x128xf32>
    %1254 = arith.addf %1252, %1253 : vector<2x128xf32>
    %1255 = vector.extract_strided_slice %1254 {offsets = [0, 0], sizes = [2, 32], strides = [1, 1]} : vector<2x128xf32> to vector<2x32xf32>
    %cst_374 = arith.constant 5.000000e-01 : f32
    %1256 = vector.broadcast %cst_374 : f32 to vector<2x32xf32>
    %1257 = arith.mulf %1256, %1255 : vector<2x32xf32>
    %1258 = math.tanh %1257 : vector<2x32xf32>
    %cst_375 = arith.constant 5.000000e-01 : f32
    %1259 = vector.broadcast %cst_375 : f32 to vector<2x32xf32>
    %1260 = arith.mulf %1259, %1258 : vector<2x32xf32>
    %cst_376 = arith.constant 5.000000e-01 : f32
    %1261 = vector.broadcast %cst_376 : f32 to vector<2x32xf32>
    %1262 = arith.addf %1260, %1261 : vector<2x32xf32>
    %1263 = vector.extract_strided_slice %1254 {offsets = [0, 32], sizes = [2, 32], strides = [1, 1]} : vector<2x128xf32> to vector<2x32xf32>
    %cst_377 = arith.constant 5.000000e-01 : f32
    %1264 = vector.broadcast %cst_377 : f32 to vector<2x32xf32>
    %1265 = arith.mulf %1264, %1263 : vector<2x32xf32>
    %1266 = math.tanh %1265 : vector<2x32xf32>
    %cst_378 = arith.constant 5.000000e-01 : f32
    %1267 = vector.broadcast %cst_378 : f32 to vector<2x32xf32>
    %1268 = arith.mulf %1267, %1266 : vector<2x32xf32>
    %cst_379 = arith.constant 5.000000e-01 : f32
    %1269 = vector.broadcast %cst_379 : f32 to vector<2x32xf32>
    %1270 = arith.addf %1268, %1269 : vector<2x32xf32>
    %1271 = vector.extract_strided_slice %1254 {offsets = [0, 64], sizes = [2, 32], strides = [1, 1]} : vector<2x128xf32> to vector<2x32xf32>
    %1272 = math.tanh %1271 : vector<2x32xf32>
    %1273 = vector.extract_strided_slice %1254 {offsets = [0, 96], sizes = [2, 32], strides = [1, 1]} : vector<2x128xf32> to vector<2x32xf32>
    %cst_380 = arith.constant 5.000000e-01 : f32
    %1274 = vector.broadcast %cst_380 : f32 to vector<2x32xf32>
    %1275 = arith.mulf %1274, %1273 : vector<2x32xf32>
    %1276 = math.tanh %1275 : vector<2x32xf32>
    %cst_381 = arith.constant 5.000000e-01 : f32
    %1277 = vector.broadcast %cst_381 : f32 to vector<2x32xf32>
    %1278 = arith.mulf %1277, %1276 : vector<2x32xf32>
    %cst_382 = arith.constant 5.000000e-01 : f32
    %1279 = vector.broadcast %cst_382 : f32 to vector<2x32xf32>
    %1280 = arith.addf %1278, %1279 : vector<2x32xf32>
    %1281 = arith.mulf %1270, %1206 : vector<2x32xf32>
    %1282 = arith.mulf %1262, %1272 : vector<2x32xf32>
    %1283 = arith.addf %1281, %1282 : vector<2x32xf32>
    %1284 = math.tanh %1283 : vector<2x32xf32>
    %1285 = arith.mulf %1280, %1284 : vector<2x32xf32>
    %1286 = tpu.concatenate %1285, %1243 in 1 : vector<2x32xf32>, vector<2x32xf32> -> vector<2x64xf32>
    %cst_383 = arith.constant dense<0.000000e+00> : vector<2x128xf32>
    %1287 = tpu.matmul %1286, %2, %cst_383 {dimension_numbers = #tpu.dot_dimension_numbers<[1], [0], [0], [1], [0, 0, 1, 1], [], []>} : vector<2x64xf32>, vector<64x128xf32>, vector<2x128xf32> -> vector<2x128xf32>
    %1288 = vector.broadcast %3 : vector<1x128xf32> to vector<2x128xf32>
    %1289 = arith.addf %1287, %1288 : vector<2x128xf32>
    %1290 = vector.extract_strided_slice %1289 {offsets = [0, 0], sizes = [2, 32], strides = [1, 1]} : vector<2x128xf32> to vector<2x32xf32>
    %cst_384 = arith.constant 5.000000e-01 : f32
    %1291 = vector.broadcast %cst_384 : f32 to vector<2x32xf32>
    %1292 = arith.mulf %1291, %1290 : vector<2x32xf32>
    %1293 = math.tanh %1292 : vector<2x32xf32>
    %cst_385 = arith.constant 5.000000e-01 : f32
    %1294 = vector.broadcast %cst_385 : f32 to vector<2x32xf32>
    %1295 = arith.mulf %1294, %1293 : vector<2x32xf32>
    %cst_386 = arith.constant 5.000000e-01 : f32
    %1296 = vector.broadcast %cst_386 : f32 to vector<2x32xf32>
    %1297 = arith.addf %1295, %1296 : vector<2x32xf32>
    %1298 = vector.extract_strided_slice %1289 {offsets = [0, 32], sizes = [2, 32], strides = [1, 1]} : vector<2x128xf32> to vector<2x32xf32>
    %cst_387 = arith.constant 5.000000e-01 : f32
    %1299 = vector.broadcast %cst_387 : f32 to vector<2x32xf32>
    %1300 = arith.mulf %1299, %1298 : vector<2x32xf32>
    %1301 = math.tanh %1300 : vector<2x32xf32>
    %cst_388 = arith.constant 5.000000e-01 : f32
    %1302 = vector.broadcast %cst_388 : f32 to vector<2x32xf32>
    %1303 = arith.mulf %1302, %1301 : vector<2x32xf32>
    %cst_389 = arith.constant 5.000000e-01 : f32
    %1304 = vector.broadcast %cst_389 : f32 to vector<2x32xf32>
    %1305 = arith.addf %1303, %1304 : vector<2x32xf32>
    %1306 = vector.extract_strided_slice %1289 {offsets = [0, 64], sizes = [2, 32], strides = [1, 1]} : vector<2x128xf32> to vector<2x32xf32>
    %1307 = math.tanh %1306 : vector<2x32xf32>
    %1308 = vector.extract_strided_slice %1289 {offsets = [0, 96], sizes = [2, 32], strides = [1, 1]} : vector<2x128xf32> to vector<2x32xf32>
    %cst_390 = arith.constant 5.000000e-01 : f32
    %1309 = vector.broadcast %cst_390 : f32 to vector<2x32xf32>
    %1310 = arith.mulf %1309, %1308 : vector<2x32xf32>
    %1311 = math.tanh %1310 : vector<2x32xf32>
    %cst_391 = arith.constant 5.000000e-01 : f32
    %1312 = vector.broadcast %cst_391 : f32 to vector<2x32xf32>
    %1313 = arith.mulf %1312, %1311 : vector<2x32xf32>
    %cst_392 = arith.constant 5.000000e-01 : f32
    %1314 = vector.broadcast %cst_392 : f32 to vector<2x32xf32>
    %1315 = arith.addf %1313, %1314 : vector<2x32xf32>
    %1316 = arith.mulf %1305, %1241 : vector<2x32xf32>
    %1317 = arith.mulf %1297, %1307 : vector<2x32xf32>
    %1318 = arith.addf %1316, %1317 : vector<2x32xf32>
    %1319 = math.tanh %1318 : vector<2x32xf32>
    %1320 = arith.mulf %1315, %1319 : vector<2x32xf32>
    %c34 = arith.constant 34 : index
    %1321 = memref.load %arg0[%c34] : memref<48xi32, #tpu.memory_space<smem>>
    %1322 = arith.index_cast %1321 : i32 to index
    %c0_393 = arith.constant 0 : index
    %1323 = vector.load %arg1[%1322, %c0_393] : memref<50x16xf32, #tpu.memory_space<vmem>>, vector<1x16xf32>
    %c35 = arith.constant 35 : index
    %1324 = memref.load %arg0[%c35] : memref<48xi32, #tpu.memory_space<smem>>
    %1325 = arith.index_cast %1324 : i32 to index
    %c0_394 = arith.constant 0 : index
    %1326 = vector.load %arg1[%1325, %c0_394] : memref<50x16xf32, #tpu.memory_space<vmem>>, vector<1x16xf32>
    %1327 = tpu.concatenate %1323, %1326 in 0 : vector<1x16xf32>, vector<1x16xf32> -> vector<2x16xf32>
    %1328 = tpu.concatenate %1327, %1285 in 1 : vector<2x16xf32>, vector<2x32xf32> -> vector<2x48xf32>
    %cst_395 = arith.constant dense<0.000000e+00> : vector<2x128xf32>
    %1329 = tpu.matmul %1328, %0, %cst_395 {dimension_numbers = #tpu.dot_dimension_numbers<[1], [0], [0], [1], [0, 0, 1, 1], [], []>} : vector<2x48xf32>, vector<48x128xf32>, vector<2x128xf32> -> vector<2x128xf32>
    %1330 = vector.broadcast %1 : vector<1x128xf32> to vector<2x128xf32>
    %1331 = arith.addf %1329, %1330 : vector<2x128xf32>
    %1332 = vector.extract_strided_slice %1331 {offsets = [0, 0], sizes = [2, 32], strides = [1, 1]} : vector<2x128xf32> to vector<2x32xf32>
    %cst_396 = arith.constant 5.000000e-01 : f32
    %1333 = vector.broadcast %cst_396 : f32 to vector<2x32xf32>
    %1334 = arith.mulf %1333, %1332 : vector<2x32xf32>
    %1335 = math.tanh %1334 : vector<2x32xf32>
    %cst_397 = arith.constant 5.000000e-01 : f32
    %1336 = vector.broadcast %cst_397 : f32 to vector<2x32xf32>
    %1337 = arith.mulf %1336, %1335 : vector<2x32xf32>
    %cst_398 = arith.constant 5.000000e-01 : f32
    %1338 = vector.broadcast %cst_398 : f32 to vector<2x32xf32>
    %1339 = arith.addf %1337, %1338 : vector<2x32xf32>
    %1340 = vector.extract_strided_slice %1331 {offsets = [0, 32], sizes = [2, 32], strides = [1, 1]} : vector<2x128xf32> to vector<2x32xf32>
    %cst_399 = arith.constant 5.000000e-01 : f32
    %1341 = vector.broadcast %cst_399 : f32 to vector<2x32xf32>
    %1342 = arith.mulf %1341, %1340 : vector<2x32xf32>
    %1343 = math.tanh %1342 : vector<2x32xf32>
    %cst_400 = arith.constant 5.000000e-01 : f32
    %1344 = vector.broadcast %cst_400 : f32 to vector<2x32xf32>
    %1345 = arith.mulf %1344, %1343 : vector<2x32xf32>
    %cst_401 = arith.constant 5.000000e-01 : f32
    %1346 = vector.broadcast %cst_401 : f32 to vector<2x32xf32>
    %1347 = arith.addf %1345, %1346 : vector<2x32xf32>
    %1348 = vector.extract_strided_slice %1331 {offsets = [0, 64], sizes = [2, 32], strides = [1, 1]} : vector<2x128xf32> to vector<2x32xf32>
    %1349 = math.tanh %1348 : vector<2x32xf32>
    %1350 = vector.extract_strided_slice %1331 {offsets = [0, 96], sizes = [2, 32], strides = [1, 1]} : vector<2x128xf32> to vector<2x32xf32>
    %cst_402 = arith.constant 5.000000e-01 : f32
    %1351 = vector.broadcast %cst_402 : f32 to vector<2x32xf32>
    %1352 = arith.mulf %1351, %1350 : vector<2x32xf32>
    %1353 = math.tanh %1352 : vector<2x32xf32>
    %cst_403 = arith.constant 5.000000e-01 : f32
    %1354 = vector.broadcast %cst_403 : f32 to vector<2x32xf32>
    %1355 = arith.mulf %1354, %1353 : vector<2x32xf32>
    %cst_404 = arith.constant 5.000000e-01 : f32
    %1356 = vector.broadcast %cst_404 : f32 to vector<2x32xf32>
    %1357 = arith.addf %1355, %1356 : vector<2x32xf32>
    %1358 = arith.mulf %1347, %1283 : vector<2x32xf32>
    %1359 = arith.mulf %1339, %1349 : vector<2x32xf32>
    %1360 = arith.addf %1358, %1359 : vector<2x32xf32>
    %1361 = math.tanh %1360 : vector<2x32xf32>
    %1362 = arith.mulf %1357, %1361 : vector<2x32xf32>
    %1363 = tpu.concatenate %1362, %1320 in 1 : vector<2x32xf32>, vector<2x32xf32> -> vector<2x64xf32>
    %cst_405 = arith.constant dense<0.000000e+00> : vector<2x128xf32>
    %1364 = tpu.matmul %1363, %2, %cst_405 {dimension_numbers = #tpu.dot_dimension_numbers<[1], [0], [0], [1], [0, 0, 1, 1], [], []>} : vector<2x64xf32>, vector<64x128xf32>, vector<2x128xf32> -> vector<2x128xf32>
    %1365 = vector.broadcast %3 : vector<1x128xf32> to vector<2x128xf32>
    %1366 = arith.addf %1364, %1365 : vector<2x128xf32>
    %1367 = vector.extract_strided_slice %1366 {offsets = [0, 0], sizes = [2, 32], strides = [1, 1]} : vector<2x128xf32> to vector<2x32xf32>
    %cst_406 = arith.constant 5.000000e-01 : f32
    %1368 = vector.broadcast %cst_406 : f32 to vector<2x32xf32>
    %1369 = arith.mulf %1368, %1367 : vector<2x32xf32>
    %1370 = math.tanh %1369 : vector<2x32xf32>
    %cst_407 = arith.constant 5.000000e-01 : f32
    %1371 = vector.broadcast %cst_407 : f32 to vector<2x32xf32>
    %1372 = arith.mulf %1371, %1370 : vector<2x32xf32>
    %cst_408 = arith.constant 5.000000e-01 : f32
    %1373 = vector.broadcast %cst_408 : f32 to vector<2x32xf32>
    %1374 = arith.addf %1372, %1373 : vector<2x32xf32>
    %1375 = vector.extract_strided_slice %1366 {offsets = [0, 32], sizes = [2, 32], strides = [1, 1]} : vector<2x128xf32> to vector<2x32xf32>
    %cst_409 = arith.constant 5.000000e-01 : f32
    %1376 = vector.broadcast %cst_409 : f32 to vector<2x32xf32>
    %1377 = arith.mulf %1376, %1375 : vector<2x32xf32>
    %1378 = math.tanh %1377 : vector<2x32xf32>
    %cst_410 = arith.constant 5.000000e-01 : f32
    %1379 = vector.broadcast %cst_410 : f32 to vector<2x32xf32>
    %1380 = arith.mulf %1379, %1378 : vector<2x32xf32>
    %cst_411 = arith.constant 5.000000e-01 : f32
    %1381 = vector.broadcast %cst_411 : f32 to vector<2x32xf32>
    %1382 = arith.addf %1380, %1381 : vector<2x32xf32>
    %1383 = vector.extract_strided_slice %1366 {offsets = [0, 64], sizes = [2, 32], strides = [1, 1]} : vector<2x128xf32> to vector<2x32xf32>
    %1384 = math.tanh %1383 : vector<2x32xf32>
    %1385 = vector.extract_strided_slice %1366 {offsets = [0, 96], sizes = [2, 32], strides = [1, 1]} : vector<2x128xf32> to vector<2x32xf32>
    %cst_412 = arith.constant 5.000000e-01 : f32
    %1386 = vector.broadcast %cst_412 : f32 to vector<2x32xf32>
    %1387 = arith.mulf %1386, %1385 : vector<2x32xf32>
    %1388 = math.tanh %1387 : vector<2x32xf32>
    %cst_413 = arith.constant 5.000000e-01 : f32
    %1389 = vector.broadcast %cst_413 : f32 to vector<2x32xf32>
    %1390 = arith.mulf %1389, %1388 : vector<2x32xf32>
    %cst_414 = arith.constant 5.000000e-01 : f32
    %1391 = vector.broadcast %cst_414 : f32 to vector<2x32xf32>
    %1392 = arith.addf %1390, %1391 : vector<2x32xf32>
    %1393 = arith.mulf %1382, %1318 : vector<2x32xf32>
    %1394 = arith.mulf %1374, %1384 : vector<2x32xf32>
    %1395 = arith.addf %1393, %1394 : vector<2x32xf32>
    %1396 = math.tanh %1395 : vector<2x32xf32>
    %1397 = arith.mulf %1392, %1396 : vector<2x32xf32>
    %c36 = arith.constant 36 : index
    %1398 = memref.load %arg0[%c36] : memref<48xi32, #tpu.memory_space<smem>>
    %1399 = arith.index_cast %1398 : i32 to index
    %c0_415 = arith.constant 0 : index
    %1400 = vector.load %arg1[%1399, %c0_415] : memref<50x16xf32, #tpu.memory_space<vmem>>, vector<1x16xf32>
    %c37 = arith.constant 37 : index
    %1401 = memref.load %arg0[%c37] : memref<48xi32, #tpu.memory_space<smem>>
    %1402 = arith.index_cast %1401 : i32 to index
    %c0_416 = arith.constant 0 : index
    %1403 = vector.load %arg1[%1402, %c0_416] : memref<50x16xf32, #tpu.memory_space<vmem>>, vector<1x16xf32>
    %1404 = tpu.concatenate %1400, %1403 in 0 : vector<1x16xf32>, vector<1x16xf32> -> vector<2x16xf32>
    %1405 = tpu.concatenate %1404, %1362 in 1 : vector<2x16xf32>, vector<2x32xf32> -> vector<2x48xf32>
    %cst_417 = arith.constant dense<0.000000e+00> : vector<2x128xf32>
    %1406 = tpu.matmul %1405, %0, %cst_417 {dimension_numbers = #tpu.dot_dimension_numbers<[1], [0], [0], [1], [0, 0, 1, 1], [], []>} : vector<2x48xf32>, vector<48x128xf32>, vector<2x128xf32> -> vector<2x128xf32>
    %1407 = vector.broadcast %1 : vector<1x128xf32> to vector<2x128xf32>
    %1408 = arith.addf %1406, %1407 : vector<2x128xf32>
    %1409 = vector.extract_strided_slice %1408 {offsets = [0, 0], sizes = [2, 32], strides = [1, 1]} : vector<2x128xf32> to vector<2x32xf32>
    %cst_418 = arith.constant 5.000000e-01 : f32
    %1410 = vector.broadcast %cst_418 : f32 to vector<2x32xf32>
    %1411 = arith.mulf %1410, %1409 : vector<2x32xf32>
    %1412 = math.tanh %1411 : vector<2x32xf32>
    %cst_419 = arith.constant 5.000000e-01 : f32
    %1413 = vector.broadcast %cst_419 : f32 to vector<2x32xf32>
    %1414 = arith.mulf %1413, %1412 : vector<2x32xf32>
    %cst_420 = arith.constant 5.000000e-01 : f32
    %1415 = vector.broadcast %cst_420 : f32 to vector<2x32xf32>
    %1416 = arith.addf %1414, %1415 : vector<2x32xf32>
    %1417 = vector.extract_strided_slice %1408 {offsets = [0, 32], sizes = [2, 32], strides = [1, 1]} : vector<2x128xf32> to vector<2x32xf32>
    %cst_421 = arith.constant 5.000000e-01 : f32
    %1418 = vector.broadcast %cst_421 : f32 to vector<2x32xf32>
    %1419 = arith.mulf %1418, %1417 : vector<2x32xf32>
    %1420 = math.tanh %1419 : vector<2x32xf32>
    %cst_422 = arith.constant 5.000000e-01 : f32
    %1421 = vector.broadcast %cst_422 : f32 to vector<2x32xf32>
    %1422 = arith.mulf %1421, %1420 : vector<2x32xf32>
    %cst_423 = arith.constant 5.000000e-01 : f32
    %1423 = vector.broadcast %cst_423 : f32 to vector<2x32xf32>
    %1424 = arith.addf %1422, %1423 : vector<2x32xf32>
    %1425 = vector.extract_strided_slice %1408 {offsets = [0, 64], sizes = [2, 32], strides = [1, 1]} : vector<2x128xf32> to vector<2x32xf32>
    %1426 = math.tanh %1425 : vector<2x32xf32>
    %1427 = vector.extract_strided_slice %1408 {offsets = [0, 96], sizes = [2, 32], strides = [1, 1]} : vector<2x128xf32> to vector<2x32xf32>
    %cst_424 = arith.constant 5.000000e-01 : f32
    %1428 = vector.broadcast %cst_424 : f32 to vector<2x32xf32>
    %1429 = arith.mulf %1428, %1427 : vector<2x32xf32>
    %1430 = math.tanh %1429 : vector<2x32xf32>
    %cst_425 = arith.constant 5.000000e-01 : f32
    %1431 = vector.broadcast %cst_425 : f32 to vector<2x32xf32>
    %1432 = arith.mulf %1431, %1430 : vector<2x32xf32>
    %cst_426 = arith.constant 5.000000e-01 : f32
    %1433 = vector.broadcast %cst_426 : f32 to vector<2x32xf32>
    %1434 = arith.addf %1432, %1433 : vector<2x32xf32>
    %1435 = arith.mulf %1424, %1360 : vector<2x32xf32>
    %1436 = arith.mulf %1416, %1426 : vector<2x32xf32>
    %1437 = arith.addf %1435, %1436 : vector<2x32xf32>
    %1438 = math.tanh %1437 : vector<2x32xf32>
    %1439 = arith.mulf %1434, %1438 : vector<2x32xf32>
    %1440 = tpu.concatenate %1439, %1397 in 1 : vector<2x32xf32>, vector<2x32xf32> -> vector<2x64xf32>
    %cst_427 = arith.constant dense<0.000000e+00> : vector<2x128xf32>
    %1441 = tpu.matmul %1440, %2, %cst_427 {dimension_numbers = #tpu.dot_dimension_numbers<[1], [0], [0], [1], [0, 0, 1, 1], [], []>} : vector<2x64xf32>, vector<64x128xf32>, vector<2x128xf32> -> vector<2x128xf32>
    %1442 = vector.broadcast %3 : vector<1x128xf32> to vector<2x128xf32>
    %1443 = arith.addf %1441, %1442 : vector<2x128xf32>
    %1444 = vector.extract_strided_slice %1443 {offsets = [0, 0], sizes = [2, 32], strides = [1, 1]} : vector<2x128xf32> to vector<2x32xf32>
    %cst_428 = arith.constant 5.000000e-01 : f32
    %1445 = vector.broadcast %cst_428 : f32 to vector<2x32xf32>
    %1446 = arith.mulf %1445, %1444 : vector<2x32xf32>
    %1447 = math.tanh %1446 : vector<2x32xf32>
    %cst_429 = arith.constant 5.000000e-01 : f32
    %1448 = vector.broadcast %cst_429 : f32 to vector<2x32xf32>
    %1449 = arith.mulf %1448, %1447 : vector<2x32xf32>
    %cst_430 = arith.constant 5.000000e-01 : f32
    %1450 = vector.broadcast %cst_430 : f32 to vector<2x32xf32>
    %1451 = arith.addf %1449, %1450 : vector<2x32xf32>
    %1452 = vector.extract_strided_slice %1443 {offsets = [0, 32], sizes = [2, 32], strides = [1, 1]} : vector<2x128xf32> to vector<2x32xf32>
    %cst_431 = arith.constant 5.000000e-01 : f32
    %1453 = vector.broadcast %cst_431 : f32 to vector<2x32xf32>
    %1454 = arith.mulf %1453, %1452 : vector<2x32xf32>
    %1455 = math.tanh %1454 : vector<2x32xf32>
    %cst_432 = arith.constant 5.000000e-01 : f32
    %1456 = vector.broadcast %cst_432 : f32 to vector<2x32xf32>
    %1457 = arith.mulf %1456, %1455 : vector<2x32xf32>
    %cst_433 = arith.constant 5.000000e-01 : f32
    %1458 = vector.broadcast %cst_433 : f32 to vector<2x32xf32>
    %1459 = arith.addf %1457, %1458 : vector<2x32xf32>
    %1460 = vector.extract_strided_slice %1443 {offsets = [0, 64], sizes = [2, 32], strides = [1, 1]} : vector<2x128xf32> to vector<2x32xf32>
    %1461 = math.tanh %1460 : vector<2x32xf32>
    %1462 = vector.extract_strided_slice %1443 {offsets = [0, 96], sizes = [2, 32], strides = [1, 1]} : vector<2x128xf32> to vector<2x32xf32>
    %cst_434 = arith.constant 5.000000e-01 : f32
    %1463 = vector.broadcast %cst_434 : f32 to vector<2x32xf32>
    %1464 = arith.mulf %1463, %1462 : vector<2x32xf32>
    %1465 = math.tanh %1464 : vector<2x32xf32>
    %cst_435 = arith.constant 5.000000e-01 : f32
    %1466 = vector.broadcast %cst_435 : f32 to vector<2x32xf32>
    %1467 = arith.mulf %1466, %1465 : vector<2x32xf32>
    %cst_436 = arith.constant 5.000000e-01 : f32
    %1468 = vector.broadcast %cst_436 : f32 to vector<2x32xf32>
    %1469 = arith.addf %1467, %1468 : vector<2x32xf32>
    %1470 = arith.mulf %1459, %1395 : vector<2x32xf32>
    %1471 = arith.mulf %1451, %1461 : vector<2x32xf32>
    %1472 = arith.addf %1470, %1471 : vector<2x32xf32>
    %1473 = math.tanh %1472 : vector<2x32xf32>
    %1474 = arith.mulf %1469, %1473 : vector<2x32xf32>
    %c38 = arith.constant 38 : index
    %1475 = memref.load %arg0[%c38] : memref<48xi32, #tpu.memory_space<smem>>
    %1476 = arith.index_cast %1475 : i32 to index
    %c0_437 = arith.constant 0 : index
    %1477 = vector.load %arg1[%1476, %c0_437] : memref<50x16xf32, #tpu.memory_space<vmem>>, vector<1x16xf32>
    %c39 = arith.constant 39 : index
    %1478 = memref.load %arg0[%c39] : memref<48xi32, #tpu.memory_space<smem>>
    %1479 = arith.index_cast %1478 : i32 to index
    %c0_438 = arith.constant 0 : index
    %1480 = vector.load %arg1[%1479, %c0_438] : memref<50x16xf32, #tpu.memory_space<vmem>>, vector<1x16xf32>
    %1481 = tpu.concatenate %1477, %1480 in 0 : vector<1x16xf32>, vector<1x16xf32> -> vector<2x16xf32>
    %1482 = tpu.concatenate %1481, %1439 in 1 : vector<2x16xf32>, vector<2x32xf32> -> vector<2x48xf32>
    %cst_439 = arith.constant dense<0.000000e+00> : vector<2x128xf32>
    %1483 = tpu.matmul %1482, %0, %cst_439 {dimension_numbers = #tpu.dot_dimension_numbers<[1], [0], [0], [1], [0, 0, 1, 1], [], []>} : vector<2x48xf32>, vector<48x128xf32>, vector<2x128xf32> -> vector<2x128xf32>
    %1484 = vector.broadcast %1 : vector<1x128xf32> to vector<2x128xf32>
    %1485 = arith.addf %1483, %1484 : vector<2x128xf32>
    %1486 = vector.extract_strided_slice %1485 {offsets = [0, 0], sizes = [2, 32], strides = [1, 1]} : vector<2x128xf32> to vector<2x32xf32>
    %cst_440 = arith.constant 5.000000e-01 : f32
    %1487 = vector.broadcast %cst_440 : f32 to vector<2x32xf32>
    %1488 = arith.mulf %1487, %1486 : vector<2x32xf32>
    %1489 = math.tanh %1488 : vector<2x32xf32>
    %cst_441 = arith.constant 5.000000e-01 : f32
    %1490 = vector.broadcast %cst_441 : f32 to vector<2x32xf32>
    %1491 = arith.mulf %1490, %1489 : vector<2x32xf32>
    %cst_442 = arith.constant 5.000000e-01 : f32
    %1492 = vector.broadcast %cst_442 : f32 to vector<2x32xf32>
    %1493 = arith.addf %1491, %1492 : vector<2x32xf32>
    %1494 = vector.extract_strided_slice %1485 {offsets = [0, 32], sizes = [2, 32], strides = [1, 1]} : vector<2x128xf32> to vector<2x32xf32>
    %cst_443 = arith.constant 5.000000e-01 : f32
    %1495 = vector.broadcast %cst_443 : f32 to vector<2x32xf32>
    %1496 = arith.mulf %1495, %1494 : vector<2x32xf32>
    %1497 = math.tanh %1496 : vector<2x32xf32>
    %cst_444 = arith.constant 5.000000e-01 : f32
    %1498 = vector.broadcast %cst_444 : f32 to vector<2x32xf32>
    %1499 = arith.mulf %1498, %1497 : vector<2x32xf32>
    %cst_445 = arith.constant 5.000000e-01 : f32
    %1500 = vector.broadcast %cst_445 : f32 to vector<2x32xf32>
    %1501 = arith.addf %1499, %1500 : vector<2x32xf32>
    %1502 = vector.extract_strided_slice %1485 {offsets = [0, 64], sizes = [2, 32], strides = [1, 1]} : vector<2x128xf32> to vector<2x32xf32>
    %1503 = math.tanh %1502 : vector<2x32xf32>
    %1504 = vector.extract_strided_slice %1485 {offsets = [0, 96], sizes = [2, 32], strides = [1, 1]} : vector<2x128xf32> to vector<2x32xf32>
    %cst_446 = arith.constant 5.000000e-01 : f32
    %1505 = vector.broadcast %cst_446 : f32 to vector<2x32xf32>
    %1506 = arith.mulf %1505, %1504 : vector<2x32xf32>
    %1507 = math.tanh %1506 : vector<2x32xf32>
    %cst_447 = arith.constant 5.000000e-01 : f32
    %1508 = vector.broadcast %cst_447 : f32 to vector<2x32xf32>
    %1509 = arith.mulf %1508, %1507 : vector<2x32xf32>
    %cst_448 = arith.constant 5.000000e-01 : f32
    %1510 = vector.broadcast %cst_448 : f32 to vector<2x32xf32>
    %1511 = arith.addf %1509, %1510 : vector<2x32xf32>
    %1512 = arith.mulf %1501, %1437 : vector<2x32xf32>
    %1513 = arith.mulf %1493, %1503 : vector<2x32xf32>
    %1514 = arith.addf %1512, %1513 : vector<2x32xf32>
    %1515 = math.tanh %1514 : vector<2x32xf32>
    %1516 = arith.mulf %1511, %1515 : vector<2x32xf32>
    %1517 = tpu.concatenate %1516, %1474 in 1 : vector<2x32xf32>, vector<2x32xf32> -> vector<2x64xf32>
    %cst_449 = arith.constant dense<0.000000e+00> : vector<2x128xf32>
    %1518 = tpu.matmul %1517, %2, %cst_449 {dimension_numbers = #tpu.dot_dimension_numbers<[1], [0], [0], [1], [0, 0, 1, 1], [], []>} : vector<2x64xf32>, vector<64x128xf32>, vector<2x128xf32> -> vector<2x128xf32>
    %1519 = vector.broadcast %3 : vector<1x128xf32> to vector<2x128xf32>
    %1520 = arith.addf %1518, %1519 : vector<2x128xf32>
    %1521 = vector.extract_strided_slice %1520 {offsets = [0, 0], sizes = [2, 32], strides = [1, 1]} : vector<2x128xf32> to vector<2x32xf32>
    %cst_450 = arith.constant 5.000000e-01 : f32
    %1522 = vector.broadcast %cst_450 : f32 to vector<2x32xf32>
    %1523 = arith.mulf %1522, %1521 : vector<2x32xf32>
    %1524 = math.tanh %1523 : vector<2x32xf32>
    %cst_451 = arith.constant 5.000000e-01 : f32
    %1525 = vector.broadcast %cst_451 : f32 to vector<2x32xf32>
    %1526 = arith.mulf %1525, %1524 : vector<2x32xf32>
    %cst_452 = arith.constant 5.000000e-01 : f32
    %1527 = vector.broadcast %cst_452 : f32 to vector<2x32xf32>
    %1528 = arith.addf %1526, %1527 : vector<2x32xf32>
    %1529 = vector.extract_strided_slice %1520 {offsets = [0, 32], sizes = [2, 32], strides = [1, 1]} : vector<2x128xf32> to vector<2x32xf32>
    %cst_453 = arith.constant 5.000000e-01 : f32
    %1530 = vector.broadcast %cst_453 : f32 to vector<2x32xf32>
    %1531 = arith.mulf %1530, %1529 : vector<2x32xf32>
    %1532 = math.tanh %1531 : vector<2x32xf32>
    %cst_454 = arith.constant 5.000000e-01 : f32
    %1533 = vector.broadcast %cst_454 : f32 to vector<2x32xf32>
    %1534 = arith.mulf %1533, %1532 : vector<2x32xf32>
    %cst_455 = arith.constant 5.000000e-01 : f32
    %1535 = vector.broadcast %cst_455 : f32 to vector<2x32xf32>
    %1536 = arith.addf %1534, %1535 : vector<2x32xf32>
    %1537 = vector.extract_strided_slice %1520 {offsets = [0, 64], sizes = [2, 32], strides = [1, 1]} : vector<2x128xf32> to vector<2x32xf32>
    %1538 = math.tanh %1537 : vector<2x32xf32>
    %1539 = vector.extract_strided_slice %1520 {offsets = [0, 96], sizes = [2, 32], strides = [1, 1]} : vector<2x128xf32> to vector<2x32xf32>
    %cst_456 = arith.constant 5.000000e-01 : f32
    %1540 = vector.broadcast %cst_456 : f32 to vector<2x32xf32>
    %1541 = arith.mulf %1540, %1539 : vector<2x32xf32>
    %1542 = math.tanh %1541 : vector<2x32xf32>
    %cst_457 = arith.constant 5.000000e-01 : f32
    %1543 = vector.broadcast %cst_457 : f32 to vector<2x32xf32>
    %1544 = arith.mulf %1543, %1542 : vector<2x32xf32>
    %cst_458 = arith.constant 5.000000e-01 : f32
    %1545 = vector.broadcast %cst_458 : f32 to vector<2x32xf32>
    %1546 = arith.addf %1544, %1545 : vector<2x32xf32>
    %1547 = arith.mulf %1536, %1472 : vector<2x32xf32>
    %1548 = arith.mulf %1528, %1538 : vector<2x32xf32>
    %1549 = arith.addf %1547, %1548 : vector<2x32xf32>
    %1550 = math.tanh %1549 : vector<2x32xf32>
    %1551 = arith.mulf %1546, %1550 : vector<2x32xf32>
    %c40 = arith.constant 40 : index
    %1552 = memref.load %arg0[%c40] : memref<48xi32, #tpu.memory_space<smem>>
    %1553 = arith.index_cast %1552 : i32 to index
    %c0_459 = arith.constant 0 : index
    %1554 = vector.load %arg1[%1553, %c0_459] : memref<50x16xf32, #tpu.memory_space<vmem>>, vector<1x16xf32>
    %c41 = arith.constant 41 : index
    %1555 = memref.load %arg0[%c41] : memref<48xi32, #tpu.memory_space<smem>>
    %1556 = arith.index_cast %1555 : i32 to index
    %c0_460 = arith.constant 0 : index
    %1557 = vector.load %arg1[%1556, %c0_460] : memref<50x16xf32, #tpu.memory_space<vmem>>, vector<1x16xf32>
    %1558 = tpu.concatenate %1554, %1557 in 0 : vector<1x16xf32>, vector<1x16xf32> -> vector<2x16xf32>
    %1559 = tpu.concatenate %1558, %1516 in 1 : vector<2x16xf32>, vector<2x32xf32> -> vector<2x48xf32>
    %cst_461 = arith.constant dense<0.000000e+00> : vector<2x128xf32>
    %1560 = tpu.matmul %1559, %0, %cst_461 {dimension_numbers = #tpu.dot_dimension_numbers<[1], [0], [0], [1], [0, 0, 1, 1], [], []>} : vector<2x48xf32>, vector<48x128xf32>, vector<2x128xf32> -> vector<2x128xf32>
    %1561 = vector.broadcast %1 : vector<1x128xf32> to vector<2x128xf32>
    %1562 = arith.addf %1560, %1561 : vector<2x128xf32>
    %1563 = vector.extract_strided_slice %1562 {offsets = [0, 0], sizes = [2, 32], strides = [1, 1]} : vector<2x128xf32> to vector<2x32xf32>
    %cst_462 = arith.constant 5.000000e-01 : f32
    %1564 = vector.broadcast %cst_462 : f32 to vector<2x32xf32>
    %1565 = arith.mulf %1564, %1563 : vector<2x32xf32>
    %1566 = math.tanh %1565 : vector<2x32xf32>
    %cst_463 = arith.constant 5.000000e-01 : f32
    %1567 = vector.broadcast %cst_463 : f32 to vector<2x32xf32>
    %1568 = arith.mulf %1567, %1566 : vector<2x32xf32>
    %cst_464 = arith.constant 5.000000e-01 : f32
    %1569 = vector.broadcast %cst_464 : f32 to vector<2x32xf32>
    %1570 = arith.addf %1568, %1569 : vector<2x32xf32>
    %1571 = vector.extract_strided_slice %1562 {offsets = [0, 32], sizes = [2, 32], strides = [1, 1]} : vector<2x128xf32> to vector<2x32xf32>
    %cst_465 = arith.constant 5.000000e-01 : f32
    %1572 = vector.broadcast %cst_465 : f32 to vector<2x32xf32>
    %1573 = arith.mulf %1572, %1571 : vector<2x32xf32>
    %1574 = math.tanh %1573 : vector<2x32xf32>
    %cst_466 = arith.constant 5.000000e-01 : f32
    %1575 = vector.broadcast %cst_466 : f32 to vector<2x32xf32>
    %1576 = arith.mulf %1575, %1574 : vector<2x32xf32>
    %cst_467 = arith.constant 5.000000e-01 : f32
    %1577 = vector.broadcast %cst_467 : f32 to vector<2x32xf32>
    %1578 = arith.addf %1576, %1577 : vector<2x32xf32>
    %1579 = vector.extract_strided_slice %1562 {offsets = [0, 64], sizes = [2, 32], strides = [1, 1]} : vector<2x128xf32> to vector<2x32xf32>
    %1580 = math.tanh %1579 : vector<2x32xf32>
    %1581 = vector.extract_strided_slice %1562 {offsets = [0, 96], sizes = [2, 32], strides = [1, 1]} : vector<2x128xf32> to vector<2x32xf32>
    %cst_468 = arith.constant 5.000000e-01 : f32
    %1582 = vector.broadcast %cst_468 : f32 to vector<2x32xf32>
    %1583 = arith.mulf %1582, %1581 : vector<2x32xf32>
    %1584 = math.tanh %1583 : vector<2x32xf32>
    %cst_469 = arith.constant 5.000000e-01 : f32
    %1585 = vector.broadcast %cst_469 : f32 to vector<2x32xf32>
    %1586 = arith.mulf %1585, %1584 : vector<2x32xf32>
    %cst_470 = arith.constant 5.000000e-01 : f32
    %1587 = vector.broadcast %cst_470 : f32 to vector<2x32xf32>
    %1588 = arith.addf %1586, %1587 : vector<2x32xf32>
    %1589 = arith.mulf %1578, %1514 : vector<2x32xf32>
    %1590 = arith.mulf %1570, %1580 : vector<2x32xf32>
    %1591 = arith.addf %1589, %1590 : vector<2x32xf32>
    %1592 = math.tanh %1591 : vector<2x32xf32>
    %1593 = arith.mulf %1588, %1592 : vector<2x32xf32>
    %1594 = tpu.concatenate %1593, %1551 in 1 : vector<2x32xf32>, vector<2x32xf32> -> vector<2x64xf32>
    %cst_471 = arith.constant dense<0.000000e+00> : vector<2x128xf32>
    %1595 = tpu.matmul %1594, %2, %cst_471 {dimension_numbers = #tpu.dot_dimension_numbers<[1], [0], [0], [1], [0, 0, 1, 1], [], []>} : vector<2x64xf32>, vector<64x128xf32>, vector<2x128xf32> -> vector<2x128xf32>
    %1596 = vector.broadcast %3 : vector<1x128xf32> to vector<2x128xf32>
    %1597 = arith.addf %1595, %1596 : vector<2x128xf32>
    %1598 = vector.extract_strided_slice %1597 {offsets = [0, 0], sizes = [2, 32], strides = [1, 1]} : vector<2x128xf32> to vector<2x32xf32>
    %cst_472 = arith.constant 5.000000e-01 : f32
    %1599 = vector.broadcast %cst_472 : f32 to vector<2x32xf32>
    %1600 = arith.mulf %1599, %1598 : vector<2x32xf32>
    %1601 = math.tanh %1600 : vector<2x32xf32>
    %cst_473 = arith.constant 5.000000e-01 : f32
    %1602 = vector.broadcast %cst_473 : f32 to vector<2x32xf32>
    %1603 = arith.mulf %1602, %1601 : vector<2x32xf32>
    %cst_474 = arith.constant 5.000000e-01 : f32
    %1604 = vector.broadcast %cst_474 : f32 to vector<2x32xf32>
    %1605 = arith.addf %1603, %1604 : vector<2x32xf32>
    %1606 = vector.extract_strided_slice %1597 {offsets = [0, 32], sizes = [2, 32], strides = [1, 1]} : vector<2x128xf32> to vector<2x32xf32>
    %cst_475 = arith.constant 5.000000e-01 : f32
    %1607 = vector.broadcast %cst_475 : f32 to vector<2x32xf32>
    %1608 = arith.mulf %1607, %1606 : vector<2x32xf32>
    %1609 = math.tanh %1608 : vector<2x32xf32>
    %cst_476 = arith.constant 5.000000e-01 : f32
    %1610 = vector.broadcast %cst_476 : f32 to vector<2x32xf32>
    %1611 = arith.mulf %1610, %1609 : vector<2x32xf32>
    %cst_477 = arith.constant 5.000000e-01 : f32
    %1612 = vector.broadcast %cst_477 : f32 to vector<2x32xf32>
    %1613 = arith.addf %1611, %1612 : vector<2x32xf32>
    %1614 = vector.extract_strided_slice %1597 {offsets = [0, 64], sizes = [2, 32], strides = [1, 1]} : vector<2x128xf32> to vector<2x32xf32>
    %1615 = math.tanh %1614 : vector<2x32xf32>
    %1616 = vector.extract_strided_slice %1597 {offsets = [0, 96], sizes = [2, 32], strides = [1, 1]} : vector<2x128xf32> to vector<2x32xf32>
    %cst_478 = arith.constant 5.000000e-01 : f32
    %1617 = vector.broadcast %cst_478 : f32 to vector<2x32xf32>
    %1618 = arith.mulf %1617, %1616 : vector<2x32xf32>
    %1619 = math.tanh %1618 : vector<2x32xf32>
    %cst_479 = arith.constant 5.000000e-01 : f32
    %1620 = vector.broadcast %cst_479 : f32 to vector<2x32xf32>
    %1621 = arith.mulf %1620, %1619 : vector<2x32xf32>
    %cst_480 = arith.constant 5.000000e-01 : f32
    %1622 = vector.broadcast %cst_480 : f32 to vector<2x32xf32>
    %1623 = arith.addf %1621, %1622 : vector<2x32xf32>
    %1624 = arith.mulf %1613, %1549 : vector<2x32xf32>
    %1625 = arith.mulf %1605, %1615 : vector<2x32xf32>
    %1626 = arith.addf %1624, %1625 : vector<2x32xf32>
    %1627 = math.tanh %1626 : vector<2x32xf32>
    %1628 = arith.mulf %1623, %1627 : vector<2x32xf32>
    %c42 = arith.constant 42 : index
    %1629 = memref.load %arg0[%c42] : memref<48xi32, #tpu.memory_space<smem>>
    %1630 = arith.index_cast %1629 : i32 to index
    %c0_481 = arith.constant 0 : index
    %1631 = vector.load %arg1[%1630, %c0_481] : memref<50x16xf32, #tpu.memory_space<vmem>>, vector<1x16xf32>
    %c43 = arith.constant 43 : index
    %1632 = memref.load %arg0[%c43] : memref<48xi32, #tpu.memory_space<smem>>
    %1633 = arith.index_cast %1632 : i32 to index
    %c0_482 = arith.constant 0 : index
    %1634 = vector.load %arg1[%1633, %c0_482] : memref<50x16xf32, #tpu.memory_space<vmem>>, vector<1x16xf32>
    %1635 = tpu.concatenate %1631, %1634 in 0 : vector<1x16xf32>, vector<1x16xf32> -> vector<2x16xf32>
    %1636 = tpu.concatenate %1635, %1593 in 1 : vector<2x16xf32>, vector<2x32xf32> -> vector<2x48xf32>
    %cst_483 = arith.constant dense<0.000000e+00> : vector<2x128xf32>
    %1637 = tpu.matmul %1636, %0, %cst_483 {dimension_numbers = #tpu.dot_dimension_numbers<[1], [0], [0], [1], [0, 0, 1, 1], [], []>} : vector<2x48xf32>, vector<48x128xf32>, vector<2x128xf32> -> vector<2x128xf32>
    %1638 = vector.broadcast %1 : vector<1x128xf32> to vector<2x128xf32>
    %1639 = arith.addf %1637, %1638 : vector<2x128xf32>
    %1640 = vector.extract_strided_slice %1639 {offsets = [0, 0], sizes = [2, 32], strides = [1, 1]} : vector<2x128xf32> to vector<2x32xf32>
    %cst_484 = arith.constant 5.000000e-01 : f32
    %1641 = vector.broadcast %cst_484 : f32 to vector<2x32xf32>
    %1642 = arith.mulf %1641, %1640 : vector<2x32xf32>
    %1643 = math.tanh %1642 : vector<2x32xf32>
    %cst_485 = arith.constant 5.000000e-01 : f32
    %1644 = vector.broadcast %cst_485 : f32 to vector<2x32xf32>
    %1645 = arith.mulf %1644, %1643 : vector<2x32xf32>
    %cst_486 = arith.constant 5.000000e-01 : f32
    %1646 = vector.broadcast %cst_486 : f32 to vector<2x32xf32>
    %1647 = arith.addf %1645, %1646 : vector<2x32xf32>
    %1648 = vector.extract_strided_slice %1639 {offsets = [0, 32], sizes = [2, 32], strides = [1, 1]} : vector<2x128xf32> to vector<2x32xf32>
    %cst_487 = arith.constant 5.000000e-01 : f32
    %1649 = vector.broadcast %cst_487 : f32 to vector<2x32xf32>
    %1650 = arith.mulf %1649, %1648 : vector<2x32xf32>
    %1651 = math.tanh %1650 : vector<2x32xf32>
    %cst_488 = arith.constant 5.000000e-01 : f32
    %1652 = vector.broadcast %cst_488 : f32 to vector<2x32xf32>
    %1653 = arith.mulf %1652, %1651 : vector<2x32xf32>
    %cst_489 = arith.constant 5.000000e-01 : f32
    %1654 = vector.broadcast %cst_489 : f32 to vector<2x32xf32>
    %1655 = arith.addf %1653, %1654 : vector<2x32xf32>
    %1656 = vector.extract_strided_slice %1639 {offsets = [0, 64], sizes = [2, 32], strides = [1, 1]} : vector<2x128xf32> to vector<2x32xf32>
    %1657 = math.tanh %1656 : vector<2x32xf32>
    %1658 = vector.extract_strided_slice %1639 {offsets = [0, 96], sizes = [2, 32], strides = [1, 1]} : vector<2x128xf32> to vector<2x32xf32>
    %cst_490 = arith.constant 5.000000e-01 : f32
    %1659 = vector.broadcast %cst_490 : f32 to vector<2x32xf32>
    %1660 = arith.mulf %1659, %1658 : vector<2x32xf32>
    %1661 = math.tanh %1660 : vector<2x32xf32>
    %cst_491 = arith.constant 5.000000e-01 : f32
    %1662 = vector.broadcast %cst_491 : f32 to vector<2x32xf32>
    %1663 = arith.mulf %1662, %1661 : vector<2x32xf32>
    %cst_492 = arith.constant 5.000000e-01 : f32
    %1664 = vector.broadcast %cst_492 : f32 to vector<2x32xf32>
    %1665 = arith.addf %1663, %1664 : vector<2x32xf32>
    %1666 = arith.mulf %1655, %1591 : vector<2x32xf32>
    %1667 = arith.mulf %1647, %1657 : vector<2x32xf32>
    %1668 = arith.addf %1666, %1667 : vector<2x32xf32>
    %1669 = math.tanh %1668 : vector<2x32xf32>
    %1670 = arith.mulf %1665, %1669 : vector<2x32xf32>
    %1671 = tpu.concatenate %1670, %1628 in 1 : vector<2x32xf32>, vector<2x32xf32> -> vector<2x64xf32>
    %cst_493 = arith.constant dense<0.000000e+00> : vector<2x128xf32>
    %1672 = tpu.matmul %1671, %2, %cst_493 {dimension_numbers = #tpu.dot_dimension_numbers<[1], [0], [0], [1], [0, 0, 1, 1], [], []>} : vector<2x64xf32>, vector<64x128xf32>, vector<2x128xf32> -> vector<2x128xf32>
    %1673 = vector.broadcast %3 : vector<1x128xf32> to vector<2x128xf32>
    %1674 = arith.addf %1672, %1673 : vector<2x128xf32>
    %1675 = vector.extract_strided_slice %1674 {offsets = [0, 0], sizes = [2, 32], strides = [1, 1]} : vector<2x128xf32> to vector<2x32xf32>
    %cst_494 = arith.constant 5.000000e-01 : f32
    %1676 = vector.broadcast %cst_494 : f32 to vector<2x32xf32>
    %1677 = arith.mulf %1676, %1675 : vector<2x32xf32>
    %1678 = math.tanh %1677 : vector<2x32xf32>
    %cst_495 = arith.constant 5.000000e-01 : f32
    %1679 = vector.broadcast %cst_495 : f32 to vector<2x32xf32>
    %1680 = arith.mulf %1679, %1678 : vector<2x32xf32>
    %cst_496 = arith.constant 5.000000e-01 : f32
    %1681 = vector.broadcast %cst_496 : f32 to vector<2x32xf32>
    %1682 = arith.addf %1680, %1681 : vector<2x32xf32>
    %1683 = vector.extract_strided_slice %1674 {offsets = [0, 32], sizes = [2, 32], strides = [1, 1]} : vector<2x128xf32> to vector<2x32xf32>
    %cst_497 = arith.constant 5.000000e-01 : f32
    %1684 = vector.broadcast %cst_497 : f32 to vector<2x32xf32>
    %1685 = arith.mulf %1684, %1683 : vector<2x32xf32>
    %1686 = math.tanh %1685 : vector<2x32xf32>
    %cst_498 = arith.constant 5.000000e-01 : f32
    %1687 = vector.broadcast %cst_498 : f32 to vector<2x32xf32>
    %1688 = arith.mulf %1687, %1686 : vector<2x32xf32>
    %cst_499 = arith.constant 5.000000e-01 : f32
    %1689 = vector.broadcast %cst_499 : f32 to vector<2x32xf32>
    %1690 = arith.addf %1688, %1689 : vector<2x32xf32>
    %1691 = vector.extract_strided_slice %1674 {offsets = [0, 64], sizes = [2, 32], strides = [1, 1]} : vector<2x128xf32> to vector<2x32xf32>
    %1692 = math.tanh %1691 : vector<2x32xf32>
    %1693 = vector.extract_strided_slice %1674 {offsets = [0, 96], sizes = [2, 32], strides = [1, 1]} : vector<2x128xf32> to vector<2x32xf32>
    %cst_500 = arith.constant 5.000000e-01 : f32
    %1694 = vector.broadcast %cst_500 : f32 to vector<2x32xf32>
    %1695 = arith.mulf %1694, %1693 : vector<2x32xf32>
    %1696 = math.tanh %1695 : vector<2x32xf32>
    %cst_501 = arith.constant 5.000000e-01 : f32
    %1697 = vector.broadcast %cst_501 : f32 to vector<2x32xf32>
    %1698 = arith.mulf %1697, %1696 : vector<2x32xf32>
    %cst_502 = arith.constant 5.000000e-01 : f32
    %1699 = vector.broadcast %cst_502 : f32 to vector<2x32xf32>
    %1700 = arith.addf %1698, %1699 : vector<2x32xf32>
    %1701 = arith.mulf %1690, %1626 : vector<2x32xf32>
    %1702 = arith.mulf %1682, %1692 : vector<2x32xf32>
    %1703 = arith.addf %1701, %1702 : vector<2x32xf32>
    %1704 = math.tanh %1703 : vector<2x32xf32>
    %1705 = arith.mulf %1700, %1704 : vector<2x32xf32>
    %c44 = arith.constant 44 : index
    %1706 = memref.load %arg0[%c44] : memref<48xi32, #tpu.memory_space<smem>>
    %1707 = arith.index_cast %1706 : i32 to index
    %c0_503 = arith.constant 0 : index
    %1708 = vector.load %arg1[%1707, %c0_503] : memref<50x16xf32, #tpu.memory_space<vmem>>, vector<1x16xf32>
    %c45 = arith.constant 45 : index
    %1709 = memref.load %arg0[%c45] : memref<48xi32, #tpu.memory_space<smem>>
    %1710 = arith.index_cast %1709 : i32 to index
    %c0_504 = arith.constant 0 : index
    %1711 = vector.load %arg1[%1710, %c0_504] : memref<50x16xf32, #tpu.memory_space<vmem>>, vector<1x16xf32>
    %1712 = tpu.concatenate %1708, %1711 in 0 : vector<1x16xf32>, vector<1x16xf32> -> vector<2x16xf32>
    %1713 = tpu.concatenate %1712, %1670 in 1 : vector<2x16xf32>, vector<2x32xf32> -> vector<2x48xf32>
    %cst_505 = arith.constant dense<0.000000e+00> : vector<2x128xf32>
    %1714 = tpu.matmul %1713, %0, %cst_505 {dimension_numbers = #tpu.dot_dimension_numbers<[1], [0], [0], [1], [0, 0, 1, 1], [], []>} : vector<2x48xf32>, vector<48x128xf32>, vector<2x128xf32> -> vector<2x128xf32>
    %1715 = vector.broadcast %1 : vector<1x128xf32> to vector<2x128xf32>
    %1716 = arith.addf %1714, %1715 : vector<2x128xf32>
    %1717 = vector.extract_strided_slice %1716 {offsets = [0, 0], sizes = [2, 32], strides = [1, 1]} : vector<2x128xf32> to vector<2x32xf32>
    %cst_506 = arith.constant 5.000000e-01 : f32
    %1718 = vector.broadcast %cst_506 : f32 to vector<2x32xf32>
    %1719 = arith.mulf %1718, %1717 : vector<2x32xf32>
    %1720 = math.tanh %1719 : vector<2x32xf32>
    %cst_507 = arith.constant 5.000000e-01 : f32
    %1721 = vector.broadcast %cst_507 : f32 to vector<2x32xf32>
    %1722 = arith.mulf %1721, %1720 : vector<2x32xf32>
    %cst_508 = arith.constant 5.000000e-01 : f32
    %1723 = vector.broadcast %cst_508 : f32 to vector<2x32xf32>
    %1724 = arith.addf %1722, %1723 : vector<2x32xf32>
    %1725 = vector.extract_strided_slice %1716 {offsets = [0, 32], sizes = [2, 32], strides = [1, 1]} : vector<2x128xf32> to vector<2x32xf32>
    %cst_509 = arith.constant 5.000000e-01 : f32
    %1726 = vector.broadcast %cst_509 : f32 to vector<2x32xf32>
    %1727 = arith.mulf %1726, %1725 : vector<2x32xf32>
    %1728 = math.tanh %1727 : vector<2x32xf32>
    %cst_510 = arith.constant 5.000000e-01 : f32
    %1729 = vector.broadcast %cst_510 : f32 to vector<2x32xf32>
    %1730 = arith.mulf %1729, %1728 : vector<2x32xf32>
    %cst_511 = arith.constant 5.000000e-01 : f32
    %1731 = vector.broadcast %cst_511 : f32 to vector<2x32xf32>
    %1732 = arith.addf %1730, %1731 : vector<2x32xf32>
    %1733 = vector.extract_strided_slice %1716 {offsets = [0, 64], sizes = [2, 32], strides = [1, 1]} : vector<2x128xf32> to vector<2x32xf32>
    %1734 = math.tanh %1733 : vector<2x32xf32>
    %1735 = vector.extract_strided_slice %1716 {offsets = [0, 96], sizes = [2, 32], strides = [1, 1]} : vector<2x128xf32> to vector<2x32xf32>
    %cst_512 = arith.constant 5.000000e-01 : f32
    %1736 = vector.broadcast %cst_512 : f32 to vector<2x32xf32>
    %1737 = arith.mulf %1736, %1735 : vector<2x32xf32>
    %1738 = math.tanh %1737 : vector<2x32xf32>
    %cst_513 = arith.constant 5.000000e-01 : f32
    %1739 = vector.broadcast %cst_513 : f32 to vector<2x32xf32>
    %1740 = arith.mulf %1739, %1738 : vector<2x32xf32>
    %cst_514 = arith.constant 5.000000e-01 : f32
    %1741 = vector.broadcast %cst_514 : f32 to vector<2x32xf32>
    %1742 = arith.addf %1740, %1741 : vector<2x32xf32>
    %1743 = arith.mulf %1732, %1668 : vector<2x32xf32>
    %1744 = arith.mulf %1724, %1734 : vector<2x32xf32>
    %1745 = arith.addf %1743, %1744 : vector<2x32xf32>
    %1746 = math.tanh %1745 : vector<2x32xf32>
    %1747 = arith.mulf %1742, %1746 : vector<2x32xf32>
    %1748 = tpu.concatenate %1747, %1705 in 1 : vector<2x32xf32>, vector<2x32xf32> -> vector<2x64xf32>
    %cst_515 = arith.constant dense<0.000000e+00> : vector<2x128xf32>
    %1749 = tpu.matmul %1748, %2, %cst_515 {dimension_numbers = #tpu.dot_dimension_numbers<[1], [0], [0], [1], [0, 0, 1, 1], [], []>} : vector<2x64xf32>, vector<64x128xf32>, vector<2x128xf32> -> vector<2x128xf32>
    %1750 = vector.broadcast %3 : vector<1x128xf32> to vector<2x128xf32>
    %1751 = arith.addf %1749, %1750 : vector<2x128xf32>
    %1752 = vector.extract_strided_slice %1751 {offsets = [0, 0], sizes = [2, 32], strides = [1, 1]} : vector<2x128xf32> to vector<2x32xf32>
    %cst_516 = arith.constant 5.000000e-01 : f32
    %1753 = vector.broadcast %cst_516 : f32 to vector<2x32xf32>
    %1754 = arith.mulf %1753, %1752 : vector<2x32xf32>
    %1755 = math.tanh %1754 : vector<2x32xf32>
    %cst_517 = arith.constant 5.000000e-01 : f32
    %1756 = vector.broadcast %cst_517 : f32 to vector<2x32xf32>
    %1757 = arith.mulf %1756, %1755 : vector<2x32xf32>
    %cst_518 = arith.constant 5.000000e-01 : f32
    %1758 = vector.broadcast %cst_518 : f32 to vector<2x32xf32>
    %1759 = arith.addf %1757, %1758 : vector<2x32xf32>
    %1760 = vector.extract_strided_slice %1751 {offsets = [0, 32], sizes = [2, 32], strides = [1, 1]} : vector<2x128xf32> to vector<2x32xf32>
    %cst_519 = arith.constant 5.000000e-01 : f32
    %1761 = vector.broadcast %cst_519 : f32 to vector<2x32xf32>
    %1762 = arith.mulf %1761, %1760 : vector<2x32xf32>
    %1763 = math.tanh %1762 : vector<2x32xf32>
    %cst_520 = arith.constant 5.000000e-01 : f32
    %1764 = vector.broadcast %cst_520 : f32 to vector<2x32xf32>
    %1765 = arith.mulf %1764, %1763 : vector<2x32xf32>
    %cst_521 = arith.constant 5.000000e-01 : f32
    %1766 = vector.broadcast %cst_521 : f32 to vector<2x32xf32>
    %1767 = arith.addf %1765, %1766 : vector<2x32xf32>
    %1768 = vector.extract_strided_slice %1751 {offsets = [0, 64], sizes = [2, 32], strides = [1, 1]} : vector<2x128xf32> to vector<2x32xf32>
    %1769 = math.tanh %1768 : vector<2x32xf32>
    %1770 = vector.extract_strided_slice %1751 {offsets = [0, 96], sizes = [2, 32], strides = [1, 1]} : vector<2x128xf32> to vector<2x32xf32>
    %cst_522 = arith.constant 5.000000e-01 : f32
    %1771 = vector.broadcast %cst_522 : f32 to vector<2x32xf32>
    %1772 = arith.mulf %1771, %1770 : vector<2x32xf32>
    %1773 = math.tanh %1772 : vector<2x32xf32>
    %cst_523 = arith.constant 5.000000e-01 : f32
    %1774 = vector.broadcast %cst_523 : f32 to vector<2x32xf32>
    %1775 = arith.mulf %1774, %1773 : vector<2x32xf32>
    %cst_524 = arith.constant 5.000000e-01 : f32
    %1776 = vector.broadcast %cst_524 : f32 to vector<2x32xf32>
    %1777 = arith.addf %1775, %1776 : vector<2x32xf32>
    %1778 = arith.mulf %1767, %1703 : vector<2x32xf32>
    %1779 = arith.mulf %1759, %1769 : vector<2x32xf32>
    %1780 = arith.addf %1778, %1779 : vector<2x32xf32>
    %1781 = math.tanh %1780 : vector<2x32xf32>
    %1782 = arith.mulf %1777, %1781 : vector<2x32xf32>
    %c46 = arith.constant 46 : index
    %1783 = memref.load %arg0[%c46] : memref<48xi32, #tpu.memory_space<smem>>
    %1784 = arith.index_cast %1783 : i32 to index
    %c0_525 = arith.constant 0 : index
    %1785 = vector.load %arg1[%1784, %c0_525] : memref<50x16xf32, #tpu.memory_space<vmem>>, vector<1x16xf32>
    %c47 = arith.constant 47 : index
    %1786 = memref.load %arg0[%c47] : memref<48xi32, #tpu.memory_space<smem>>
    %1787 = arith.index_cast %1786 : i32 to index
    %c0_526 = arith.constant 0 : index
    %1788 = vector.load %arg1[%1787, %c0_526] : memref<50x16xf32, #tpu.memory_space<vmem>>, vector<1x16xf32>
    %1789 = tpu.concatenate %1785, %1788 in 0 : vector<1x16xf32>, vector<1x16xf32> -> vector<2x16xf32>
    %1790 = tpu.concatenate %1789, %1747 in 1 : vector<2x16xf32>, vector<2x32xf32> -> vector<2x48xf32>
    %cst_527 = arith.constant dense<0.000000e+00> : vector<2x128xf32>
    %1791 = tpu.matmul %1790, %0, %cst_527 {dimension_numbers = #tpu.dot_dimension_numbers<[1], [0], [0], [1], [0, 0, 1, 1], [], []>} : vector<2x48xf32>, vector<48x128xf32>, vector<2x128xf32> -> vector<2x128xf32>
    %1792 = vector.broadcast %1 : vector<1x128xf32> to vector<2x128xf32>
    %1793 = arith.addf %1791, %1792 : vector<2x128xf32>
    %1794 = vector.extract_strided_slice %1793 {offsets = [0, 0], sizes = [2, 32], strides = [1, 1]} : vector<2x128xf32> to vector<2x32xf32>
    %cst_528 = arith.constant 5.000000e-01 : f32
    %1795 = vector.broadcast %cst_528 : f32 to vector<2x32xf32>
    %1796 = arith.mulf %1795, %1794 : vector<2x32xf32>
    %1797 = math.tanh %1796 : vector<2x32xf32>
    %cst_529 = arith.constant 5.000000e-01 : f32
    %1798 = vector.broadcast %cst_529 : f32 to vector<2x32xf32>
    %1799 = arith.mulf %1798, %1797 : vector<2x32xf32>
    %cst_530 = arith.constant 5.000000e-01 : f32
    %1800 = vector.broadcast %cst_530 : f32 to vector<2x32xf32>
    %1801 = arith.addf %1799, %1800 : vector<2x32xf32>
    %1802 = vector.extract_strided_slice %1793 {offsets = [0, 32], sizes = [2, 32], strides = [1, 1]} : vector<2x128xf32> to vector<2x32xf32>
    %cst_531 = arith.constant 5.000000e-01 : f32
    %1803 = vector.broadcast %cst_531 : f32 to vector<2x32xf32>
    %1804 = arith.mulf %1803, %1802 : vector<2x32xf32>
    %1805 = math.tanh %1804 : vector<2x32xf32>
    %cst_532 = arith.constant 5.000000e-01 : f32
    %1806 = vector.broadcast %cst_532 : f32 to vector<2x32xf32>
    %1807 = arith.mulf %1806, %1805 : vector<2x32xf32>
    %cst_533 = arith.constant 5.000000e-01 : f32
    %1808 = vector.broadcast %cst_533 : f32 to vector<2x32xf32>
    %1809 = arith.addf %1807, %1808 : vector<2x32xf32>
    %1810 = vector.extract_strided_slice %1793 {offsets = [0, 64], sizes = [2, 32], strides = [1, 1]} : vector<2x128xf32> to vector<2x32xf32>
    %1811 = math.tanh %1810 : vector<2x32xf32>
    %1812 = vector.extract_strided_slice %1793 {offsets = [0, 96], sizes = [2, 32], strides = [1, 1]} : vector<2x128xf32> to vector<2x32xf32>
    %cst_534 = arith.constant 5.000000e-01 : f32
    %1813 = vector.broadcast %cst_534 : f32 to vector<2x32xf32>
    %1814 = arith.mulf %1813, %1812 : vector<2x32xf32>
    %1815 = math.tanh %1814 : vector<2x32xf32>
    %cst_535 = arith.constant 5.000000e-01 : f32
    %1816 = vector.broadcast %cst_535 : f32 to vector<2x32xf32>
    %1817 = arith.mulf %1816, %1815 : vector<2x32xf32>
    %cst_536 = arith.constant 5.000000e-01 : f32
    %1818 = vector.broadcast %cst_536 : f32 to vector<2x32xf32>
    %1819 = arith.addf %1817, %1818 : vector<2x32xf32>
    %1820 = arith.mulf %1809, %1745 : vector<2x32xf32>
    %1821 = arith.mulf %1801, %1811 : vector<2x32xf32>
    %1822 = arith.addf %1820, %1821 : vector<2x32xf32>
    %1823 = math.tanh %1822 : vector<2x32xf32>
    %1824 = arith.mulf %1819, %1823 : vector<2x32xf32>
    %1825 = tpu.concatenate %1824, %1782 in 1 : vector<2x32xf32>, vector<2x32xf32> -> vector<2x64xf32>
    %cst_537 = arith.constant dense<0.000000e+00> : vector<2x128xf32>
    %1826 = tpu.matmul %1825, %2, %cst_537 {dimension_numbers = #tpu.dot_dimension_numbers<[1], [0], [0], [1], [0, 0, 1, 1], [], []>} : vector<2x64xf32>, vector<64x128xf32>, vector<2x128xf32> -> vector<2x128xf32>
    %1827 = vector.broadcast %3 : vector<1x128xf32> to vector<2x128xf32>
    %1828 = arith.addf %1826, %1827 : vector<2x128xf32>
    %1829 = vector.extract_strided_slice %1828 {offsets = [0, 0], sizes = [2, 32], strides = [1, 1]} : vector<2x128xf32> to vector<2x32xf32>
    %cst_538 = arith.constant 5.000000e-01 : f32
    %1830 = vector.broadcast %cst_538 : f32 to vector<2x32xf32>
    %1831 = arith.mulf %1830, %1829 : vector<2x32xf32>
    %1832 = math.tanh %1831 : vector<2x32xf32>
    %cst_539 = arith.constant 5.000000e-01 : f32
    %1833 = vector.broadcast %cst_539 : f32 to vector<2x32xf32>
    %1834 = arith.mulf %1833, %1832 : vector<2x32xf32>
    %cst_540 = arith.constant 5.000000e-01 : f32
    %1835 = vector.broadcast %cst_540 : f32 to vector<2x32xf32>
    %1836 = arith.addf %1834, %1835 : vector<2x32xf32>
    %1837 = vector.extract_strided_slice %1828 {offsets = [0, 32], sizes = [2, 32], strides = [1, 1]} : vector<2x128xf32> to vector<2x32xf32>
    %cst_541 = arith.constant 5.000000e-01 : f32
    %1838 = vector.broadcast %cst_541 : f32 to vector<2x32xf32>
    %1839 = arith.mulf %1838, %1837 : vector<2x32xf32>
    %1840 = math.tanh %1839 : vector<2x32xf32>
    %cst_542 = arith.constant 5.000000e-01 : f32
    %1841 = vector.broadcast %cst_542 : f32 to vector<2x32xf32>
    %1842 = arith.mulf %1841, %1840 : vector<2x32xf32>
    %cst_543 = arith.constant 5.000000e-01 : f32
    %1843 = vector.broadcast %cst_543 : f32 to vector<2x32xf32>
    %1844 = arith.addf %1842, %1843 : vector<2x32xf32>
    %1845 = vector.extract_strided_slice %1828 {offsets = [0, 64], sizes = [2, 32], strides = [1, 1]} : vector<2x128xf32> to vector<2x32xf32>
    %1846 = math.tanh %1845 : vector<2x32xf32>
    %1847 = vector.extract_strided_slice %1828 {offsets = [0, 96], sizes = [2, 32], strides = [1, 1]} : vector<2x128xf32> to vector<2x32xf32>
    %cst_544 = arith.constant 5.000000e-01 : f32
    %1848 = vector.broadcast %cst_544 : f32 to vector<2x32xf32>
    %1849 = arith.mulf %1848, %1847 : vector<2x32xf32>
    %1850 = math.tanh %1849 : vector<2x32xf32>
    %cst_545 = arith.constant 5.000000e-01 : f32
    %1851 = vector.broadcast %cst_545 : f32 to vector<2x32xf32>
    %1852 = arith.mulf %1851, %1850 : vector<2x32xf32>
    %cst_546 = arith.constant 5.000000e-01 : f32
    %1853 = vector.broadcast %cst_546 : f32 to vector<2x32xf32>
    %1854 = arith.addf %1852, %1853 : vector<2x32xf32>
    %1855 = arith.mulf %1844, %1780 : vector<2x32xf32>
    %1856 = arith.mulf %1836, %1846 : vector<2x32xf32>
    %1857 = arith.addf %1855, %1856 : vector<2x32xf32>
    %1858 = math.tanh %1857 : vector<2x32xf32>
    %1859 = arith.mulf %1854, %1858 : vector<2x32xf32>
    %c0_547 = arith.constant 0 : index
    %c0_548 = arith.constant 0 : index
    %1860 = vector.load %arg8[%c0_547, %c0_548] : memref<64x32xf32, #tpu.memory_space<vmem>>, vector<64x32xf32>
    %c0_549 = arith.constant 0 : index
    %c0_550 = arith.constant 0 : index
    %1861 = vector.load %arg10[%c0_549, %c0_550] : memref<64x4xf32, #tpu.memory_space<vmem>>, vector<64x4xf32>
    %1862 = vector.extract_strided_slice %1860 {offsets = [0, 0], sizes = [32, 32], strides = [1, 1]} : vector<64x32xf32> to vector<32x32xf32>
    %cst_551 = arith.constant dense<0.000000e+00> : vector<2x32xf32>
    %1863 = tpu.matmul %627, %1862, %cst_551 {dimension_numbers = #tpu.dot_dimension_numbers<[1], [0], [0], [1], [0, 0, 1, 1], [], []>} : vector<2x32xf32>, vector<32x32xf32>, vector<2x32xf32> -> vector<2x32xf32>
    %1864 = vector.extract_strided_slice %1860 {offsets = [32, 0], sizes = [32, 32], strides = [1, 1]} : vector<64x32xf32> to vector<32x32xf32>
    %cst_552 = arith.constant dense<0.000000e+00> : vector<2x32xf32>
    %1865 = tpu.matmul %1243, %1864, %cst_552 {dimension_numbers = #tpu.dot_dimension_numbers<[1], [0], [0], [1], [0, 0, 1, 1], [], []>} : vector<2x32xf32>, vector<32x32xf32>, vector<2x32xf32> -> vector<2x32xf32>
    %1866 = arith.addf %1863, %1865 : vector<2x32xf32>
    %c0_553 = arith.constant 0 : index
    %c0_554 = arith.constant 0 : index
    %1867 = vector.load %arg9[%c0_553, %c0_554] : memref<1x32xf32, #tpu.memory_space<vmem>>, vector<1x32xf32>
    %1868 = vector.broadcast %1867 : vector<1x32xf32> to vector<2x32xf32>
    %1869 = arith.addf %1866, %1868 : vector<2x32xf32>
    %cst_555 = arith.constant 0.000000e+00 : f32
    %1870 = vector.broadcast %cst_555 : f32 to vector<2x32xf32>
    %1871 = arith.maximumf %1869, %1870 : vector<2x32xf32>
    %1872 = vector.extract_strided_slice %1861 {offsets = [0, 0], sizes = [32, 4], strides = [1, 1]} : vector<64x4xf32> to vector<32x4xf32>
    %cst_556 = arith.constant dense<0.000000e+00> : vector<2x4xf32>
    %1873 = tpu.matmul %1871, %1872, %cst_556 {dimension_numbers = #tpu.dot_dimension_numbers<[1], [0], [0], [1], [0, 0, 1, 1], [], []>} : vector<2x32xf32>, vector<32x4xf32>, vector<2x4xf32> -> vector<2x4xf32>
    %1874 = vector.extract_strided_slice %1861 {offsets = [32, 0], sizes = [32, 4], strides = [1, 1]} : vector<64x4xf32> to vector<32x4xf32>
    %cst_557 = arith.constant dense<0.000000e+00> : vector<2x4xf32>
    %1875 = tpu.matmul %1859, %1874, %cst_557 {dimension_numbers = #tpu.dot_dimension_numbers<[1], [0], [0], [1], [0, 0, 1, 1], [], []>} : vector<2x32xf32>, vector<32x4xf32>, vector<2x4xf32> -> vector<2x4xf32>
    %1876 = arith.addf %1873, %1875 : vector<2x4xf32>
    %c0_558 = arith.constant 0 : index
    %c0_559 = arith.constant 0 : index
    %1877 = vector.load %arg11[%c0_558, %c0_559] : memref<1x4xf32, #tpu.memory_space<vmem>>, vector<1x4xf32>
    %1878 = vector.broadcast %1877 : vector<1x4xf32> to vector<2x4xf32>
    %1879 = arith.addf %1876, %1878 : vector<2x4xf32>
    %cst_560 = arith.constant dense<0xFF800000> : vector<2xf32>
    %1880 = vector.multi_reduction <maximumf>, %1879, %cst_560 [1] : vector<2x4xf32> to vector<2xf32>
    %1881 = vector.shape_cast %1880 : vector<2xf32> to vector<2x1xf32>
    %1882 = vector.broadcast %1881 : vector<2x1xf32> to vector<2x4xf32>
    %1883 = arith.subf %1879, %1882 : vector<2x4xf32>
    %1884 = math.exp %1883 : vector<2x4xf32>
    %cst_561 = arith.constant dense<0.000000e+00> : vector<2xf32>
    %1885 = vector.multi_reduction <add>, %1884, %cst_561 [1] : vector<2x4xf32> to vector<2xf32>
    %1886 = vector.shape_cast %1885 : vector<2xf32> to vector<2x1xf32>
    %1887 = math.log %1886 : vector<2x1xf32>
    %1888 = vector.broadcast %1887 : vector<2x1xf32> to vector<2x4xf32>
    %1889 = arith.subf %1883, %1888 : vector<2x4xf32>
    %c0_562 = arith.constant 0 : index
    %c0_563 = arith.constant 0 : index
    %1890 = vector.load %arg12[%c0_562, %c0_563] : memref<2x4xf32, #tpu.memory_space<vmem>>, vector<2x4xf32>
    tpu.vector_store %arg12[%c0_562, %c0_563], %1889 {strides = array<i32>} : memref<2x4xf32, #tpu.memory_space<vmem>>, vector<2x4xf32>,
    return
  }
}

</mosaic_0001>

<llo_original>
// kernel: classifier_forward.1
$region0: #{classifier_forward.1}
  #allocation0 [shape = 'u32[]', space=smem, size = 0x4, offset = 0x4, fixed_abs, tag = 'smem constant byte address 0x4 - core index']
  #allocation1 [shape = 'u32[144,128]{1,0:T(1,128)}', space=vmem, size = 0x12000, scoped, tag = 'internal scratch']
  %s0 = inlined_call_operand.vmem [shape: s32[48], index: 0, kind: input, shape index: {}]
  %s1 = inlined_call_operand.vmem [shape: f32[50,16], index: 1, kind: input, shape index: {}]
  %s2 = inlined_call_operand.vmem [shape: f32[48,128], index: 2, kind: input, shape index: {}]
  %s3 = inlined_call_operand.vmem [shape: f32[1,128], index: 3, kind: input, shape index: {}]
  %s4 = inlined_call_operand.vmem [shape: f32[64,128], index: 4, kind: input, shape index: {}]
  %s5 = inlined_call_operand.vmem [shape: f32[1,128], index: 5, kind: input, shape index: {}]
  %s6 = inlined_call_operand.vmem [shape: f32[2,2,32], index: 6, kind: input, shape index: {}]
  %s7 = inlined_call_operand.vmem [shape: f32[2,2,32], index: 7, kind: input, shape index: {}]
  %s8 = inlined_call_operand.vmem [shape: f32[64,32], index: 8, kind: input, shape index: {}]
  %s9 = inlined_call_operand.vmem [shape: f32[1,32], index: 9, kind: input, shape index: {}]
  %s10 = inlined_call_operand.vmem [shape: f32[64,4], index: 10, kind: input, shape index: {}]
  %s11 = inlined_call_operand.vmem [shape: f32[1,4], index: 11, kind: input, shape index: {}]
  %s12 = inlined_call_operand.hbm [shape: f32[2,4], index: 12, kind: output, shape index: {}]
  %s13 = sld [smem:[#allocation0]]
  $region62: #{classifier_forward.1} parent=0
    _
  %s15 = ssub.s32 1, %s13
  %s16 = scalar_select 0, %s15, %s13
  $region1: #{classifier_forward.1} parent=0
    #allocation2 [shape = 'u8[512]{0}', space=smem, size = 0x200, scoped, tag = 'input window, operand 0, single buffered']
    #allocation3 [shape = 's32[1]{0}', space=sflag, size = 0x4, scoped, tag = 'scoped memory for classifier_forward.1']
    #allocation4 [shape = 's32[1]{0}', space=sflag, size = 0x4, scoped, tag = 'scoped memory for classifier_forward.1']
    #allocation5 [shape = 'u8[1024]{0}', space=vmem, size = 0x400, scoped, tag = 'output window, operand 0, single buffered']
    %17 = vsyncpa [#allocation4], 0
    %18 = vsyncpa [#allocation3], 0
    // Predicated region
    $region2: #{classifier_forward.1} parent=1 // pred_check
      _
    $region3: #{classifier_forward.1} parent=1 // pred_check_branch
      %20 = sbr.rel (0) target = $region5
    $region4: #{classifier_forward.1} parent=1 // pred_region
      %s22 = ssub.s32 16, 16
      %23 = vsyncadd [#allocation4], %s22
      %s25 = sshll.u32 %s0, 4
      %s26 = int_to_ptr.vmem [resolvable:$true] %s25
      %28 = dma.vmem_to_smem %s26, 16, [#allocation2], [#allocation4]
    $region5: #{classifier_forward.1} parent=1 // pred_fallthru
      _
    // Predicated region
    $region6: #{classifier_forward.1} parent=1 // pred_check
      _
    $region7: #{classifier_forward.1} parent=1 // pred_check_branch
      %30 = sbr.rel (0) target = $region9
    $region8: #{classifier_forward.1} parent=1 // pred_region
      _
    $region9: #{classifier_forward.1} parent=1 // pred_fallthru
      _
    // Predicated region
    $region10: #{classifier_forward.1} parent=1 // pred_check
      _
    $region11: #{classifier_forward.1} parent=1 // pred_check_branch
      %32 = sbr.rel (0) target = $region13
    $region12: #{classifier_forward.1} parent=1 // pred_region
      _
    $region13: #{classifier_forward.1} parent=1 // pred_fallthru
      _
    // Predicated region
    $region14: #{classifier_forward.1} parent=1 // pred_check
      _
    $region15: #{classifier_forward.1} parent=1 // pred_check_branch
      %34 = sbr.rel (0) target = $region17
    $region16: #{classifier_forward.1} parent=1 // pred_region
      _
    $region17: #{classifier_forward.1} parent=1 // pred_fallthru
      _
    // Predicated region
    $region18: #{classifier_forward.1} parent=1 // pred_check
      _
    $region19: #{classifier_forward.1} parent=1 // pred_check_branch
      %36 = sbr.rel (0) target = $region21
    $region20: #{classifier_forward.1} parent=1 // pred_region
      _
    $region21: #{classifier_forward.1} parent=1 // pred_fallthru
      _
    // Predicated region
    $region22: #{classifier_forward.1} parent=1 // pred_check
      _
    $region23: #{classifier_forward.1} parent=1 // pred_check_branch
      %38 = sbr.rel (0) target = $region25
    $region24: #{classifier_forward.1} parent=1 // pred_region
      _
    $region25: #{classifier_forward.1} parent=1 // pred_fallthru
      _
    // Predicated region
    $region26: #{classifier_forward.1} parent=1 // pred_check
      _
    $region27: #{classifier_forward.1} parent=1 // pred_check_branch
      %40 = sbr.rel (0) target = $region29
    $region28: #{classifier_forward.1} parent=1 // pred_region
      _
    $region29: #{classifier_forward.1} parent=1 // pred_fallthru
      _
    // Predicated region
    $region30: #{classifier_forward.1} parent=1 // pred_check
      _
    $region31: #{classifier_forward.1} parent=1 // pred_check_branch
      %42 = sbr.rel (0) target = $region33
    $region32: #{classifier_forward.1} parent=1 // pred_region
      _
    $region33: #{classifier_forward.1} parent=1 // pred_fallthru
      _
    // Predicated region
    $region34: #{classifier_forward.1} parent=1 // pred_check
      _
    $region35: #{classifier_forward.1} parent=1 // pred_check_branch
      %44 = sbr.rel (0) target = $region37
    $region36: #{classifier_forward.1} parent=1 // pred_region
      _
    $region37: #{classifier_forward.1} parent=1 // pred_fallthru
      _
    // Predicated region
    $region38: #{classifier_forward.1} parent=1 // pred_check
      _
    $region39: #{classifier_forward.1} parent=1 // pred_check_branch
      %46 = sbr.rel (0) target = $region41
    $region40: #{classifier_forward.1} parent=1 // pred_region
      _
    $region41: #{classifier_forward.1} parent=1 // pred_fallthru
      _
    // Predicated region
    $region42: #{classifier_forward.1} parent=1 // pred_check
      _
    $region43: #{classifier_forward.1} parent=1 // pred_check_branch
      %48 = sbr.rel (0) target = $region45
    $region44: #{classifier_forward.1} parent=1 // pred_region
      _
    $region45: #{classifier_forward.1} parent=1 // pred_fallthru
      _
    // Predicated region
    $region46: #{classifier_forward.1} parent=1 // pred_check
      _
    $region47: #{classifier_forward.1} parent=1 // pred_check_branch
      %50 = sbr.rel (0) target = $region49
    $region48: #{classifier_forward.1} parent=1 // pred_region
      _
    $region49: #{classifier_forward.1} parent=1 // pred_fallthru
      _
    // Predicated region
    $region50: #{classifier_forward.1} parent=1 // pred_check
      _
    $region51: #{classifier_forward.1} parent=1 // pred_check_branch
      %52 = sbr.rel (0) target = $region53
    $region52: #{classifier_forward.1} parent=1 // pred_region
      %53 = dma.done [#allocation4], 16
    $region53: #{classifier_forward.1} parent=1 // pred_fallthru
      _
    %54 = sfence
    %v55 = vld [vmem:[%s2] sm:$0xff]
    %v56 = vld [vmem:[%s2 + $0x8] sm:$0xff]
    %v57 = vld [vmem:[%s2 + $0x10] sm:$0xff]
    %v58 = vld [vmem:[%s2 + $0x18] sm:$0xff]
    %v59 = vld [vmem:[%s2 + $0x20] sm:$0xff]
    %v60 = vld [vmem:[%s2 + $0x28] sm:$0xff]
    %v61 = vld [vmem:[%s3] sm:$0x1]
    %v62 = vld [vmem:[%s4] sm:$0xff]
    %v63 = vld [vmem:[%s4 + $0x8] sm:$0xff]
    %v64 = vld [vmem:[%s4 + $0x10] sm:$0xff]
    %v65 = vld [vmem:[%s4 + $0x18] sm:$0xff]
    %v66 = vld [vmem:[%s4 + $0x20] sm:$0xff]
    %v67 = vld [vmem:[%s4 + $0x28] sm:$0xff]
    %v68 = vld [vmem:[%s4 + $0x30] sm:$0xff]
    %v69 = vld [vmem:[%s4 + $0x38] sm:$0xff]
    %v70 = vld [vmem:[%s5] sm:$0x1]
    %v71 = vld [vmem:[%s6] sm:$0x3]
    %v72 = vld [vmem:[%s7] sm:$0x3]
    %s73 = scalar_lea.vmem %s6, 2
    %v74 = vld [vmem:[%s73] sm:$0x3]
    %s75 = scalar_lea.vmem %s7, 2
    %v76 = vld [vmem:[%s75] sm:$0x3]
    %s77 = sld [smem:[#allocation2]]
    %s78 = scalar_lea.vmem %s1, %s77
    %v79 = vld [vmem:[%s78] sm:$0x1]
    %s80 = sld [smem:[#allocation2 + $0x1]]
    %s81 = scalar_lea.vmem %s1, %s80
    %v82 = vld [vmem:[%s81] sm:$0x1]
    %v84 = vrot.slane %v82, 7
    %vm86 = vcmask 1040384
    %v87 = vsel %vm86, %v79, %v84
    %89 = vrot.lane.b32.xlu0 %v71, 16
    %v90 = vpop.permute.xlu0 %89
    %vm92 = vcmask 130048
    %v93 = vsel %vm92, %v87, %v90
    %v95 = vlaneseq
    %v96 = vshrl.u32 %v95, 7
    %v97 = vsub.s32 0, %v96
    %v98 = vrot.slane %v61, %v97
    %vm100 = vcmask 392192
    %v102 = vsel %vm100, %v93, 0
    %104 = vmatprep.subr.mxu0 0.0
    %105 = vmatpush1.msra.mxu0 0.0
    %106 = vmatprep.subr.mxu0 0.0
    %107 = vmatpush1.msra.mxu0 0.0
    %108 = vmatprep.subr.mxu0 0.0
    %109 = vmatpush1.msra.mxu0 0.0
    %110 = vmatprep.subr.mxu0 0.0
    %111 = vmatpush1.msra.mxu0 0.0
    %112 = vmatprep.subr.mxu0 0.0
    %113 = vmatpush1.msra.mxu0 0.0
    %114 = vmatprep.subr.mxu0 0.0
    %115 = vmatpush1.msra.mxu0 0.0
    %116 = vmatprep.subr.mxu0 0.0
    %117 = vmatpush1.msra.mxu0 0.0
    %118 = vmatprep.subr.mxu0 0.0
    %119 = vmatpush1.msra.mxu0 0.0
    %120 = vmatprep.subr.mxu0 0.0
    %121 = vmatpush1.msra.mxu0 0.0
    %122 = vmatprep.subr.mxu0 0.0
    %123 = vmatpush1.msra.mxu0 0.0
    %124 = vmatprep.subr.mxu0 0.0
    %125 = vmatpush1.msra.mxu0 %v60
    %126 = vmatprep.subr.mxu0 0.0
    %127 = vmatpush1.msra.mxu0 %v59
    %128 = vmatprep.subr.mxu0 0.0
    %129 = vmatpush1.msra.mxu0 %v58
    %130 = vmatprep.subr.mxu0 0.0
    %131 = vmatpush1.msra.mxu0 %v57
    %132 = vmatprep.subr.mxu0 0.0
    %133 = vmatpush1.msra.mxu0 %v56
    %134 = vmatprep.subr.mxu0 0.0
    %135 = vmatpush1.msra.mxu0 %v55
    %136 = vmatprep.subr.mxu0 0.0
    %137 = vmatpush2.msra.mxu0 0.0
    %138 = vmatprep.subr.mxu0 0.0
    %139 = vmatpush2.msra.mxu0 0.0
    %140 = vmatprep.subr.mxu0 0.0
    %141 = vmatpush2.msra.mxu0 0.0
    %142 = vmatprep.subr.mxu0 0.0
    %143 = vmatpush2.msra.mxu0 0.0
    %144 = vmatprep.subr.mxu0 0.0
    %145 = vmatpush2.msra.mxu0 0.0
    %146 = vmatprep.subr.mxu0 0.0
    %147 = vmatpush2.msra.mxu0 0.0
    %148 = vmatprep.subr.mxu0 0.0
    %149 = vmatpush2.msra.mxu0 0.0
    %150 = vmatprep.subr.mxu0 0.0
    %151 = vmatpush2.msra.mxu0 0.0
    %152 = vmatprep.subr.mxu0 0.0
    %153 = vmatpush2.msra.mxu0 0.0
    %154 = vmatprep.subr.mxu0 0.0
    %155 = vmatpush2.msra.mxu0 0.0
    %156 = vmatprep.subr.mxu0 0.0
    %157 = vmatpush2.msra.mxu0 0.0
    %158 = vmatprep.subr.mxu0 0.0
    %159 = vmatpush2.msra.mxu0 0.0
    %160 = vmatprep.subr.mxu0 0.0
    %161 = vmatpush2.msra.mxu0 0.0
    %162 = vmatprep.subr.mxu0 0.0
    %163 = vmatpush2.msra.mxu0 0.0
    %164 = vmatprep.subr.mxu0 0.0
    %165 = vmatpush2.msra.mxu0 0.0
    %166 = vmatprep.subr.mxu0 0.0
    %167 = vmatpush2.msra.mxu0 0.0
    %168 = vmatprep.mubr.f32.mxu0 0.0
    %169 = vmatmul.mubr.f32.gmra.mxu0 %v102
    %v170 = vpop.f32.mrf.mxu0
    %v171 = vadd.f32 %v98, %v170
    %v172 = vpop.f32.mrf.mxu0
    %173 = vdwg.mxu0
    %v174 = vmul.f32 %v171, 0.5
    %v175 = vtanh.pop %v174
    %v176 = vmul.f32 %v175, 0.5
    %v177 = vadd.f32 %v176, 0.5
    %v178 = vtanh.pop %v171
    %180 = vrot.lane.b32.xlu0 %v72, 32
    %v181 = vpop.permute.xlu0 %180
    %v183 = vmul.f32 %v177, %v181
    %185 = vrot.lane.b32.xlu0 %v178, 64
    %v186 = vpop.permute.xlu0 %185
    %v188 = vmul.f32 %v177, %v186
    %190 = vrot.lane.b32.xlu0 %v188, 32
    %v191 = vpop.permute.xlu0 %190
    %v193 = vadd.f32 %v183, %v191
    %v194 = vtanh.pop %v193
    %196 = vrot.lane.b32.xlu0 %v194, 64
    %v197 = vpop.permute.xlu0 %196
    %v199 = vmul.f32 %v177, %v197
    %201 = vrot.lane.b32.xlu0 %v199, 32
    %v202 = vpop.permute.xlu0 %201
    %205 = vrot.lane.b32.xlu0 %v74, 32
    %v206 = vpop.permute.xlu0 %205
    %vm208 = vcmask 261120
    %v209 = vsel %vm208, %v202, %v206
    %v211 = vlaneseq
    %v212 = vshrl.u32 %v211, 7
    %v213 = vsub.s32 0, %v212
    %v214 = vrot.slane %v70, %v213
    %vm216 = vcmask 523264
    %v218 = vsel %vm216, %v209, 0
    %220 = vmatprep.subr.mxu0 0.0
    %221 = vmatpush1.msra.mxu0 0.0
    %222 = vmatprep.subr.mxu0 0.0
    %223 = vmatpush1.msra.mxu0 0.0
    %224 = vmatprep.subr.mxu0 0.0
    %225 = vmatpush1.msra.mxu0 0.0
    %226 = vmatprep.subr.mxu0 0.0
    %227 = vmatpush1.msra.mxu0 0.0
    %228 = vmatprep.subr.mxu0 0.0
    %229 = vmatpush1.msra.mxu0 0.0
    %230 = vmatprep.subr.mxu0 0.0
    %231 = vmatpush1.msra.mxu0 0.0
    %232 = vmatprep.subr.mxu0 0.0
    %233 = vmatpush1.msra.mxu0 0.0
    %234 = vmatprep.subr.mxu0 0.0
    %235 = vmatpush1.msra.mxu0 0.0
    %236 = vmatprep.subr.mxu0 0.0
    %237 = vmatpush1.msra.mxu0 %v69
    %238 = vmatprep.subr.mxu0 0.0
    %239 = vmatpush1.msra.mxu0 %v68
    %240 = vmatprep.subr.mxu0 0.0
    %241 = vmatpush1.msra.mxu0 %v67
    %242 = vmatprep.subr.mxu0 0.0
    %243 = vmatpush1.msra.mxu0 %v66
    %244 = vmatprep.subr.mxu0 0.0
    %245 = vmatpush1.msra.mxu0 %v65
    %246 = vmatprep.subr.mxu0 0.0
    %247 = vmatpush1.msra.mxu0 %v64
    %248 = vmatprep.subr.mxu0 0.0
    %249 = vmatpush1.msra.mxu0 %v63
    %250 = vmatprep.subr.mxu0 0.0
    %251 = vmatpush1.msra.mxu0 %v62
    %252 = vmatprep.subr.mxu0 0.0
    %253 = vmatpush2.msra.mxu0 0.0
    %254 = vmatprep.subr.mxu0 0.0
    %255 = vmatpush2.msra.mxu0 0.0
    %256 = vmatprep.subr.mxu0 0.0
    %257 = vmatpush2.msra.mxu0 0.0
    %258 = vmatprep.subr.mxu0 0.0
    %259 = vmatpush2.msra.mxu0 0.0
    %260 = vmatprep.subr.mxu0 0.0
    %261 = vmatpush2.msra.mxu0 0.0
    %262 = vmatprep.subr.mxu0 0.0
    %263 = vmatpush2.msra.mxu0 0.0
    %264 = vmatprep.subr.mxu0 0.0
    %265 = vmatpush2.msra.mxu0 0.0
    %266 = vmatprep.subr.mxu0 0.0
    %267 = vmatpush2.msra.mxu0 0.0
    %268 = vmatprep.subr.mxu0 0.0
    %269 = vmatpush2.msra.mxu0 0.0
    %270 = vmatprep.subr.mxu0 0.0
    %271 = vmatpush2.msra.mxu0 0.0
    %272 = vmatprep.subr.mxu0 0.0
    %273 = vmatpush2.msra.mxu0 0.0
    %274 = vmatprep.subr.mxu0 0.0
    %275 = vmatpush2.msra.mxu0 0.0
    %276 = vmatprep.subr.mxu0 0.0
    %277 = vmatpush2.msra.mxu0 0.0
    %278 = vmatprep.subr.mxu0 0.0
    %279 = vmatpush2.msra.mxu0 0.0
    %280 = vmatprep.subr.mxu0 0.0
    %281 = vmatpush2.msra.mxu0 0.0
    %282 = vmatprep.subr.mxu0 0.0
    %283 = vmatpush2.msra.mxu0 0.0
    %284 = vmatprep.mubr.f32.mxu0 0.0
    %285 = vmatmul.mubr.f32.gmra.mxu0 %v218
    %v286 = vpop.f32.mrf.mxu0
    %v287 = vadd.f32 %v214, %v286
    %v288 = vpop.f32.mrf.mxu0
    %289 = vdwg.mxu0
    %v290 = vmul.f32 %v287, 0.5
    %v291 = vtanh.pop %v290
    %v292 = vmul.f32 %v291, 0.5
    %v293 = vadd.f32 %v292, 0.5
    %v294 = vtanh.pop %v287
    %296 = vrot.lane.b32.xlu0 %v76, 32
    %v297 = vpop.permute.xlu0 %296
    %v299 = vmul.f32 %v293, %v297
    %301 = vrot.lane.b32.xlu0 %v294, 64
    %v302 = vpop.permute.xlu0 %301
    %v304 = vmul.f32 %v293, %v302
    %306 = vrot.lane.b32.xlu0 %v304, 32
    %v307 = vpop.permute.xlu0 %306
    %v309 = vadd.f32 %v299, %v307
    %v310 = vtanh.pop %v309
    %312 = vrot.lane.b32.xlu0 %v310, 64
    %v313 = vpop.permute.xlu0 %312
    %v315 = vmul.f32 %v293, %v313
    %s316 = sld [smem:[#allocation2 + $0x2]]
    %s317 = scalar_lea.vmem %s1, %s316
    %v318 = vld [vmem:[%s317] sm:$0x1]
    %s319 = sld [smem:[#allocation2 + $0x3]]
    %s320 = scalar_lea.vmem %s1, %s319
    %v321 = vld [vmem:[%s320] sm:$0x1]
    %v323 = vrot.slane %v321, 7
    %v325 = vsel %vm86, %v318, %v323
    %326 = vrot.lane.b32.xlu0 %v199, 48
    %v327 = vpop.permute.xlu0 %326
    %v329 = vsel %vm92, %v325, %v327
    %v331 = vsel %vm100, %v329, 0
    %333 = vmatprep.subr.mxu0 0.0
    %334 = vmatpush1.msra.mxu0 0.0
    %335 = vmatprep.subr.mxu0 0.0
    %336 = vmatpush1.msra.mxu0 0.0
    %337 = vmatprep.subr.mxu0 0.0
    %338 = vmatpush1.msra.mxu0 0.0
    %339 = vmatprep.subr.mxu0 0.0
    %340 = vmatpush1.msra.mxu0 0.0
    %341 = vmatprep.subr.mxu0 0.0
    %342 = vmatpush1.msra.mxu0 0.0
    %343 = vmatprep.subr.mxu0 0.0
    %344 = vmatpush1.msra.mxu0 0.0
    %345 = vmatprep.subr.mxu0 0.0
    %346 = vmatpush1.msra.mxu0 0.0
    %347 = vmatprep.subr.mxu0 0.0
    %348 = vmatpush1.msra.mxu0 0.0
    %349 = vmatprep.subr.mxu0 0.0
    %350 = vmatpush1.msra.mxu0 0.0
    %351 = vmatprep.subr.mxu0 0.0
    %352 = vmatpush1.msra.mxu0 0.0
    %353 = vmatprep.subr.mxu0 0.0
    %354 = vmatpush1.msra.mxu0 %v60
    %355 = vmatprep.subr.mxu0 0.0
    %356 = vmatpush1.msra.mxu0 %v59
    %357 = vmatprep.subr.mxu0 0.0
    %358 = vmatpush1.msra.mxu0 %v58
    %359 = vmatprep.subr.mxu0 0.0
    %360 = vmatpush1.msra.mxu0 %v57
    %361 = vmatprep.subr.mxu0 0.0
    %362 = vmatpush1.msra.mxu0 %v56
    %363 = vmatprep.subr.mxu0 0.0
    %364 = vmatpush1.msra.mxu0 %v55
    %365 = vmatprep.subr.mxu0 0.0
    %366 = vmatpush2.msra.mxu0 0.0
    %367 = vmatprep.subr.mxu0 0.0
    %368 = vmatpush2.msra.mxu0 0.0
    %369 = vmatprep.subr.mxu0 0.0
    %370 = vmatpush2.msra.mxu0 0.0
    %371 = vmatprep.subr.mxu0 0.0
    %372 = vmatpush2.msra.mxu0 0.0
    %373 = vmatprep.subr.mxu0 0.0
    %374 = vmatpush2.msra.mxu0 0.0
    %375 = vmatprep.subr.mxu0 0.0
    %376 = vmatpush2.msra.mxu0 0.0
    %377 = vmatprep.subr.mxu0 0.0
    %378 = vmatpush2.msra.mxu0 0.0
    %379 = vmatprep.subr.mxu0 0.0
    %380 = vmatpush2.msra.mxu0 0.0
    %381 = vmatprep.subr.mxu0 0.0
    %382 = vmatpush2.msra.mxu0 0.0
    %383 = vmatprep.subr.mxu0 0.0
    %384 = vmatpush2.msra.mxu0 0.0
    %385 = vmatprep.subr.mxu0 0.0
    %386 = vmatpush2.msra.mxu0 0.0
    %387 = vmatprep.subr.mxu0 0.0
    %388 = vmatpush2.msra.mxu0 0.0
    %389 = vmatprep.subr.mxu0 0.0
    %390 = vmatpush2.msra.mxu0 0.0
    %391 = vmatprep.subr.mxu0 0.0
    %392 = vmatpush2.msra.mxu0 0.0
    %393 = vmatprep.subr.mxu0 0.0
    %394 = vmatpush2.msra.mxu0 0.0
    %395 = vmatprep.subr.mxu0 0.0
    %396 = vmatpush2.msra.mxu0 0.0
    %397 = vmatprep.mubr.f32.mxu0 0.0
    %398 = vmatmul.mubr.f32.gmra.mxu0 %v331
    %v399 = vpop.f32.mrf.mxu0
    %v400 = vadd.f32 %v98, %v399
    %v401 = vpop.f32.mrf.mxu0
    %402 = vdwg.mxu0
    %v403 = vmul.f32 %v400, 0.5
    %v404 = vtanh.pop %v403
    %v405 = vmul.f32 %v404, 0.5
    %v406 = vadd.f32 %v405, 0.5
    %v407 = vtanh.pop %v400
    %v408 = vmul.f32 %v406, %v193
    %410 = vrot.lane.b32.xlu0 %v407, 64
    %v411 = vpop.permute.xlu0 %410
    %v413 = vmul.f32 %v406, %v411
    %415 = vrot.lane.b32.xlu0 %v413, 32
    %v416 = vpop.permute.xlu0 %415
    %v418 = vadd.f32 %v408, %v416
    %v419 = vtanh.pop %v418
    %421 = vrot.lane.b32.xlu0 %v419, 64
    %v422 = vpop.permute.xlu0 %421
    %v424 = vmul.f32 %v406, %v422
    %426 = vrot.lane.b32.xlu0 %v424, 32
    %v427 = vpop.permute.xlu0 %426
    %430 = vrot.lane.b32.xlu0 %v315, 64
    %v431 = vpop.permute.xlu0 %430
    %v433 = vsel %vm208, %v427, %v431
    %v435 = vsel %vm216, %v433, 0
    %437 = vmatprep.subr.mxu0 0.0
    %438 = vmatpush1.msra.mxu0 0.0
    %439 = vmatprep.subr.mxu0 0.0
    %440 = vmatpush1.msra.mxu0 0.0
    %441 = vmatprep.subr.mxu0 0.0
    %442 = vmatpush1.msra.mxu0 0.0
    %443 = vmatprep.subr.mxu0 0.0
    %444 = vmatpush1.msra.mxu0 0.0
    %445 = vmatprep.subr.mxu0 0.0
    %446 = vmatpush1.msra.mxu0 0.0
    %447 = vmatprep.subr.mxu0 0.0
    %448 = vmatpush1.msra.mxu0 0.0
    %449 = vmatprep.subr.mxu0 0.0
    %450 = vmatpush1.msra.mxu0 0.0
    %451 = vmatprep.subr.mxu0 0.0
    %452 = vmatpush1.msra.mxu0 0.0
    %453 = vmatprep.subr.mxu0 0.0
    %454 = vmatpush1.msra.mxu0 %v69
    %455 = vmatprep.subr.mxu0 0.0
    %456 = vmatpush1.msra.mxu0 %v68
    %457 = vmatprep.subr.mxu0 0.0
    %458 = vmatpush1.msra.mxu0 %v67
    %459 = vmatprep.subr.mxu0 0.0
    %460 = vmatpush1.msra.mxu0 %v66
    %461 = vmatprep.subr.mxu0 0.0
    %462 = vmatpush1.msra.mxu0 %v65
    %463 = vmatprep.subr.mxu0 0.0
    %464 = vmatpush1.msra.mxu0 %v64
    %465 = vmatprep.subr.mxu0 0.0
    %466 = vmatpush1.msra.mxu0 %v63
    %467 = vmatprep.subr.mxu0 0.0
    %468 = vmatpush1.msra.mxu0 %v62
    %469 = vmatprep.subr.mxu0 0.0
    %470 = vmatpush2.msra.mxu0 0.0
    %471 = vmatprep.subr.mxu0 0.0
    %472 = vmatpush2.msra.mxu0 0.0
    %473 = vmatprep.subr.mxu0 0.0
    %474 = vmatpush2.msra.mxu0 0.0
    %475 = vmatprep.subr.mxu0 0.0
    %476 = vmatpush2.msra.mxu0 0.0
    %477 = vmatprep.subr.mxu0 0.0
    %478 = vmatpush2.msra.mxu0 0.0
    %479 = vmatprep.subr.mxu0 0.0
    %480 = vmatpush2.msra.mxu0 0.0
    %481 = vmatprep.subr.mxu0 0.0
    %482 = vmatpush2.msra.mxu0 0.0
    %483 = vmatprep.subr.mxu0 0.0
    %484 = vmatpush2.msra.mxu0 0.0
    %485 = vmatprep.subr.mxu0 0.0
    %486 = vmatpush2.msra.mxu0 0.0
    %487 = vmatprep.subr.mxu0 0.0
    %488 = vmatpush2.msra.mxu0 0.0
    %489 = vmatprep.subr.mxu0 0.0
    %490 = vmatpush2.msra.mxu0 0.0
    %491 = vmatprep.subr.mxu0 0.0
    %492 = vmatpush2.msra.mxu0 0.0
    %493 = vmatprep.subr.mxu0 0.0
    %494 = vmatpush2.msra.mxu0 0.0
    %495 = vmatprep.subr.mxu0 0.0
    %496 = vmatpush2.msra.mxu0 0.0
    %497 = vmatprep.subr.mxu0 0.0
    %498 = vmatpush2.msra.mxu0 0.0
    %499 = vmatprep.subr.mxu0 0.0
    %500 = vmatpush2.msra.mxu0 0.0
    %501 = vmatprep.mubr.f32.mxu0 0.0
    %502 = vmatmul.mubr.f32.gmra.mxu0 %v435
    %v503 = vpop.f32.mrf.mxu0
    %v504 = vadd.f32 %v214, %v503
    %v505 = vpop.f32.mrf.mxu0
    %506 = vdwg.mxu0
    %v507 = vmul.f32 %v504, 0.5
    %v508 = vtanh.pop %v507
    %v509 = vmul.f32 %v508, 0.5
    %v510 = vadd.f32 %v509, 0.5
    %v511 = vtanh.pop %v504
    %v512 = vmul.f32 %v510, %v309
    %514 = vrot.lane.b32.xlu0 %v511, 64
    %v515 = vpop.permute.xlu0 %514
    %v517 = vmul.f32 %v510, %v515
    %519 = vrot.lane.b32.xlu0 %v517, 32
    %v520 = vpop.permute.xlu0 %519
    %v522 = vadd.f32 %v512, %v520
    %v523 = vtanh.pop %v522
    %525 = vrot.lane.b32.xlu0 %v523, 64
    %v526 = vpop.permute.xlu0 %525
    %v528 = vmul.f32 %v510, %v526
    %s529 = sld [smem:[#allocation2 + $0x4]]
    %s530 = scalar_lea.vmem %s1, %s529
    %v531 = vld [vmem:[%s530] sm:$0x1]
    %s532 = sld [smem:[#allocation2 + $0x5]]
    %s533 = scalar_lea.vmem %s1, %s532
    %v534 = vld [vmem:[%s533] sm:$0x1]
    %v536 = vrot.slane %v534, 7
    %v538 = vsel %vm86, %v531, %v536
    %539 = vrot.lane.b32.xlu0 %v424, 48
    %v540 = vpop.permute.xlu0 %539
    %v542 = vsel %vm92, %v538, %v540
    %v544 = vsel %vm100, %v542, 0
    %546 = vmatprep.subr.mxu0 0.0
    %547 = vmatpush1.msra.mxu0 0.0
    %548 = vmatprep.subr.mxu0 0.0
    %549 = vmatpush1.msra.mxu0 0.0
    %550 = vmatprep.subr.mxu0 0.0
    %551 = vmatpush1.msra.mxu0 0.0
    %552 = vmatprep.subr.mxu0 0.0
    %553 = vmatpush1.msra.mxu0 0.0
    %554 = vmatprep.subr.mxu0 0.0
    %555 = vmatpush1.msra.mxu0 0.0
    %556 = vmatprep.subr.mxu0 0.0
    %557 = vmatpush1.msra.mxu0 0.0
    %558 = vmatprep.subr.mxu0 0.0
    %559 = vmatpush1.msra.mxu0 0.0
    %560 = vmatprep.subr.mxu0 0.0
    %561 = vmatpush1.msra.mxu0 0.0
    %562 = vmatprep.subr.mxu0 0.0
    %563 = vmatpush1.msra.mxu0 0.0
    %564 = vmatprep.subr.mxu0 0.0
    %565 = vmatpush1.msra.mxu0 0.0
    %566 = vmatprep.subr.mxu0 0.0
    %567 = vmatpush1.msra.mxu0 %v60
    %568 = vmatprep.subr.mxu0 0.0
    %569 = vmatpush1.msra.mxu0 %v59
    %570 = vmatprep.subr.mxu0 0.0
    %571 = vmatpush1.msra.mxu0 %v58
    %572 = vmatprep.subr.mxu0 0.0
    %573 = vmatpush1.msra.mxu0 %v57
    %574 = vmatprep.subr.mxu0 0.0
    %575 = vmatpush1.msra.mxu0 %v56
    %576 = vmatprep.subr.mxu0 0.0
    %577 = vmatpush1.msra.mxu0 %v55
    %578 = vmatprep.subr.mxu0 0.0
    %579 = vmatpush2.msra.mxu0 0.0
    %580 = vmatprep.subr.mxu0 0.0
    %581 = vmatpush2.msra.mxu0 0.0
    %582 = vmatprep.subr.mxu0 0.0
    %583 = vmatpush2.msra.mxu0 0.0
    %584 = vmatprep.subr.mxu0 0.0
    %585 = vmatpush2.msra.mxu0 0.0
    %586 = vmatprep.subr.mxu0 0.0
    %587 = vmatpush2.msra.mxu0 0.0
    %588 = vmatprep.subr.mxu0 0.0
    %589 = vmatpush2.msra.mxu0 0.0
    %590 = vmatprep.subr.mxu0 0.0
    %591 = vmatpush2.msra.mxu0 0.0
    %592 = vmatprep.subr.mxu0 0.0
    %593 = vmatpush2.msra.mxu0 0.0
    %594 = vmatprep.subr.mxu0 0.0
    %595 = vmatpush2.msra.mxu0 0.0
    %596 = vmatprep.subr.mxu0 0.0
    %597 = vmatpush2.msra.mxu0 0.0
    %598 = vmatprep.subr.mxu0 0.0
    %599 = vmatpush2.msra.mxu0 0.0
    %600 = vmatprep.subr.mxu0 0.0
    %601 = vmatpush2.msra.mxu0 0.0
    %602 = vmatprep.subr.mxu0 0.0
    %603 = vmatpush2.msra.mxu0 0.0
    %604 = vmatprep.subr.mxu0 0.0
    %605 = vmatpush2.msra.mxu0 0.0
    %606 = vmatprep.subr.mxu0 0.0
    %607 = vmatpush2.msra.mxu0 0.0
    %608 = vmatprep.subr.mxu0 0.0
    %609 = vmatpush2.msra.mxu0 0.0
    %610 = vmatprep.mubr.f32.mxu0 0.0
    %611 = vmatmul.mubr.f32.gmra.mxu0 %v544
    %v612 = vpop.f32.mrf.mxu0
    %v613 = vadd.f32 %v98, %v612
    %v614 = vpop.f32.mrf.mxu0
    %615 = vdwg.mxu0
    %v616 = vmul.f32 %v613, 0.5
    %v617 = vtanh.pop %v616
    %v618 = vmul.f32 %v617, 0.5
    %v619 = vadd.f32 %v618, 0.5
    %v620 = vtanh.pop %v613
    %v621 = vmul.f32 %v619, %v418
    %623 = vrot.lane.b32.xlu0 %v620, 64
    %v624 = vpop.permute.xlu0 %623
    %v626 = vmul.f32 %v619, %v624
    %628 = vrot.lane.b32.xlu0 %v626, 32
    %v629 = vpop.permute.xlu0 %628
    %v631 = vadd.f32 %v621, %v629
    %v632 = vtanh.pop %v631
    %634 = vrot.lane.b32.xlu0 %v632, 64
    %v635 = vpop.permute.xlu0 %634
    %v637 = vmul.f32 %v619, %v635
    %639 = vrot.lane.b32.xlu0 %v637, 32
    %v640 = vpop.permute.xlu0 %639
    %643 = vrot.lane.b32.xlu0 %v528, 64
    %v644 = vpop.permute.xlu0 %643
    %v646 = vsel %vm208, %v640, %v644
    %v648 = vsel %vm216, %v646, 0
    %650 = vmatprep.subr.mxu0 0.0
    %651 = vmatpush1.msra.mxu0 0.0
    %652 = vmatprep.subr.mxu0 0.0
    %653 = vmatpush1.msra.mxu0 0.0
    %654 = vmatprep.subr.mxu0 0.0
    %655 = vmatpush1.msra.mxu0 0.0
    %656 = vmatprep.subr.mxu0 0.0
    %657 = vmatpush1.msra.mxu0 0.0
    %658 = vmatprep.subr.mxu0 0.0
    %659 = vmatpush1.msra.mxu0 0.0
    %660 = vmatprep.subr.mxu0 0.0
    %661 = vmatpush1.msra.mxu0 0.0
    %662 = vmatprep.subr.mxu0 0.0
    %663 = vmatpush1.msra.mxu0 0.0
    %664 = vmatprep.subr.mxu0 0.0
    %665 = vmatpush1.msra.mxu0 0.0
    %666 = vmatprep.subr.mxu0 0.0
    %667 = vmatpush1.msra.mxu0 %v69
    %668 = vmatprep.subr.mxu0 0.0
    %669 = vmatpush1.msra.mxu0 %v68
    %670 = vmatprep.subr.mxu0 0.0
    %671 = vmatpush1.msra.mxu0 %v67
    %672 = vmatprep.subr.mxu0 0.0
    %673 = vmatpush1.msra.mxu0 %v66
    %674 = vmatprep.subr.mxu0 0.0
    %675 = vmatpush1.msra.mxu0 %v65
    %676 = vmatprep.subr.mxu0 0.0
    %677 = vmatpush1.msra.mxu0 %v64
    %678 = vmatprep.subr.mxu0 0.0
    %679 = vmatpush1.msra.mxu0 %v63
    %680 = vmatprep.subr.mxu0 0.0
    %681 = vmatpush1.msra.mxu0 %v62
    %682 = vmatprep.subr.mxu0 0.0
    %683 = vmatpush2.msra.mxu0 0.0
    %684 = vmatprep.subr.mxu0 0.0
    %685 = vmatpush2.msra.mxu0 0.0
    %686 = vmatprep.subr.mxu0 0.0
    %687 = vmatpush2.msra.mxu0 0.0
    %688 = vmatprep.subr.mxu0 0.0
    %689 = vmatpush2.msra.mxu0 0.0
    %690 = vmatprep.subr.mxu0 0.0
    %691 = vmatpush2.msra.mxu0 0.0
    %692 = vmatprep.subr.mxu0 0.0
    %693 = vmatpush2.msra.mxu0 0.0
    %694 = vmatprep.subr.mxu0 0.0
    %695 = vmatpush2.msra.mxu0 0.0
    %696 = vmatprep.subr.mxu0 0.0
    %697 = vmatpush2.msra.mxu0 0.0
    %698 = vmatprep.subr.mxu0 0.0
    %699 = vmatpush2.msra.mxu0 0.0
    %700 = vmatprep.subr.mxu0 0.0
    %701 = vmatpush2.msra.mxu0 0.0
    %702 = vmatprep.subr.mxu0 0.0
    %703 = vmatpush2.msra.mxu0 0.0
    %704 = vmatprep.subr.mxu0 0.0
    %705 = vmatpush2.msra.mxu0 0.0
    %706 = vmatprep.subr.mxu0 0.0
    %707 = vmatpush2.msra.mxu0 0.0
    %708 = vmatprep.subr.mxu0 0.0
    %709 = vmatpush2.msra.mxu0 0.0
    %710 = vmatprep.subr.mxu0 0.0
    %711 = vmatpush2.msra.mxu0 0.0
    %712 = vmatprep.subr.mxu0 0.0
    %713 = vmatpush2.msra.mxu0 0.0
    %714 = vmatprep.mubr.f32.mxu0 0.0
    %715 = vmatmul.mubr.f32.gmra.mxu0 %v648
    %v716 = vpop.f32.mrf.mxu0
    %v717 = vadd.f32 %v214, %v716
    %v718 = vpop.f32.mrf.mxu0
    %719 = vdwg.mxu0
    %v720 = vmul.f32 %v717, 0.5
    %v721 = vtanh.pop %v720
    %v722 = vmul.f32 %v721, 0.5
    %v723 = vadd.f32 %v722, 0.5
    %v724 = vtanh.pop %v717
    %v725 = vmul.f32 %v723, %v522
    %727 = vrot.lane.b32.xlu0 %v724, 64
    %v728 = vpop.permute.xlu0 %727
    %v730 = vmul.f32 %v723, %v728
    %732 = vrot.lane.b32.xlu0 %v730, 32
    %v733 = vpop.permute.xlu0 %732
    %v735 = vadd.f32 %v725, %v733
    %v736 = vtanh.pop %v735
    %738 = vrot.lane.b32.xlu0 %v736, 64
    %v739 = vpop.permute.xlu0 %738
    %v741 = vmul.f32 %v723, %v739
    %s742 = sld [smem:[#allocation2 + $0x6]]
    %s743 = scalar_lea.vmem %s1, %s742
    %v744 = vld [vmem:[%s743] sm:$0x1]
    %s745 = sld [smem:[#allocation2 + $0x7]]
    %s746 = scalar_lea.vmem %s1, %s745
    %v747 = vld [vmem:[%s746] sm:$0x1]
    %v749 = vrot.slane %v747, 7
    %v751 = vsel %vm86, %v744, %v749
    %752 = vrot.lane.b32.xlu0 %v637, 48
    %v753 = vpop.permute.xlu0 %752
    %v755 = vsel %vm92, %v751, %v753
    %v757 = vsel %vm100, %v755, 0
    %759 = vmatprep.subr.mxu0 0.0
    %760 = vmatpush1.msra.mxu0 0.0
    %761 = vmatprep.subr.mxu0 0.0
    %762 = vmatpush1.msra.mxu0 0.0
    %763 = vmatprep.subr.mxu0 0.0
    %764 = vmatpush1.msra.mxu0 0.0
    %765 = vmatprep.subr.mxu0 0.0
    %766 = vmatpush1.msra.mxu0 0.0
    %767 = vmatprep.subr.mxu0 0.0
    %768 = vmatpush1.msra.mxu0 0.0
    %769 = vmatprep.subr.mxu0 0.0
    %770 = vmatpush1.msra.mxu0 0.0
    %771 = vmatprep.subr.mxu0 0.0
    %772 = vmatpush1.msra.mxu0 0.0
    %773 = vmatprep.subr.mxu0 0.0
    %774 = vmatpush1.msra.mxu0 0.0
    %775 = vmatprep.subr.mxu0 0.0
    %776 = vmatpush1.msra.mxu0 0.0
    %777 = vmatprep.subr.mxu0 0.0
    %778 = vmatpush1.msra.mxu0 0.0
    %779 = vmatprep.subr.mxu0 0.0
    %780 = vmatpush1.msra.mxu0 %v60
    %781 = vmatprep.subr.mxu0 0.0
    %782 = vmatpush1.msra.mxu0 %v59
    %783 = vmatprep.subr.mxu0 0.0
    %784 = vmatpush1.msra.mxu0 %v58
    %785 = vmatprep.subr.mxu0 0.0
    %786 = vmatpush1.msra.mxu0 %v57
    %787 = vmatprep.subr.mxu0 0.0
    %788 = vmatpush1.msra.mxu0 %v56
    %789 = vmatprep.subr.mxu0 0.0
    %790 = vmatpush1.msra.mxu0 %v55
    %791 = vmatprep.subr.mxu0 0.0
    %792 = vmatpush2.msra.mxu0 0.0
    %793 = vmatprep.subr.mxu0 0.0
    %794 = vmatpush2.msra.mxu0 0.0
    %795 = vmatprep.subr.mxu0 0.0
    %796 = vmatpush2.msra.mxu0 0.0
    %797 = vmatprep.subr.mxu0 0.0
    %798 = vmatpush2.msra.mxu0 0.0
    %799 = vmatprep.subr.mxu0 0.0
    %800 = vmatpush2.msra.mxu0 0.0
    %801 = vmatprep.subr.mxu0 0.0
    %802 = vmatpush2.msra.mxu0 0.0
    %803 = vmatprep.subr.mxu0 0.0
    %804 = vmatpush2.msra.mxu0 0.0
    %805 = vmatprep.subr.mxu0 0.0
    %806 = vmatpush2.msra.mxu0 0.0
    %807 = vmatprep.subr.mxu0 0.0
    %808 = vmatpush2.msra.mxu0 0.0
    %809 = vmatprep.subr.mxu0 0.0
    %810 = vmatpush2.msra.mxu0 0.0
    %811 = vmatprep.subr.mxu0 0.0
    %812 = vmatpush2.msra.mxu0 0.0
    %813 = vmatprep.subr.mxu0 0.0
    %814 = vmatpush2.msra.mxu0 0.0
    %815 = vmatprep.subr.mxu0 0.0
    %816 = vmatpush2.msra.mxu0 0.0
    %817 = vmatprep.subr.mxu0 0.0
    %818 = vmatpush2.msra.mxu0 0.0
    %819 = vmatprep.subr.mxu0 0.0
    %820 = vmatpush2.msra.mxu0 0.0
    %821 = vmatprep.subr.mxu0 0.0
    %822 = vmatpush2.msra.mxu0 0.0
    %823 = vmatprep.mubr.f32.mxu0 0.0
    %824 = vmatmul.mubr.f32.gmra.mxu0 %v757
    %v825 = vpop.f32.mrf.mxu0
    %v826 = vadd.f32 %v98, %v825
    %v827 = vpop.f32.mrf.mxu0
    %828 = vdwg.mxu0
    %v829 = vmul.f32 %v826, 0.5
    %v830 = vtanh.pop %v829
    %v831 = vmul.f32 %v830, 0.5
    %v832 = vadd.f32 %v831, 0.5
    %v833 = vtanh.pop %v826
    %v834 = vmul.f32 %v832, %v631
    %836 = vrot.lane.b32.xlu0 %v833, 64
    %v837 = vpop.permute.xlu0 %836
    %v839 = vmul.f32 %v832, %v837
    %841 = vrot.lane.b32.xlu0 %v839, 32
    %v842 = vpop.permute.xlu0 %841
    %v844 = vadd.f32 %v834, %v842
    %v845 = vtanh.pop %v844
    %847 = vrot.lane.b32.xlu0 %v845, 64
    %v848 = vpop.permute.xlu0 %847
    %v850 = vmul.f32 %v832, %v848
    %852 = vrot.lane.b32.xlu0 %v850, 32
    %v853 = vpop.permute.xlu0 %852
    %856 = vrot.lane.b32.xlu0 %v741, 64
    %v857 = vpop.permute.xlu0 %856
    %v859 = vsel %vm208, %v853, %v857
    %v861 = vsel %vm216, %v859, 0
    %863 = vmatprep.subr.mxu0 0.0
    %864 = vmatpush1.msra.mxu0 0.0
    %865 = vmatprep.subr.mxu0 0.0
    %866 = vmatpush1.msra.mxu0 0.0
    %867 = vmatprep.subr.mxu0 0.0
    %868 = vmatpush1.msra.mxu0 0.0
    %869 = vmatprep.subr.mxu0 0.0
    %870 = vmatpush1.msra.mxu0 0.0
    %871 = vmatprep.subr.mxu0 0.0
    %872 = vmatpush1.msra.mxu0 0.0
    %873 = vmatprep.subr.mxu0 0.0
    %874 = vmatpush1.msra.mxu0 0.0
    %875 = vmatprep.subr.mxu0 0.0
    %876 = vmatpush1.msra.mxu0 0.0
    %877 = vmatprep.subr.mxu0 0.0
    %878 = vmatpush1.msra.mxu0 0.0
    %879 = vmatprep.subr.mxu0 0.0
    %880 = vmatpush1.msra.mxu0 %v69
    %881 = vmatprep.subr.mxu0 0.0
    %882 = vmatpush1.msra.mxu0 %v68
    %883 = vmatprep.subr.mxu0 0.0
    %884 = vmatpush1.msra.mxu0 %v67
    %885 = vmatprep.subr.mxu0 0.0
    %886 = vmatpush1.msra.mxu0 %v66
    %887 = vmatprep.subr.mxu0 0.0
    %888 = vmatpush1.msra.mxu0 %v65
    %889 = vmatprep.subr.mxu0 0.0
    %890 = vmatpush1.msra.mxu0 %v64
    %891 = vmatprep.subr.mxu0 0.0
    %892 = vmatpush1.msra.mxu0 %v63
    %893 = vmatprep.subr.mxu0 0.0
    %894 = vmatpush1.msra.mxu0 %v62
    %895 = vmatprep.subr.mxu0 0.0
    %896 = vmatpush2.msra.mxu0 0.0
    %897 = vmatprep.subr.mxu0 0.0
    %898 = vmatpush2.msra.mxu0 0.0
    %899 = vmatprep.subr.mxu0 0.0
    %900 = vmatpush2.msra.mxu0 0.0
    %901 = vmatprep.subr.mxu0 0.0
    %902 = vmatpush2.msra.mxu0 0.0
    %903 = vmatprep.subr.mxu0 0.0
    %904 = vmatpush2.msra.mxu0 0.0
    %905 = vmatprep.subr.mxu0 0.0
    %906 = vmatpush2.msra.mxu0 0.0
    %907 = vmatprep.subr.mxu0 0.0
    %908 = vmatpush2.msra.mxu0 0.0
    %909 = vmatprep.subr.mxu0 0.0
    %910 = vmatpush2.msra.mxu0 0.0
    %911 = vmatprep.subr.mxu0 0.0
    %912 = vmatpush2.msra.mxu0 0.0
    %913 = vmatprep.subr.mxu0 0.0
    %914 = vmatpush2.msra.mxu0 0.0
    %915 = vmatprep.subr.mxu0 0.0
    %916 = vmatpush2.msra.mxu0 0.0
    %917 = vmatprep.subr.mxu0 0.0
    %918 = vmatpush2.msra.mxu0 0.0
    %919 = vmatprep.subr.mxu0 0.0
    %920 = vmatpush2.msra.mxu0 0.0
    %921 = vmatprep.subr.mxu0 0.0
    %922 = vmatpush2.msra.mxu0 0.0
    %923 = vmatprep.subr.mxu0 0.0
    %924 = vmatpush2.msra.mxu0 0.0
    %925 = vmatprep.subr.mxu0 0.0
    %926 = vmatpush2.msra.mxu0 0.0
    %927 = vmatprep.mubr.f32.mxu0 0.0
    %928 = vmatmul.mubr.f32.gmra.mxu0 %v861
    %v929 = vpop.f32.mrf.mxu0
    %v930 = vadd.f32 %v214, %v929
    %v931 = vpop.f32.mrf.mxu0
    %932 = vdwg.mxu0
    %v933 = vmul.f32 %v930, 0.5
    %v934 = vtanh.pop %v933
    %v935 = vmul.f32 %v934, 0.5
    %v936 = vadd.f32 %v935, 0.5
    %v937 = vtanh.pop %v930
    %v938 = vmul.f32 %v936, %v735
    %940 = vrot.lane.b32.xlu0 %v937, 64
    %v941 = vpop.permute.xlu0 %940
    %v943 = vmul.f32 %v936, %v941
    %945 = vrot.lane.b32.xlu0 %v943, 32
    %v946 = vpop.permute.xlu0 %945
    %v948 = vadd.f32 %v938, %v946
    %v949 = vtanh.pop %v948
    %951 = vrot.lane.b32.xlu0 %v949, 64
    %v952 = vpop.permute.xlu0 %951
    %v954 = vmul.f32 %v936, %v952
    %s955 = sld [smem:[#allocation2 + $0x8]]
    %s956 = scalar_lea.vmem %s1, %s955
    %v957 = vld [vmem:[%s956] sm:$0x1]
    %s958 = sld [smem:[#allocation2 + $0x9]]
    %s959 = scalar_lea.vmem %s1, %s958
    %v960 = vld [vmem:[%s959] sm:$0x1]
    %v962 = vrot.slane %v960, 7
    %v964 = vsel %vm86, %v957, %v962
    %965 = vrot.lane.b32.xlu0 %v850, 48
    %v966 = vpop.permute.xlu0 %965
    %v968 = vsel %vm92, %v964, %v966
    %v970 = vsel %vm100, %v968, 0
    %972 = vmatprep.subr.mxu0 0.0
    %973 = vmatpush1.msra.mxu0 0.0
    %974 = vmatprep.subr.mxu0 0.0
    %975 = vmatpush1.msra.mxu0 0.0
    %976 = vmatprep.subr.mxu0 0.0
    %977 = vmatpush1.msra.mxu0 0.0
    %978 = vmatprep.subr.mxu0 0.0
    %979 = vmatpush1.msra.mxu0 0.0
    %980 = vmatprep.subr.mxu0 0.0
    %981 = vmatpush1.msra.mxu0 0.0
    %982 = vmatprep.subr.mxu0 0.0
    %983 = vmatpush1.msra.mxu0 0.0
    %984 = vmatprep.subr.mxu0 0.0
    %985 = vmatpush1.msra.mxu0 0.0
    %986 = vmatprep.subr.mxu0 0.0
    %987 = vmatpush1.msra.mxu0 0.0
    %988 = vmatprep.subr.mxu0 0.0
    %989 = vmatpush1.msra.mxu0 0.0
    %990 = vmatprep.subr.mxu0 0.0
    %991 = vmatpush1.msra.mxu0 0.0
    %992 = vmatprep.subr.mxu0 0.0
    %993 = vmatpush1.msra.mxu0 %v60
    %994 = vmatprep.subr.mxu0 0.0
    %995 = vmatpush1.msra.mxu0 %v59
    %996 = vmatprep.subr.mxu0 0.0
    %997 = vmatpush1.msra.mxu0 %v58
    %998 = vmatprep.subr.mxu0 0.0
    %999 = vmatpush1.msra.mxu0 %v57
    %1000 = vmatprep.subr.mxu0 0.0
    %1001 = vmatpush1.msra.mxu0 %v56
    %1002 = vmatprep.subr.mxu0 0.0
    %1003 = vmatpush1.msra.mxu0 %v55
    %1004 = vmatprep.subr.mxu0 0.0
    %1005 = vmatpush2.msra.mxu0 0.0
    %1006 = vmatprep.subr.mxu0 0.0
    %1007 = vmatpush2.msra.mxu0 0.0
    %1008 = vmatprep.subr.mxu0 0.0
    %1009 = vmatpush2.msra.mxu0 0.0
    %1010 = vmatprep.subr.mxu0 0.0
    %1011 = vmatpush2.msra.mxu0 0.0
    %1012 = vmatprep.subr.mxu0 0.0
    %1013 = vmatpush2.msra.mxu0 0.0
    %1014 = vmatprep.subr.mxu0 0.0
    %1015 = vmatpush2.msra.mxu0 0.0
    %1016 = vmatprep.subr.mxu0 0.0
    %1017 = vmatpush2.msra.mxu0 0.0
    %1018 = vmatprep.subr.mxu0 0.0
    %1019 = vmatpush2.msra.mxu0 0.0
    %1020 = vmatprep.subr.mxu0 0.0
    %1021 = vmatpush2.msra.mxu0 0.0
    %1022 = vmatprep.subr.mxu0 0.0
    %1023 = vmatpush2.msra.mxu0 0.0
    %1024 = vmatprep.subr.mxu0 0.0
    %1025 = vmatpush2.msra.mxu0 0.0
    %1026 = vmatprep.subr.mxu0 0.0
    %1027 = vmatpush2.msra.mxu0 0.0
    %1028 = vmatprep.subr.mxu0 0.0
    %1029 = vmatpush2.msra.mxu0 0.0
    %1030 = vmatprep.subr.mxu0 0.0
    %1031 = vmatpush2.msra.mxu0 0.0
    %1032 = vmatprep.subr.mxu0 0.0
    %1033 = vmatpush2.msra.mxu0 0.0
    %1034 = vmatprep.subr.mxu0 0.0
    %1035 = vmatpush2.msra.mxu0 0.0
    %1036 = vmatprep.mubr.f32.mxu0 0.0
    %1037 = vmatmul.mubr.f32.gmra.mxu0 %v970
    %v1038 = vpop.f32.mrf.mxu0
    %v1039 = vadd.f32 %v98, %v1038
    %v1040 = vpop.f32.mrf.mxu0
    %1041 = vdwg.mxu0
    %v1042 = vmul.f32 %v1039, 0.5
    %v1043 = vtanh.pop %v1042
    %v1044 = vmul.f32 %v1043, 0.5
    %v1045 = vadd.f32 %v1044, 0.5
    %v1046 = vtanh.pop %v1039
    %v1047 = vmul.f32 %v1045, %v844
    %1049 = vrot.lane.b32.xlu0 %v1046, 64
    %v1050 = vpop.permute.xlu0 %1049
    %v1052 = vmul.f32 %v1045, %v1050
    %1054 = vrot.lane.b32.xlu0 %v1052, 32
    %v1055 = vpop.permute.xlu0 %1054
    %v1057 = vadd.f32 %v1047, %v1055
    %v1058 = vtanh.pop %v1057
    %1060 = vrot.lane.b32.xlu0 %v1058, 64
    %v1061 = vpop.permute.xlu0 %1060
    %v1063 = vmul.f32 %v1045, %v1061
    %1065 = vrot.lane.b32.xlu0 %v1063, 32
    %v1066 = vpop.permute.xlu0 %1065
    %1069 = vrot.lane.b32.xlu0 %v954, 64
    %v1070 = vpop.permute.xlu0 %1069
    %v1072 = vsel %vm208, %v1066, %v1070
    %v1074 = vsel %vm216, %v1072, 0
    %1076 = vmatprep.subr.mxu0 0.0
    %1077 = vmatpush1.msra.mxu0 0.0
    %1078 = vmatprep.subr.mxu0 0.0
    %1079 = vmatpush1.msra.mxu0 0.0
    %1080 = vmatprep.subr.mxu0 0.0
    %1081 = vmatpush1.msra.mxu0 0.0
    %1082 = vmatprep.subr.mxu0 0.0
    %1083 = vmatpush1.msra.mxu0 0.0
    %1084 = vmatprep.subr.mxu0 0.0
    %1085 = vmatpush1.msra.mxu0 0.0
    %1086 = vmatprep.subr.mxu0 0.0
    %1087 = vmatpush1.msra.mxu0 0.0
    %1088 = vmatprep.subr.mxu0 0.0
    %1089 = vmatpush1.msra.mxu0 0.0
    %1090 = vmatprep.subr.mxu0 0.0
    %1091 = vmatpush1.msra.mxu0 0.0
    %1092 = vmatprep.subr.mxu0 0.0
    %1093 = vmatpush1.msra.mxu0 %v69
    %1094 = vmatprep.subr.mxu0 0.0
    %1095 = vmatpush1.msra.mxu0 %v68
    %1096 = vmatprep.subr.mxu0 0.0
    %1097 = vmatpush1.msra.mxu0 %v67
    %1098 = vmatprep.subr.mxu0 0.0
    %1099 = vmatpush1.msra.mxu0 %v66
    %1100 = vmatprep.subr.mxu0 0.0
    %1101 = vmatpush1.msra.mxu0 %v65
    %1102 = vmatprep.subr.mxu0 0.0
    %1103 = vmatpush1.msra.mxu0 %v64
    %1104 = vmatprep.subr.mxu0 0.0
    %1105 = vmatpush1.msra.mxu0 %v63
    %1106 = vmatprep.subr.mxu0 0.0
    %1107 = vmatpush1.msra.mxu0 %v62
    %1108 = vmatprep.subr.mxu0 0.0
    %1109 = vmatpush2.msra.mxu0 0.0
    %1110 = vmatprep.subr.mxu0 0.0
    %1111 = vmatpush2.msra.mxu0 0.0
    %1112 = vmatprep.subr.mxu0 0.0
    %1113 = vmatpush2.msra.mxu0 0.0
    %1114 = vmatprep.subr.mxu0 0.0
    %1115 = vmatpush2.msra.mxu0 0.0
    %1116 = vmatprep.subr.mxu0 0.0
    %1117 = vmatpush2.msra.mxu0 0.0
    %1118 = vmatprep.subr.mxu0 0.0
    %1119 = vmatpush2.msra.mxu0 0.0
    %1120 = vmatprep.subr.mxu0 0.0
    %1121 = vmatpush2.msra.mxu0 0.0
    %1122 = vmatprep.subr.mxu0 0.0
    %1123 = vmatpush2.msra.mxu0 0.0
    %1124 = vmatprep.subr.mxu0 0.0
    %1125 = vmatpush2.msra.mxu0 0.0
    %1126 = vmatprep.subr.mxu0 0.0
    %1127 = vmatpush2.msra.mxu0 0.0
    %1128 = vmatprep.subr.mxu0 0.0
    %1129 = vmatpush2.msra.mxu0 0.0
    %1130 = vmatprep.subr.mxu0 0.0
    %1131 = vmatpush2.msra.mxu0 0.0
    %1132 = vmatprep.subr.mxu0 0.0
    %1133 = vmatpush2.msra.mxu0 0.0
    %1134 = vmatprep.subr.mxu0 0.0
    %1135 = vmatpush2.msra.mxu0 0.0
    %1136 = vmatprep.subr.mxu0 0.0
    %1137 = vmatpush2.msra.mxu0 0.0
    %1138 = vmatprep.subr.mxu0 0.0
    %1139 = vmatpush2.msra.mxu0 0.0
    %1140 = vmatprep.mubr.f32.mxu0 0.0
    %1141 = vmatmul.mubr.f32.gmra.mxu0 %v1074
    %v1142 = vpop.f32.mrf.mxu0
    %v1143 = vadd.f32 %v214, %v1142
    %v1144 = vpop.f32.mrf.mxu0
    %1145 = vdwg.mxu0
    %v1146 = vmul.f32 %v1143, 0.5
    %v1147 = vtanh.pop %v1146
    %v1148 = vmul.f32 %v1147, 0.5
    %v1149 = vadd.f32 %v1148, 0.5
    %v1150 = vtanh.pop %v1143
    %v1151 = vmul.f32 %v1149, %v948
    %1153 = vrot.lane.b32.xlu0 %v1150, 64
    %v1154 = vpop.permute.xlu0 %1153
    %v1156 = vmul.f32 %v1149, %v1154
    %1158 = vrot.lane.b32.xlu0 %v1156, 32
    %v1159 = vpop.permute.xlu0 %1158
    %v1161 = vadd.f32 %v1151, %v1159
    %v1162 = vtanh.pop %v1161
    %1164 = vrot.lane.b32.xlu0 %v1162, 64
    %v1165 = vpop.permute.xlu0 %1164
    %v1167 = vmul.f32 %v1149, %v1165
    %s1168 = sld [smem:[#allocation2 + $0xa]]
    %s1169 = scalar_lea.vmem %s1, %s1168
    %v1170 = vld [vmem:[%s1169] sm:$0x1]
    %s1171 = sld [smem:[#allocation2 + $0xb]]
    %s1172 = scalar_lea.vmem %s1, %s1171
    %v1173 = vld [vmem:[%s1172] sm:$0x1]
    %v1175 = vrot.slane %v1173, 7
    %v1177 = vsel %vm86, %v1170, %v1175
    %1178 = vrot.lane.b32.xlu0 %v1063, 48
    %v1179 = vpop.permute.xlu0 %1178
    %v1181 = vsel %vm92, %v1177, %v1179
    %v1183 = vsel %vm100, %v1181, 0
    %1185 = vmatprep.subr.mxu0 0.0
    %1186 = vmatpush1.msra.mxu0 0.0
    %1187 = vmatprep.subr.mxu0 0.0
    %1188 = vmatpush1.msra.mxu0 0.0
    %1189 = vmatprep.subr.mxu0 0.0
    %1190 = vmatpush1.msra.mxu0 0.0
    %1191 = vmatprep.subr.mxu0 0.0
    %1192 = vmatpush1.msra.mxu0 0.0
    %1193 = vmatprep.subr.mxu0 0.0
    %1194 = vmatpush1.msra.mxu0 0.0
    %1195 = vmatprep.subr.mxu0 0.0
    %1196 = vmatpush1.msra.mxu0 0.0
    %1197 = vmatprep.subr.mxu0 0.0
    %1198 = vmatpush1.msra.mxu0 0.0
    %1199 = vmatprep.subr.mxu0 0.0
    %1200 = vmatpush1.msra.mxu0 0.0
    %1201 = vmatprep.subr.mxu0 0.0
    %1202 = vmatpush1.msra.mxu0 0.0
    %1203 = vmatprep.subr.mxu0 0.0
    %1204 = vmatpush1.msra.mxu0 0.0
    %1205 = vmatprep.subr.mxu0 0.0
    %1206 = vmatpush1.msra.mxu0 %v60
    %1207 = vmatprep.subr.mxu0 0.0
    %1208 = vmatpush1.msra.mxu0 %v59
    %1209 = vmatprep.subr.mxu0 0.0
    %1210 = vmatpush1.msra.mxu0 %v58
    %1211 = vmatprep.subr.mxu0 0.0
    %1212 = vmatpush1.msra.mxu0 %v57
    %1213 = vmatprep.subr.mxu0 0.0
    %1214 = vmatpush1.msra.mxu0 %v56
    %1215 = vmatprep.subr.mxu0 0.0
    %1216 = vmatpush1.msra.mxu0 %v55
    %1217 = vmatprep.subr.mxu0 0.0
    %1218 = vmatpush2.msra.mxu0 0.0
    %1219 = vmatprep.subr.mxu0 0.0
    %1220 = vmatpush2.msra.mxu0 0.0
    %1221 = vmatprep.subr.mxu0 0.0
    %1222 = vmatpush2.msra.mxu0 0.0
    %1223 = vmatprep.subr.mxu0 0.0
    %1224 = vmatpush2.msra.mxu0 0.0
    %1225 = vmatprep.subr.mxu0 0.0
    %1226 = vmatpush2.msra.mxu0 0.0
    %1227 = vmatprep.subr.mxu0 0.0
    %1228 = vmatpush2.msra.mxu0 0.0
    %1229 = vmatprep.subr.mxu0 0.0
    %1230 = vmatpush2.msra.mxu0 0.0
    %1231 = vmatprep.subr.mxu0 0.0
    %1232 = vmatpush2.msra.mxu0 0.0
    %1233 = vmatprep.subr.mxu0 0.0
    %1234 = vmatpush2.msra.mxu0 0.0
    %1235 = vmatprep.subr.mxu0 0.0
    %1236 = vmatpush2.msra.mxu0 0.0
    %1237 = vmatprep.subr.mxu0 0.0
    %1238 = vmatpush2.msra.mxu0 0.0
    %1239 = vmatprep.subr.mxu0 0.0
    %1240 = vmatpush2.msra.mxu0 0.0
    %1241 = vmatprep.subr.mxu0 0.0
    %1242 = vmatpush2.msra.mxu0 0.0
    %1243 = vmatprep.subr.mxu0 0.0
    %1244 = vmatpush2.msra.mxu0 0.0
    %1245 = vmatprep.subr.mxu0 0.0
    %1246 = vmatpush2.msra.mxu0 0.0
    %1247 = vmatprep.subr.mxu0 0.0
    %1248 = vmatpush2.msra.mxu0 0.0
    %1249 = vmatprep.mubr.f32.mxu0 0.0
    %1250 = vmatmul.mubr.f32.gmra.mxu0 %v1183
    %v1251 = vpop.f32.mrf.mxu0
    %v1252 = vadd.f32 %v98, %v1251
    %v1253 = vpop.f32.mrf.mxu0
    %1254 = vdwg.mxu0
    %v1255 = vmul.f32 %v1252, 0.5
    %v1256 = vtanh.pop %v1255
    %v1257 = vmul.f32 %v1256, 0.5
    %v1258 = vadd.f32 %v1257, 0.5
    %v1259 = vtanh.pop %v1252
    %v1260 = vmul.f32 %v1258, %v1057
    %1262 = vrot.lane.b32.xlu0 %v1259, 64
    %v1263 = vpop.permute.xlu0 %1262
    %v1265 = vmul.f32 %v1258, %v1263
    %1267 = vrot.lane.b32.xlu0 %v1265, 32
    %v1268 = vpop.permute.xlu0 %1267
    %v1270 = vadd.f32 %v1260, %v1268
    %v1271 = vtanh.pop %v1270
    %1273 = vrot.lane.b32.xlu0 %v1271, 64
    %v1274 = vpop.permute.xlu0 %1273
    %v1276 = vmul.f32 %v1258, %v1274
    %1278 = vrot.lane.b32.xlu0 %v1276, 32
    %v1279 = vpop.permute.xlu0 %1278
    %1282 = vrot.lane.b32.xlu0 %v1167, 64
    %v1283 = vpop.permute.xlu0 %1282
    %v1285 = vsel %vm208, %v1279, %v1283
    %v1287 = vsel %vm216, %v1285, 0
    %1289 = vmatprep.subr.mxu0 0.0
    %1290 = vmatpush1.msra.mxu0 0.0
    %1291 = vmatprep.subr.mxu0 0.0
    %1292 = vmatpush1.msra.mxu0 0.0
    %1293 = vmatprep.subr.mxu0 0.0
    %1294 = vmatpush1.msra.mxu0 0.0
    %1295 = vmatprep.subr.mxu0 0.0
    %1296 = vmatpush1.msra.mxu0 0.0
    %1297 = vmatprep.subr.mxu0 0.0
    %1298 = vmatpush1.msra.mxu0 0.0
    %1299 = vmatprep.subr.mxu0 0.0
    %1300 = vmatpush1.msra.mxu0 0.0
    %1301 = vmatprep.subr.mxu0 0.0
    %1302 = vmatpush1.msra.mxu0 0.0
    %1303 = vmatprep.subr.mxu0 0.0
    %1304 = vmatpush1.msra.mxu0 0.0
    %1305 = vmatprep.subr.mxu0 0.0
    %1306 = vmatpush1.msra.mxu0 %v69
    %1307 = vmatprep.subr.mxu0 0.0
    %1308 = vmatpush1.msra.mxu0 %v68
    %1309 = vmatprep.subr.mxu0 0.0
    %1310 = vmatpush1.msra.mxu0 %v67
    %1311 = vmatprep.subr.mxu0 0.0
    %1312 = vmatpush1.msra.mxu0 %v66
    %1313 = vmatprep.subr.mxu0 0.0
    %1314 = vmatpush1.msra.mxu0 %v65
    %1315 = vmatprep.subr.mxu0 0.0
    %1316 = vmatpush1.msra.mxu0 %v64
    %1317 = vmatprep.subr.mxu0 0.0
    %1318 = vmatpush1.msra.mxu0 %v63
    %1319 = vmatprep.subr.mxu0 0.0
    %1320 = vmatpush1.msra.mxu0 %v62
    %1321 = vmatprep.subr.mxu0 0.0
    %1322 = vmatpush2.msra.mxu0 0.0
    %1323 = vmatprep.subr.mxu0 0.0
    %1324 = vmatpush2.msra.mxu0 0.0
    %1325 = vmatprep.subr.mxu0 0.0
    %1326 = vmatpush2.msra.mxu0 0.0
    %1327 = vmatprep.subr.mxu0 0.0
    %1328 = vmatpush2.msra.mxu0 0.0
    %1329 = vmatprep.subr.mxu0 0.0
    %1330 = vmatpush2.msra.mxu0 0.0
    %1331 = vmatprep.subr.mxu0 0.0
    %1332 = vmatpush2.msra.mxu0 0.0
    %1333 = vmatprep.subr.mxu0 0.0
    %1334 = vmatpush2.msra.mxu0 0.0
    %1335 = vmatprep.subr.mxu0 0.0
    %1336 = vmatpush2.msra.mxu0 0.0
    %1337 = vmatprep.subr.mxu0 0.0
    %1338 = vmatpush2.msra.mxu0 0.0
    %1339 = vmatprep.subr.mxu0 0.0
    %1340 = vmatpush2.msra.mxu0 0.0
    %1341 = vmatprep.subr.mxu0 0.0
    %1342 = vmatpush2.msra.mxu0 0.0
    %1343 = vmatprep.subr.mxu0 0.0
    %1344 = vmatpush2.msra.mxu0 0.0
    %1345 = vmatprep.subr.mxu0 0.0
    %1346 = vmatpush2.msra.mxu0 0.0
    %1347 = vmatprep.subr.mxu0 0.0
    %1348 = vmatpush2.msra.mxu0 0.0
    %1349 = vmatprep.subr.mxu0 0.0
    %1350 = vmatpush2.msra.mxu0 0.0
    %1351 = vmatprep.subr.mxu0 0.0
    %1352 = vmatpush2.msra.mxu0 0.0
    %1353 = vmatprep.mubr.f32.mxu0 0.0
    %1354 = vmatmul.mubr.f32.gmra.mxu0 %v1287
    %v1355 = vpop.f32.mrf.mxu0
    %v1356 = vadd.f32 %v214, %v1355
    %v1357 = vpop.f32.mrf.mxu0
    %1358 = vdwg.mxu0
    %v1359 = vmul.f32 %v1356, 0.5
    %v1360 = vtanh.pop %v1359
    %v1361 = vmul.f32 %v1360, 0.5
    %v1362 = vadd.f32 %v1361, 0.5
    %v1363 = vtanh.pop %v1356
    %v1364 = vmul.f32 %v1362, %v1161
    %1366 = vrot.lane.b32.xlu0 %v1363, 64
    %v1367 = vpop.permute.xlu0 %1366
    %v1369 = vmul.f32 %v1362, %v1367
    %1371 = vrot.lane.b32.xlu0 %v1369, 32
    %v1372 = vpop.permute.xlu0 %1371
    %v1374 = vadd.f32 %v1364, %v1372
    %v1375 = vtanh.pop %v1374
    %1377 = vrot.lane.b32.xlu0 %v1375, 64
    %v1378 = vpop.permute.xlu0 %1377
    %v1380 = vmul.f32 %v1362, %v1378
    %s1381 = sld [smem:[#allocation2 + $0xc]]
    %s1382 = scalar_lea.vmem %s1, %s1381
    %v1383 = vld [vmem:[%s1382] sm:$0x1]
    %s1384 = sld [smem:[#allocation2 + $0xd]]
    %s1385 = scalar_lea.vmem %s1, %s1384
    %v1386 = vld [vmem:[%s1385] sm:$0x1]
    %v1388 = vrot.slane %v1386, 7
    %v1390 = vsel %vm86, %v1383, %v1388
    %1391 = vrot.lane.b32.xlu0 %v1276, 48
    %v1392 = vpop.permute.xlu0 %1391
    %v1394 = vsel %vm92, %v1390, %v1392
    %v1396 = vsel %vm100, %v1394, 0
    %1398 = vmatprep.subr.mxu0 0.0
    %1399 = vmatpush1.msra.mxu0 0.0
    %1400 = vmatprep.subr.mxu0 0.0
    %1401 = vmatpush1.msra.mxu0 0.0
    %1402 = vmatprep.subr.mxu0 0.0
    %1403 = vmatpush1.msra.mxu0 0.0
    %1404 = vmatprep.subr.mxu0 0.0
    %1405 = vmatpush1.msra.mxu0 0.0
    %1406 = vmatprep.subr.mxu0 0.0
    %1407 = vmatpush1.msra.mxu0 0.0
    %1408 = vmatprep.subr.mxu0 0.0
    %1409 = vmatpush1.msra.mxu0 0.0
    %1410 = vmatprep.subr.mxu0 0.0
    %1411 = vmatpush1.msra.mxu0 0.0
    %1412 = vmatprep.subr.mxu0 0.0
    %1413 = vmatpush1.msra.mxu0 0.0
    %1414 = vmatprep.subr.mxu0 0.0
    %1415 = vmatpush1.msra.mxu0 0.0
    %1416 = vmatprep.subr.mxu0 0.0
    %1417 = vmatpush1.msra.mxu0 0.0
    %1418 = vmatprep.subr.mxu0 0.0
    %1419 = vmatpush1.msra.mxu0 %v60
    %1420 = vmatprep.subr.mxu0 0.0
    %1421 = vmatpush1.msra.mxu0 %v59
    %1422 = vmatprep.subr.mxu0 0.0
    %1423 = vmatpush1.msra.mxu0 %v58
    %1424 = vmatprep.subr.mxu0 0.0
    %1425 = vmatpush1.msra.mxu0 %v57
    %1426 = vmatprep.subr.mxu0 0.0
    %1427 = vmatpush1.msra.mxu0 %v56
    %1428 = vmatprep.subr.mxu0 0.0
    %1429 = vmatpush1.msra.mxu0 %v55
    %1430 = vmatprep.subr.mxu0 0.0
    %1431 = vmatpush2.msra.mxu0 0.0
    %1432 = vmatprep.subr.mxu0 0.0
    %1433 = vmatpush2.msra.mxu0 0.0
    %1434 = vmatprep.subr.mxu0 0.0
    %1435 = vmatpush2.msra.mxu0 0.0
    %1436 = vmatprep.subr.mxu0 0.0
    %1437 = vmatpush2.msra.mxu0 0.0
    %1438 = vmatprep.subr.mxu0 0.0
    %1439 = vmatpush2.msra.mxu0 0.0
    %1440 = vmatprep.subr.mxu0 0.0
    %1441 = vmatpush2.msra.mxu0 0.0
    %1442 = vmatprep.subr.mxu0 0.0
    %1443 = vmatpush2.msra.mxu0 0.0
    %1444 = vmatprep.subr.mxu0 0.0
    %1445 = vmatpush2.msra.mxu0 0.0
    %1446 = vmatprep.subr.mxu0 0.0
    %1447 = vmatpush2.msra.mxu0 0.0
    %1448 = vmatprep.subr.mxu0 0.0
    %1449 = vmatpush2.msra.mxu0 0.0
    %1450 = vmatprep.subr.mxu0 0.0
    %1451 = vmatpush2.msra.mxu0 0.0
    %1452 = vmatprep.subr.mxu0 0.0
    %1453 = vmatpush2.msra.mxu0 0.0
    %1454 = vmatprep.subr.mxu0 0.0
    %1455 = vmatpush2.msra.mxu0 0.0
    %1456 = vmatprep.subr.mxu0 0.0
    %1457 = vmatpush2.msra.mxu0 0.0
    %1458 = vmatprep.subr.mxu0 0.0
    %1459 = vmatpush2.msra.mxu0 0.0
    %1460 = vmatprep.subr.mxu0 0.0
    %1461 = vmatpush2.msra.mxu0 0.0
    %1462 = vmatprep.mubr.f32.mxu0 0.0
    %1463 = vmatmul.mubr.f32.gmra.mxu0 %v1396
    %v1464 = vpop.f32.mrf.mxu0
    %v1465 = vadd.f32 %v98, %v1464
    %v1466 = vpop.f32.mrf.mxu0
    %1467 = vdwg.mxu0
    %v1468 = vmul.f32 %v1465, 0.5
    %v1469 = vtanh.pop %v1468
    %v1470 = vmul.f32 %v1469, 0.5
    %v1471 = vadd.f32 %v1470, 0.5
    %v1472 = vtanh.pop %v1465
    %v1473 = vmul.f32 %v1471, %v1270
    %1475 = vrot.lane.b32.xlu0 %v1472, 64
    %v1476 = vpop.permute.xlu0 %1475
    %v1478 = vmul.f32 %v1471, %v1476
    %1480 = vrot.lane.b32.xlu0 %v1478, 32
    %v1481 = vpop.permute.xlu0 %1480
    %v1483 = vadd.f32 %v1473, %v1481
    %v1484 = vtanh.pop %v1483
    %1486 = vrot.lane.b32.xlu0 %v1484, 64
    %v1487 = vpop.permute.xlu0 %1486
    %v1489 = vmul.f32 %v1471, %v1487
    %1491 = vrot.lane.b32.xlu0 %v1489, 32
    %v1492 = vpop.permute.xlu0 %1491
    %1495 = vrot.lane.b32.xlu0 %v1380, 64
    %v1496 = vpop.permute.xlu0 %1495
    %v1498 = vsel %vm208, %v1492, %v1496
    %v1500 = vsel %vm216, %v1498, 0
    %1502 = vmatprep.subr.mxu0 0.0
    %1503 = vmatpush1.msra.mxu0 0.0
    %1504 = vmatprep.subr.mxu0 0.0
    %1505 = vmatpush1.msra.mxu0 0.0
    %1506 = vmatprep.subr.mxu0 0.0
    %1507 = vmatpush1.msra.mxu0 0.0
    %1508 = vmatprep.subr.mxu0 0.0
    %1509 = vmatpush1.msra.mxu0 0.0
    %1510 = vmatprep.subr.mxu0 0.0
    %1511 = vmatpush1.msra.mxu0 0.0
    %1512 = vmatprep.subr.mxu0 0.0
    %1513 = vmatpush1.msra.mxu0 0.0
    %1514 = vmatprep.subr.mxu0 0.0
    %1515 = vmatpush1.msra.mxu0 0.0
    %1516 = vmatprep.subr.mxu0 0.0
    %1517 = vmatpush1.msra.mxu0 0.0
    %1518 = vmatprep.subr.mxu0 0.0
    %1519 = vmatpush1.msra.mxu0 %v69
    %1520 = vmatprep.subr.mxu0 0.0
    %1521 = vmatpush1.msra.mxu0 %v68
    %1522 = vmatprep.subr.mxu0 0.0
    %1523 = vmatpush1.msra.mxu0 %v67
    %1524 = vmatprep.subr.mxu0 0.0
    %1525 = vmatpush1.msra.mxu0 %v66
    %1526 = vmatprep.subr.mxu0 0.0
    %1527 = vmatpush1.msra.mxu0 %v65
    %1528 = vmatprep.subr.mxu0 0.0
    %1529 = vmatpush1.msra.mxu0 %v64
    %1530 = vmatprep.subr.mxu0 0.0
    %1531 = vmatpush1.msra.mxu0 %v63
    %1532 = vmatprep.subr.mxu0 0.0
    %1533 = vmatpush1.msra.mxu0 %v62
    %1534 = vmatprep.subr.mxu0 0.0
    %1535 = vmatpush2.msra.mxu0 0.0
    %1536 = vmatprep.subr.mxu0 0.0
    %1537 = vmatpush2.msra.mxu0 0.0
    %1538 = vmatprep.subr.mxu0 0.0
    %1539 = vmatpush2.msra.mxu0 0.0
    %1540 = vmatprep.subr.mxu0 0.0
    %1541 = vmatpush2.msra.mxu0 0.0
    %1542 = vmatprep.subr.mxu0 0.0
    %1543 = vmatpush2.msra.mxu0 0.0
    %1544 = vmatprep.subr.mxu0 0.0
    %1545 = vmatpush2.msra.mxu0 0.0
    %1546 = vmatprep.subr.mxu0 0.0
    %1547 = vmatpush2.msra.mxu0 0.0
    %1548 = vmatprep.subr.mxu0 0.0
    %1549 = vmatpush2.msra.mxu0 0.0
    %1550 = vmatprep.subr.mxu0 0.0
    %1551 = vmatpush2.msra.mxu0 0.0
    %1552 = vmatprep.subr.mxu0 0.0
    %1553 = vmatpush2.msra.mxu0 0.0
    %1554 = vmatprep.subr.mxu0 0.0
    %1555 = vmatpush2.msra.mxu0 0.0
    %1556 = vmatprep.subr.mxu0 0.0
    %1557 = vmatpush2.msra.mxu0 0.0
    %1558 = vmatprep.subr.mxu0 0.0
    %1559 = vmatpush2.msra.mxu0 0.0
    %1560 = vmatprep.subr.mxu0 0.0
    %1561 = vmatpush2.msra.mxu0 0.0
    %1562 = vmatprep.subr.mxu0 0.0
    %1563 = vmatpush2.msra.mxu0 0.0
    %1564 = vmatprep.subr.mxu0 0.0
    %1565 = vmatpush2.msra.mxu0 0.0
    %1566 = vmatprep.mubr.f32.mxu0 0.0
    %1567 = vmatmul.mubr.f32.gmra.mxu0 %v1500
    %v1568 = vpop.f32.mrf.mxu0
    %v1569 = vadd.f32 %v214, %v1568
    %v1570 = vpop.f32.mrf.mxu0
    %1571 = vdwg.mxu0
    %v1572 = vmul.f32 %v1569, 0.5
    %v1573 = vtanh.pop %v1572
    %v1574 = vmul.f32 %v1573, 0.5
    %v1575 = vadd.f32 %v1574, 0.5
    %v1576 = vtanh.pop %v1569
    %v1577 = vmul.f32 %v1575, %v1374
    %1579 = vrot.lane.b32.xlu0 %v1576, 64
    %v1580 = vpop.permute.xlu0 %1579
    %v1582 = vmul.f32 %v1575, %v1580
    %1584 = vrot.lane.b32.xlu0 %v1582, 32
    %v1585 = vpop.permute.xlu0 %1584
    %v1587 = vadd.f32 %v1577, %v1585
    %v1588 = vtanh.pop %v1587
    %1590 = vrot.lane.b32.xlu0 %v1588, 64
    %v1591 = vpop.permute.xlu0 %1590
    %v1593 = vmul.f32 %v1575, %v1591
    %s1594 = sld [smem:[#allocation2 + $0xe]]
    %s1595 = scalar_lea.vmem %s1, %s1594
    %v1596 = vld [vmem:[%s1595] sm:$0x1]
    %s1597 = sld [smem:[#allocation2 + $0xf]]
    %s1598 = scalar_lea.vmem %s1, %s1597
    %v1599 = vld [vmem:[%s1598] sm:$0x1]
    %v1601 = vrot.slane %v1599, 7
    %v1603 = vsel %vm86, %v1596, %v1601
    %1604 = vrot.lane.b32.xlu0 %v1489, 48
    %v1605 = vpop.permute.xlu0 %1604
    %v1607 = vsel %vm92, %v1603, %v1605
    %v1609 = vsel %vm100, %v1607, 0
    %1611 = vmatprep.subr.mxu0 0.0
    %1612 = vmatpush1.msra.mxu0 0.0
    %1613 = vmatprep.subr.mxu0 0.0
    %1614 = vmatpush1.msra.mxu0 0.0
    %1615 = vmatprep.subr.mxu0 0.0
    %1616 = vmatpush1.msra.mxu0 0.0
    %1617 = vmatprep.subr.mxu0 0.0
    %1618 = vmatpush1.msra.mxu0 0.0
    %1619 = vmatprep.subr.mxu0 0.0
    %1620 = vmatpush1.msra.mxu0 0.0
    %1621 = vmatprep.subr.mxu0 0.0
    %1622 = vmatpush1.msra.mxu0 0.0
    %1623 = vmatprep.subr.mxu0 0.0
    %1624 = vmatpush1.msra.mxu0 0.0
    %1625 = vmatprep.subr.mxu0 0.0
    %1626 = vmatpush1.msra.mxu0 0.0
    %1627 = vmatprep.subr.mxu0 0.0
    %1628 = vmatpush1.msra.mxu0 0.0
    %1629 = vmatprep.subr.mxu0 0.0
    %1630 = vmatpush1.msra.mxu0 0.0
    %1631 = vmatprep.subr.mxu0 0.0
    %1632 = vmatpush1.msra.mxu0 %v60
    %1633 = vmatprep.subr.mxu0 0.0
    %1634 = vmatpush1.msra.mxu0 %v59
    %1635 = vmatprep.subr.mxu0 0.0
    %1636 = vmatpush1.msra.mxu0 %v58
    %1637 = vmatprep.subr.mxu0 0.0
    %1638 = vmatpush1.msra.mxu0 %v57
    %1639 = vmatprep.subr.mxu0 0.0
    %1640 = vmatpush1.msra.mxu0 %v56
    %1641 = vmatprep.subr.mxu0 0.0
    %1642 = vmatpush1.msra.mxu0 %v55
    %1643 = vmatprep.subr.mxu0 0.0
    %1644 = vmatpush2.msra.mxu0 0.0
    %1645 = vmatprep.subr.mxu0 0.0
    %1646 = vmatpush2.msra.mxu0 0.0
    %1647 = vmatprep.subr.mxu0 0.0
    %1648 = vmatpush2.msra.mxu0 0.0
    %1649 = vmatprep.subr.mxu0 0.0
    %1650 = vmatpush2.msra.mxu0 0.0
    %1651 = vmatprep.subr.mxu0 0.0
    %1652 = vmatpush2.msra.mxu0 0.0
    %1653 = vmatprep.subr.mxu0 0.0
    %1654 = vmatpush2.msra.mxu0 0.0
    %1655 = vmatprep.subr.mxu0 0.0
    %1656 = vmatpush2.msra.mxu0 0.0
    %1657 = vmatprep.subr.mxu0 0.0
    %1658 = vmatpush2.msra.mxu0 0.0
    %1659 = vmatprep.subr.mxu0 0.0
    %1660 = vmatpush2.msra.mxu0 0.0
    %1661 = vmatprep.subr.mxu0 0.0
    %1662 = vmatpush2.msra.mxu0 0.0
    %1663 = vmatprep.subr.mxu0 0.0
    %1664 = vmatpush2.msra.mxu0 0.0
    %1665 = vmatprep.subr.mxu0 0.0
    %1666 = vmatpush2.msra.mxu0 0.0
    %1667 = vmatprep.subr.mxu0 0.0
    %1668 = vmatpush2.msra.mxu0 0.0
    %1669 = vmatprep.subr.mxu0 0.0
    %1670 = vmatpush2.msra.mxu0 0.0
    %1671 = vmatprep.subr.mxu0 0.0
    %1672 = vmatpush2.msra.mxu0 0.0
    %1673 = vmatprep.subr.mxu0 0.0
    %1674 = vmatpush2.msra.mxu0 0.0
    %1675 = vmatprep.mubr.f32.mxu0 0.0
    %1676 = vmatmul.mubr.f32.gmra.mxu0 %v1609
    %v1677 = vpop.f32.mrf.mxu0
    %v1678 = vadd.f32 %v98, %v1677
    %v1679 = vpop.f32.mrf.mxu0
    %1680 = vdwg.mxu0
    %v1681 = vmul.f32 %v1678, 0.5
    %v1682 = vtanh.pop %v1681
    %v1683 = vmul.f32 %v1682, 0.5
    %v1684 = vadd.f32 %v1683, 0.5
    %v1685 = vtanh.pop %v1678
    %v1686 = vmul.f32 %v1684, %v1483
    %1688 = vrot.lane.b32.xlu0 %v1685, 64
    %v1689 = vpop.permute.xlu0 %1688
    %v1691 = vmul.f32 %v1684, %v1689
    %1693 = vrot.lane.b32.xlu0 %v1691, 32
    %v1694 = vpop.permute.xlu0 %1693
    %v1696 = vadd.f32 %v1686, %v1694
    %v1697 = vtanh.pop %v1696
    %1699 = vrot.lane.b32.xlu0 %v1697, 64
    %v1700 = vpop.permute.xlu0 %1699
    %v1702 = vmul.f32 %v1684, %v1700
    %1704 = vrot.lane.b32.xlu0 %v1702, 32
    %v1705 = vpop.permute.xlu0 %1704
    %1708 = vrot.lane.b32.xlu0 %v1593, 64
    %v1709 = vpop.permute.xlu0 %1708
    %v1711 = vsel %vm208, %v1705, %v1709
    %v1713 = vsel %vm216, %v1711, 0
    %1715 = vmatprep.subr.mxu0 0.0
    %1716 = vmatpush1.msra.mxu0 0.0
    %1717 = vmatprep.subr.mxu0 0.0
    %1718 = vmatpush1.msra.mxu0 0.0
    %1719 = vmatprep.subr.mxu0 0.0
    %1720 = vmatpush1.msra.mxu0 0.0
    %1721 = vmatprep.subr.mxu0 0.0
    %1722 = vmatpush1.msra.mxu0 0.0
    %1723 = vmatprep.subr.mxu0 0.0
    %1724 = vmatpush1.msra.mxu0 0.0
    %1725 = vmatprep.subr.mxu0 0.0
    %1726 = vmatpush1.msra.mxu0 0.0
    %1727 = vmatprep.subr.mxu0 0.0
    %1728 = vmatpush1.msra.mxu0 0.0
    %1729 = vmatprep.subr.mxu0 0.0
    %1730 = vmatpush1.msra.mxu0 0.0
    %1731 = vmatprep.subr.mxu0 0.0
    %1732 = vmatpush1.msra.mxu0 %v69
    %1733 = vmatprep.subr.mxu0 0.0
    %1734 = vmatpush1.msra.mxu0 %v68
    %1735 = vmatprep.subr.mxu0 0.0
    %1736 = vmatpush1.msra.mxu0 %v67
    %1737 = vmatprep.subr.mxu0 0.0
    %1738 = vmatpush1.msra.mxu0 %v66
    %1739 = vmatprep.subr.mxu0 0.0
    %1740 = vmatpush1.msra.mxu0 %v65
    %1741 = vmatprep.subr.mxu0 0.0
    %1742 = vmatpush1.msra.mxu0 %v64
    %1743 = vmatprep.subr.mxu0 0.0
    %1744 = vmatpush1.msra.mxu0 %v63
    %1745 = vmatprep.subr.mxu0 0.0
    %1746 = vmatpush1.msra.mxu0 %v62
    %1747 = vmatprep.subr.mxu0 0.0
    %1748 = vmatpush2.msra.mxu0 0.0
    %1749 = vmatprep.subr.mxu0 0.0
    %1750 = vmatpush2.msra.mxu0 0.0
    %1751 = vmatprep.subr.mxu0 0.0
    %1752 = vmatpush2.msra.mxu0 0.0
    %1753 = vmatprep.subr.mxu0 0.0
    %1754 = vmatpush2.msra.mxu0 0.0
    %1755 = vmatprep.subr.mxu0 0.0
    %1756 = vmatpush2.msra.mxu0 0.0
    %1757 = vmatprep.subr.mxu0 0.0
    %1758 = vmatpush2.msra.mxu0 0.0
    %1759 = vmatprep.subr.mxu0 0.0
    %1760 = vmatpush2.msra.mxu0 0.0
    %1761 = vmatprep.subr.mxu0 0.0
    %1762 = vmatpush2.msra.mxu0 0.0
    %1763 = vmatprep.subr.mxu0 0.0
    %1764 = vmatpush2.msra.mxu0 0.0
    %1765 = vmatprep.subr.mxu0 0.0
    %1766 = vmatpush2.msra.mxu0 0.0
    %1767 = vmatprep.subr.mxu0 0.0
    %1768 = vmatpush2.msra.mxu0 0.0
    %1769 = vmatprep.subr.mxu0 0.0
    %1770 = vmatpush2.msra.mxu0 0.0
    %1771 = vmatprep.subr.mxu0 0.0
    %1772 = vmatpush2.msra.mxu0 0.0
    %1773 = vmatprep.subr.mxu0 0.0
    %1774 = vmatpush2.msra.mxu0 0.0
    %1775 = vmatprep.subr.mxu0 0.0
    %1776 = vmatpush2.msra.mxu0 0.0
    %1777 = vmatprep.subr.mxu0 0.0
    %1778 = vmatpush2.msra.mxu0 0.0
    %1779 = vmatprep.mubr.f32.mxu0 0.0
    %1780 = vmatmul.mubr.f32.gmra.mxu0 %v1713
    %v1781 = vpop.f32.mrf.mxu0
    %v1782 = vadd.f32 %v214, %v1781
    %v1783 = vpop.f32.mrf.mxu0
    %1784 = vdwg.mxu0
    %v1785 = vmul.f32 %v1782, 0.5
    %v1786 = vtanh.pop %v1785
    %v1787 = vmul.f32 %v1786, 0.5
    %v1788 = vadd.f32 %v1787, 0.5
    %v1789 = vtanh.pop %v1782
    %v1790 = vmul.f32 %v1788, %v1587
    %1792 = vrot.lane.b32.xlu0 %v1789, 64
    %v1793 = vpop.permute.xlu0 %1792
    %v1795 = vmul.f32 %v1788, %v1793
    %1797 = vrot.lane.b32.xlu0 %v1795, 32
    %v1798 = vpop.permute.xlu0 %1797
    %v1800 = vadd.f32 %v1790, %v1798
    %v1801 = vtanh.pop %v1800
    %1803 = vrot.lane.b32.xlu0 %v1801, 64
    %v1804 = vpop.permute.xlu0 %1803
    %v1806 = vmul.f32 %v1788, %v1804
    %s1807 = sld [smem:[#allocation2 + $0x10]]
    %s1808 = scalar_lea.vmem %s1, %s1807
    %v1809 = vld [vmem:[%s1808] sm:$0x1]
    %s1810 = sld [smem:[#allocation2 + $0x11]]
    %s1811 = scalar_lea.vmem %s1, %s1810
    %v1812 = vld [vmem:[%s1811] sm:$0x1]
    %v1814 = vrot.slane %v1812, 7
    %v1816 = vsel %vm86, %v1809, %v1814
    %1817 = vrot.lane.b32.xlu0 %v1702, 48
    %v1818 = vpop.permute.xlu0 %1817
    %v1820 = vsel %vm92, %v1816, %v1818
    %v1822 = vsel %vm100, %v1820, 0
    %1824 = vmatprep.subr.mxu0 0.0
    %1825 = vmatpush1.msra.mxu0 0.0
    %1826 = vmatprep.subr.mxu0 0.0
    %1827 = vmatpush1.msra.mxu0 0.0
    %1828 = vmatprep.subr.mxu0 0.0
    %1829 = vmatpush1.msra.mxu0 0.0
    %1830 = vmatprep.subr.mxu0 0.0
    %1831 = vmatpush1.msra.mxu0 0.0
    %1832 = vmatprep.subr.mxu0 0.0
    %1833 = vmatpush1.msra.mxu0 0.0
    %1834 = vmatprep.subr.mxu0 0.0
    %1835 = vmatpush1.msra.mxu0 0.0
    %1836 = vmatprep.subr.mxu0 0.0
    %1837 = vmatpush1.msra.mxu0 0.0
    %1838 = vmatprep.subr.mxu0 0.0
    %1839 = vmatpush1.msra.mxu0 0.0
    %1840 = vmatprep.subr.mxu0 0.0
    %1841 = vmatpush1.msra.mxu0 0.0
    %1842 = vmatprep.subr.mxu0 0.0
    %1843 = vmatpush1.msra.mxu0 0.0
    %1844 = vmatprep.subr.mxu0 0.0
    %1845 = vmatpush1.msra.mxu0 %v60
    %1846 = vmatprep.subr.mxu0 0.0
    %1847 = vmatpush1.msra.mxu0 %v59
    %1848 = vmatprep.subr.mxu0 0.0
    %1849 = vmatpush1.msra.mxu0 %v58
    %1850 = vmatprep.subr.mxu0 0.0
    %1851 = vmatpush1.msra.mxu0 %v57
    %1852 = vmatprep.subr.mxu0 0.0
    %1853 = vmatpush1.msra.mxu0 %v56
    %1854 = vmatprep.subr.mxu0 0.0
    %1855 = vmatpush1.msra.mxu0 %v55
    %1856 = vmatprep.subr.mxu0 0.0
    %1857 = vmatpush2.msra.mxu0 0.0
    %1858 = vmatprep.subr.mxu0 0.0
    %1859 = vmatpush2.msra.mxu0 0.0
    %1860 = vmatprep.subr.mxu0 0.0
    %1861 = vmatpush2.msra.mxu0 0.0
    %1862 = vmatprep.subr.mxu0 0.0
    %1863 = vmatpush2.msra.mxu0 0.0
    %1864 = vmatprep.subr.mxu0 0.0
    %1865 = vmatpush2.msra.mxu0 0.0
    %1866 = vmatprep.subr.mxu0 0.0
    %1867 = vmatpush2.msra.mxu0 0.0
    %1868 = vmatprep.subr.mxu0 0.0
    %1869 = vmatpush2.msra.mxu0 0.0
    %1870 = vmatprep.subr.mxu0 0.0
    %1871 = vmatpush2.msra.mxu0 0.0
    %1872 = vmatprep.subr.mxu0 0.0
    %1873 = vmatpush2.msra.mxu0 0.0
    %1874 = vmatprep.subr.mxu0 0.0
    %1875 = vmatpush2.msra.mxu0 0.0
    %1876 = vmatprep.subr.mxu0 0.0
    %1877 = vmatpush2.msra.mxu0 0.0
    %1878 = vmatprep.subr.mxu0 0.0
    %1879 = vmatpush2.msra.mxu0 0.0
    %1880 = vmatprep.subr.mxu0 0.0
    %1881 = vmatpush2.msra.mxu0 0.0
    %1882 = vmatprep.subr.mxu0 0.0
    %1883 = vmatpush2.msra.mxu0 0.0
    %1884 = vmatprep.subr.mxu0 0.0
    %1885 = vmatpush2.msra.mxu0 0.0
    %1886 = vmatprep.subr.mxu0 0.0
    %1887 = vmatpush2.msra.mxu0 0.0
    %1888 = vmatprep.mubr.f32.mxu0 0.0
    %1889 = vmatmul.mubr.f32.gmra.mxu0 %v1822
    %v1890 = vpop.f32.mrf.mxu0
    %v1891 = vadd.f32 %v98, %v1890
    %v1892 = vpop.f32.mrf.mxu0
    %1893 = vdwg.mxu0
    %v1894 = vmul.f32 %v1891, 0.5
    %v1895 = vtanh.pop %v1894
    %v1896 = vmul.f32 %v1895, 0.5
    %v1897 = vadd.f32 %v1896, 0.5
    %v1898 = vtanh.pop %v1891
    %v1899 = vmul.f32 %v1897, %v1696
    %1901 = vrot.lane.b32.xlu0 %v1898, 64
    %v1902 = vpop.permute.xlu0 %1901
    %v1904 = vmul.f32 %v1897, %v1902
    %1906 = vrot.lane.b32.xlu0 %v1904, 32
    %v1907 = vpop.permute.xlu0 %1906
    %v1909 = vadd.f32 %v1899, %v1907
    %v1910 = vtanh.pop %v1909
    %1912 = vrot.lane.b32.xlu0 %v1910, 64
    %v1913 = vpop.permute.xlu0 %1912
    %v1915 = vmul.f32 %v1897, %v1913
    %1917 = vrot.lane.b32.xlu0 %v1915, 32
    %v1918 = vpop.permute.xlu0 %1917
    %1921 = vrot.lane.b32.xlu0 %v1806, 64
    %v1922 = vpop.permute.xlu0 %1921
    %v1924 = vsel %vm208, %v1918, %v1922
    %v1926 = vsel %vm216, %v1924, 0
    %1928 = vmatprep.subr.mxu0 0.0
    %1929 = vmatpush1.msra.mxu0 0.0
    %1930 = vmatprep.subr.mxu0 0.0
    %1931 = vmatpush1.msra.mxu0 0.0
    %1932 = vmatprep.subr.mxu0 0.0
    %1933 = vmatpush1.msra.mxu0 0.0
    %1934 = vmatprep.subr.mxu0 0.0
    %1935 = vmatpush1.msra.mxu0 0.0
    %1936 = vmatprep.subr.mxu0 0.0
    %1937 = vmatpush1.msra.mxu0 0.0
    %1938 = vmatprep.subr.mxu0 0.0
    %1939 = vmatpush1.msra.mxu0 0.0
    %1940 = vmatprep.subr.mxu0 0.0
    %1941 = vmatpush1.msra.mxu0 0.0
    %1942 = vmatprep.subr.mxu0 0.0
    %1943 = vmatpush1.msra.mxu0 0.0
    %1944 = vmatprep.subr.mxu0 0.0
    %1945 = vmatpush1.msra.mxu0 %v69
    %1946 = vmatprep.subr.mxu0 0.0
    %1947 = vmatpush1.msra.mxu0 %v68
    %1948 = vmatprep.subr.mxu0 0.0
    %1949 = vmatpush1.msra.mxu0 %v67
    %1950 = vmatprep.subr.mxu0 0.0
    %1951 = vmatpush1.msra.mxu0 %v66
    %1952 = vmatprep.subr.mxu0 0.0
    %1953 = vmatpush1.msra.mxu0 %v65
    %1954 = vmatprep.subr.mxu0 0.0
    %1955 = vmatpush1.msra.mxu0 %v64
    %1956 = vmatprep.subr.mxu0 0.0
    %1957 = vmatpush1.msra.mxu0 %v63
    %1958 = vmatprep.subr.mxu0 0.0
    %1959 = vmatpush1.msra.mxu0 %v62
    %1960 = vmatprep.subr.mxu0 0.0
    %1961 = vmatpush2.msra.mxu0 0.0
    %1962 = vmatprep.subr.mxu0 0.0
    %1963 = vmatpush2.msra.mxu0 0.0
    %1964 = vmatprep.subr.mxu0 0.0
    %1965 = vmatpush2.msra.mxu0 0.0
    %1966 = vmatprep.subr.mxu0 0.0
    %1967 = vmatpush2.msra.mxu0 0.0
    %1968 = vmatprep.subr.mxu0 0.0
    %1969 = vmatpush2.msra.mxu0 0.0
    %1970 = vmatprep.subr.mxu0 0.0
    %1971 = vmatpush2.msra.mxu0 0.0
    %1972 = vmatprep.subr.mxu0 0.0
    %1973 = vmatpush2.msra.mxu0 0.0
    %1974 = vmatprep.subr.mxu0 0.0
    %1975 = vmatpush2.msra.mxu0 0.0
    %1976 = vmatprep.subr.mxu0 0.0
    %1977 = vmatpush2.msra.mxu0 0.0
    %1978 = vmatprep.subr.mxu0 0.0
    %1979 = vmatpush2.msra.mxu0 0.0
    %1980 = vmatprep.subr.mxu0 0.0
    %1981 = vmatpush2.msra.mxu0 0.0
    %1982 = vmatprep.subr.mxu0 0.0
    %1983 = vmatpush2.msra.mxu0 0.0
    %1984 = vmatprep.subr.mxu0 0.0
    %1985 = vmatpush2.msra.mxu0 0.0
    %1986 = vmatprep.subr.mxu0 0.0
    %1987 = vmatpush2.msra.mxu0 0.0
    %1988 = vmatprep.subr.mxu0 0.0
    %1989 = vmatpush2.msra.mxu0 0.0
    %1990 = vmatprep.subr.mxu0 0.0
    %1991 = vmatpush2.msra.mxu0 0.0
    %1992 = vmatprep.mubr.f32.mxu0 0.0
    %1993 = vmatmul.mubr.f32.gmra.mxu0 %v1926
    %v1994 = vpop.f32.mrf.mxu0
    %v1995 = vadd.f32 %v214, %v1994
    %v1996 = vpop.f32.mrf.mxu0
    %1997 = vdwg.mxu0
    %v1998 = vmul.f32 %v1995, 0.5
    %v1999 = vtanh.pop %v1998
    %v2000 = vmul.f32 %v1999, 0.5
    %v2001 = vadd.f32 %v2000, 0.5
    %v2002 = vtanh.pop %v1995
    %v2003 = vmul.f32 %v2001, %v1800
    %2005 = vrot.lane.b32.xlu0 %v2002, 64
    %v2006 = vpop.permute.xlu0 %2005
    %v2008 = vmul.f32 %v2001, %v2006
    %2010 = vrot.lane.b32.xlu0 %v2008, 32
    %v2011 = vpop.permute.xlu0 %2010
    %v2013 = vadd.f32 %v2003, %v2011
    %v2014 = vtanh.pop %v2013
    %2016 = vrot.lane.b32.xlu0 %v2014, 64
    %v2017 = vpop.permute.xlu0 %2016
    %v2019 = vmul.f32 %v2001, %v2017
    %s2020 = sld [smem:[#allocation2 + $0x12]]
    %s2021 = scalar_lea.vmem %s1, %s2020
    %v2022 = vld [vmem:[%s2021] sm:$0x1]
    %s2023 = sld [smem:[#allocation2 + $0x13]]
    %s2024 = scalar_lea.vmem %s1, %s2023
    %v2025 = vld [vmem:[%s2024] sm:$0x1]
    %v2027 = vrot.slane %v2025, 7
    %v2029 = vsel %vm86, %v2022, %v2027
    %2030 = vrot.lane.b32.xlu0 %v1915, 48
    %v2031 = vpop.permute.xlu0 %2030
    %v2033 = vsel %vm92, %v2029, %v2031
    %v2035 = vsel %vm100, %v2033, 0
    %2037 = vmatprep.subr.mxu0 0.0
    %2038 = vmatpush1.msra.mxu0 0.0
    %2039 = vmatprep.subr.mxu0 0.0
    %2040 = vmatpush1.msra.mxu0 0.0
    %2041 = vmatprep.subr.mxu0 0.0
    %2042 = vmatpush1.msra.mxu0 0.0
    %2043 = vmatprep.subr.mxu0 0.0
    %2044 = vmatpush1.msra.mxu0 0.0
    %2045 = vmatprep.subr.mxu0 0.0
    %2046 = vmatpush1.msra.mxu0 0.0
    %2047 = vmatprep.subr.mxu0 0.0
    %2048 = vmatpush1.msra.mxu0 0.0
    %2049 = vmatprep.subr.mxu0 0.0
    %2050 = vmatpush1.msra.mxu0 0.0
    %2051 = vmatprep.subr.mxu0 0.0
    %2052 = vmatpush1.msra.mxu0 0.0
    %2053 = vmatprep.subr.mxu0 0.0
    %2054 = vmatpush1.msra.mxu0 0.0
    %2055 = vmatprep.subr.mxu0 0.0
    %2056 = vmatpush1.msra.mxu0 0.0
    %2057 = vmatprep.subr.mxu0 0.0
    %2058 = vmatpush1.msra.mxu0 %v60
    %2059 = vmatprep.subr.mxu0 0.0
    %2060 = vmatpush1.msra.mxu0 %v59
    %2061 = vmatprep.subr.mxu0 0.0
    %2062 = vmatpush1.msra.mxu0 %v58
    %2063 = vmatprep.subr.mxu0 0.0
    %2064 = vmatpush1.msra.mxu0 %v57
    %2065 = vmatprep.subr.mxu0 0.0
    %2066 = vmatpush1.msra.mxu0 %v56
    %2067 = vmatprep.subr.mxu0 0.0
    %2068 = vmatpush1.msra.mxu0 %v55
    %2069 = vmatprep.subr.mxu0 0.0
    %2070 = vmatpush2.msra.mxu0 0.0
    %2071 = vmatprep.subr.mxu0 0.0
    %2072 = vmatpush2.msra.mxu0 0.0
    %2073 = vmatprep.subr.mxu0 0.0
    %2074 = vmatpush2.msra.mxu0 0.0
    %2075 = vmatprep.subr.mxu0 0.0
    %2076 = vmatpush2.msra.mxu0 0.0
    %2077 = vmatprep.subr.mxu0 0.0
    %2078 = vmatpush2.msra.mxu0 0.0
    %2079 = vmatprep.subr.mxu0 0.0
    %2080 = vmatpush2.msra.mxu0 0.0
    %2081 = vmatprep.subr.mxu0 0.0
    %2082 = vmatpush2.msra.mxu0 0.0
    %2083 = vmatprep.subr.mxu0 0.0
    %2084 = vmatpush2.msra.mxu0 0.0
    %2085 = vmatprep.subr.mxu0 0.0
    %2086 = vmatpush2.msra.mxu0 0.0
    %2087 = vmatprep.subr.mxu0 0.0
    %2088 = vmatpush2.msra.mxu0 0.0
    %2089 = vmatprep.subr.mxu0 0.0
    %2090 = vmatpush2.msra.mxu0 0.0
    %2091 = vmatprep.subr.mxu0 0.0
    %2092 = vmatpush2.msra.mxu0 0.0
    %2093 = vmatprep.subr.mxu0 0.0
    %2094 = vmatpush2.msra.mxu0 0.0
    %2095 = vmatprep.subr.mxu0 0.0
    %2096 = vmatpush2.msra.mxu0 0.0
    %2097 = vmatprep.subr.mxu0 0.0
    %2098 = vmatpush2.msra.mxu0 0.0
    %2099 = vmatprep.subr.mxu0 0.0
    %2100 = vmatpush2.msra.mxu0 0.0
    %2101 = vmatprep.mubr.f32.mxu0 0.0
    %2102 = vmatmul.mubr.f32.gmra.mxu0 %v2035
    %v2103 = vpop.f32.mrf.mxu0
    %v2104 = vadd.f32 %v98, %v2103
    %v2105 = vpop.f32.mrf.mxu0
    %2106 = vdwg.mxu0
    %v2107 = vmul.f32 %v2104, 0.5
    %v2108 = vtanh.pop %v2107
    %v2109 = vmul.f32 %v2108, 0.5
    %v2110 = vadd.f32 %v2109, 0.5
    %v2111 = vtanh.pop %v2104
    %v2112 = vmul.f32 %v2110, %v1909
    %2114 = vrot.lane.b32.xlu0 %v2111, 64
    %v2115 = vpop.permute.xlu0 %2114
    %v2117 = vmul.f32 %v2110, %v2115
    %2119 = vrot.lane.b32.xlu0 %v2117, 32
    %v2120 = vpop.permute.xlu0 %2119
    %v2122 = vadd.f32 %v2112, %v2120
    %v2123 = vtanh.pop %v2122
    %2125 = vrot.lane.b32.xlu0 %v2123, 64
    %v2126 = vpop.permute.xlu0 %2125
    %v2128 = vmul.f32 %v2110, %v2126
    %2130 = vrot.lane.b32.xlu0 %v2128, 32
    %v2131 = vpop.permute.xlu0 %2130
    %2134 = vrot.lane.b32.xlu0 %v2019, 64
    %v2135 = vpop.permute.xlu0 %2134
    %v2137 = vsel %vm208, %v2131, %v2135
    %v2139 = vsel %vm216, %v2137, 0
    %2141 = vmatprep.subr.mxu0 0.0
    %2142 = vmatpush1.msra.mxu0 0.0
    %2143 = vmatprep.subr.mxu0 0.0
    %2144 = vmatpush1.msra.mxu0 0.0
    %2145 = vmatprep.subr.mxu0 0.0
    %2146 = vmatpush1.msra.mxu0 0.0
    %2147 = vmatprep.subr.mxu0 0.0
    %2148 = vmatpush1.msra.mxu0 0.0
    %2149 = vmatprep.subr.mxu0 0.0
    %2150 = vmatpush1.msra.mxu0 0.0
    %2151 = vmatprep.subr.mxu0 0.0
    %2152 = vmatpush1.msra.mxu0 0.0
    %2153 = vmatprep.subr.mxu0 0.0
    %2154 = vmatpush1.msra.mxu0 0.0
    %2155 = vmatprep.subr.mxu0 0.0
    %2156 = vmatpush1.msra.mxu0 0.0
    %2157 = vmatprep.subr.mxu0 0.0
    %2158 = vmatpush1.msra.mxu0 %v69
    %2159 = vmatprep.subr.mxu0 0.0
    %2160 = vmatpush1.msra.mxu0 %v68
    %2161 = vmatprep.subr.mxu0 0.0
    %2162 = vmatpush1.msra.mxu0 %v67
    %2163 = vmatprep.subr.mxu0 0.0
    %2164 = vmatpush1.msra.mxu0 %v66
    %2165 = vmatprep.subr.mxu0 0.0
    %2166 = vmatpush1.msra.mxu0 %v65
    %2167 = vmatprep.subr.mxu0 0.0
    %2168 = vmatpush1.msra.mxu0 %v64
    %2169 = vmatprep.subr.mxu0 0.0
    %2170 = vmatpush1.msra.mxu0 %v63
    %2171 = vmatprep.subr.mxu0 0.0
    %2172 = vmatpush1.msra.mxu0 %v62
    %2173 = vmatprep.subr.mxu0 0.0
    %2174 = vmatpush2.msra.mxu0 0.0
    %2175 = vmatprep.subr.mxu0 0.0
    %2176 = vmatpush2.msra.mxu0 0.0
    %2177 = vmatprep.subr.mxu0 0.0
    %2178 = vmatpush2.msra.mxu0 0.0
    %2179 = vmatprep.subr.mxu0 0.0
    %2180 = vmatpush2.msra.mxu0 0.0
    %2181 = vmatprep.subr.mxu0 0.0
    %2182 = vmatpush2.msra.mxu0 0.0
    %2183 = vmatprep.subr.mxu0 0.0
    %2184 = vmatpush2.msra.mxu0 0.0
    %2185 = vmatprep.subr.mxu0 0.0
    %2186 = vmatpush2.msra.mxu0 0.0
    %2187 = vmatprep.subr.mxu0 0.0
    %2188 = vmatpush2.msra.mxu0 0.0
    %2189 = vmatprep.subr.mxu0 0.0
    %2190 = vmatpush2.msra.mxu0 0.0
    %2191 = vmatprep.subr.mxu0 0.0
    %2192 = vmatpush2.msra.mxu0 0.0
    %2193 = vmatprep.subr.mxu0 0.0
    %2194 = vmatpush2.msra.mxu0 0.0
    %2195 = vmatprep.subr.mxu0 0.0
    %2196 = vmatpush2.msra.mxu0 0.0
    %2197 = vmatprep.subr.mxu0 0.0
    %2198 = vmatpush2.msra.mxu0 0.0
    %2199 = vmatprep.subr.mxu0 0.0
    %2200 = vmatpush2.msra.mxu0 0.0
    %2201 = vmatprep.subr.mxu0 0.0
    %2202 = vmatpush2.msra.mxu0 0.0
    %2203 = vmatprep.subr.mxu0 0.0
    %2204 = vmatpush2.msra.mxu0 0.0
    %2205 = vmatprep.mubr.f32.mxu0 0.0
    %2206 = vmatmul.mubr.f32.gmra.mxu0 %v2139
    %v2207 = vpop.f32.mrf.mxu0
    %v2208 = vadd.f32 %v214, %v2207
    %v2209 = vpop.f32.mrf.mxu0
    %2210 = vdwg.mxu0
    %v2211 = vmul.f32 %v2208, 0.5
    %v2212 = vtanh.pop %v2211
    %v2213 = vmul.f32 %v2212, 0.5
    %v2214 = vadd.f32 %v2213, 0.5
    %v2215 = vtanh.pop %v2208
    %v2216 = vmul.f32 %v2214, %v2013
    %2218 = vrot.lane.b32.xlu0 %v2215, 64
    %v2219 = vpop.permute.xlu0 %2218
    %v2221 = vmul.f32 %v2214, %v2219
    %2223 = vrot.lane.b32.xlu0 %v2221, 32
    %v2224 = vpop.permute.xlu0 %2223
    %v2226 = vadd.f32 %v2216, %v2224
    %v2227 = vtanh.pop %v2226
    %2229 = vrot.lane.b32.xlu0 %v2227, 64
    %v2230 = vpop.permute.xlu0 %2229
    %v2232 = vmul.f32 %v2214, %v2230
    %s2233 = sld [smem:[#allocation2 + $0x14]]
    %s2234 = scalar_lea.vmem %s1, %s2233
    %v2235 = vld [vmem:[%s2234] sm:$0x1]
    %s2236 = sld [smem:[#allocation2 + $0x15]]
    %s2237 = scalar_lea.vmem %s1, %s2236
    %v2238 = vld [vmem:[%s2237] sm:$0x1]
    %v2240 = vrot.slane %v2238, 7
    %v2242 = vsel %vm86, %v2235, %v2240
    %2243 = vrot.lane.b32.xlu0 %v2128, 48
    %v2244 = vpop.permute.xlu0 %2243
    %v2246 = vsel %vm92, %v2242, %v2244
    %v2248 = vsel %vm100, %v2246, 0
    %2250 = vmatprep.subr.mxu0 0.0
    %2251 = vmatpush1.msra.mxu0 0.0
    %2252 = vmatprep.subr.mxu0 0.0
    %2253 = vmatpush1.msra.mxu0 0.0
    %2254 = vmatprep.subr.mxu0 0.0
    %2255 = vmatpush1.msra.mxu0 0.0
    %2256 = vmatprep.subr.mxu0 0.0
    %2257 = vmatpush1.msra.mxu0 0.0
    %2258 = vmatprep.subr.mxu0 0.0
    %2259 = vmatpush1.msra.mxu0 0.0
    %2260 = vmatprep.subr.mxu0 0.0
    %2261 = vmatpush1.msra.mxu0 0.0
    %2262 = vmatprep.subr.mxu0 0.0
    %2263 = vmatpush1.msra.mxu0 0.0
    %2264 = vmatprep.subr.mxu0 0.0
    %2265 = vmatpush1.msra.mxu0 0.0
    %2266 = vmatprep.subr.mxu0 0.0
    %2267 = vmatpush1.msra.mxu0 0.0
    %2268 = vmatprep.subr.mxu0 0.0
    %2269 = vmatpush1.msra.mxu0 0.0
    %2270 = vmatprep.subr.mxu0 0.0
    %2271 = vmatpush1.msra.mxu0 %v60
    %2272 = vmatprep.subr.mxu0 0.0
    %2273 = vmatpush1.msra.mxu0 %v59
    %2274 = vmatprep.subr.mxu0 0.0
    %2275 = vmatpush1.msra.mxu0 %v58
    %2276 = vmatprep.subr.mxu0 0.0
    %2277 = vmatpush1.msra.mxu0 %v57
    %2278 = vmatprep.subr.mxu0 0.0
    %2279 = vmatpush1.msra.mxu0 %v56
    %2280 = vmatprep.subr.mxu0 0.0
    %2281 = vmatpush1.msra.mxu0 %v55
    %2282 = vmatprep.subr.mxu0 0.0
    %2283 = vmatpush2.msra.mxu0 0.0
    %2284 = vmatprep.subr.mxu0 0.0
    %2285 = vmatpush2.msra.mxu0 0.0
    %2286 = vmatprep.subr.mxu0 0.0
    %2287 = vmatpush2.msra.mxu0 0.0
    %2288 = vmatprep.subr.mxu0 0.0
    %2289 = vmatpush2.msra.mxu0 0.0
    %2290 = vmatprep.subr.mxu0 0.0
    %2291 = vmatpush2.msra.mxu0 0.0
    %2292 = vmatprep.subr.mxu0 0.0
    %2293 = vmatpush2.msra.mxu0 0.0
    %2294 = vmatprep.subr.mxu0 0.0
    %2295 = vmatpush2.msra.mxu0 0.0
    %2296 = vmatprep.subr.mxu0 0.0
    %2297 = vmatpush2.msra.mxu0 0.0
    %2298 = vmatprep.subr.mxu0 0.0
    %2299 = vmatpush2.msra.mxu0 0.0
    %2300 = vmatprep.subr.mxu0 0.0
    %2301 = vmatpush2.msra.mxu0 0.0
    %2302 = vmatprep.subr.mxu0 0.0
    %2303 = vmatpush2.msra.mxu0 0.0
    %2304 = vmatprep.subr.mxu0 0.0
    %2305 = vmatpush2.msra.mxu0 0.0
    %2306 = vmatprep.subr.mxu0 0.0
    %2307 = vmatpush2.msra.mxu0 0.0
    %2308 = vmatprep.subr.mxu0 0.0
    %2309 = vmatpush2.msra.mxu0 0.0
    %2310 = vmatprep.subr.mxu0 0.0
    %2311 = vmatpush2.msra.mxu0 0.0
    %2312 = vmatprep.subr.mxu0 0.0
    %2313 = vmatpush2.msra.mxu0 0.0
    %2314 = vmatprep.mubr.f32.mxu0 0.0
    %2315 = vmatmul.mubr.f32.gmra.mxu0 %v2248
    %v2316 = vpop.f32.mrf.mxu0
    %v2317 = vadd.f32 %v98, %v2316
    %v2318 = vpop.f32.mrf.mxu0
    %2319 = vdwg.mxu0
    %v2320 = vmul.f32 %v2317, 0.5
    %v2321 = vtanh.pop %v2320
    %v2322 = vmul.f32 %v2321, 0.5
    %v2323 = vadd.f32 %v2322, 0.5
    %v2324 = vtanh.pop %v2317
    %v2325 = vmul.f32 %v2323, %v2122
    %2327 = vrot.lane.b32.xlu0 %v2324, 64
    %v2328 = vpop.permute.xlu0 %2327
    %v2330 = vmul.f32 %v2323, %v2328
    %2332 = vrot.lane.b32.xlu0 %v2330, 32
    %v2333 = vpop.permute.xlu0 %2332
    %v2335 = vadd.f32 %v2325, %v2333
    %v2336 = vtanh.pop %v2335
    %2338 = vrot.lane.b32.xlu0 %v2336, 64
    %v2339 = vpop.permute.xlu0 %2338
    %v2341 = vmul.f32 %v2323, %v2339
    %2343 = vrot.lane.b32.xlu0 %v2341, 32
    %v2344 = vpop.permute.xlu0 %2343
    %2347 = vrot.lane.b32.xlu0 %v2232, 64
    %v2348 = vpop.permute.xlu0 %2347
    %v2350 = vsel %vm208, %v2344, %v2348
    %v2352 = vsel %vm216, %v2350, 0
    %2354 = vmatprep.subr.mxu0 0.0
    %2355 = vmatpush1.msra.mxu0 0.0
    %2356 = vmatprep.subr.mxu0 0.0
    %2357 = vmatpush1.msra.mxu0 0.0
    %2358 = vmatprep.subr.mxu0 0.0
    %2359 = vmatpush1.msra.mxu0 0.0
    %2360 = vmatprep.subr.mxu0 0.0
    %2361 = vmatpush1.msra.mxu0 0.0
    %2362 = vmatprep.subr.mxu0 0.0
    %2363 = vmatpush1.msra.mxu0 0.0
    %2364 = vmatprep.subr.mxu0 0.0
    %2365 = vmatpush1.msra.mxu0 0.0
    %2366 = vmatprep.subr.mxu0 0.0
    %2367 = vmatpush1.msra.mxu0 0.0
    %2368 = vmatprep.subr.mxu0 0.0
    %2369 = vmatpush1.msra.mxu0 0.0
    %2370 = vmatprep.subr.mxu0 0.0
    %2371 = vmatpush1.msra.mxu0 %v69
    %2372 = vmatprep.subr.mxu0 0.0
    %2373 = vmatpush1.msra.mxu0 %v68
    %2374 = vmatprep.subr.mxu0 0.0
    %2375 = vmatpush1.msra.mxu0 %v67
    %2376 = vmatprep.subr.mxu0 0.0
    %2377 = vmatpush1.msra.mxu0 %v66
    %2378 = vmatprep.subr.mxu0 0.0
    %2379 = vmatpush1.msra.mxu0 %v65
    %2380 = vmatprep.subr.mxu0 0.0
    %2381 = vmatpush1.msra.mxu0 %v64
    %2382 = vmatprep.subr.mxu0 0.0
    %2383 = vmatpush1.msra.mxu0 %v63
    %2384 = vmatprep.subr.mxu0 0.0
    %2385 = vmatpush1.msra.mxu0 %v62
    %2386 = vmatprep.subr.mxu0 0.0
    %2387 = vmatpush2.msra.mxu0 0.0
    %2388 = vmatprep.subr.mxu0 0.0
    %2389 = vmatpush2.msra.mxu0 0.0
    %2390 = vmatprep.subr.mxu0 0.0
    %2391 = vmatpush2.msra.mxu0 0.0
    %2392 = vmatprep.subr.mxu0 0.0
    %2393 = vmatpush2.msra.mxu0 0.0
    %2394 = vmatprep.subr.mxu0 0.0
    %2395 = vmatpush2.msra.mxu0 0.0
    %2396 = vmatprep.subr.mxu0 0.0
    %2397 = vmatpush2.msra.mxu0 0.0
    %2398 = vmatprep.subr.mxu0 0.0
    %2399 = vmatpush2.msra.mxu0 0.0
    %2400 = vmatprep.subr.mxu0 0.0
    %2401 = vmatpush2.msra.mxu0 0.0
    %2402 = vmatprep.subr.mxu0 0.0
    %2403 = vmatpush2.msra.mxu0 0.0
    %2404 = vmatprep.subr.mxu0 0.0
    %2405 = vmatpush2.msra.mxu0 0.0
    %2406 = vmatprep.subr.mxu0 0.0
    %2407 = vmatpush2.msra.mxu0 0.0
    %2408 = vmatprep.subr.mxu0 0.0
    %2409 = vmatpush2.msra.mxu0 0.0
    %2410 = vmatprep.subr.mxu0 0.0
    %2411 = vmatpush2.msra.mxu0 0.0
    %2412 = vmatprep.subr.mxu0 0.0
    %2413 = vmatpush2.msra.mxu0 0.0
    %2414 = vmatprep.subr.mxu0 0.0
    %2415 = vmatpush2.msra.mxu0 0.0
    %2416 = vmatprep.subr.mxu0 0.0
    %2417 = vmatpush2.msra.mxu0 0.0
    %2418 = vmatprep.mubr.f32.mxu0 0.0
    %2419 = vmatmul.mubr.f32.gmra.mxu0 %v2352
    %v2420 = vpop.f32.mrf.mxu0
    %v2421 = vadd.f32 %v214, %v2420
    %v2422 = vpop.f32.mrf.mxu0
    %2423 = vdwg.mxu0
    %v2424 = vmul.f32 %v2421, 0.5
    %v2425 = vtanh.pop %v2424
    %v2426 = vmul.f32 %v2425, 0.5
    %v2427 = vadd.f32 %v2426, 0.5
    %v2428 = vtanh.pop %v2421
    %v2429 = vmul.f32 %v2427, %v2226
    %2431 = vrot.lane.b32.xlu0 %v2428, 64
    %v2432 = vpop.permute.xlu0 %2431
    %v2434 = vmul.f32 %v2427, %v2432
    %2436 = vrot.lane.b32.xlu0 %v2434, 32
    %v2437 = vpop.permute.xlu0 %2436
    %v2439 = vadd.f32 %v2429, %v2437
    %v2440 = vtanh.pop %v2439
    %2442 = vrot.lane.b32.xlu0 %v2440, 64
    %v2443 = vpop.permute.xlu0 %2442
    %v2445 = vmul.f32 %v2427, %v2443
    %s2446 = sld [smem:[#allocation2 + $0x16]]
    %s2447 = scalar_lea.vmem %s1, %s2446
    %v2448 = vld [vmem:[%s2447] sm:$0x1]
    %s2449 = sld [smem:[#allocation2 + $0x17]]
    %s2450 = scalar_lea.vmem %s1, %s2449
    %v2451 = vld [vmem:[%s2450] sm:$0x1]
    %v2453 = vrot.slane %v2451, 7
    %v2455 = vsel %vm86, %v2448, %v2453
    %2456 = vrot.lane.b32.xlu0 %v2341, 48
    %v2457 = vpop.permute.xlu0 %2456
    %v2459 = vsel %vm92, %v2455, %v2457
    %v2461 = vsel %vm100, %v2459, 0
    %2463 = vmatprep.subr.mxu0 0.0
    %2464 = vmatpush1.msra.mxu0 0.0
    %2465 = vmatprep.subr.mxu0 0.0
    %2466 = vmatpush1.msra.mxu0 0.0
    %2467 = vmatprep.subr.mxu0 0.0
    %2468 = vmatpush1.msra.mxu0 0.0
    %2469 = vmatprep.subr.mxu0 0.0
    %2470 = vmatpush1.msra.mxu0 0.0
    %2471 = vmatprep.subr.mxu0 0.0
    %2472 = vmatpush1.msra.mxu0 0.0
    %2473 = vmatprep.subr.mxu0 0.0
    %2474 = vmatpush1.msra.mxu0 0.0
    %2475 = vmatprep.subr.mxu0 0.0
    %2476 = vmatpush1.msra.mxu0 0.0
    %2477 = vmatprep.subr.mxu0 0.0
    %2478 = vmatpush1.msra.mxu0 0.0
    %2479 = vmatprep.subr.mxu0 0.0
    %2480 = vmatpush1.msra.mxu0 0.0
    %2481 = vmatprep.subr.mxu0 0.0
    %2482 = vmatpush1.msra.mxu0 0.0
    %2483 = vmatprep.subr.mxu0 0.0
    %2484 = vmatpush1.msra.mxu0 %v60
    %2485 = vmatprep.subr.mxu0 0.0
    %2486 = vmatpush1.msra.mxu0 %v59
    %2487 = vmatprep.subr.mxu0 0.0
    %2488 = vmatpush1.msra.mxu0 %v58
    %2489 = vmatprep.subr.mxu0 0.0
    %2490 = vmatpush1.msra.mxu0 %v57
    %2491 = vmatprep.subr.mxu0 0.0
    %2492 = vmatpush1.msra.mxu0 %v56
    %2493 = vmatprep.subr.mxu0 0.0
    %2494 = vmatpush1.msra.mxu0 %v55
    %2495 = vmatprep.subr.mxu0 0.0
    %2496 = vmatpush2.msra.mxu0 0.0
    %2497 = vmatprep.subr.mxu0 0.0
    %2498 = vmatpush2.msra.mxu0 0.0
    %2499 = vmatprep.subr.mxu0 0.0
    %2500 = vmatpush2.msra.mxu0 0.0
    %2501 = vmatprep.subr.mxu0 0.0
    %2502 = vmatpush2.msra.mxu0 0.0
    %2503 = vmatprep.subr.mxu0 0.0
    %2504 = vmatpush2.msra.mxu0 0.0
    %2505 = vmatprep.subr.mxu0 0.0
    %2506 = vmatpush2.msra.mxu0 0.0
    %2507 = vmatprep.subr.mxu0 0.0
    %2508 = vmatpush2.msra.mxu0 0.0
    %2509 = vmatprep.subr.mxu0 0.0
    %2510 = vmatpush2.msra.mxu0 0.0
    %2511 = vmatprep.subr.mxu0 0.0
    %2512 = vmatpush2.msra.mxu0 0.0
    %2513 = vmatprep.subr.mxu0 0.0
    %2514 = vmatpush2.msra.mxu0 0.0
    %2515 = vmatprep.subr.mxu0 0.0
    %2516 = vmatpush2.msra.mxu0 0.0
    %2517 = vmatprep.subr.mxu0 0.0
    %2518 = vmatpush2.msra.mxu0 0.0
    %2519 = vmatprep.subr.mxu0 0.0
    %2520 = vmatpush2.msra.mxu0 0.0
    %2521 = vmatprep.subr.mxu0 0.0
    %2522 = vmatpush2.msra.mxu0 0.0
    %2523 = vmatprep.subr.mxu0 0.0
    %2524 = vmatpush2.msra.mxu0 0.0
    %2525 = vmatprep.subr.mxu0 0.0
    %2526 = vmatpush2.msra.mxu0 0.0
    %2527 = vmatprep.mubr.f32.mxu0 0.0
    %2528 = vmatmul.mubr.f32.gmra.mxu0 %v2461
    %v2529 = vpop.f32.mrf.mxu0
    %v2530 = vadd.f32 %v98, %v2529
    %v2531 = vpop.f32.mrf.mxu0
    %2532 = vdwg.mxu0
    %v2533 = vmul.f32 %v2530, 0.5
    %v2534 = vtanh.pop %v2533
    %v2535 = vmul.f32 %v2534, 0.5
    %v2536 = vadd.f32 %v2535, 0.5
    %v2537 = vtanh.pop %v2530
    %v2538 = vmul.f32 %v2536, %v2335
    %2540 = vrot.lane.b32.xlu0 %v2537, 64
    %v2541 = vpop.permute.xlu0 %2540
    %v2543 = vmul.f32 %v2536, %v2541
    %2545 = vrot.lane.b32.xlu0 %v2543, 32
    %v2546 = vpop.permute.xlu0 %2545
    %v2548 = vadd.f32 %v2538, %v2546
    %v2549 = vtanh.pop %v2548
    %2551 = vrot.lane.b32.xlu0 %v2549, 64
    %v2552 = vpop.permute.xlu0 %2551
    %v2554 = vmul.f32 %v2536, %v2552
    %2556 = vrot.lane.b32.xlu0 %v2554, 32
    %v2557 = vpop.permute.xlu0 %2556
    %2560 = vrot.lane.b32.xlu0 %v2445, 64
    %v2561 = vpop.permute.xlu0 %2560
    %v2563 = vsel %vm208, %v2557, %v2561
    %v2565 = vsel %vm216, %v2563, 0
    %2567 = vmatprep.subr.mxu0 0.0
    %2568 = vmatpush1.msra.mxu0 0.0
    %2569 = vmatprep.subr.mxu0 0.0
    %2570 = vmatpush1.msra.mxu0 0.0
    %2571 = vmatprep.subr.mxu0 0.0
    %2572 = vmatpush1.msra.mxu0 0.0
    %2573 = vmatprep.subr.mxu0 0.0
    %2574 = vmatpush1.msra.mxu0 0.0
    %2575 = vmatprep.subr.mxu0 0.0
    %2576 = vmatpush1.msra.mxu0 0.0
    %2577 = vmatprep.subr.mxu0 0.0
    %2578 = vmatpush1.msra.mxu0 0.0
    %2579 = vmatprep.subr.mxu0 0.0
    %2580 = vmatpush1.msra.mxu0 0.0
    %2581 = vmatprep.subr.mxu0 0.0
    %2582 = vmatpush1.msra.mxu0 0.0
    %2583 = vmatprep.subr.mxu0 0.0
    %2584 = vmatpush1.msra.mxu0 %v69
    %2585 = vmatprep.subr.mxu0 0.0
    %2586 = vmatpush1.msra.mxu0 %v68
    %2587 = vmatprep.subr.mxu0 0.0
    %2588 = vmatpush1.msra.mxu0 %v67
    %2589 = vmatprep.subr.mxu0 0.0
    %2590 = vmatpush1.msra.mxu0 %v66
    %2591 = vmatprep.subr.mxu0 0.0
    %2592 = vmatpush1.msra.mxu0 %v65
    %2593 = vmatprep.subr.mxu0 0.0
    %2594 = vmatpush1.msra.mxu0 %v64
    %2595 = vmatprep.subr.mxu0 0.0
    %2596 = vmatpush1.msra.mxu0 %v63
    %2597 = vmatprep.subr.mxu0 0.0
    %2598 = vmatpush1.msra.mxu0 %v62
    %2599 = vmatprep.subr.mxu0 0.0
    %2600 = vmatpush2.msra.mxu0 0.0
    %2601 = vmatprep.subr.mxu0 0.0
    %2602 = vmatpush2.msra.mxu0 0.0
    %2603 = vmatprep.subr.mxu0 0.0
    %2604 = vmatpush2.msra.mxu0 0.0
    %2605 = vmatprep.subr.mxu0 0.0
    %2606 = vmatpush2.msra.mxu0 0.0
    %2607 = vmatprep.subr.mxu0 0.0
    %2608 = vmatpush2.msra.mxu0 0.0
    %2609 = vmatprep.subr.mxu0 0.0
    %2610 = vmatpush2.msra.mxu0 0.0
    %2611 = vmatprep.subr.mxu0 0.0
    %2612 = vmatpush2.msra.mxu0 0.0
    %2613 = vmatprep.subr.mxu0 0.0
    %2614 = vmatpush2.msra.mxu0 0.0
    %2615 = vmatprep.subr.mxu0 0.0
    %2616 = vmatpush2.msra.mxu0 0.0
    %2617 = vmatprep.subr.mxu0 0.0
    %2618 = vmatpush2.msra.mxu0 0.0
    %2619 = vmatprep.subr.mxu0 0.0
    %2620 = vmatpush2.msra.mxu0 0.0
    %2621 = vmatprep.subr.mxu0 0.0
    %2622 = vmatpush2.msra.mxu0 0.0
    %2623 = vmatprep.subr.mxu0 0.0
    %2624 = vmatpush2.msra.mxu0 0.0
    %2625 = vmatprep.subr.mxu0 0.0
    %2626 = vmatpush2.msra.mxu0 0.0
    %2627 = vmatprep.subr.mxu0 0.0
    %2628 = vmatpush2.msra.mxu0 0.0
    %2629 = vmatprep.subr.mxu0 0.0
    %2630 = vmatpush2.msra.mxu0 0.0
    %2631 = vmatprep.mubr.f32.mxu0 0.0
    %2632 = vmatmul.mubr.f32.gmra.mxu0 %v2565
    %v2633 = vpop.f32.mrf.mxu0
    %v2634 = vadd.f32 %v214, %v2633
    %v2635 = vpop.f32.mrf.mxu0
    %2636 = vdwg.mxu0
    %v2637 = vmul.f32 %v2634, 0.5
    %v2638 = vtanh.pop %v2637
    %v2639 = vmul.f32 %v2638, 0.5
    %v2640 = vadd.f32 %v2639, 0.5
    %v2641 = vtanh.pop %v2634
    %v2642 = vmul.f32 %v2640, %v2439
    %2644 = vrot.lane.b32.xlu0 %v2641, 64
    %v2645 = vpop.permute.xlu0 %2644
    %v2647 = vmul.f32 %v2640, %v2645
    %2649 = vrot.lane.b32.xlu0 %v2647, 32
    %v2650 = vpop.permute.xlu0 %2649
    %v2652 = vadd.f32 %v2642, %v2650
    %v2653 = vtanh.pop %v2652
    %2655 = vrot.lane.b32.xlu0 %v2653, 64
    %v2656 = vpop.permute.xlu0 %2655
    %v2658 = vmul.f32 %v2640, %v2656
    %s2659 = sld [smem:[#allocation2 + $0x18]]
    %s2660 = scalar_lea.vmem %s1, %s2659
    %v2661 = vld [vmem:[%s2660] sm:$0x1]
    %s2662 = sld [smem:[#allocation2 + $0x19]]
    %s2663 = scalar_lea.vmem %s1, %s2662
    %v2664 = vld [vmem:[%s2663] sm:$0x1]
    %v2666 = vrot.slane %v2664, 7
    %v2668 = vsel %vm86, %v2661, %v2666
    %2669 = vrot.lane.b32.xlu0 %v2554, 48
    %v2670 = vpop.permute.xlu0 %2669
    %v2672 = vsel %vm92, %v2668, %v2670
    %v2674 = vsel %vm100, %v2672, 0
    %2676 = vmatprep.subr.mxu0 0.0
    %2677 = vmatpush1.msra.mxu0 0.0
    %2678 = vmatprep.subr.mxu0 0.0
    %2679 = vmatpush1.msra.mxu0 0.0
    %2680 = vmatprep.subr.mxu0 0.0
    %2681 = vmatpush1.msra.mxu0 0.0
    %2682 = vmatprep.subr.mxu0 0.0
    %2683 = vmatpush1.msra.mxu0 0.0
    %2684 = vmatprep.subr.mxu0 0.0
    %2685 = vmatpush1.msra.mxu0 0.0
    %2686 = vmatprep.subr.mxu0 0.0
    %2687 = vmatpush1.msra.mxu0 0.0
    %2688 = vmatprep.subr.mxu0 0.0
    %2689 = vmatpush1.msra.mxu0 0.0
    %2690 = vmatprep.subr.mxu0 0.0
    %2691 = vmatpush1.msra.mxu0 0.0
    %2692 = vmatprep.subr.mxu0 0.0
    %2693 = vmatpush1.msra.mxu0 0.0
    %2694 = vmatprep.subr.mxu0 0.0
    %2695 = vmatpush1.msra.mxu0 0.0
    %2696 = vmatprep.subr.mxu0 0.0
    %2697 = vmatpush1.msra.mxu0 %v60
    %2698 = vmatprep.subr.mxu0 0.0
    %2699 = vmatpush1.msra.mxu0 %v59
    %2700 = vmatprep.subr.mxu0 0.0
    %2701 = vmatpush1.msra.mxu0 %v58
    %2702 = vmatprep.subr.mxu0 0.0
    %2703 = vmatpush1.msra.mxu0 %v57
    %2704 = vmatprep.subr.mxu0 0.0
    %2705 = vmatpush1.msra.mxu0 %v56
    %2706 = vmatprep.subr.mxu0 0.0
    %2707 = vmatpush1.msra.mxu0 %v55
    %2708 = vmatprep.subr.mxu0 0.0
    %2709 = vmatpush2.msra.mxu0 0.0
    %2710 = vmatprep.subr.mxu0 0.0
    %2711 = vmatpush2.msra.mxu0 0.0
    %2712 = vmatprep.subr.mxu0 0.0
    %2713 = vmatpush2.msra.mxu0 0.0
    %2714 = vmatprep.subr.mxu0 0.0
    %2715 = vmatpush2.msra.mxu0 0.0
    %2716 = vmatprep.subr.mxu0 0.0
    %2717 = vmatpush2.msra.mxu0 0.0
    %2718 = vmatprep.subr.mxu0 0.0
    %2719 = vmatpush2.msra.mxu0 0.0
    %2720 = vmatprep.subr.mxu0 0.0
    %2721 = vmatpush2.msra.mxu0 0.0
    %2722 = vmatprep.subr.mxu0 0.0
    %2723 = vmatpush2.msra.mxu0 0.0
    %2724 = vmatprep.subr.mxu0 0.0
    %2725 = vmatpush2.msra.mxu0 0.0
    %2726 = vmatprep.subr.mxu0 0.0
    %2727 = vmatpush2.msra.mxu0 0.0
    %2728 = vmatprep.subr.mxu0 0.0
    %2729 = vmatpush2.msra.mxu0 0.0
    %2730 = vmatprep.subr.mxu0 0.0
    %2731 = vmatpush2.msra.mxu0 0.0
    %2732 = vmatprep.subr.mxu0 0.0
    %2733 = vmatpush2.msra.mxu0 0.0
    %2734 = vmatprep.subr.mxu0 0.0
    %2735 = vmatpush2.msra.mxu0 0.0
    %2736 = vmatprep.subr.mxu0 0.0
    %2737 = vmatpush2.msra.mxu0 0.0
    %2738 = vmatprep.subr.mxu0 0.0
    %2739 = vmatpush2.msra.mxu0 0.0
    %2740 = vmatprep.mubr.f32.mxu0 0.0
    %2741 = vmatmul.mubr.f32.gmra.mxu0 %v2674
    %v2742 = vpop.f32.mrf.mxu0
    %v2743 = vadd.f32 %v98, %v2742
    %v2744 = vpop.f32.mrf.mxu0
    %2745 = vdwg.mxu0
    %v2746 = vmul.f32 %v2743, 0.5
    %v2747 = vtanh.pop %v2746
    %v2748 = vmul.f32 %v2747, 0.5
    %v2749 = vadd.f32 %v2748, 0.5
    %v2750 = vtanh.pop %v2743
    %v2751 = vmul.f32 %v2749, %v2548
    %2753 = vrot.lane.b32.xlu0 %v2750, 64
    %v2754 = vpop.permute.xlu0 %2753
    %v2756 = vmul.f32 %v2749, %v2754
    %2758 = vrot.lane.b32.xlu0 %v2756, 32
    %v2759 = vpop.permute.xlu0 %2758
    %v2761 = vadd.f32 %v2751, %v2759
    %v2762 = vtanh.pop %v2761
    %2764 = vrot.lane.b32.xlu0 %v2762, 64
    %v2765 = vpop.permute.xlu0 %2764
    %v2767 = vmul.f32 %v2749, %v2765
    %2769 = vrot.lane.b32.xlu0 %v2767, 32
    %v2770 = vpop.permute.xlu0 %2769
    %2773 = vrot.lane.b32.xlu0 %v2658, 64
    %v2774 = vpop.permute.xlu0 %2773
    %v2776 = vsel %vm208, %v2770, %v2774
    %v2778 = vsel %vm216, %v2776, 0
    %2780 = vmatprep.subr.mxu0 0.0
    %2781 = vmatpush1.msra.mxu0 0.0
    %2782 = vmatprep.subr.mxu0 0.0
    %2783 = vmatpush1.msra.mxu0 0.0
    %2784 = vmatprep.subr.mxu0 0.0
    %2785 = vmatpush1.msra.mxu0 0.0
    %2786 = vmatprep.subr.mxu0 0.0
    %2787 = vmatpush1.msra.mxu0 0.0
    %2788 = vmatprep.subr.mxu0 0.0
    %2789 = vmatpush1.msra.mxu0 0.0
    %2790 = vmatprep.subr.mxu0 0.0
    %2791 = vmatpush1.msra.mxu0 0.0
    %2792 = vmatprep.subr.mxu0 0.0
    %2793 = vmatpush1.msra.mxu0 0.0
    %2794 = vmatprep.subr.mxu0 0.0
    %2795 = vmatpush1.msra.mxu0 0.0
    %2796 = vmatprep.subr.mxu0 0.0
    %2797 = vmatpush1.msra.mxu0 %v69
    %2798 = vmatprep.subr.mxu0 0.0
    %2799 = vmatpush1.msra.mxu0 %v68
    %2800 = vmatprep.subr.mxu0 0.0
    %2801 = vmatpush1.msra.mxu0 %v67
    %2802 = vmatprep.subr.mxu0 0.0
    %2803 = vmatpush1.msra.mxu0 %v66
    %2804 = vmatprep.subr.mxu0 0.0
    %2805 = vmatpush1.msra.mxu0 %v65
    %2806 = vmatprep.subr.mxu0 0.0
    %2807 = vmatpush1.msra.mxu0 %v64
    %2808 = vmatprep.subr.mxu0 0.0
    %2809 = vmatpush1.msra.mxu0 %v63
    %2810 = vmatprep.subr.mxu0 0.0
    %2811 = vmatpush1.msra.mxu0 %v62
    %2812 = vmatprep.subr.mxu0 0.0
    %2813 = vmatpush2.msra.mxu0 0.0
    %2814 = vmatprep.subr.mxu0 0.0
    %2815 = vmatpush2.msra.mxu0 0.0
    %2816 = vmatprep.subr.mxu0 0.0
    %2817 = vmatpush2.msra.mxu0 0.0
    %2818 = vmatprep.subr.mxu0 0.0
    %2819 = vmatpush2.msra.mxu0 0.0
    %2820 = vmatprep.subr.mxu0 0.0
    %2821 = vmatpush2.msra.mxu0 0.0
    %2822 = vmatprep.subr.mxu0 0.0
    %2823 = vmatpush2.msra.mxu0 0.0
    %2824 = vmatprep.subr.mxu0 0.0
    %2825 = vmatpush2.msra.mxu0 0.0
    %2826 = vmatprep.subr.mxu0 0.0
    %2827 = vmatpush2.msra.mxu0 0.0
    %2828 = vmatprep.subr.mxu0 0.0
    %2829 = vmatpush2.msra.mxu0 0.0
    %2830 = vmatprep.subr.mxu0 0.0
    %2831 = vmatpush2.msra.mxu0 0.0
    %2832 = vmatprep.subr.mxu0 0.0
    %2833 = vmatpush2.msra.mxu0 0.0
    %2834 = vmatprep.subr.mxu0 0.0
    %2835 = vmatpush2.msra.mxu0 0.0
    %2836 = vmatprep.subr.mxu0 0.0
    %2837 = vmatpush2.msra.mxu0 0.0
    %2838 = vmatprep.subr.mxu0 0.0
    %2839 = vmatpush2.msra.mxu0 0.0
    %2840 = vmatprep.subr.mxu0 0.0
    %2841 = vmatpush2.msra.mxu0 0.0
    %2842 = vmatprep.subr.mxu0 0.0
    %2843 = vmatpush2.msra.mxu0 0.0
    %2844 = vmatprep.mubr.f32.mxu0 0.0
    %2845 = vmatmul.mubr.f32.gmra.mxu0 %v2778
    %v2846 = vpop.f32.mrf.mxu0
    %v2847 = vadd.f32 %v214, %v2846
    %v2848 = vpop.f32.mrf.mxu0
    %2849 = vdwg.mxu0
    %v2850 = vmul.f32 %v2847, 0.5
    %v2851 = vtanh.pop %v2850
    %v2852 = vmul.f32 %v2851, 0.5
    %v2853 = vadd.f32 %v2852, 0.5
    %v2854 = vtanh.pop %v2847
    %v2855 = vmul.f32 %v2853, %v2652
    %2857 = vrot.lane.b32.xlu0 %v2854, 64
    %v2858 = vpop.permute.xlu0 %2857
    %v2860 = vmul.f32 %v2853, %v2858
    %2862 = vrot.lane.b32.xlu0 %v2860, 32
    %v2863 = vpop.permute.xlu0 %2862
    %v2865 = vadd.f32 %v2855, %v2863
    %v2866 = vtanh.pop %v2865
    %2868 = vrot.lane.b32.xlu0 %v2866, 64
    %v2869 = vpop.permute.xlu0 %2868
    %v2871 = vmul.f32 %v2853, %v2869
    %s2872 = sld [smem:[#allocation2 + $0x1a]]
    %s2873 = scalar_lea.vmem %s1, %s2872
    %v2874 = vld [vmem:[%s2873] sm:$0x1]
    %s2875 = sld [smem:[#allocation2 + $0x1b]]
    %s2876 = scalar_lea.vmem %s1, %s2875
    %v2877 = vld [vmem:[%s2876] sm:$0x1]
    %v2879 = vrot.slane %v2877, 7
    %v2881 = vsel %vm86, %v2874, %v2879
    %2882 = vrot.lane.b32.xlu0 %v2767, 48
    %v2883 = vpop.permute.xlu0 %2882
    %v2885 = vsel %vm92, %v2881, %v2883
    %v2887 = vsel %vm100, %v2885, 0
    %2889 = vmatprep.subr.mxu0 0.0
    %2890 = vmatpush1.msra.mxu0 0.0
    %2891 = vmatprep.subr.mxu0 0.0
    %2892 = vmatpush1.msra.mxu0 0.0
    %2893 = vmatprep.subr.mxu0 0.0
    %2894 = vmatpush1.msra.mxu0 0.0
    %2895 = vmatprep.subr.mxu0 0.0
    %2896 = vmatpush1.msra.mxu0 0.0
    %2897 = vmatprep.subr.mxu0 0.0
    %2898 = vmatpush1.msra.mxu0 0.0
    %2899 = vmatprep.subr.mxu0 0.0
    %2900 = vmatpush1.msra.mxu0 0.0
    %2901 = vmatprep.subr.mxu0 0.0
    %2902 = vmatpush1.msra.mxu0 0.0
    %2903 = vmatprep.subr.mxu0 0.0
    %2904 = vmatpush1.msra.mxu0 0.0
    %2905 = vmatprep.subr.mxu0 0.0
    %2906 = vmatpush1.msra.mxu0 0.0
    %2907 = vmatprep.subr.mxu0 0.0
    %2908 = vmatpush1.msra.mxu0 0.0
    %2909 = vmatprep.subr.mxu0 0.0
    %2910 = vmatpush1.msra.mxu0 %v60
    %2911 = vmatprep.subr.mxu0 0.0
    %2912 = vmatpush1.msra.mxu0 %v59
    %2913 = vmatprep.subr.mxu0 0.0
    %2914 = vmatpush1.msra.mxu0 %v58
    %2915 = vmatprep.subr.mxu0 0.0
    %2916 = vmatpush1.msra.mxu0 %v57
    %2917 = vmatprep.subr.mxu0 0.0
    %2918 = vmatpush1.msra.mxu0 %v56
    %2919 = vmatprep.subr.mxu0 0.0
    %2920 = vmatpush1.msra.mxu0 %v55
    %2921 = vmatprep.subr.mxu0 0.0
    %2922 = vmatpush2.msra.mxu0 0.0
    %2923 = vmatprep.subr.mxu0 0.0
    %2924 = vmatpush2.msra.mxu0 0.0
    %2925 = vmatprep.subr.mxu0 0.0
    %2926 = vmatpush2.msra.mxu0 0.0
    %2927 = vmatprep.subr.mxu0 0.0
    %2928 = vmatpush2.msra.mxu0 0.0
    %2929 = vmatprep.subr.mxu0 0.0
    %2930 = vmatpush2.msra.mxu0 0.0
    %2931 = vmatprep.subr.mxu0 0.0
    %2932 = vmatpush2.msra.mxu0 0.0
    %2933 = vmatprep.subr.mxu0 0.0
    %2934 = vmatpush2.msra.mxu0 0.0
    %2935 = vmatprep.subr.mxu0 0.0
    %2936 = vmatpush2.msra.mxu0 0.0
    %2937 = vmatprep.subr.mxu0 0.0
    %2938 = vmatpush2.msra.mxu0 0.0
    %2939 = vmatprep.subr.mxu0 0.0
    %2940 = vmatpush2.msra.mxu0 0.0
    %2941 = vmatprep.subr.mxu0 0.0
    %2942 = vmatpush2.msra.mxu0 0.0
    %2943 = vmatprep.subr.mxu0 0.0
    %2944 = vmatpush2.msra.mxu0 0.0
    %2945 = vmatprep.subr.mxu0 0.0
    %2946 = vmatpush2.msra.mxu0 0.0
    %2947 = vmatprep.subr.mxu0 0.0
    %2948 = vmatpush2.msra.mxu0 0.0
    %2949 = vmatprep.subr.mxu0 0.0
    %2950 = vmatpush2.msra.mxu0 0.0
    %2951 = vmatprep.subr.mxu0 0.0
    %2952 = vmatpush2.msra.mxu0 0.0
    %2953 = vmatprep.mubr.f32.mxu0 0.0
    %2954 = vmatmul.mubr.f32.gmra.mxu0 %v2887
    %v2955 = vpop.f32.mrf.mxu0
    %v2956 = vadd.f32 %v98, %v2955
    %v2957 = vpop.f32.mrf.mxu0
    %2958 = vdwg.mxu0
    %v2959 = vmul.f32 %v2956, 0.5
    %v2960 = vtanh.pop %v2959
    %v2961 = vmul.f32 %v2960, 0.5
    %v2962 = vadd.f32 %v2961, 0.5
    %v2963 = vtanh.pop %v2956
    %v2964 = vmul.f32 %v2962, %v2761
    %2966 = vrot.lane.b32.xlu0 %v2963, 64
    %v2967 = vpop.permute.xlu0 %2966
    %v2969 = vmul.f32 %v2962, %v2967
    %2971 = vrot.lane.b32.xlu0 %v2969, 32
    %v2972 = vpop.permute.xlu0 %2971
    %v2974 = vadd.f32 %v2964, %v2972
    %v2975 = vtanh.pop %v2974
    %2977 = vrot.lane.b32.xlu0 %v2975, 64
    %v2978 = vpop.permute.xlu0 %2977
    %v2980 = vmul.f32 %v2962, %v2978
    %2982 = vrot.lane.b32.xlu0 %v2980, 32
    %v2983 = vpop.permute.xlu0 %2982
    %2986 = vrot.lane.b32.xlu0 %v2871, 64
    %v2987 = vpop.permute.xlu0 %2986
    %v2989 = vsel %vm208, %v2983, %v2987
    %v2991 = vsel %vm216, %v2989, 0
    %2993 = vmatprep.subr.mxu0 0.0
    %2994 = vmatpush1.msra.mxu0 0.0
    %2995 = vmatprep.subr.mxu0 0.0
    %2996 = vmatpush1.msra.mxu0 0.0
    %2997 = vmatprep.subr.mxu0 0.0
    %2998 = vmatpush1.msra.mxu0 0.0
    %2999 = vmatprep.subr.mxu0 0.0
    %3000 = vmatpush1.msra.mxu0 0.0
    %3001 = vmatprep.subr.mxu0 0.0
    %3002 = vmatpush1.msra.mxu0 0.0
    %3003 = vmatprep.subr.mxu0 0.0
    %3004 = vmatpush1.msra.mxu0 0.0
    %3005 = vmatprep.subr.mxu0 0.0
    %3006 = vmatpush1.msra.mxu0 0.0
    %3007 = vmatprep.subr.mxu0 0.0
    %3008 = vmatpush1.msra.mxu0 0.0
    %3009 = vmatprep.subr.mxu0 0.0
    %3010 = vmatpush1.msra.mxu0 %v69
    %3011 = vmatprep.subr.mxu0 0.0
    %3012 = vmatpush1.msra.mxu0 %v68
    %3013 = vmatprep.subr.mxu0 0.0
    %3014 = vmatpush1.msra.mxu0 %v67
    %3015 = vmatprep.subr.mxu0 0.0
    %3016 = vmatpush1.msra.mxu0 %v66
    %3017 = vmatprep.subr.mxu0 0.0
    %3018 = vmatpush1.msra.mxu0 %v65
    %3019 = vmatprep.subr.mxu0 0.0
    %3020 = vmatpush1.msra.mxu0 %v64
    %3021 = vmatprep.subr.mxu0 0.0
    %3022 = vmatpush1.msra.mxu0 %v63
    %3023 = vmatprep.subr.mxu0 0.0
    %3024 = vmatpush1.msra.mxu0 %v62
    %3025 = vmatprep.subr.mxu0 0.0
    %3026 = vmatpush2.msra.mxu0 0.0
    %3027 = vmatprep.subr.mxu0 0.0
    %3028 = vmatpush2.msra.mxu0 0.0
    %3029 = vmatprep.subr.mxu0 0.0
    %3030 = vmatpush2.msra.mxu0 0.0
    %3031 = vmatprep.subr.mxu0 0.0
    %3032 = vmatpush2.msra.mxu0 0.0
    %3033 = vmatprep.subr.mxu0 0.0
    %3034 = vmatpush2.msra.mxu0 0.0
    %3035 = vmatprep.subr.mxu0 0.0
    %3036 = vmatpush2.msra.mxu0 0.0
    %3037 = vmatprep.subr.mxu0 0.0
    %3038 = vmatpush2.msra.mxu0 0.0
    %3039 = vmatprep.subr.mxu0 0.0
    %3040 = vmatpush2.msra.mxu0 0.0
    %3041 = vmatprep.subr.mxu0 0.0
    %3042 = vmatpush2.msra.mxu0 0.0
    %3043 = vmatprep.subr.mxu0 0.0
    %3044 = vmatpush2.msra.mxu0 0.0
    %3045 = vmatprep.subr.mxu0 0.0
    %3046 = vmatpush2.msra.mxu0 0.0
    %3047 = vmatprep.subr.mxu0 0.0
    %3048 = vmatpush2.msra.mxu0 0.0
    %3049 = vmatprep.subr.mxu0 0.0
    %3050 = vmatpush2.msra.mxu0 0.0
    %3051 = vmatprep.subr.mxu0 0.0
    %3052 = vmatpush2.msra.mxu0 0.0
    %3053 = vmatprep.subr.mxu0 0.0
    %3054 = vmatpush2.msra.mxu0 0.0
    %3055 = vmatprep.subr.mxu0 0.0
    %3056 = vmatpush2.msra.mxu0 0.0
    %3057 = vmatprep.mubr.f32.mxu0 0.0
    %3058 = vmatmul.mubr.f32.gmra.mxu0 %v2991
    %v3059 = vpop.f32.mrf.mxu0
    %v3060 = vadd.f32 %v214, %v3059
    %v3061 = vpop.f32.mrf.mxu0
    %3062 = vdwg.mxu0
    %v3063 = vmul.f32 %v3060, 0.5
    %v3064 = vtanh.pop %v3063
    %v3065 = vmul.f32 %v3064, 0.5
    %v3066 = vadd.f32 %v3065, 0.5
    %v3067 = vtanh.pop %v3060
    %v3068 = vmul.f32 %v3066, %v2865
    %3070 = vrot.lane.b32.xlu0 %v3067, 64
    %v3071 = vpop.permute.xlu0 %3070
    %v3073 = vmul.f32 %v3066, %v3071
    %3075 = vrot.lane.b32.xlu0 %v3073, 32
    %v3076 = vpop.permute.xlu0 %3075
    %v3078 = vadd.f32 %v3068, %v3076
    %v3079 = vtanh.pop %v3078
    %3081 = vrot.lane.b32.xlu0 %v3079, 64
    %v3082 = vpop.permute.xlu0 %3081
    %v3084 = vmul.f32 %v3066, %v3082
    %s3085 = sld [smem:[#allocation2 + $0x1c]]
    %s3086 = scalar_lea.vmem %s1, %s3085
    %v3087 = vld [vmem:[%s3086] sm:$0x1]
    %s3088 = sld [smem:[#allocation2 + $0x1d]]
    %s3089 = scalar_lea.vmem %s1, %s3088
    %v3090 = vld [vmem:[%s3089] sm:$0x1]
    %v3092 = vrot.slane %v3090, 7
    %v3094 = vsel %vm86, %v3087, %v3092
    %3095 = vrot.lane.b32.xlu0 %v2980, 48
    %v3096 = vpop.permute.xlu0 %3095
    %v3098 = vsel %vm92, %v3094, %v3096
    %v3100 = vsel %vm100, %v3098, 0
    %3102 = vmatprep.subr.mxu0 0.0
    %3103 = vmatpush1.msra.mxu0 0.0
    %3104 = vmatprep.subr.mxu0 0.0
    %3105 = vmatpush1.msra.mxu0 0.0
    %3106 = vmatprep.subr.mxu0 0.0
    %3107 = vmatpush1.msra.mxu0 0.0
    %3108 = vmatprep.subr.mxu0 0.0
    %3109 = vmatpush1.msra.mxu0 0.0
    %3110 = vmatprep.subr.mxu0 0.0
    %3111 = vmatpush1.msra.mxu0 0.0
    %3112 = vmatprep.subr.mxu0 0.0
    %3113 = vmatpush1.msra.mxu0 0.0
    %3114 = vmatprep.subr.mxu0 0.0
    %3115 = vmatpush1.msra.mxu0 0.0
    %3116 = vmatprep.subr.mxu0 0.0
    %3117 = vmatpush1.msra.mxu0 0.0
    %3118 = vmatprep.subr.mxu0 0.0
    %3119 = vmatpush1.msra.mxu0 0.0
    %3120 = vmatprep.subr.mxu0 0.0
    %3121 = vmatpush1.msra.mxu0 0.0
    %3122 = vmatprep.subr.mxu0 0.0
    %3123 = vmatpush1.msra.mxu0 %v60
    %3124 = vmatprep.subr.mxu0 0.0
    %3125 = vmatpush1.msra.mxu0 %v59
    %3126 = vmatprep.subr.mxu0 0.0
    %3127 = vmatpush1.msra.mxu0 %v58
    %3128 = vmatprep.subr.mxu0 0.0
    %3129 = vmatpush1.msra.mxu0 %v57
    %3130 = vmatprep.subr.mxu0 0.0
    %3131 = vmatpush1.msra.mxu0 %v56
    %3132 = vmatprep.subr.mxu0 0.0
    %3133 = vmatpush1.msra.mxu0 %v55
    %3134 = vmatprep.subr.mxu0 0.0
    %3135 = vmatpush2.msra.mxu0 0.0
    %3136 = vmatprep.subr.mxu0 0.0
    %3137 = vmatpush2.msra.mxu0 0.0
    %3138 = vmatprep.subr.mxu0 0.0
    %3139 = vmatpush2.msra.mxu0 0.0
    %3140 = vmatprep.subr.mxu0 0.0
    %3141 = vmatpush2.msra.mxu0 0.0
    %3142 = vmatprep.subr.mxu0 0.0
    %3143 = vmatpush2.msra.mxu0 0.0
    %3144 = vmatprep.subr.mxu0 0.0
    %3145 = vmatpush2.msra.mxu0 0.0
    %3146 = vmatprep.subr.mxu0 0.0
    %3147 = vmatpush2.msra.mxu0 0.0
    %3148 = vmatprep.subr.mxu0 0.0
    %3149 = vmatpush2.msra.mxu0 0.0
    %3150 = vmatprep.subr.mxu0 0.0
    %3151 = vmatpush2.msra.mxu0 0.0
    %3152 = vmatprep.subr.mxu0 0.0
    %3153 = vmatpush2.msra.mxu0 0.0
    %3154 = vmatprep.subr.mxu0 0.0
    %3155 = vmatpush2.msra.mxu0 0.0
    %3156 = vmatprep.subr.mxu0 0.0
    %3157 = vmatpush2.msra.mxu0 0.0
    %3158 = vmatprep.subr.mxu0 0.0
    %3159 = vmatpush2.msra.mxu0 0.0
    %3160 = vmatprep.subr.mxu0 0.0
    %3161 = vmatpush2.msra.mxu0 0.0
    %3162 = vmatprep.subr.mxu0 0.0
    %3163 = vmatpush2.msra.mxu0 0.0
    %3164 = vmatprep.subr.mxu0 0.0
    %3165 = vmatpush2.msra.mxu0 0.0
    %3166 = vmatprep.mubr.f32.mxu0 0.0
    %3167 = vmatmul.mubr.f32.gmra.mxu0 %v3100
    %v3168 = vpop.f32.mrf.mxu0
    %v3169 = vadd.f32 %v98, %v3168
    %v3170 = vpop.f32.mrf.mxu0
    %3171 = vdwg.mxu0
    %v3172 = vmul.f32 %v3169, 0.5
    %v3173 = vtanh.pop %v3172
    %v3174 = vmul.f32 %v3173, 0.5
    %v3175 = vadd.f32 %v3174, 0.5
    %v3176 = vtanh.pop %v3169
    %v3177 = vmul.f32 %v3175, %v2974
    %3179 = vrot.lane.b32.xlu0 %v3176, 64
    %v3180 = vpop.permute.xlu0 %3179
    %v3182 = vmul.f32 %v3175, %v3180
    %3184 = vrot.lane.b32.xlu0 %v3182, 32
    %v3185 = vpop.permute.xlu0 %3184
    %v3187 = vadd.f32 %v3177, %v3185
    %v3188 = vtanh.pop %v3187
    %3190 = vrot.lane.b32.xlu0 %v3188, 64
    %v3191 = vpop.permute.xlu0 %3190
    %v3193 = vmul.f32 %v3175, %v3191
    %3195 = vrot.lane.b32.xlu0 %v3193, 32
    %v3196 = vpop.permute.xlu0 %3195
    %3199 = vrot.lane.b32.xlu0 %v3084, 64
    %v3200 = vpop.permute.xlu0 %3199
    %v3202 = vsel %vm208, %v3196, %v3200
    %v3204 = vsel %vm216, %v3202, 0
    %3206 = vmatprep.subr.mxu0 0.0
    %3207 = vmatpush1.msra.mxu0 0.0
    %3208 = vmatprep.subr.mxu0 0.0
    %3209 = vmatpush1.msra.mxu0 0.0
    %3210 = vmatprep.subr.mxu0 0.0
    %3211 = vmatpush1.msra.mxu0 0.0
    %3212 = vmatprep.subr.mxu0 0.0
    %3213 = vmatpush1.msra.mxu0 0.0
    %3214 = vmatprep.subr.mxu0 0.0
    %3215 = vmatpush1.msra.mxu0 0.0
    %3216 = vmatprep.subr.mxu0 0.0
    %3217 = vmatpush1.msra.mxu0 0.0
    %3218 = vmatprep.subr.mxu0 0.0
    %3219 = vmatpush1.msra.mxu0 0.0
    %3220 = vmatprep.subr.mxu0 0.0
    %3221 = vmatpush1.msra.mxu0 0.0
    %3222 = vmatprep.subr.mxu0 0.0
    %3223 = vmatpush1.msra.mxu0 %v69
    %3224 = vmatprep.subr.mxu0 0.0
    %3225 = vmatpush1.msra.mxu0 %v68
    %3226 = vmatprep.subr.mxu0 0.0
    %3227 = vmatpush1.msra.mxu0 %v67
    %3228 = vmatprep.subr.mxu0 0.0
    %3229 = vmatpush1.msra.mxu0 %v66
    %3230 = vmatprep.subr.mxu0 0.0
    %3231 = vmatpush1.msra.mxu0 %v65
    %3232 = vmatprep.subr.mxu0 0.0
    %3233 = vmatpush1.msra.mxu0 %v64
    %3234 = vmatprep.subr.mxu0 0.0
    %3235 = vmatpush1.msra.mxu0 %v63
    %3236 = vmatprep.subr.mxu0 0.0
    %3237 = vmatpush1.msra.mxu0 %v62
    %3238 = vmatprep.subr.mxu0 0.0
    %3239 = vmatpush2.msra.mxu0 0.0
    %3240 = vmatprep.subr.mxu0 0.0
    %3241 = vmatpush2.msra.mxu0 0.0
    %3242 = vmatprep.subr.mxu0 0.0
    %3243 = vmatpush2.msra.mxu0 0.0
    %3244 = vmatprep.subr.mxu0 0.0
    %3245 = vmatpush2.msra.mxu0 0.0
    %3246 = vmatprep.subr.mxu0 0.0
    %3247 = vmatpush2.msra.mxu0 0.0
    %3248 = vmatprep.subr.mxu0 0.0
    %3249 = vmatpush2.msra.mxu0 0.0
    %3250 = vmatprep.subr.mxu0 0.0
    %3251 = vmatpush2.msra.mxu0 0.0
    %3252 = vmatprep.subr.mxu0 0.0
    %3253 = vmatpush2.msra.mxu0 0.0
    %3254 = vmatprep.subr.mxu0 0.0
    %3255 = vmatpush2.msra.mxu0 0.0
    %3256 = vmatprep.subr.mxu0 0.0
    %3257 = vmatpush2.msra.mxu0 0.0
    %3258 = vmatprep.subr.mxu0 0.0
    %3259 = vmatpush2.msra.mxu0 0.0
    %3260 = vmatprep.subr.mxu0 0.0
    %3261 = vmatpush2.msra.mxu0 0.0
    %3262 = vmatprep.subr.mxu0 0.0
    %3263 = vmatpush2.msra.mxu0 0.0
    %3264 = vmatprep.subr.mxu0 0.0
    %3265 = vmatpush2.msra.mxu0 0.0
    %3266 = vmatprep.subr.mxu0 0.0
    %3267 = vmatpush2.msra.mxu0 0.0
    %3268 = vmatprep.subr.mxu0 0.0
    %3269 = vmatpush2.msra.mxu0 0.0
    %3270 = vmatprep.mubr.f32.mxu0 0.0
    %3271 = vmatmul.mubr.f32.gmra.mxu0 %v3204
    %v3272 = vpop.f32.mrf.mxu0
    %v3273 = vadd.f32 %v214, %v3272
    %v3274 = vpop.f32.mrf.mxu0
    %3275 = vdwg.mxu0
    %v3276 = vmul.f32 %v3273, 0.5
    %v3277 = vtanh.pop %v3276
    %v3278 = vmul.f32 %v3277, 0.5
    %v3279 = vadd.f32 %v3278, 0.5
    %v3280 = vtanh.pop %v3273
    %v3281 = vmul.f32 %v3279, %v3078
    %3283 = vrot.lane.b32.xlu0 %v3280, 64
    %v3284 = vpop.permute.xlu0 %3283
    %v3286 = vmul.f32 %v3279, %v3284
    %3288 = vrot.lane.b32.xlu0 %v3286, 32
    %v3289 = vpop.permute.xlu0 %3288
    %v3291 = vadd.f32 %v3281, %v3289
    %v3292 = vtanh.pop %v3291
    %3294 = vrot.lane.b32.xlu0 %v3292, 64
    %v3295 = vpop.permute.xlu0 %3294
    %v3297 = vmul.f32 %v3279, %v3295
    %s3298 = sld [smem:[#allocation2 + $0x1e]]
    %s3299 = scalar_lea.vmem %s1, %s3298
    %v3300 = vld [vmem:[%s3299] sm:$0x1]
    %s3301 = sld [smem:[#allocation2 + $0x1f]]
    %s3302 = scalar_lea.vmem %s1, %s3301
    %v3303 = vld [vmem:[%s3302] sm:$0x1]
    %v3305 = vrot.slane %v3303, 7
    %v3307 = vsel %vm86, %v3300, %v3305
    %3308 = vrot.lane.b32.xlu0 %v3193, 48
    %v3309 = vpop.permute.xlu0 %3308
    %v3311 = vsel %vm92, %v3307, %v3309
    %v3313 = vsel %vm100, %v3311, 0
    %3315 = vmatprep.subr.mxu0 0.0
    %3316 = vmatpush1.msra.mxu0 0.0
    %3317 = vmatprep.subr.mxu0 0.0
    %3318 = vmatpush1.msra.mxu0 0.0
    %3319 = vmatprep.subr.mxu0 0.0
    %3320 = vmatpush1.msra.mxu0 0.0
    %3321 = vmatprep.subr.mxu0 0.0
    %3322 = vmatpush1.msra.mxu0 0.0
    %3323 = vmatprep.subr.mxu0 0.0
    %3324 = vmatpush1.msra.mxu0 0.0
    %3325 = vmatprep.subr.mxu0 0.0
    %3326 = vmatpush1.msra.mxu0 0.0
    %3327 = vmatprep.subr.mxu0 0.0
    %3328 = vmatpush1.msra.mxu0 0.0
    %3329 = vmatprep.subr.mxu0 0.0
    %3330 = vmatpush1.msra.mxu0 0.0
    %3331 = vmatprep.subr.mxu0 0.0
    %3332 = vmatpush1.msra.mxu0 0.0
    %3333 = vmatprep.subr.mxu0 0.0
    %3334 = vmatpush1.msra.mxu0 0.0
    %3335 = vmatprep.subr.mxu0 0.0
    %3336 = vmatpush1.msra.mxu0 %v60
    %3337 = vmatprep.subr.mxu0 0.0
    %3338 = vmatpush1.msra.mxu0 %v59
    %3339 = vmatprep.subr.mxu0 0.0
    %3340 = vmatpush1.msra.mxu0 %v58
    %3341 = vmatprep.subr.mxu0 0.0
    %3342 = vmatpush1.msra.mxu0 %v57
    %3343 = vmatprep.subr.mxu0 0.0
    %3344 = vmatpush1.msra.mxu0 %v56
    %3345 = vmatprep.subr.mxu0 0.0
    %3346 = vmatpush1.msra.mxu0 %v55
    %3347 = vmatprep.subr.mxu0 0.0
    %3348 = vmatpush2.msra.mxu0 0.0
    %3349 = vmatprep.subr.mxu0 0.0
    %3350 = vmatpush2.msra.mxu0 0.0
    %3351 = vmatprep.subr.mxu0 0.0
    %3352 = vmatpush2.msra.mxu0 0.0
    %3353 = vmatprep.subr.mxu0 0.0
    %3354 = vmatpush2.msra.mxu0 0.0
    %3355 = vmatprep.subr.mxu0 0.0
    %3356 = vmatpush2.msra.mxu0 0.0
    %3357 = vmatprep.subr.mxu0 0.0
    %3358 = vmatpush2.msra.mxu0 0.0
    %3359 = vmatprep.subr.mxu0 0.0
    %3360 = vmatpush2.msra.mxu0 0.0
    %3361 = vmatprep.subr.mxu0 0.0
    %3362 = vmatpush2.msra.mxu0 0.0
    %3363 = vmatprep.subr.mxu0 0.0
    %3364 = vmatpush2.msra.mxu0 0.0
    %3365 = vmatprep.subr.mxu0 0.0
    %3366 = vmatpush2.msra.mxu0 0.0
    %3367 = vmatprep.subr.mxu0 0.0
    %3368 = vmatpush2.msra.mxu0 0.0
    %3369 = vmatprep.subr.mxu0 0.0
    %3370 = vmatpush2.msra.mxu0 0.0
    %3371 = vmatprep.subr.mxu0 0.0
    %3372 = vmatpush2.msra.mxu0 0.0
    %3373 = vmatprep.subr.mxu0 0.0
    %3374 = vmatpush2.msra.mxu0 0.0
    %3375 = vmatprep.subr.mxu0 0.0
    %3376 = vmatpush2.msra.mxu0 0.0
    %3377 = vmatprep.subr.mxu0 0.0
    %3378 = vmatpush2.msra.mxu0 0.0
    %3379 = vmatprep.mubr.f32.mxu0 0.0
    %3380 = vmatmul.mubr.f32.gmra.mxu0 %v3313
    %v3381 = vpop.f32.mrf.mxu0
    %v3382 = vadd.f32 %v98, %v3381
    %v3383 = vpop.f32.mrf.mxu0
    %3384 = vdwg.mxu0
    %v3385 = vmul.f32 %v3382, 0.5
    %v3386 = vtanh.pop %v3385
    %v3387 = vmul.f32 %v3386, 0.5
    %v3388 = vadd.f32 %v3387, 0.5
    %v3389 = vtanh.pop %v3382
    %v3390 = vmul.f32 %v3388, %v3187
    %3392 = vrot.lane.b32.xlu0 %v3389, 64
    %v3393 = vpop.permute.xlu0 %3392
    %v3395 = vmul.f32 %v3388, %v3393
    %3397 = vrot.lane.b32.xlu0 %v3395, 32
    %v3398 = vpop.permute.xlu0 %3397
    %v3400 = vadd.f32 %v3390, %v3398
    %v3401 = vtanh.pop %v3400
    %3403 = vrot.lane.b32.xlu0 %v3401, 64
    %v3404 = vpop.permute.xlu0 %3403
    %v3406 = vmul.f32 %v3388, %v3404
    %3408 = vrot.lane.b32.xlu0 %v3406, 32
    %v3409 = vpop.permute.xlu0 %3408
    %3412 = vrot.lane.b32.xlu0 %v3297, 64
    %v3413 = vpop.permute.xlu0 %3412
    %v3415 = vsel %vm208, %v3409, %v3413
    %v3417 = vsel %vm216, %v3415, 0
    %3419 = vmatprep.subr.mxu0 0.0
    %3420 = vmatpush1.msra.mxu0 0.0
    %3421 = vmatprep.subr.mxu0 0.0
    %3422 = vmatpush1.msra.mxu0 0.0
    %3423 = vmatprep.subr.mxu0 0.0
    %3424 = vmatpush1.msra.mxu0 0.0
    %3425 = vmatprep.subr.mxu0 0.0
    %3426 = vmatpush1.msra.mxu0 0.0
    %3427 = vmatprep.subr.mxu0 0.0
    %3428 = vmatpush1.msra.mxu0 0.0
    %3429 = vmatprep.subr.mxu0 0.0
    %3430 = vmatpush1.msra.mxu0 0.0
    %3431 = vmatprep.subr.mxu0 0.0
    %3432 = vmatpush1.msra.mxu0 0.0
    %3433 = vmatprep.subr.mxu0 0.0
    %3434 = vmatpush1.msra.mxu0 0.0
    %3435 = vmatprep.subr.mxu0 0.0
    %3436 = vmatpush1.msra.mxu0 %v69
    %3437 = vmatprep.subr.mxu0 0.0
    %3438 = vmatpush1.msra.mxu0 %v68
    %3439 = vmatprep.subr.mxu0 0.0
    %3440 = vmatpush1.msra.mxu0 %v67
    %3441 = vmatprep.subr.mxu0 0.0
    %3442 = vmatpush1.msra.mxu0 %v66
    %3443 = vmatprep.subr.mxu0 0.0
    %3444 = vmatpush1.msra.mxu0 %v65
    %3445 = vmatprep.subr.mxu0 0.0
    %3446 = vmatpush1.msra.mxu0 %v64
    %3447 = vmatprep.subr.mxu0 0.0
    %3448 = vmatpush1.msra.mxu0 %v63
    %3449 = vmatprep.subr.mxu0 0.0
    %3450 = vmatpush1.msra.mxu0 %v62
    %3451 = vmatprep.subr.mxu0 0.0
    %3452 = vmatpush2.msra.mxu0 0.0
    %3453 = vmatprep.subr.mxu0 0.0
    %3454 = vmatpush2.msra.mxu0 0.0
    %3455 = vmatprep.subr.mxu0 0.0
    %3456 = vmatpush2.msra.mxu0 0.0
    %3457 = vmatprep.subr.mxu0 0.0
    %3458 = vmatpush2.msra.mxu0 0.0
    %3459 = vmatprep.subr.mxu0 0.0
    %3460 = vmatpush2.msra.mxu0 0.0
    %3461 = vmatprep.subr.mxu0 0.0
    %3462 = vmatpush2.msra.mxu0 0.0
    %3463 = vmatprep.subr.mxu0 0.0
    %3464 = vmatpush2.msra.mxu0 0.0
    %3465 = vmatprep.subr.mxu0 0.0
    %3466 = vmatpush2.msra.mxu0 0.0
    %3467 = vmatprep.subr.mxu0 0.0
    %3468 = vmatpush2.msra.mxu0 0.0
    %3469 = vmatprep.subr.mxu0 0.0
    %3470 = vmatpush2.msra.mxu0 0.0
    %3471 = vmatprep.subr.mxu0 0.0
    %3472 = vmatpush2.msra.mxu0 0.0
    %3473 = vmatprep.subr.mxu0 0.0
    %3474 = vmatpush2.msra.mxu0 0.0
    %3475 = vmatprep.subr.mxu0 0.0
    %3476 = vmatpush2.msra.mxu0 0.0
    %3477 = vmatprep.subr.mxu0 0.0
    %3478 = vmatpush2.msra.mxu0 0.0
    %3479 = vmatprep.subr.mxu0 0.0
    %3480 = vmatpush2.msra.mxu0 0.0
    %3481 = vmatprep.subr.mxu0 0.0
    %3482 = vmatpush2.msra.mxu0 0.0
    %3483 = vmatprep.mubr.f32.mxu0 0.0
    %3484 = vmatmul.mubr.f32.gmra.mxu0 %v3417
    %v3485 = vpop.f32.mrf.mxu0
    %v3486 = vadd.f32 %v214, %v3485
    %v3487 = vpop.f32.mrf.mxu0
    %3488 = vdwg.mxu0
    %v3489 = vmul.f32 %v3486, 0.5
    %v3490 = vtanh.pop %v3489
    %v3491 = vmul.f32 %v3490, 0.5
    %v3492 = vadd.f32 %v3491, 0.5
    %v3493 = vtanh.pop %v3486
    %v3494 = vmul.f32 %v3492, %v3291
    %3496 = vrot.lane.b32.xlu0 %v3493, 64
    %v3497 = vpop.permute.xlu0 %3496
    %v3499 = vmul.f32 %v3492, %v3497
    %3501 = vrot.lane.b32.xlu0 %v3499, 32
    %v3502 = vpop.permute.xlu0 %3501
    %v3504 = vadd.f32 %v3494, %v3502
    %v3505 = vtanh.pop %v3504
    %3507 = vrot.lane.b32.xlu0 %v3505, 64
    %v3508 = vpop.permute.xlu0 %3507
    %v3510 = vmul.f32 %v3492, %v3508
    %s3511 = sld [smem:[#allocation2 + $0x20]]
    %s3512 = scalar_lea.vmem %s1, %s3511
    %v3513 = vld [vmem:[%s3512] sm:$0x1]
    %s3514 = sld [smem:[#allocation2 + $0x21]]
    %s3515 = scalar_lea.vmem %s1, %s3514
    %v3516 = vld [vmem:[%s3515] sm:$0x1]
    %v3518 = vrot.slane %v3516, 7
    %v3520 = vsel %vm86, %v3513, %v3518
    %3521 = vrot.lane.b32.xlu0 %v3406, 48
    %v3522 = vpop.permute.xlu0 %3521
    %v3524 = vsel %vm92, %v3520, %v3522
    %v3526 = vsel %vm100, %v3524, 0
    %3528 = vmatprep.subr.mxu0 0.0
    %3529 = vmatpush1.msra.mxu0 0.0
    %3530 = vmatprep.subr.mxu0 0.0
    %3531 = vmatpush1.msra.mxu0 0.0
    %3532 = vmatprep.subr.mxu0 0.0
    %3533 = vmatpush1.msra.mxu0 0.0
    %3534 = vmatprep.subr.mxu0 0.0
    %3535 = vmatpush1.msra.mxu0 0.0
    %3536 = vmatprep.subr.mxu0 0.0
    %3537 = vmatpush1.msra.mxu0 0.0
    %3538 = vmatprep.subr.mxu0 0.0
    %3539 = vmatpush1.msra.mxu0 0.0
    %3540 = vmatprep.subr.mxu0 0.0
    %3541 = vmatpush1.msra.mxu0 0.0
    %3542 = vmatprep.subr.mxu0 0.0
    %3543 = vmatpush1.msra.mxu0 0.0
    %3544 = vmatprep.subr.mxu0 0.0
    %3545 = vmatpush1.msra.mxu0 0.0
    %3546 = vmatprep.subr.mxu0 0.0
    %3547 = vmatpush1.msra.mxu0 0.0
    %3548 = vmatprep.subr.mxu0 0.0
    %3549 = vmatpush1.msra.mxu0 %v60
    %3550 = vmatprep.subr.mxu0 0.0
    %3551 = vmatpush1.msra.mxu0 %v59
    %3552 = vmatprep.subr.mxu0 0.0
    %3553 = vmatpush1.msra.mxu0 %v58
    %3554 = vmatprep.subr.mxu0 0.0
    %3555 = vmatpush1.msra.mxu0 %v57
    %3556 = vmatprep.subr.mxu0 0.0
    %3557 = vmatpush1.msra.mxu0 %v56
    %3558 = vmatprep.subr.mxu0 0.0
    %3559 = vmatpush1.msra.mxu0 %v55
    %3560 = vmatprep.subr.mxu0 0.0
    %3561 = vmatpush2.msra.mxu0 0.0
    %3562 = vmatprep.subr.mxu0 0.0
    %3563 = vmatpush2.msra.mxu0 0.0
    %3564 = vmatprep.subr.mxu0 0.0
    %3565 = vmatpush2.msra.mxu0 0.0
    %3566 = vmatprep.subr.mxu0 0.0
    %3567 = vmatpush2.msra.mxu0 0.0
    %3568 = vmatprep.subr.mxu0 0.0
    %3569 = vmatpush2.msra.mxu0 0.0
    %3570 = vmatprep.subr.mxu0 0.0
    %3571 = vmatpush2.msra.mxu0 0.0
    %3572 = vmatprep.subr.mxu0 0.0
    %3573 = vmatpush2.msra.mxu0 0.0
    %3574 = vmatprep.subr.mxu0 0.0
    %3575 = vmatpush2.msra.mxu0 0.0
    %3576 = vmatprep.subr.mxu0 0.0
    %3577 = vmatpush2.msra.mxu0 0.0
    %3578 = vmatprep.subr.mxu0 0.0
    %3579 = vmatpush2.msra.mxu0 0.0
    %3580 = vmatprep.subr.mxu0 0.0
    %3581 = vmatpush2.msra.mxu0 0.0
    %3582 = vmatprep.subr.mxu0 0.0
    %3583 = vmatpush2.msra.mxu0 0.0
    %3584 = vmatprep.subr.mxu0 0.0
    %3585 = vmatpush2.msra.mxu0 0.0
    %3586 = vmatprep.subr.mxu0 0.0
    %3587 = vmatpush2.msra.mxu0 0.0
    %3588 = vmatprep.subr.mxu0 0.0
    %3589 = vmatpush2.msra.mxu0 0.0
    %3590 = vmatprep.subr.mxu0 0.0
    %3591 = vmatpush2.msra.mxu0 0.0
    %3592 = vmatprep.mubr.f32.mxu0 0.0
    %3593 = vmatmul.mubr.f32.gmra.mxu0 %v3526
    %v3594 = vpop.f32.mrf.mxu0
    %v3595 = vadd.f32 %v98, %v3594
    %v3596 = vpop.f32.mrf.mxu0
    %3597 = vdwg.mxu0
    %v3598 = vmul.f32 %v3595, 0.5
    %v3599 = vtanh.pop %v3598
    %v3600 = vmul.f32 %v3599, 0.5
    %v3601 = vadd.f32 %v3600, 0.5
    %v3602 = vtanh.pop %v3595
    %v3603 = vmul.f32 %v3601, %v3400
    %3605 = vrot.lane.b32.xlu0 %v3602, 64
    %v3606 = vpop.permute.xlu0 %3605
    %v3608 = vmul.f32 %v3601, %v3606
    %3610 = vrot.lane.b32.xlu0 %v3608, 32
    %v3611 = vpop.permute.xlu0 %3610
    %v3613 = vadd.f32 %v3603, %v3611
    %v3614 = vtanh.pop %v3613
    %3616 = vrot.lane.b32.xlu0 %v3614, 64
    %v3617 = vpop.permute.xlu0 %3616
    %v3619 = vmul.f32 %v3601, %v3617
    %3621 = vrot.lane.b32.xlu0 %v3619, 32
    %v3622 = vpop.permute.xlu0 %3621
    %3625 = vrot.lane.b32.xlu0 %v3510, 64
    %v3626 = vpop.permute.xlu0 %3625
    %v3628 = vsel %vm208, %v3622, %v3626
    %v3630 = vsel %vm216, %v3628, 0
    %3632 = vmatprep.subr.mxu0 0.0
    %3633 = vmatpush1.msra.mxu0 0.0
    %3634 = vmatprep.subr.mxu0 0.0
    %3635 = vmatpush1.msra.mxu0 0.0
    %3636 = vmatprep.subr.mxu0 0.0
    %3637 = vmatpush1.msra.mxu0 0.0
    %3638 = vmatprep.subr.mxu0 0.0
    %3639 = vmatpush1.msra.mxu0 0.0
    %3640 = vmatprep.subr.mxu0 0.0
    %3641 = vmatpush1.msra.mxu0 0.0
    %3642 = vmatprep.subr.mxu0 0.0
    %3643 = vmatpush1.msra.mxu0 0.0
    %3644 = vmatprep.subr.mxu0 0.0
    %3645 = vmatpush1.msra.mxu0 0.0
    %3646 = vmatprep.subr.mxu0 0.0
    %3647 = vmatpush1.msra.mxu0 0.0
    %3648 = vmatprep.subr.mxu0 0.0
    %3649 = vmatpush1.msra.mxu0 %v69
    %3650 = vmatprep.subr.mxu0 0.0
    %3651 = vmatpush1.msra.mxu0 %v68
    %3652 = vmatprep.subr.mxu0 0.0
    %3653 = vmatpush1.msra.mxu0 %v67
    %3654 = vmatprep.subr.mxu0 0.0
    %3655 = vmatpush1.msra.mxu0 %v66
    %3656 = vmatprep.subr.mxu0 0.0
    %3657 = vmatpush1.msra.mxu0 %v65
    %3658 = vmatprep.subr.mxu0 0.0
    %3659 = vmatpush1.msra.mxu0 %v64
    %3660 = vmatprep.subr.mxu0 0.0
    %3661 = vmatpush1.msra.mxu0 %v63
    %3662 = vmatprep.subr.mxu0 0.0
    %3663 = vmatpush1.msra.mxu0 %v62
    %3664 = vmatprep.subr.mxu0 0.0
    %3665 = vmatpush2.msra.mxu0 0.0
    %3666 = vmatprep.subr.mxu0 0.0
    %3667 = vmatpush2.msra.mxu0 0.0
    %3668 = vmatprep.subr.mxu0 0.0
    %3669 = vmatpush2.msra.mxu0 0.0
    %3670 = vmatprep.subr.mxu0 0.0
    %3671 = vmatpush2.msra.mxu0 0.0
    %3672 = vmatprep.subr.mxu0 0.0
    %3673 = vmatpush2.msra.mxu0 0.0
    %3674 = vmatprep.subr.mxu0 0.0
    %3675 = vmatpush2.msra.mxu0 0.0
    %3676 = vmatprep.subr.mxu0 0.0
    %3677 = vmatpush2.msra.mxu0 0.0
    %3678 = vmatprep.subr.mxu0 0.0
    %3679 = vmatpush2.msra.mxu0 0.0
    %3680 = vmatprep.subr.mxu0 0.0
    %3681 = vmatpush2.msra.mxu0 0.0
    %3682 = vmatprep.subr.mxu0 0.0
    %3683 = vmatpush2.msra.mxu0 0.0
    %3684 = vmatprep.subr.mxu0 0.0
    %3685 = vmatpush2.msra.mxu0 0.0
    %3686 = vmatprep.subr.mxu0 0.0
    %3687 = vmatpush2.msra.mxu0 0.0
    %3688 = vmatprep.subr.mxu0 0.0
    %3689 = vmatpush2.msra.mxu0 0.0
    %3690 = vmatprep.subr.mxu0 0.0
    %3691 = vmatpush2.msra.mxu0 0.0
    %3692 = vmatprep.subr.mxu0 0.0
    %3693 = vmatpush2.msra.mxu0 0.0
    %3694 = vmatprep.subr.mxu0 0.0
    %3695 = vmatpush2.msra.mxu0 0.0
    %3696 = vmatprep.mubr.f32.mxu0 0.0
    %3697 = vmatmul.mubr.f32.gmra.mxu0 %v3630
    %v3698 = vpop.f32.mrf.mxu0
    %v3699 = vadd.f32 %v214, %v3698
    %v3700 = vpop.f32.mrf.mxu0
    %3701 = vdwg.mxu0
    %v3702 = vmul.f32 %v3699, 0.5
    %v3703 = vtanh.pop %v3702
    %v3704 = vmul.f32 %v3703, 0.5
    %v3705 = vadd.f32 %v3704, 0.5
    %v3706 = vtanh.pop %v3699
    %v3707 = vmul.f32 %v3705, %v3504
    %3709 = vrot.lane.b32.xlu0 %v3706, 64
    %v3710 = vpop.permute.xlu0 %3709
    %v3712 = vmul.f32 %v3705, %v3710
    %3714 = vrot.lane.b32.xlu0 %v3712, 32
    %v3715 = vpop.permute.xlu0 %3714
    %v3717 = vadd.f32 %v3707, %v3715
    %v3718 = vtanh.pop %v3717
    %3720 = vrot.lane.b32.xlu0 %v3718, 64
    %v3721 = vpop.permute.xlu0 %3720
    %v3723 = vmul.f32 %v3705, %v3721
    %s3724 = sld [smem:[#allocation2 + $0x22]]
    %s3725 = scalar_lea.vmem %s1, %s3724
    %v3726 = vld [vmem:[%s3725] sm:$0x1]
    %s3727 = sld [smem:[#allocation2 + $0x23]]
    %s3728 = scalar_lea.vmem %s1, %s3727
    %v3729 = vld [vmem:[%s3728] sm:$0x1]
    %v3731 = vrot.slane %v3729, 7
    %v3733 = vsel %vm86, %v3726, %v3731
    %3734 = vrot.lane.b32.xlu0 %v3619, 48
    %v3735 = vpop.permute.xlu0 %3734
    %v3737 = vsel %vm92, %v3733, %v3735
    %v3739 = vsel %vm100, %v3737, 0
    %3741 = vmatprep.subr.mxu0 0.0
    %3742 = vmatpush1.msra.mxu0 0.0
    %3743 = vmatprep.subr.mxu0 0.0
    %3744 = vmatpush1.msra.mxu0 0.0
    %3745 = vmatprep.subr.mxu0 0.0
    %3746 = vmatpush1.msra.mxu0 0.0
    %3747 = vmatprep.subr.mxu0 0.0
    %3748 = vmatpush1.msra.mxu0 0.0
    %3749 = vmatprep.subr.mxu0 0.0
    %3750 = vmatpush1.msra.mxu0 0.0
    %3751 = vmatprep.subr.mxu0 0.0
    %3752 = vmatpush1.msra.mxu0 0.0
    %3753 = vmatprep.subr.mxu0 0.0
    %3754 = vmatpush1.msra.mxu0 0.0
    %3755 = vmatprep.subr.mxu0 0.0
    %3756 = vmatpush1.msra.mxu0 0.0
    %3757 = vmatprep.subr.mxu0 0.0
    %3758 = vmatpush1.msra.mxu0 0.0
    %3759 = vmatprep.subr.mxu0 0.0
    %3760 = vmatpush1.msra.mxu0 0.0
    %3761 = vmatprep.subr.mxu0 0.0
    %3762 = vmatpush1.msra.mxu0 %v60
    %3763 = vmatprep.subr.mxu0 0.0
    %3764 = vmatpush1.msra.mxu0 %v59
    %3765 = vmatprep.subr.mxu0 0.0
    %3766 = vmatpush1.msra.mxu0 %v58
    %3767 = vmatprep.subr.mxu0 0.0
    %3768 = vmatpush1.msra.mxu0 %v57
    %3769 = vmatprep.subr.mxu0 0.0
    %3770 = vmatpush1.msra.mxu0 %v56
    %3771 = vmatprep.subr.mxu0 0.0
    %3772 = vmatpush1.msra.mxu0 %v55
    %3773 = vmatprep.subr.mxu0 0.0
    %3774 = vmatpush2.msra.mxu0 0.0
    %3775 = vmatprep.subr.mxu0 0.0
    %3776 = vmatpush2.msra.mxu0 0.0
    %3777 = vmatprep.subr.mxu0 0.0
    %3778 = vmatpush2.msra.mxu0 0.0
    %3779 = vmatprep.subr.mxu0 0.0
    %3780 = vmatpush2.msra.mxu0 0.0
    %3781 = vmatprep.subr.mxu0 0.0
    %3782 = vmatpush2.msra.mxu0 0.0
    %3783 = vmatprep.subr.mxu0 0.0
    %3784 = vmatpush2.msra.mxu0 0.0
    %3785 = vmatprep.subr.mxu0 0.0
    %3786 = vmatpush2.msra.mxu0 0.0
    %3787 = vmatprep.subr.mxu0 0.0
    %3788 = vmatpush2.msra.mxu0 0.0
    %3789 = vmatprep.subr.mxu0 0.0
    %3790 = vmatpush2.msra.mxu0 0.0
    %3791 = vmatprep.subr.mxu0 0.0
    %3792 = vmatpush2.msra.mxu0 0.0
    %3793 = vmatprep.subr.mxu0 0.0
    %3794 = vmatpush2.msra.mxu0 0.0
    %3795 = vmatprep.subr.mxu0 0.0
    %3796 = vmatpush2.msra.mxu0 0.0
    %3797 = vmatprep.subr.mxu0 0.0
    %3798 = vmatpush2.msra.mxu0 0.0
    %3799 = vmatprep.subr.mxu0 0.0
    %3800 = vmatpush2.msra.mxu0 0.0
    %3801 = vmatprep.subr.mxu0 0.0
    %3802 = vmatpush2.msra.mxu0 0.0
    %3803 = vmatprep.subr.mxu0 0.0
    %3804 = vmatpush2.msra.mxu0 0.0
    %3805 = vmatprep.mubr.f32.mxu0 0.0
    %3806 = vmatmul.mubr.f32.gmra.mxu0 %v3739
    %v3807 = vpop.f32.mrf.mxu0
    %v3808 = vadd.f32 %v98, %v3807
    %v3809 = vpop.f32.mrf.mxu0
    %3810 = vdwg.mxu0
    %v3811 = vmul.f32 %v3808, 0.5
    %v3812 = vtanh.pop %v3811
    %v3813 = vmul.f32 %v3812, 0.5
    %v3814 = vadd.f32 %v3813, 0.5
    %v3815 = vtanh.pop %v3808
    %v3816 = vmul.f32 %v3814, %v3613
    %3818 = vrot.lane.b32.xlu0 %v3815, 64
    %v3819 = vpop.permute.xlu0 %3818
    %v3821 = vmul.f32 %v3814, %v3819
    %3823 = vrot.lane.b32.xlu0 %v3821, 32
    %v3824 = vpop.permute.xlu0 %3823
    %v3826 = vadd.f32 %v3816, %v3824
    %v3827 = vtanh.pop %v3826
    %3829 = vrot.lane.b32.xlu0 %v3827, 64
    %v3830 = vpop.permute.xlu0 %3829
    %v3832 = vmul.f32 %v3814, %v3830
    %3834 = vrot.lane.b32.xlu0 %v3832, 32
    %v3835 = vpop.permute.xlu0 %3834
    %3838 = vrot.lane.b32.xlu0 %v3723, 64
    %v3839 = vpop.permute.xlu0 %3838
    %v3841 = vsel %vm208, %v3835, %v3839
    %v3843 = vsel %vm216, %v3841, 0
    %3845 = vmatprep.subr.mxu0 0.0
    %3846 = vmatpush1.msra.mxu0 0.0
    %3847 = vmatprep.subr.mxu0 0.0
    %3848 = vmatpush1.msra.mxu0 0.0
    %3849 = vmatprep.subr.mxu0 0.0
    %3850 = vmatpush1.msra.mxu0 0.0
    %3851 = vmatprep.subr.mxu0 0.0
    %3852 = vmatpush1.msra.mxu0 0.0
    %3853 = vmatprep.subr.mxu0 0.0
    %3854 = vmatpush1.msra.mxu0 0.0
    %3855 = vmatprep.subr.mxu0 0.0
    %3856 = vmatpush1.msra.mxu0 0.0
    %3857 = vmatprep.subr.mxu0 0.0
    %3858 = vmatpush1.msra.mxu0 0.0
    %3859 = vmatprep.subr.mxu0 0.0
    %3860 = vmatpush1.msra.mxu0 0.0
    %3861 = vmatprep.subr.mxu0 0.0
    %3862 = vmatpush1.msra.mxu0 %v69
    %3863 = vmatprep.subr.mxu0 0.0
    %3864 = vmatpush1.msra.mxu0 %v68
    %3865 = vmatprep.subr.mxu0 0.0
    %3866 = vmatpush1.msra.mxu0 %v67
    %3867 = vmatprep.subr.mxu0 0.0
    %3868 = vmatpush1.msra.mxu0 %v66
    %3869 = vmatprep.subr.mxu0 0.0
    %3870 = vmatpush1.msra.mxu0 %v65
    %3871 = vmatprep.subr.mxu0 0.0
    %3872 = vmatpush1.msra.mxu0 %v64
    %3873 = vmatprep.subr.mxu0 0.0
    %3874 = vmatpush1.msra.mxu0 %v63
    %3875 = vmatprep.subr.mxu0 0.0
    %3876 = vmatpush1.msra.mxu0 %v62
    %3877 = vmatprep.subr.mxu0 0.0
    %3878 = vmatpush2.msra.mxu0 0.0
    %3879 = vmatprep.subr.mxu0 0.0
    %3880 = vmatpush2.msra.mxu0 0.0
    %3881 = vmatprep.subr.mxu0 0.0
    %3882 = vmatpush2.msra.mxu0 0.0
    %3883 = vmatprep.subr.mxu0 0.0
    %3884 = vmatpush2.msra.mxu0 0.0
    %3885 = vmatprep.subr.mxu0 0.0
    %3886 = vmatpush2.msra.mxu0 0.0
    %3887 = vmatprep.subr.mxu0 0.0
    %3888 = vmatpush2.msra.mxu0 0.0
    %3889 = vmatprep.subr.mxu0 0.0
    %3890 = vmatpush2.msra.mxu0 0.0
    %3891 = vmatprep.subr.mxu0 0.0
    %3892 = vmatpush2.msra.mxu0 0.0
    %3893 = vmatprep.subr.mxu0 0.0
    %3894 = vmatpush2.msra.mxu0 0.0
    %3895 = vmatprep.subr.mxu0 0.0
    %3896 = vmatpush2.msra.mxu0 0.0
    %3897 = vmatprep.subr.mxu0 0.0
    %3898 = vmatpush2.msra.mxu0 0.0
    %3899 = vmatprep.subr.mxu0 0.0
    %3900 = vmatpush2.msra.mxu0 0.0
    %3901 = vmatprep.subr.mxu0 0.0
    %3902 = vmatpush2.msra.mxu0 0.0
    %3903 = vmatprep.subr.mxu0 0.0
    %3904 = vmatpush2.msra.mxu0 0.0
    %3905 = vmatprep.subr.mxu0 0.0
    %3906 = vmatpush2.msra.mxu0 0.0
    %3907 = vmatprep.subr.mxu0 0.0
    %3908 = vmatpush2.msra.mxu0 0.0
    %3909 = vmatprep.mubr.f32.mxu0 0.0
    %3910 = vmatmul.mubr.f32.gmra.mxu0 %v3843
    %v3911 = vpop.f32.mrf.mxu0
    %v3912 = vadd.f32 %v214, %v3911
    %v3913 = vpop.f32.mrf.mxu0
    %3914 = vdwg.mxu0
    %v3915 = vmul.f32 %v3912, 0.5
    %v3916 = vtanh.pop %v3915
    %v3917 = vmul.f32 %v3916, 0.5
    %v3918 = vadd.f32 %v3917, 0.5
    %v3919 = vtanh.pop %v3912
    %v3920 = vmul.f32 %v3918, %v3717
    %3922 = vrot.lane.b32.xlu0 %v3919, 64
    %v3923 = vpop.permute.xlu0 %3922
    %v3925 = vmul.f32 %v3918, %v3923
    %3927 = vrot.lane.b32.xlu0 %v3925, 32
    %v3928 = vpop.permute.xlu0 %3927
    %v3930 = vadd.f32 %v3920, %v3928
    %v3931 = vtanh.pop %v3930
    %3933 = vrot.lane.b32.xlu0 %v3931, 64
    %v3934 = vpop.permute.xlu0 %3933
    %v3936 = vmul.f32 %v3918, %v3934
    %s3937 = sld [smem:[#allocation2 + $0x24]]
    %s3938 = scalar_lea.vmem %s1, %s3937
    %v3939 = vld [vmem:[%s3938] sm:$0x1]
    %s3940 = sld [smem:[#allocation2 + $0x25]]
    %s3941 = scalar_lea.vmem %s1, %s3940
    %v3942 = vld [vmem:[%s3941] sm:$0x1]
    %v3944 = vrot.slane %v3942, 7
    %v3946 = vsel %vm86, %v3939, %v3944
    %3947 = vrot.lane.b32.xlu0 %v3832, 48
    %v3948 = vpop.permute.xlu0 %3947
    %v3950 = vsel %vm92, %v3946, %v3948
    %v3952 = vsel %vm100, %v3950, 0
    %3954 = vmatprep.subr.mxu0 0.0
    %3955 = vmatpush1.msra.mxu0 0.0
    %3956 = vmatprep.subr.mxu0 0.0
    %3957 = vmatpush1.msra.mxu0 0.0
    %3958 = vmatprep.subr.mxu0 0.0
    %3959 = vmatpush1.msra.mxu0 0.0
    %3960 = vmatprep.subr.mxu0 0.0
    %3961 = vmatpush1.msra.mxu0 0.0
    %3962 = vmatprep.subr.mxu0 0.0
    %3963 = vmatpush1.msra.mxu0 0.0
    %3964 = vmatprep.subr.mxu0 0.0
    %3965 = vmatpush1.msra.mxu0 0.0
    %3966 = vmatprep.subr.mxu0 0.0
    %3967 = vmatpush1.msra.mxu0 0.0
    %3968 = vmatprep.subr.mxu0 0.0
    %3969 = vmatpush1.msra.mxu0 0.0
    %3970 = vmatprep.subr.mxu0 0.0
    %3971 = vmatpush1.msra.mxu0 0.0
    %3972 = vmatprep.subr.mxu0 0.0
    %3973 = vmatpush1.msra.mxu0 0.0
    %3974 = vmatprep.subr.mxu0 0.0
    %3975 = vmatpush1.msra.mxu0 %v60
    %3976 = vmatprep.subr.mxu0 0.0
    %3977 = vmatpush1.msra.mxu0 %v59
    %3978 = vmatprep.subr.mxu0 0.0
    %3979 = vmatpush1.msra.mxu0 %v58
    %3980 = vmatprep.subr.mxu0 0.0
    %3981 = vmatpush1.msra.mxu0 %v57
    %3982 = vmatprep.subr.mxu0 0.0
    %3983 = vmatpush1.msra.mxu0 %v56
    %3984 = vmatprep.subr.mxu0 0.0
    %3985 = vmatpush1.msra.mxu0 %v55
    %3986 = vmatprep.subr.mxu0 0.0
    %3987 = vmatpush2.msra.mxu0 0.0
    %3988 = vmatprep.subr.mxu0 0.0
    %3989 = vmatpush2.msra.mxu0 0.0
    %3990 = vmatprep.subr.mxu0 0.0
    %3991 = vmatpush2.msra.mxu0 0.0
    %3992 = vmatprep.subr.mxu0 0.0
    %3993 = vmatpush2.msra.mxu0 0.0
    %3994 = vmatprep.subr.mxu0 0.0
    %3995 = vmatpush2.msra.mxu0 0.0
    %3996 = vmatprep.subr.mxu0 0.0
    %3997 = vmatpush2.msra.mxu0 0.0
    %3998 = vmatprep.subr.mxu0 0.0
    %3999 = vmatpush2.msra.mxu0 0.0
    %4000 = vmatprep.subr.mxu0 0.0
    %4001 = vmatpush2.msra.mxu0 0.0
    %4002 = vmatprep.subr.mxu0 0.0
    %4003 = vmatpush2.msra.mxu0 0.0
    %4004 = vmatprep.subr.mxu0 0.0
    %4005 = vmatpush2.msra.mxu0 0.0
    %4006 = vmatprep.subr.mxu0 0.0
    %4007 = vmatpush2.msra.mxu0 0.0
    %4008 = vmatprep.subr.mxu0 0.0
    %4009 = vmatpush2.msra.mxu0 0.0
    %4010 = vmatprep.subr.mxu0 0.0
    %4011 = vmatpush2.msra.mxu0 0.0
    %4012 = vmatprep.subr.mxu0 0.0
    %4013 = vmatpush2.msra.mxu0 0.0
    %4014 = vmatprep.subr.mxu0 0.0
    %4015 = vmatpush2.msra.mxu0 0.0
    %4016 = vmatprep.subr.mxu0 0.0
    %4017 = vmatpush2.msra.mxu0 0.0
    %4018 = vmatprep.mubr.f32.mxu0 0.0
    %4019 = vmatmul.mubr.f32.gmra.mxu0 %v3952
    %v4020 = vpop.f32.mrf.mxu0
    %v4021 = vadd.f32 %v98, %v4020
    %v4022 = vpop.f32.mrf.mxu0
    %4023 = vdwg.mxu0
    %v4024 = vmul.f32 %v4021, 0.5
    %v4025 = vtanh.pop %v4024
    %v4026 = vmul.f32 %v4025, 0.5
    %v4027 = vadd.f32 %v4026, 0.5
    %v4028 = vtanh.pop %v4021
    %v4029 = vmul.f32 %v4027, %v3826
    %4031 = vrot.lane.b32.xlu0 %v4028, 64
    %v4032 = vpop.permute.xlu0 %4031
    %v4034 = vmul.f32 %v4027, %v4032
    %4036 = vrot.lane.b32.xlu0 %v4034, 32
    %v4037 = vpop.permute.xlu0 %4036
    %v4039 = vadd.f32 %v4029, %v4037
    %v4040 = vtanh.pop %v4039
    %4042 = vrot.lane.b32.xlu0 %v4040, 64
    %v4043 = vpop.permute.xlu0 %4042
    %v4045 = vmul.f32 %v4027, %v4043
    %4047 = vrot.lane.b32.xlu0 %v4045, 32
    %v4048 = vpop.permute.xlu0 %4047
    %4051 = vrot.lane.b32.xlu0 %v3936, 64
    %v4052 = vpop.permute.xlu0 %4051
    %v4054 = vsel %vm208, %v4048, %v4052
    %v4056 = vsel %vm216, %v4054, 0
    %4058 = vmatprep.subr.mxu0 0.0
    %4059 = vmatpush1.msra.mxu0 0.0
    %4060 = vmatprep.subr.mxu0 0.0
    %4061 = vmatpush1.msra.mxu0 0.0
    %4062 = vmatprep.subr.mxu0 0.0
    %4063 = vmatpush1.msra.mxu0 0.0
    %4064 = vmatprep.subr.mxu0 0.0
    %4065 = vmatpush1.msra.mxu0 0.0
    %4066 = vmatprep.subr.mxu0 0.0
    %4067 = vmatpush1.msra.mxu0 0.0
    %4068 = vmatprep.subr.mxu0 0.0
    %4069 = vmatpush1.msra.mxu0 0.0
    %4070 = vmatprep.subr.mxu0 0.0
    %4071 = vmatpush1.msra.mxu0 0.0
    %4072 = vmatprep.subr.mxu0 0.0
    %4073 = vmatpush1.msra.mxu0 0.0
    %4074 = vmatprep.subr.mxu0 0.0
    %4075 = vmatpush1.msra.mxu0 %v69
    %4076 = vmatprep.subr.mxu0 0.0
    %4077 = vmatpush1.msra.mxu0 %v68
    %4078 = vmatprep.subr.mxu0 0.0
    %4079 = vmatpush1.msra.mxu0 %v67
    %4080 = vmatprep.subr.mxu0 0.0
    %4081 = vmatpush1.msra.mxu0 %v66
    %4082 = vmatprep.subr.mxu0 0.0
    %4083 = vmatpush1.msra.mxu0 %v65
    %4084 = vmatprep.subr.mxu0 0.0
    %4085 = vmatpush1.msra.mxu0 %v64
    %4086 = vmatprep.subr.mxu0 0.0
    %4087 = vmatpush1.msra.mxu0 %v63
    %4088 = vmatprep.subr.mxu0 0.0
    %4089 = vmatpush1.msra.mxu0 %v62
    %4090 = vmatprep.subr.mxu0 0.0
    %4091 = vmatpush2.msra.mxu0 0.0
    %4092 = vmatprep.subr.mxu0 0.0
    %4093 = vmatpush2.msra.mxu0 0.0
    %4094 = vmatprep.subr.mxu0 0.0
    %4095 = vmatpush2.msra.mxu0 0.0
    %4096 = vmatprep.subr.mxu0 0.0
    %4097 = vmatpush2.msra.mxu0 0.0
    %4098 = vmatprep.subr.mxu0 0.0
    %4099 = vmatpush2.msra.mxu0 0.0
    %4100 = vmatprep.subr.mxu0 0.0
    %4101 = vmatpush2.msra.mxu0 0.0
    %4102 = vmatprep.subr.mxu0 0.0
    %4103 = vmatpush2.msra.mxu0 0.0
    %4104 = vmatprep.subr.mxu0 0.0
    %4105 = vmatpush2.msra.mxu0 0.0
    %4106 = vmatprep.subr.mxu0 0.0
    %4107 = vmatpush2.msra.mxu0 0.0
    %4108 = vmatprep.subr.mxu0 0.0
    %4109 = vmatpush2.msra.mxu0 0.0
    %4110 = vmatprep.subr.mxu0 0.0
    %4111 = vmatpush2.msra.mxu0 0.0
    %4112 = vmatprep.subr.mxu0 0.0
    %4113 = vmatpush2.msra.mxu0 0.0
    %4114 = vmatprep.subr.mxu0 0.0
    %4115 = vmatpush2.msra.mxu0 0.0
    %4116 = vmatprep.subr.mxu0 0.0
    %4117 = vmatpush2.msra.mxu0 0.0
    %4118 = vmatprep.subr.mxu0 0.0
    %4119 = vmatpush2.msra.mxu0 0.0
    %4120 = vmatprep.subr.mxu0 0.0
    %4121 = vmatpush2.msra.mxu0 0.0
    %4122 = vmatprep.mubr.f32.mxu0 0.0
    %4123 = vmatmul.mubr.f32.gmra.mxu0 %v4056
    %v4124 = vpop.f32.mrf.mxu0
    %v4125 = vadd.f32 %v214, %v4124
    %v4126 = vpop.f32.mrf.mxu0
    %4127 = vdwg.mxu0
    %v4128 = vmul.f32 %v4125, 0.5
    %v4129 = vtanh.pop %v4128
    %v4130 = vmul.f32 %v4129, 0.5
    %v4131 = vadd.f32 %v4130, 0.5
    %v4132 = vtanh.pop %v4125
    %v4133 = vmul.f32 %v4131, %v3930
    %4135 = vrot.lane.b32.xlu0 %v4132, 64
    %v4136 = vpop.permute.xlu0 %4135
    %v4138 = vmul.f32 %v4131, %v4136
    %4140 = vrot.lane.b32.xlu0 %v4138, 32
    %v4141 = vpop.permute.xlu0 %4140
    %v4143 = vadd.f32 %v4133, %v4141
    %v4144 = vtanh.pop %v4143
    %4146 = vrot.lane.b32.xlu0 %v4144, 64
    %v4147 = vpop.permute.xlu0 %4146
    %v4149 = vmul.f32 %v4131, %v4147
    %s4150 = sld [smem:[#allocation2 + $0x26]]
    %s4151 = scalar_lea.vmem %s1, %s4150
    %v4152 = vld [vmem:[%s4151] sm:$0x1]
    %s4153 = sld [smem:[#allocation2 + $0x27]]
    %s4154 = scalar_lea.vmem %s1, %s4153
    %v4155 = vld [vmem:[%s4154] sm:$0x1]
    %v4157 = vrot.slane %v4155, 7
    %v4159 = vsel %vm86, %v4152, %v4157
    %4160 = vrot.lane.b32.xlu0 %v4045, 48
    %v4161 = vpop.permute.xlu0 %4160
    %v4163 = vsel %vm92, %v4159, %v4161
    %v4165 = vsel %vm100, %v4163, 0
    %4167 = vmatprep.subr.mxu0 0.0
    %4168 = vmatpush1.msra.mxu0 0.0
    %4169 = vmatprep.subr.mxu0 0.0
    %4170 = vmatpush1.msra.mxu0 0.0
    %4171 = vmatprep.subr.mxu0 0.0
    %4172 = vmatpush1.msra.mxu0 0.0
    %4173 = vmatprep.subr.mxu0 0.0
    %4174 = vmatpush1.msra.mxu0 0.0
    %4175 = vmatprep.subr.mxu0 0.0
    %4176 = vmatpush1.msra.mxu0 0.0
    %4177 = vmatprep.subr.mxu0 0.0
    %4178 = vmatpush1.msra.mxu0 0.0
    %4179 = vmatprep.subr.mxu0 0.0
    %4180 = vmatpush1.msra.mxu0 0.0
    %4181 = vmatprep.subr.mxu0 0.0
    %4182 = vmatpush1.msra.mxu0 0.0
    %4183 = vmatprep.subr.mxu0 0.0
    %4184 = vmatpush1.msra.mxu0 0.0
    %4185 = vmatprep.subr.mxu0 0.0
    %4186 = vmatpush1.msra.mxu0 0.0
    %4187 = vmatprep.subr.mxu0 0.0
    %4188 = vmatpush1.msra.mxu0 %v60
    %4189 = vmatprep.subr.mxu0 0.0
    %4190 = vmatpush1.msra.mxu0 %v59
    %4191 = vmatprep.subr.mxu0 0.0
    %4192 = vmatpush1.msra.mxu0 %v58
    %4193 = vmatprep.subr.mxu0 0.0
    %4194 = vmatpush1.msra.mxu0 %v57
    %4195 = vmatprep.subr.mxu0 0.0
    %4196 = vmatpush1.msra.mxu0 %v56
    %4197 = vmatprep.subr.mxu0 0.0
    %4198 = vmatpush1.msra.mxu0 %v55
    %4199 = vmatprep.subr.mxu0 0.0
    %4200 = vmatpush2.msra.mxu0 0.0
    %4201 = vmatprep.subr.mxu0 0.0
    %4202 = vmatpush2.msra.mxu0 0.0
    %4203 = vmatprep.subr.mxu0 0.0
    %4204 = vmatpush2.msra.mxu0 0.0
    %4205 = vmatprep.subr.mxu0 0.0
    %4206 = vmatpush2.msra.mxu0 0.0
    %4207 = vmatprep.subr.mxu0 0.0
    %4208 = vmatpush2.msra.mxu0 0.0
    %4209 = vmatprep.subr.mxu0 0.0
    %4210 = vmatpush2.msra.mxu0 0.0
    %4211 = vmatprep.subr.mxu0 0.0
    %4212 = vmatpush2.msra.mxu0 0.0
    %4213 = vmatprep.subr.mxu0 0.0
    %4214 = vmatpush2.msra.mxu0 0.0
    %4215 = vmatprep.subr.mxu0 0.0
    %4216 = vmatpush2.msra.mxu0 0.0
    %4217 = vmatprep.subr.mxu0 0.0
    %4218 = vmatpush2.msra.mxu0 0.0
    %4219 = vmatprep.subr.mxu0 0.0
    %4220 = vmatpush2.msra.mxu0 0.0
    %4221 = vmatprep.subr.mxu0 0.0
    %4222 = vmatpush2.msra.mxu0 0.0
    %4223 = vmatprep.subr.mxu0 0.0
    %4224 = vmatpush2.msra.mxu0 0.0
    %4225 = vmatprep.subr.mxu0 0.0
    %4226 = vmatpush2.msra.mxu0 0.0
    %4227 = vmatprep.subr.mxu0 0.0
    %4228 = vmatpush2.msra.mxu0 0.0
    %4229 = vmatprep.subr.mxu0 0.0
    %4230 = vmatpush2.msra.mxu0 0.0
    %4231 = vmatprep.mubr.f32.mxu0 0.0
    %4232 = vmatmul.mubr.f32.gmra.mxu0 %v4165
    %v4233 = vpop.f32.mrf.mxu0
    %v4234 = vadd.f32 %v98, %v4233
    %v4235 = vpop.f32.mrf.mxu0
    %4236 = vdwg.mxu0
    %v4237 = vmul.f32 %v4234, 0.5
    %v4238 = vtanh.pop %v4237
    %v4239 = vmul.f32 %v4238, 0.5
    %v4240 = vadd.f32 %v4239, 0.5
    %v4241 = vtanh.pop %v4234
    %v4242 = vmul.f32 %v4240, %v4039
    %4244 = vrot.lane.b32.xlu0 %v4241, 64
    %v4245 = vpop.permute.xlu0 %4244
    %v4247 = vmul.f32 %v4240, %v4245
    %4249 = vrot.lane.b32.xlu0 %v4247, 32
    %v4250 = vpop.permute.xlu0 %4249
    %v4252 = vadd.f32 %v4242, %v4250
    %v4253 = vtanh.pop %v4252
    %4255 = vrot.lane.b32.xlu0 %v4253, 64
    %v4256 = vpop.permute.xlu0 %4255
    %v4258 = vmul.f32 %v4240, %v4256
    %4260 = vrot.lane.b32.xlu0 %v4258, 32
    %v4261 = vpop.permute.xlu0 %4260
    %4264 = vrot.lane.b32.xlu0 %v4149, 64
    %v4265 = vpop.permute.xlu0 %4264
    %v4267 = vsel %vm208, %v4261, %v4265
    %v4269 = vsel %vm216, %v4267, 0
    %4271 = vmatprep.subr.mxu0 0.0
    %4272 = vmatpush1.msra.mxu0 0.0
    %4273 = vmatprep.subr.mxu0 0.0
    %4274 = vmatpush1.msra.mxu0 0.0
    %4275 = vmatprep.subr.mxu0 0.0
    %4276 = vmatpush1.msra.mxu0 0.0
    %4277 = vmatprep.subr.mxu0 0.0
    %4278 = vmatpush1.msra.mxu0 0.0
    %4279 = vmatprep.subr.mxu0 0.0
    %4280 = vmatpush1.msra.mxu0 0.0
    %4281 = vmatprep.subr.mxu0 0.0
    %4282 = vmatpush1.msra.mxu0 0.0
    %4283 = vmatprep.subr.mxu0 0.0
    %4284 = vmatpush1.msra.mxu0 0.0
    %4285 = vmatprep.subr.mxu0 0.0
    %4286 = vmatpush1.msra.mxu0 0.0
    %4287 = vmatprep.subr.mxu0 0.0
    %4288 = vmatpush1.msra.mxu0 %v69
    %4289 = vmatprep.subr.mxu0 0.0
    %4290 = vmatpush1.msra.mxu0 %v68
    %4291 = vmatprep.subr.mxu0 0.0
    %4292 = vmatpush1.msra.mxu0 %v67
    %4293 = vmatprep.subr.mxu0 0.0
    %4294 = vmatpush1.msra.mxu0 %v66
    %4295 = vmatprep.subr.mxu0 0.0
    %4296 = vmatpush1.msra.mxu0 %v65
    %4297 = vmatprep.subr.mxu0 0.0
    %4298 = vmatpush1.msra.mxu0 %v64
    %4299 = vmatprep.subr.mxu0 0.0
    %4300 = vmatpush1.msra.mxu0 %v63
    %4301 = vmatprep.subr.mxu0 0.0
    %4302 = vmatpush1.msra.mxu0 %v62
    %4303 = vmatprep.subr.mxu0 0.0
    %4304 = vmatpush2.msra.mxu0 0.0
    %4305 = vmatprep.subr.mxu0 0.0
    %4306 = vmatpush2.msra.mxu0 0.0
    %4307 = vmatprep.subr.mxu0 0.0
    %4308 = vmatpush2.msra.mxu0 0.0
    %4309 = vmatprep.subr.mxu0 0.0
    %4310 = vmatpush2.msra.mxu0 0.0
    %4311 = vmatprep.subr.mxu0 0.0
    %4312 = vmatpush2.msra.mxu0 0.0
    %4313 = vmatprep.subr.mxu0 0.0
    %4314 = vmatpush2.msra.mxu0 0.0
    %4315 = vmatprep.subr.mxu0 0.0
    %4316 = vmatpush2.msra.mxu0 0.0
    %4317 = vmatprep.subr.mxu0 0.0
    %4318 = vmatpush2.msra.mxu0 0.0
    %4319 = vmatprep.subr.mxu0 0.0
    %4320 = vmatpush2.msra.mxu0 0.0
    %4321 = vmatprep.subr.mxu0 0.0
    %4322 = vmatpush2.msra.mxu0 0.0
    %4323 = vmatprep.subr.mxu0 0.0
    %4324 = vmatpush2.msra.mxu0 0.0
    %4325 = vmatprep.subr.mxu0 0.0
    %4326 = vmatpush2.msra.mxu0 0.0
    %4327 = vmatprep.subr.mxu0 0.0
    %4328 = vmatpush2.msra.mxu0 0.0
    %4329 = vmatprep.subr.mxu0 0.0
    %4330 = vmatpush2.msra.mxu0 0.0
    %4331 = vmatprep.subr.mxu0 0.0
    %4332 = vmatpush2.msra.mxu0 0.0
    %4333 = vmatprep.subr.mxu0 0.0
    %4334 = vmatpush2.msra.mxu0 0.0
    %4335 = vmatprep.mubr.f32.mxu0 0.0
    %4336 = vmatmul.mubr.f32.gmra.mxu0 %v4269
    %v4337 = vpop.f32.mrf.mxu0
    %v4338 = vadd.f32 %v214, %v4337
    %v4339 = vpop.f32.mrf.mxu0
    %4340 = vdwg.mxu0
    %v4341 = vmul.f32 %v4338, 0.5
    %v4342 = vtanh.pop %v4341
    %v4343 = vmul.f32 %v4342, 0.5
    %v4344 = vadd.f32 %v4343, 0.5
    %v4345 = vtanh.pop %v4338
    %v4346 = vmul.f32 %v4344, %v4143
    %4348 = vrot.lane.b32.xlu0 %v4345, 64
    %v4349 = vpop.permute.xlu0 %4348
    %v4351 = vmul.f32 %v4344, %v4349
    %4353 = vrot.lane.b32.xlu0 %v4351, 32
    %v4354 = vpop.permute.xlu0 %4353
    %v4356 = vadd.f32 %v4346, %v4354
    %v4357 = vtanh.pop %v4356
    %4359 = vrot.lane.b32.xlu0 %v4357, 64
    %v4360 = vpop.permute.xlu0 %4359
    %v4362 = vmul.f32 %v4344, %v4360
    %s4363 = sld [smem:[#allocation2 + $0x28]]
    %s4364 = scalar_lea.vmem %s1, %s4363
    %v4365 = vld [vmem:[%s4364] sm:$0x1]
    %s4366 = sld [smem:[#allocation2 + $0x29]]
    %s4367 = scalar_lea.vmem %s1, %s4366
    %v4368 = vld [vmem:[%s4367] sm:$0x1]
    %v4370 = vrot.slane %v4368, 7
    %v4372 = vsel %vm86, %v4365, %v4370
    %4373 = vrot.lane.b32.xlu0 %v4258, 48
    %v4374 = vpop.permute.xlu0 %4373
    %v4376 = vsel %vm92, %v4372, %v4374
    %v4378 = vsel %vm100, %v4376, 0
    %4380 = vmatprep.subr.mxu0 0.0
    %4381 = vmatpush1.msra.mxu0 0.0
    %4382 = vmatprep.subr.mxu0 0.0
    %4383 = vmatpush1.msra.mxu0 0.0
    %4384 = vmatprep.subr.mxu0 0.0
    %4385 = vmatpush1.msra.mxu0 0.0
    %4386 = vmatprep.subr.mxu0 0.0
    %4387 = vmatpush1.msra.mxu0 0.0
    %4388 = vmatprep.subr.mxu0 0.0
    %4389 = vmatpush1.msra.mxu0 0.0
    %4390 = vmatprep.subr.mxu0 0.0
    %4391 = vmatpush1.msra.mxu0 0.0
    %4392 = vmatprep.subr.mxu0 0.0
    %4393 = vmatpush1.msra.mxu0 0.0
    %4394 = vmatprep.subr.mxu0 0.0
    %4395 = vmatpush1.msra.mxu0 0.0
    %4396 = vmatprep.subr.mxu0 0.0
    %4397 = vmatpush1.msra.mxu0 0.0
    %4398 = vmatprep.subr.mxu0 0.0
    %4399 = vmatpush1.msra.mxu0 0.0
    %4400 = vmatprep.subr.mxu0 0.0
    %4401 = vmatpush1.msra.mxu0 %v60
    %4402 = vmatprep.subr.mxu0 0.0
    %4403 = vmatpush1.msra.mxu0 %v59
    %4404 = vmatprep.subr.mxu0 0.0
    %4405 = vmatpush1.msra.mxu0 %v58
    %4406 = vmatprep.subr.mxu0 0.0
    %4407 = vmatpush1.msra.mxu0 %v57
    %4408 = vmatprep.subr.mxu0 0.0
    %4409 = vmatpush1.msra.mxu0 %v56
    %4410 = vmatprep.subr.mxu0 0.0
    %4411 = vmatpush1.msra.mxu0 %v55
    %4412 = vmatprep.subr.mxu0 0.0
    %4413 = vmatpush2.msra.mxu0 0.0
    %4414 = vmatprep.subr.mxu0 0.0
    %4415 = vmatpush2.msra.mxu0 0.0
    %4416 = vmatprep.subr.mxu0 0.0
    %4417 = vmatpush2.msra.mxu0 0.0
    %4418 = vmatprep.subr.mxu0 0.0
    %4419 = vmatpush2.msra.mxu0 0.0
    %4420 = vmatprep.subr.mxu0 0.0
    %4421 = vmatpush2.msra.mxu0 0.0
    %4422 = vmatprep.subr.mxu0 0.0
    %4423 = vmatpush2.msra.mxu0 0.0
    %4424 = vmatprep.subr.mxu0 0.0
    %4425 = vmatpush2.msra.mxu0 0.0
    %4426 = vmatprep.subr.mxu0 0.0
    %4427 = vmatpush2.msra.mxu0 0.0
    %4428 = vmatprep.subr.mxu0 0.0
    %4429 = vmatpush2.msra.mxu0 0.0
    %4430 = vmatprep.subr.mxu0 0.0
    %4431 = vmatpush2.msra.mxu0 0.0
    %4432 = vmatprep.subr.mxu0 0.0
    %4433 = vmatpush2.msra.mxu0 0.0
    %4434 = vmatprep.subr.mxu0 0.0
    %4435 = vmatpush2.msra.mxu0 0.0
    %4436 = vmatprep.subr.mxu0 0.0
    %4437 = vmatpush2.msra.mxu0 0.0
    %4438 = vmatprep.subr.mxu0 0.0
    %4439 = vmatpush2.msra.mxu0 0.0
    %4440 = vmatprep.subr.mxu0 0.0
    %4441 = vmatpush2.msra.mxu0 0.0
    %4442 = vmatprep.subr.mxu0 0.0
    %4443 = vmatpush2.msra.mxu0 0.0
    %4444 = vmatprep.mubr.f32.mxu0 0.0
    %4445 = vmatmul.mubr.f32.gmra.mxu0 %v4378
    %v4446 = vpop.f32.mrf.mxu0
    %v4447 = vadd.f32 %v98, %v4446
    %v4448 = vpop.f32.mrf.mxu0
    %4449 = vdwg.mxu0
    %v4450 = vmul.f32 %v4447, 0.5
    %v4451 = vtanh.pop %v4450
    %v4452 = vmul.f32 %v4451, 0.5
    %v4453 = vadd.f32 %v4452, 0.5
    %v4454 = vtanh.pop %v4447
    %v4455 = vmul.f32 %v4453, %v4252
    %4457 = vrot.lane.b32.xlu0 %v4454, 64
    %v4458 = vpop.permute.xlu0 %4457
    %v4460 = vmul.f32 %v4453, %v4458
    %4462 = vrot.lane.b32.xlu0 %v4460, 32
    %v4463 = vpop.permute.xlu0 %4462
    %v4465 = vadd.f32 %v4455, %v4463
    %v4466 = vtanh.pop %v4465
    %4468 = vrot.lane.b32.xlu0 %v4466, 64
    %v4469 = vpop.permute.xlu0 %4468
    %v4471 = vmul.f32 %v4453, %v4469
    %4473 = vrot.lane.b32.xlu0 %v4471, 32
    %v4474 = vpop.permute.xlu0 %4473
    %4477 = vrot.lane.b32.xlu0 %v4362, 64
    %v4478 = vpop.permute.xlu0 %4477
    %v4480 = vsel %vm208, %v4474, %v4478
    %v4482 = vsel %vm216, %v4480, 0
    %4484 = vmatprep.subr.mxu0 0.0
    %4485 = vmatpush1.msra.mxu0 0.0
    %4486 = vmatprep.subr.mxu0 0.0
    %4487 = vmatpush1.msra.mxu0 0.0
    %4488 = vmatprep.subr.mxu0 0.0
    %4489 = vmatpush1.msra.mxu0 0.0
    %4490 = vmatprep.subr.mxu0 0.0
    %4491 = vmatpush1.msra.mxu0 0.0
    %4492 = vmatprep.subr.mxu0 0.0
    %4493 = vmatpush1.msra.mxu0 0.0
    %4494 = vmatprep.subr.mxu0 0.0
    %4495 = vmatpush1.msra.mxu0 0.0
    %4496 = vmatprep.subr.mxu0 0.0
    %4497 = vmatpush1.msra.mxu0 0.0
    %4498 = vmatprep.subr.mxu0 0.0
    %4499 = vmatpush1.msra.mxu0 0.0
    %4500 = vmatprep.subr.mxu0 0.0
    %4501 = vmatpush1.msra.mxu0 %v69
    %4502 = vmatprep.subr.mxu0 0.0
    %4503 = vmatpush1.msra.mxu0 %v68
    %4504 = vmatprep.subr.mxu0 0.0
    %4505 = vmatpush1.msra.mxu0 %v67
    %4506 = vmatprep.subr.mxu0 0.0
    %4507 = vmatpush1.msra.mxu0 %v66
    %4508 = vmatprep.subr.mxu0 0.0
    %4509 = vmatpush1.msra.mxu0 %v65
    %4510 = vmatprep.subr.mxu0 0.0
    %4511 = vmatpush1.msra.mxu0 %v64
    %4512 = vmatprep.subr.mxu0 0.0
    %4513 = vmatpush1.msra.mxu0 %v63
    %4514 = vmatprep.subr.mxu0 0.0
    %4515 = vmatpush1.msra.mxu0 %v62
    %4516 = vmatprep.subr.mxu0 0.0
    %4517 = vmatpush2.msra.mxu0 0.0
    %4518 = vmatprep.subr.mxu0 0.0
    %4519 = vmatpush2.msra.mxu0 0.0
    %4520 = vmatprep.subr.mxu0 0.0
    %4521 = vmatpush2.msra.mxu0 0.0
    %4522 = vmatprep.subr.mxu0 0.0
    %4523 = vmatpush2.msra.mxu0 0.0
    %4524 = vmatprep.subr.mxu0 0.0
    %4525 = vmatpush2.msra.mxu0 0.0
    %4526 = vmatprep.subr.mxu0 0.0
    %4527 = vmatpush2.msra.mxu0 0.0
    %4528 = vmatprep.subr.mxu0 0.0
    %4529 = vmatpush2.msra.mxu0 0.0
    %4530 = vmatprep.subr.mxu0 0.0
    %4531 = vmatpush2.msra.mxu0 0.0
    %4532 = vmatprep.subr.mxu0 0.0
    %4533 = vmatpush2.msra.mxu0 0.0
    %4534 = vmatprep.subr.mxu0 0.0
    %4535 = vmatpush2.msra.mxu0 0.0
    %4536 = vmatprep.subr.mxu0 0.0
    %4537 = vmatpush2.msra.mxu0 0.0
    %4538 = vmatprep.subr.mxu0 0.0
    %4539 = vmatpush2.msra.mxu0 0.0
    %4540 = vmatprep.subr.mxu0 0.0
    %4541 = vmatpush2.msra.mxu0 0.0
    %4542 = vmatprep.subr.mxu0 0.0
    %4543 = vmatpush2.msra.mxu0 0.0
    %4544 = vmatprep.subr.mxu0 0.0
    %4545 = vmatpush2.msra.mxu0 0.0
    %4546 = vmatprep.subr.mxu0 0.0
    %4547 = vmatpush2.msra.mxu0 0.0
    %4548 = vmatprep.mubr.f32.mxu0 0.0
    %4549 = vmatmul.mubr.f32.gmra.mxu0 %v4482
    %v4550 = vpop.f32.mrf.mxu0
    %v4551 = vadd.f32 %v214, %v4550
    %v4552 = vpop.f32.mrf.mxu0
    %4553 = vdwg.mxu0
    %v4554 = vmul.f32 %v4551, 0.5
    %v4555 = vtanh.pop %v4554
    %v4556 = vmul.f32 %v4555, 0.5
    %v4557 = vadd.f32 %v4556, 0.5
    %v4558 = vtanh.pop %v4551
    %v4559 = vmul.f32 %v4557, %v4356
    %4561 = vrot.lane.b32.xlu0 %v4558, 64
    %v4562 = vpop.permute.xlu0 %4561
    %v4564 = vmul.f32 %v4557, %v4562
    %4566 = vrot.lane.b32.xlu0 %v4564, 32
    %v4567 = vpop.permute.xlu0 %4566
    %v4569 = vadd.f32 %v4559, %v4567
    %v4570 = vtanh.pop %v4569
    %4572 = vrot.lane.b32.xlu0 %v4570, 64
    %v4573 = vpop.permute.xlu0 %4572
    %v4575 = vmul.f32 %v4557, %v4573
    %s4576 = sld [smem:[#allocation2 + $0x2a]]
    %s4577 = scalar_lea.vmem %s1, %s4576
    %v4578 = vld [vmem:[%s4577] sm:$0x1]
    %s4579 = sld [smem:[#allocation2 + $0x2b]]
    %s4580 = scalar_lea.vmem %s1, %s4579
    %v4581 = vld [vmem:[%s4580] sm:$0x1]
    %v4583 = vrot.slane %v4581, 7
    %v4585 = vsel %vm86, %v4578, %v4583
    %4586 = vrot.lane.b32.xlu0 %v4471, 48
    %v4587 = vpop.permute.xlu0 %4586
    %v4589 = vsel %vm92, %v4585, %v4587
    %v4591 = vsel %vm100, %v4589, 0
    %4593 = vmatprep.subr.mxu0 0.0
    %4594 = vmatpush1.msra.mxu0 0.0
    %4595 = vmatprep.subr.mxu0 0.0
    %4596 = vmatpush1.msra.mxu0 0.0
    %4597 = vmatprep.subr.mxu0 0.0
    %4598 = vmatpush1.msra.mxu0 0.0
    %4599 = vmatprep.subr.mxu0 0.0
    %4600 = vmatpush1.msra.mxu0 0.0
    %4601 = vmatprep.subr.mxu0 0.0
    %4602 = vmatpush1.msra.mxu0 0.0
    %4603 = vmatprep.subr.mxu0 0.0
    %4604 = vmatpush1.msra.mxu0 0.0
    %4605 = vmatprep.subr.mxu0 0.0
    %4606 = vmatpush1.msra.mxu0 0.0
    %4607 = vmatprep.subr.mxu0 0.0
    %4608 = vmatpush1.msra.mxu0 0.0
    %4609 = vmatprep.subr.mxu0 0.0
    %4610 = vmatpush1.msra.mxu0 0.0
    %4611 = vmatprep.subr.mxu0 0.0
    %4612 = vmatpush1.msra.mxu0 0.0
    %4613 = vmatprep.subr.mxu0 0.0
    %4614 = vmatpush1.msra.mxu0 %v60
    %4615 = vmatprep.subr.mxu0 0.0
    %4616 = vmatpush1.msra.mxu0 %v59
    %4617 = vmatprep.subr.mxu0 0.0
    %4618 = vmatpush1.msra.mxu0 %v58
    %4619 = vmatprep.subr.mxu0 0.0
    %4620 = vmatpush1.msra.mxu0 %v57
    %4621 = vmatprep.subr.mxu0 0.0
    %4622 = vmatpush1.msra.mxu0 %v56
    %4623 = vmatprep.subr.mxu0 0.0
    %4624 = vmatpush1.msra.mxu0 %v55
    %4625 = vmatprep.subr.mxu0 0.0
    %4626 = vmatpush2.msra.mxu0 0.0
    %4627 = vmatprep.subr.mxu0 0.0
    %4628 = vmatpush2.msra.mxu0 0.0
    %4629 = vmatprep.subr.mxu0 0.0
    %4630 = vmatpush2.msra.mxu0 0.0
    %4631 = vmatprep.subr.mxu0 0.0
    %4632 = vmatpush2.msra.mxu0 0.0
    %4633 = vmatprep.subr.mxu0 0.0
    %4634 = vmatpush2.msra.mxu0 0.0
    %4635 = vmatprep.subr.mxu0 0.0
    %4636 = vmatpush2.msra.mxu0 0.0
    %4637 = vmatprep.subr.mxu0 0.0
    %4638 = vmatpush2.msra.mxu0 0.0
    %4639 = vmatprep.subr.mxu0 0.0
    %4640 = vmatpush2.msra.mxu0 0.0
    %4641 = vmatprep.subr.mxu0 0.0
    %4642 = vmatpush2.msra.mxu0 0.0
    %4643 = vmatprep.subr.mxu0 0.0
    %4644 = vmatpush2.msra.mxu0 0.0
    %4645 = vmatprep.subr.mxu0 0.0
    %4646 = vmatpush2.msra.mxu0 0.0
    %4647 = vmatprep.subr.mxu0 0.0
    %4648 = vmatpush2.msra.mxu0 0.0
    %4649 = vmatprep.subr.mxu0 0.0
    %4650 = vmatpush2.msra.mxu0 0.0
    %4651 = vmatprep.subr.mxu0 0.0
    %4652 = vmatpush2.msra.mxu0 0.0
    %4653 = vmatprep.subr.mxu0 0.0
    %4654 = vmatpush2.msra.mxu0 0.0
    %4655 = vmatprep.subr.mxu0 0.0
    %4656 = vmatpush2.msra.mxu0 0.0
    %4657 = vmatprep.mubr.f32.mxu0 0.0
    %4658 = vmatmul.mubr.f32.gmra.mxu0 %v4591
    %v4659 = vpop.f32.mrf.mxu0
    %v4660 = vadd.f32 %v98, %v4659
    %v4661 = vpop.f32.mrf.mxu0
    %4662 = vdwg.mxu0
    %v4663 = vmul.f32 %v4660, 0.5
    %v4664 = vtanh.pop %v4663
    %v4665 = vmul.f32 %v4664, 0.5
    %v4666 = vadd.f32 %v4665, 0.5
    %v4667 = vtanh.pop %v4660
    %v4668 = vmul.f32 %v4666, %v4465
    %4670 = vrot.lane.b32.xlu0 %v4667, 64
    %v4671 = vpop.permute.xlu0 %4670
    %v4673 = vmul.f32 %v4666, %v4671
    %4675 = vrot.lane.b32.xlu0 %v4673, 32
    %v4676 = vpop.permute.xlu0 %4675
    %v4678 = vadd.f32 %v4668, %v4676
    %v4679 = vtanh.pop %v4678
    %4681 = vrot.lane.b32.xlu0 %v4679, 64
    %v4682 = vpop.permute.xlu0 %4681
    %v4684 = vmul.f32 %v4666, %v4682
    %4686 = vrot.lane.b32.xlu0 %v4684, 32
    %v4687 = vpop.permute.xlu0 %4686
    %4690 = vrot.lane.b32.xlu0 %v4575, 64
    %v4691 = vpop.permute.xlu0 %4690
    %v4693 = vsel %vm208, %v4687, %v4691
    %v4695 = vsel %vm216, %v4693, 0
    %4697 = vmatprep.subr.mxu0 0.0
    %4698 = vmatpush1.msra.mxu0 0.0
    %4699 = vmatprep.subr.mxu0 0.0
    %4700 = vmatpush1.msra.mxu0 0.0
    %4701 = vmatprep.subr.mxu0 0.0
    %4702 = vmatpush1.msra.mxu0 0.0
    %4703 = vmatprep.subr.mxu0 0.0
    %4704 = vmatpush1.msra.mxu0 0.0
    %4705 = vmatprep.subr.mxu0 0.0
    %4706 = vmatpush1.msra.mxu0 0.0
    %4707 = vmatprep.subr.mxu0 0.0
    %4708 = vmatpush1.msra.mxu0 0.0
    %4709 = vmatprep.subr.mxu0 0.0
    %4710 = vmatpush1.msra.mxu0 0.0
    %4711 = vmatprep.subr.mxu0 0.0
    %4712 = vmatpush1.msra.mxu0 0.0
    %4713 = vmatprep.subr.mxu0 0.0
    %4714 = vmatpush1.msra.mxu0 %v69
    %4715 = vmatprep.subr.mxu0 0.0
    %4716 = vmatpush1.msra.mxu0 %v68
    %4717 = vmatprep.subr.mxu0 0.0
    %4718 = vmatpush1.msra.mxu0 %v67
    %4719 = vmatprep.subr.mxu0 0.0
    %4720 = vmatpush1.msra.mxu0 %v66
    %4721 = vmatprep.subr.mxu0 0.0
    %4722 = vmatpush1.msra.mxu0 %v65
    %4723 = vmatprep.subr.mxu0 0.0
    %4724 = vmatpush1.msra.mxu0 %v64
    %4725 = vmatprep.subr.mxu0 0.0
    %4726 = vmatpush1.msra.mxu0 %v63
    %4727 = vmatprep.subr.mxu0 0.0
    %4728 = vmatpush1.msra.mxu0 %v62
    %4729 = vmatprep.subr.mxu0 0.0
    %4730 = vmatpush2.msra.mxu0 0.0
    %4731 = vmatprep.subr.mxu0 0.0
    %4732 = vmatpush2.msra.mxu0 0.0
    %4733 = vmatprep.subr.mxu0 0.0
    %4734 = vmatpush2.msra.mxu0 0.0
    %4735 = vmatprep.subr.mxu0 0.0
    %4736 = vmatpush2.msra.mxu0 0.0
    %4737 = vmatprep.subr.mxu0 0.0
    %4738 = vmatpush2.msra.mxu0 0.0
    %4739 = vmatprep.subr.mxu0 0.0
    %4740 = vmatpush2.msra.mxu0 0.0
    %4741 = vmatprep.subr.mxu0 0.0
    %4742 = vmatpush2.msra.mxu0 0.0
    %4743 = vmatprep.subr.mxu0 0.0
    %4744 = vmatpush2.msra.mxu0 0.0
    %4745 = vmatprep.subr.mxu0 0.0
    %4746 = vmatpush2.msra.mxu0 0.0
    %4747 = vmatprep.subr.mxu0 0.0
    %4748 = vmatpush2.msra.mxu0 0.0
    %4749 = vmatprep.subr.mxu0 0.0
    %4750 = vmatpush2.msra.mxu0 0.0
    %4751 = vmatprep.subr.mxu0 0.0
    %4752 = vmatpush2.msra.mxu0 0.0
    %4753 = vmatprep.subr.mxu0 0.0
    %4754 = vmatpush2.msra.mxu0 0.0
    %4755 = vmatprep.subr.mxu0 0.0
    %4756 = vmatpush2.msra.mxu0 0.0
    %4757 = vmatprep.subr.mxu0 0.0
    %4758 = vmatpush2.msra.mxu0 0.0
    %4759 = vmatprep.subr.mxu0 0.0
    %4760 = vmatpush2.msra.mxu0 0.0
    %4761 = vmatprep.mubr.f32.mxu0 0.0
    %4762 = vmatmul.mubr.f32.gmra.mxu0 %v4695
    %v4763 = vpop.f32.mrf.mxu0
    %v4764 = vadd.f32 %v214, %v4763
    %v4765 = vpop.f32.mrf.mxu0
    %4766 = vdwg.mxu0
    %v4767 = vmul.f32 %v4764, 0.5
    %v4768 = vtanh.pop %v4767
    %v4769 = vmul.f32 %v4768, 0.5
    %v4770 = vadd.f32 %v4769, 0.5
    %v4771 = vtanh.pop %v4764
    %v4772 = vmul.f32 %v4770, %v4569
    %4774 = vrot.lane.b32.xlu0 %v4771, 64
    %v4775 = vpop.permute.xlu0 %4774
    %v4777 = vmul.f32 %v4770, %v4775
    %4779 = vrot.lane.b32.xlu0 %v4777, 32
    %v4780 = vpop.permute.xlu0 %4779
    %v4782 = vadd.f32 %v4772, %v4780
    %v4783 = vtanh.pop %v4782
    %4785 = vrot.lane.b32.xlu0 %v4783, 64
    %v4786 = vpop.permute.xlu0 %4785
    %v4788 = vmul.f32 %v4770, %v4786
    %s4789 = sld [smem:[#allocation2 + $0x2c]]
    %s4790 = scalar_lea.vmem %s1, %s4789
    %v4791 = vld [vmem:[%s4790] sm:$0x1]
    %s4792 = sld [smem:[#allocation2 + $0x2d]]
    %s4793 = scalar_lea.vmem %s1, %s4792
    %v4794 = vld [vmem:[%s4793] sm:$0x1]
    %v4796 = vrot.slane %v4794, 7
    %v4798 = vsel %vm86, %v4791, %v4796
    %4799 = vrot.lane.b32.xlu0 %v4684, 48
    %v4800 = vpop.permute.xlu0 %4799
    %v4802 = vsel %vm92, %v4798, %v4800
    %v4804 = vsel %vm100, %v4802, 0
    %4806 = vmatprep.subr.mxu0 0.0
    %4807 = vmatpush1.msra.mxu0 0.0
    %4808 = vmatprep.subr.mxu0 0.0
    %4809 = vmatpush1.msra.mxu0 0.0
    %4810 = vmatprep.subr.mxu0 0.0
    %4811 = vmatpush1.msra.mxu0 0.0
    %4812 = vmatprep.subr.mxu0 0.0
    %4813 = vmatpush1.msra.mxu0 0.0
    %4814 = vmatprep.subr.mxu0 0.0
    %4815 = vmatpush1.msra.mxu0 0.0
    %4816 = vmatprep.subr.mxu0 0.0
    %4817 = vmatpush1.msra.mxu0 0.0
    %4818 = vmatprep.subr.mxu0 0.0
    %4819 = vmatpush1.msra.mxu0 0.0
    %4820 = vmatprep.subr.mxu0 0.0
    %4821 = vmatpush1.msra.mxu0 0.0
    %4822 = vmatprep.subr.mxu0 0.0
    %4823 = vmatpush1.msra.mxu0 0.0
    %4824 = vmatprep.subr.mxu0 0.0
    %4825 = vmatpush1.msra.mxu0 0.0
    %4826 = vmatprep.subr.mxu0 0.0
    %4827 = vmatpush1.msra.mxu0 %v60
    %4828 = vmatprep.subr.mxu0 0.0
    %4829 = vmatpush1.msra.mxu0 %v59
    %4830 = vmatprep.subr.mxu0 0.0
    %4831 = vmatpush1.msra.mxu0 %v58
    %4832 = vmatprep.subr.mxu0 0.0
    %4833 = vmatpush1.msra.mxu0 %v57
    %4834 = vmatprep.subr.mxu0 0.0
    %4835 = vmatpush1.msra.mxu0 %v56
    %4836 = vmatprep.subr.mxu0 0.0
    %4837 = vmatpush1.msra.mxu0 %v55
    %4838 = vmatprep.subr.mxu0 0.0
    %4839 = vmatpush2.msra.mxu0 0.0
    %4840 = vmatprep.subr.mxu0 0.0
    %4841 = vmatpush2.msra.mxu0 0.0
    %4842 = vmatprep.subr.mxu0 0.0
    %4843 = vmatpush2.msra.mxu0 0.0
    %4844 = vmatprep.subr.mxu0 0.0
    %4845 = vmatpush2.msra.mxu0 0.0
    %4846 = vmatprep.subr.mxu0 0.0
    %4847 = vmatpush2.msra.mxu0 0.0
    %4848 = vmatprep.subr.mxu0 0.0
    %4849 = vmatpush2.msra.mxu0 0.0
    %4850 = vmatprep.subr.mxu0 0.0
    %4851 = vmatpush2.msra.mxu0 0.0
    %4852 = vmatprep.subr.mxu0 0.0
    %4853 = vmatpush2.msra.mxu0 0.0
    %4854 = vmatprep.subr.mxu0 0.0
    %4855 = vmatpush2.msra.mxu0 0.0
    %4856 = vmatprep.subr.mxu0 0.0
    %4857 = vmatpush2.msra.mxu0 0.0
    %4858 = vmatprep.subr.mxu0 0.0
    %4859 = vmatpush2.msra.mxu0 0.0
    %4860 = vmatprep.subr.mxu0 0.0
    %4861 = vmatpush2.msra.mxu0 0.0
    %4862 = vmatprep.subr.mxu0 0.0
    %4863 = vmatpush2.msra.mxu0 0.0
    %4864 = vmatprep.subr.mxu0 0.0
    %4865 = vmatpush2.msra.mxu0 0.0
    %4866 = vmatprep.subr.mxu0 0.0
    %4867 = vmatpush2.msra.mxu0 0.0
    %4868 = vmatprep.subr.mxu0 0.0
    %4869 = vmatpush2.msra.mxu0 0.0
    %4870 = vmatprep.mubr.f32.mxu0 0.0
    %4871 = vmatmul.mubr.f32.gmra.mxu0 %v4804
    %v4872 = vpop.f32.mrf.mxu0
    %v4873 = vadd.f32 %v98, %v4872
    %v4874 = vpop.f32.mrf.mxu0
    %4875 = vdwg.mxu0
    %v4876 = vmul.f32 %v4873, 0.5
    %v4877 = vtanh.pop %v4876
    %v4878 = vmul.f32 %v4877, 0.5
    %v4879 = vadd.f32 %v4878, 0.5
    %v4880 = vtanh.pop %v4873
    %v4881 = vmul.f32 %v4879, %v4678
    %4883 = vrot.lane.b32.xlu0 %v4880, 64
    %v4884 = vpop.permute.xlu0 %4883
    %v4886 = vmul.f32 %v4879, %v4884
    %4888 = vrot.lane.b32.xlu0 %v4886, 32
    %v4889 = vpop.permute.xlu0 %4888
    %v4891 = vadd.f32 %v4881, %v4889
    %v4892 = vtanh.pop %v4891
    %4894 = vrot.lane.b32.xlu0 %v4892, 64
    %v4895 = vpop.permute.xlu0 %4894
    %v4897 = vmul.f32 %v4879, %v4895
    %4899 = vrot.lane.b32.xlu0 %v4897, 32
    %v4900 = vpop.permute.xlu0 %4899
    %4903 = vrot.lane.b32.xlu0 %v4788, 64
    %v4904 = vpop.permute.xlu0 %4903
    %v4906 = vsel %vm208, %v4900, %v4904
    %v4908 = vsel %vm216, %v4906, 0
    %4910 = vmatprep.subr.mxu0 0.0
    %4911 = vmatpush1.msra.mxu0 0.0
    %4912 = vmatprep.subr.mxu0 0.0
    %4913 = vmatpush1.msra.mxu0 0.0
    %4914 = vmatprep.subr.mxu0 0.0
    %4915 = vmatpush1.msra.mxu0 0.0
    %4916 = vmatprep.subr.mxu0 0.0
    %4917 = vmatpush1.msra.mxu0 0.0
    %4918 = vmatprep.subr.mxu0 0.0
    %4919 = vmatpush1.msra.mxu0 0.0
    %4920 = vmatprep.subr.mxu0 0.0
    %4921 = vmatpush1.msra.mxu0 0.0
    %4922 = vmatprep.subr.mxu0 0.0
    %4923 = vmatpush1.msra.mxu0 0.0
    %4924 = vmatprep.subr.mxu0 0.0
    %4925 = vmatpush1.msra.mxu0 0.0
    %4926 = vmatprep.subr.mxu0 0.0
    %4927 = vmatpush1.msra.mxu0 %v69
    %4928 = vmatprep.subr.mxu0 0.0
    %4929 = vmatpush1.msra.mxu0 %v68
    %4930 = vmatprep.subr.mxu0 0.0
    %4931 = vmatpush1.msra.mxu0 %v67
    %4932 = vmatprep.subr.mxu0 0.0
    %4933 = vmatpush1.msra.mxu0 %v66
    %4934 = vmatprep.subr.mxu0 0.0
    %4935 = vmatpush1.msra.mxu0 %v65
    %4936 = vmatprep.subr.mxu0 0.0
    %4937 = vmatpush1.msra.mxu0 %v64
    %4938 = vmatprep.subr.mxu0 0.0
    %4939 = vmatpush1.msra.mxu0 %v63
    %4940 = vmatprep.subr.mxu0 0.0
    %4941 = vmatpush1.msra.mxu0 %v62
    %4942 = vmatprep.subr.mxu0 0.0
    %4943 = vmatpush2.msra.mxu0 0.0
    %4944 = vmatprep.subr.mxu0 0.0
    %4945 = vmatpush2.msra.mxu0 0.0
    %4946 = vmatprep.subr.mxu0 0.0
    %4947 = vmatpush2.msra.mxu0 0.0
    %4948 = vmatprep.subr.mxu0 0.0
    %4949 = vmatpush2.msra.mxu0 0.0
    %4950 = vmatprep.subr.mxu0 0.0
    %4951 = vmatpush2.msra.mxu0 0.0
    %4952 = vmatprep.subr.mxu0 0.0
    %4953 = vmatpush2.msra.mxu0 0.0
    %4954 = vmatprep.subr.mxu0 0.0
    %4955 = vmatpush2.msra.mxu0 0.0
    %4956 = vmatprep.subr.mxu0 0.0
    %4957 = vmatpush2.msra.mxu0 0.0
    %4958 = vmatprep.subr.mxu0 0.0
    %4959 = vmatpush2.msra.mxu0 0.0
    %4960 = vmatprep.subr.mxu0 0.0
    %4961 = vmatpush2.msra.mxu0 0.0
    %4962 = vmatprep.subr.mxu0 0.0
    %4963 = vmatpush2.msra.mxu0 0.0
    %4964 = vmatprep.subr.mxu0 0.0
    %4965 = vmatpush2.msra.mxu0 0.0
    %4966 = vmatprep.subr.mxu0 0.0
    %4967 = vmatpush2.msra.mxu0 0.0
    %4968 = vmatprep.subr.mxu0 0.0
    %4969 = vmatpush2.msra.mxu0 0.0
    %4970 = vmatprep.subr.mxu0 0.0
    %4971 = vmatpush2.msra.mxu0 0.0
    %4972 = vmatprep.subr.mxu0 0.0
    %4973 = vmatpush2.msra.mxu0 0.0
    %4974 = vmatprep.mubr.f32.mxu0 0.0
    %4975 = vmatmul.mubr.f32.gmra.mxu0 %v4908
    %v4976 = vpop.f32.mrf.mxu0
    %v4977 = vadd.f32 %v214, %v4976
    %v4978 = vpop.f32.mrf.mxu0
    %4979 = vdwg.mxu0
    %v4980 = vmul.f32 %v4977, 0.5
    %v4981 = vtanh.pop %v4980
    %v4982 = vmul.f32 %v4981, 0.5
    %v4983 = vadd.f32 %v4982, 0.5
    %v4984 = vtanh.pop %v4977
    %v4985 = vmul.f32 %v4983, %v4782
    %4987 = vrot.lane.b32.xlu0 %v4984, 64
    %v4988 = vpop.permute.xlu0 %4987
    %v4990 = vmul.f32 %v4983, %v4988
    %4992 = vrot.lane.b32.xlu0 %v4990, 32
    %v4993 = vpop.permute.xlu0 %4992
    %v4995 = vadd.f32 %v4985, %v4993
    %v4996 = vtanh.pop %v4995
    %4998 = vrot.lane.b32.xlu0 %v4996, 64
    %v4999 = vpop.permute.xlu0 %4998
    %v5001 = vmul.f32 %v4983, %v4999
    %s5002 = sld [smem:[#allocation2 + $0x2e]]
    %s5003 = scalar_lea.vmem %s1, %s5002
    %v5004 = vld [vmem:[%s5003] sm:$0x1]
    %s5005 = sld [smem:[#allocation2 + $0x2f]]
    %s5006 = scalar_lea.vmem %s1, %s5005
    %v5007 = vld [vmem:[%s5006] sm:$0x1]
    %v5009 = vrot.slane %v5007, 7
    %v5011 = vsel %vm86, %v5004, %v5009
    %5012 = vrot.lane.b32.xlu0 %v4897, 48
    %v5013 = vpop.permute.xlu0 %5012
    %v5015 = vsel %vm92, %v5011, %v5013
    %v5017 = vsel %vm100, %v5015, 0
    %5019 = vmatprep.subr.mxu0 0.0
    %5020 = vmatpush1.msra.mxu0 0.0
    %5021 = vmatprep.subr.mxu0 0.0
    %5022 = vmatpush1.msra.mxu0 0.0
    %5023 = vmatprep.subr.mxu0 0.0
    %5024 = vmatpush1.msra.mxu0 0.0
    %5025 = vmatprep.subr.mxu0 0.0
    %5026 = vmatpush1.msra.mxu0 0.0
    %5027 = vmatprep.subr.mxu0 0.0
    %5028 = vmatpush1.msra.mxu0 0.0
    %5029 = vmatprep.subr.mxu0 0.0
    %5030 = vmatpush1.msra.mxu0 0.0
    %5031 = vmatprep.subr.mxu0 0.0
    %5032 = vmatpush1.msra.mxu0 0.0
    %5033 = vmatprep.subr.mxu0 0.0
    %5034 = vmatpush1.msra.mxu0 0.0
    %5035 = vmatprep.subr.mxu0 0.0
    %5036 = vmatpush1.msra.mxu0 0.0
    %5037 = vmatprep.subr.mxu0 0.0
    %5038 = vmatpush1.msra.mxu0 0.0
    %5039 = vmatprep.subr.mxu0 0.0
    %5040 = vmatpush1.msra.mxu0 %v60
    %5041 = vmatprep.subr.mxu0 0.0
    %5042 = vmatpush1.msra.mxu0 %v59
    %5043 = vmatprep.subr.mxu0 0.0
    %5044 = vmatpush1.msra.mxu0 %v58
    %5045 = vmatprep.subr.mxu0 0.0
    %5046 = vmatpush1.msra.mxu0 %v57
    %5047 = vmatprep.subr.mxu0 0.0
    %5048 = vmatpush1.msra.mxu0 %v56
    %5049 = vmatprep.subr.mxu0 0.0
    %5050 = vmatpush1.msra.mxu0 %v55
    %5051 = vmatprep.subr.mxu0 0.0
    %5052 = vmatpush2.msra.mxu0 0.0
    %5053 = vmatprep.subr.mxu0 0.0
    %5054 = vmatpush2.msra.mxu0 0.0
    %5055 = vmatprep.subr.mxu0 0.0
    %5056 = vmatpush2.msra.mxu0 0.0
    %5057 = vmatprep.subr.mxu0 0.0
    %5058 = vmatpush2.msra.mxu0 0.0
    %5059 = vmatprep.subr.mxu0 0.0
    %5060 = vmatpush2.msra.mxu0 0.0
    %5061 = vmatprep.subr.mxu0 0.0
    %5062 = vmatpush2.msra.mxu0 0.0
    %5063 = vmatprep.subr.mxu0 0.0
    %5064 = vmatpush2.msra.mxu0 0.0
    %5065 = vmatprep.subr.mxu0 0.0
    %5066 = vmatpush2.msra.mxu0 0.0
    %5067 = vmatprep.subr.mxu0 0.0
    %5068 = vmatpush2.msra.mxu0 0.0
    %5069 = vmatprep.subr.mxu0 0.0
    %5070 = vmatpush2.msra.mxu0 0.0
    %5071 = vmatprep.subr.mxu0 0.0
    %5072 = vmatpush2.msra.mxu0 0.0
    %5073 = vmatprep.subr.mxu0 0.0
    %5074 = vmatpush2.msra.mxu0 0.0
    %5075 = vmatprep.subr.mxu0 0.0
    %5076 = vmatpush2.msra.mxu0 0.0
    %5077 = vmatprep.subr.mxu0 0.0
    %5078 = vmatpush2.msra.mxu0 0.0
    %5079 = vmatprep.subr.mxu0 0.0
    %5080 = vmatpush2.msra.mxu0 0.0
    %5081 = vmatprep.subr.mxu0 0.0
    %5082 = vmatpush2.msra.mxu0 0.0
    %5083 = vmatprep.mubr.f32.mxu0 0.0
    %5084 = vmatmul.mubr.f32.gmra.mxu0 %v5017
    %v5085 = vpop.f32.mrf.mxu0
    %v5086 = vadd.f32 %v98, %v5085
    %v5087 = vpop.f32.mrf.mxu0
    %5088 = vdwg.mxu0
    %v5089 = vmul.f32 %v5086, 0.5
    %v5090 = vtanh.pop %v5089
    %v5091 = vmul.f32 %v5090, 0.5
    %v5092 = vadd.f32 %v5091, 0.5
    %v5093 = vtanh.pop %v5086
    %v5094 = vmul.f32 %v5092, %v4891
    %5096 = vrot.lane.b32.xlu0 %v5093, 64
    %v5097 = vpop.permute.xlu0 %5096
    %v5099 = vmul.f32 %v5092, %v5097
    %5101 = vrot.lane.b32.xlu0 %v5099, 32
    %v5102 = vpop.permute.xlu0 %5101
    %v5104 = vadd.f32 %v5094, %v5102
    %v5105 = vtanh.pop %v5104
    %5107 = vrot.lane.b32.xlu0 %v5105, 64
    %v5108 = vpop.permute.xlu0 %5107
    %v5110 = vmul.f32 %v5092, %v5108
    %5112 = vrot.lane.b32.xlu0 %v5110, 32
    %v5113 = vpop.permute.xlu0 %5112
    %5116 = vrot.lane.b32.xlu0 %v5001, 64
    %v5117 = vpop.permute.xlu0 %5116
    %v5119 = vsel %vm208, %v5113, %v5117
    %v5121 = vsel %vm216, %v5119, 0
    %5123 = vmatprep.subr.mxu0 0.0
    %5124 = vmatpush1.msra.mxu0 0.0
    %5125 = vmatprep.subr.mxu0 0.0
    %5126 = vmatpush1.msra.mxu0 0.0
    %5127 = vmatprep.subr.mxu0 0.0
    %5128 = vmatpush1.msra.mxu0 0.0
    %5129 = vmatprep.subr.mxu0 0.0
    %5130 = vmatpush1.msra.mxu0 0.0
    %5131 = vmatprep.subr.mxu0 0.0
    %5132 = vmatpush1.msra.mxu0 0.0
    %5133 = vmatprep.subr.mxu0 0.0
    %5134 = vmatpush1.msra.mxu0 0.0
    %5135 = vmatprep.subr.mxu0 0.0
    %5136 = vmatpush1.msra.mxu0 0.0
    %5137 = vmatprep.subr.mxu0 0.0
    %5138 = vmatpush1.msra.mxu0 0.0
    %5139 = vmatprep.subr.mxu0 0.0
    %5140 = vmatpush1.msra.mxu0 %v69
    %5141 = vmatprep.subr.mxu0 0.0
    %5142 = vmatpush1.msra.mxu0 %v68
    %5143 = vmatprep.subr.mxu0 0.0
    %5144 = vmatpush1.msra.mxu0 %v67
    %5145 = vmatprep.subr.mxu0 0.0
    %5146 = vmatpush1.msra.mxu0 %v66
    %5147 = vmatprep.subr.mxu0 0.0
    %5148 = vmatpush1.msra.mxu0 %v65
    %5149 = vmatprep.subr.mxu0 0.0
    %5150 = vmatpush1.msra.mxu0 %v64
    %5151 = vmatprep.subr.mxu0 0.0
    %5152 = vmatpush1.msra.mxu0 %v63
    %5153 = vmatprep.subr.mxu0 0.0
    %5154 = vmatpush1.msra.mxu0 %v62
    %5155 = vmatprep.subr.mxu0 0.0
    %5156 = vmatpush2.msra.mxu0 0.0
    %5157 = vmatprep.subr.mxu0 0.0
    %5158 = vmatpush2.msra.mxu0 0.0
    %5159 = vmatprep.subr.mxu0 0.0
    %5160 = vmatpush2.msra.mxu0 0.0
    %5161 = vmatprep.subr.mxu0 0.0
    %5162 = vmatpush2.msra.mxu0 0.0
    %5163 = vmatprep.subr.mxu0 0.0
    %5164 = vmatpush2.msra.mxu0 0.0
    %5165 = vmatprep.subr.mxu0 0.0
    %5166 = vmatpush2.msra.mxu0 0.0
    %5167 = vmatprep.subr.mxu0 0.0
    %5168 = vmatpush2.msra.mxu0 0.0
    %5169 = vmatprep.subr.mxu0 0.0
    %5170 = vmatpush2.msra.mxu0 0.0
    %5171 = vmatprep.subr.mxu0 0.0
    %5172 = vmatpush2.msra.mxu0 0.0
    %5173 = vmatprep.subr.mxu0 0.0
    %5174 = vmatpush2.msra.mxu0 0.0
    %5175 = vmatprep.subr.mxu0 0.0
    %5176 = vmatpush2.msra.mxu0 0.0
    %5177 = vmatprep.subr.mxu0 0.0
    %5178 = vmatpush2.msra.mxu0 0.0
    %5179 = vmatprep.subr.mxu0 0.0
    %5180 = vmatpush2.msra.mxu0 0.0
    %5181 = vmatprep.subr.mxu0 0.0
    %5182 = vmatpush2.msra.mxu0 0.0
    %5183 = vmatprep.subr.mxu0 0.0
    %5184 = vmatpush2.msra.mxu0 0.0
    %5185 = vmatprep.subr.mxu0 0.0
    %5186 = vmatpush2.msra.mxu0 0.0
    %5187 = vmatprep.mubr.f32.mxu0 0.0
    %5188 = vmatmul.mubr.f32.gmra.mxu0 %v5121
    %v5189 = vpop.f32.mrf.mxu0
    %v5190 = vadd.f32 %v214, %v5189
    %v5191 = vpop.f32.mrf.mxu0
    %5192 = vdwg.mxu0
    %v5193 = vmul.f32 %v5190, 0.5
    %v5194 = vtanh.pop %v5193
    %v5195 = vmul.f32 %v5194, 0.5
    %v5196 = vadd.f32 %v5195, 0.5
    %v5197 = vtanh.pop %v5190
    %v5198 = vmul.f32 %v5196, %v4995
    %5200 = vrot.lane.b32.xlu0 %v5197, 64
    %v5201 = vpop.permute.xlu0 %5200
    %v5203 = vmul.f32 %v5196, %v5201
    %5205 = vrot.lane.b32.xlu0 %v5203, 32
    %v5206 = vpop.permute.xlu0 %5205
    %v5208 = vadd.f32 %v5198, %v5206
    %v5209 = vtanh.pop %v5208
    %5211 = vrot.lane.b32.xlu0 %v5209, 64
    %v5212 = vpop.permute.xlu0 %5211
    %v5214 = vmul.f32 %v5196, %v5212
    %v5215 = vld [vmem:[%s8] sm:$0xff]
    %v5216 = vld [vmem:[%s8 + $0x8] sm:$0xff]
    %v5217 = vld [vmem:[%s8 + $0x10] sm:$0xff]
    %v5218 = vld [vmem:[%s8 + $0x18] sm:$0xff]
    %v5219 = vld [vmem:[%s8 + $0x20] sm:$0xff]
    %v5220 = vld [vmem:[%s8 + $0x28] sm:$0xff]
    %v5221 = vld [vmem:[%s8 + $0x30] sm:$0xff]
    %v5222 = vld [vmem:[%s8 + $0x38] sm:$0xff]
    %v5223 = vld [vmem:[%s10] sm:$0xff]
    %v5224 = vld [vmem:[%s10 + $0x8] sm:$0xff]
    %v5225 = vld [vmem:[%s10 + $0x10] sm:$0xff]
    %v5226 = vld [vmem:[%s10 + $0x18] sm:$0xff]
    %v5227 = vld [vmem:[%s10 + $0x20] sm:$0xff]
    %v5228 = vld [vmem:[%s10 + $0x28] sm:$0xff]
    %v5229 = vld [vmem:[%s10 + $0x30] sm:$0xff]
    %v5230 = vld [vmem:[%s10 + $0x38] sm:$0xff]
    %5231 = vrot.lane.b32.xlu0 %v3510, 32
    %v5232 = vpop.permute.xlu0 %5231
    %v5233 = vsel %vm208, %v5232, 0
    %5235 = vmatprep.subr.mxu0 0.0
    %5236 = vmatpush1.msra.mxu0 0.0
    %5237 = vmatprep.subr.mxu0 0.0
    %5238 = vmatpush1.msra.mxu0 0.0
    %5239 = vmatprep.subr.mxu0 0.0
    %5240 = vmatpush1.msra.mxu0 0.0
    %5241 = vmatprep.subr.mxu0 0.0
    %5242 = vmatpush1.msra.mxu0 0.0
    %5243 = vmatprep.subr.mxu0 0.0
    %5244 = vmatpush1.msra.mxu0 0.0
    %5245 = vmatprep.subr.mxu0 0.0
    %5246 = vmatpush1.msra.mxu0 0.0
    %5247 = vmatprep.subr.mxu0 0.0
    %5248 = vmatpush1.msra.mxu0 0.0
    %5249 = vmatprep.subr.mxu0 0.0
    %5250 = vmatpush1.msra.mxu0 0.0
    %5251 = vmatprep.subr.mxu0 0.0
    %5252 = vmatpush1.msra.mxu0 0.0
    %5253 = vmatprep.subr.mxu0 0.0
    %5254 = vmatpush1.msra.mxu0 0.0
    %5255 = vmatprep.subr.mxu0 0.0
    %5256 = vmatpush1.msra.mxu0 0.0
    %5257 = vmatprep.subr.mxu0 0.0
    %5258 = vmatpush1.msra.mxu0 0.0
    %5259 = vmatprep.subr.mxu0 0.0
    %5260 = vmatpush1.msra.mxu0 %v5222
    %5261 = vmatprep.subr.mxu0 0.0
    %5262 = vmatpush1.msra.mxu0 %v5221
    %5263 = vmatprep.subr.mxu0 0.0
    %5264 = vmatpush1.msra.mxu0 %v5220
    %5265 = vmatprep.subr.mxu0 0.0
    %5266 = vmatpush1.msra.mxu0 %v5219
    %5267 = vmatprep.subr.mxu0 0.0
    %5268 = vmatpush2.msra.mxu0 0.0
    %5269 = vmatprep.subr.mxu0 0.0
    %5270 = vmatpush2.msra.mxu0 0.0
    %5271 = vmatprep.subr.mxu0 0.0
    %5272 = vmatpush2.msra.mxu0 0.0
    %5273 = vmatprep.subr.mxu0 0.0
    %5274 = vmatpush2.msra.mxu0 0.0
    %5275 = vmatprep.subr.mxu0 0.0
    %5276 = vmatpush2.msra.mxu0 0.0
    %5277 = vmatprep.subr.mxu0 0.0
    %5278 = vmatpush2.msra.mxu0 0.0
    %5279 = vmatprep.subr.mxu0 0.0
    %5280 = vmatpush2.msra.mxu0 0.0
    %5281 = vmatprep.subr.mxu0 0.0
    %5282 = vmatpush2.msra.mxu0 0.0
    %5283 = vmatprep.subr.mxu0 0.0
    %5284 = vmatpush2.msra.mxu0 0.0
    %5285 = vmatprep.subr.mxu0 0.0
    %5286 = vmatpush2.msra.mxu0 0.0
    %5287 = vmatprep.subr.mxu0 0.0
    %5288 = vmatpush2.msra.mxu0 0.0
    %5289 = vmatprep.subr.mxu0 0.0
    %5290 = vmatpush2.msra.mxu0 0.0
    %5291 = vmatprep.subr.mxu0 0.0
    %5292 = vmatpush2.msra.mxu0 0.0
    %5293 = vmatprep.subr.mxu0 0.0
    %5294 = vmatpush2.msra.mxu0 0.0
    %5295 = vmatprep.subr.mxu0 0.0
    %5296 = vmatpush2.msra.mxu0 0.0
    %5297 = vmatprep.subr.mxu0 0.0
    %5298 = vmatpush2.msra.mxu0 0.0
    %5299 = vmatprep.mubr.f32.mxu0 0.0
    %5300 = vmatmul.mubr.f32.gmra.mxu0 %v5233
    %v5301 = vpop.f32.mrf.mxu0
    %v5302 = vadd.f32 0.0, %v5301
    %v5303 = vpop.f32.mrf.mxu0
    %5304 = vdwg.mxu0
    %5305 = vrot.lane.b32.xlu0 %v1806, 32
    %v5306 = vpop.permute.xlu0 %5305
    %v5307 = vsel %vm208, %v5306, 0
    %5309 = vmatprep.subr.mxu0 0.0
    %5310 = vmatpush1.msra.mxu0 0.0
    %5311 = vmatprep.subr.mxu0 0.0
    %5312 = vmatpush1.msra.mxu0 0.0
    %5313 = vmatprep.subr.mxu0 0.0
    %5314 = vmatpush1.msra.mxu0 0.0
    %5315 = vmatprep.subr.mxu0 0.0
    %5316 = vmatpush1.msra.mxu0 0.0
    %5317 = vmatprep.subr.mxu0 0.0
    %5318 = vmatpush1.msra.mxu0 0.0
    %5319 = vmatprep.subr.mxu0 0.0
    %5320 = vmatpush1.msra.mxu0 0.0
    %5321 = vmatprep.subr.mxu0 0.0
    %5322 = vmatpush1.msra.mxu0 0.0
    %5323 = vmatprep.subr.mxu0 0.0
    %5324 = vmatpush1.msra.mxu0 0.0
    %5325 = vmatprep.subr.mxu0 0.0
    %5326 = vmatpush1.msra.mxu0 0.0
    %5327 = vmatprep.subr.mxu0 0.0
    %5328 = vmatpush1.msra.mxu0 0.0
    %5329 = vmatprep.subr.mxu0 0.0
    %5330 = vmatpush1.msra.mxu0 0.0
    %5331 = vmatprep.subr.mxu0 0.0
    %5332 = vmatpush1.msra.mxu0 0.0
    %5333 = vmatprep.subr.mxu0 0.0
    %5334 = vmatpush1.msra.mxu0 %v5218
    %5335 = vmatprep.subr.mxu0 0.0
    %5336 = vmatpush1.msra.mxu0 %v5217
    %5337 = vmatprep.subr.mxu0 0.0
    %5338 = vmatpush1.msra.mxu0 %v5216
    %5339 = vmatprep.subr.mxu0 0.0
    %5340 = vmatpush1.msra.mxu0 %v5215
    %5341 = vmatprep.subr.mxu0 0.0
    %5342 = vmatpush2.msra.mxu0 0.0
    %5343 = vmatprep.subr.mxu0 0.0
    %5344 = vmatpush2.msra.mxu0 0.0
    %5345 = vmatprep.subr.mxu0 0.0
    %5346 = vmatpush2.msra.mxu0 0.0
    %5347 = vmatprep.subr.mxu0 0.0
    %5348 = vmatpush2.msra.mxu0 0.0
    %5349 = vmatprep.subr.mxu0 0.0
    %5350 = vmatpush2.msra.mxu0 0.0
    %5351 = vmatprep.subr.mxu0 0.0
    %5352 = vmatpush2.msra.mxu0 0.0
    %5353 = vmatprep.subr.mxu0 0.0
    %5354 = vmatpush2.msra.mxu0 0.0
    %5355 = vmatprep.subr.mxu0 0.0
    %5356 = vmatpush2.msra.mxu0 0.0
    %5357 = vmatprep.subr.mxu0 0.0
    %5358 = vmatpush2.msra.mxu0 0.0
    %5359 = vmatprep.subr.mxu0 0.0
    %5360 = vmatpush2.msra.mxu0 0.0
    %5361 = vmatprep.subr.mxu0 0.0
    %5362 = vmatpush2.msra.mxu0 0.0
    %5363 = vmatprep.subr.mxu0 0.0
    %5364 = vmatpush2.msra.mxu0 0.0
    %5365 = vmatprep.subr.mxu0 0.0
    %5366 = vmatpush2.msra.mxu0 0.0
    %5367 = vmatprep.subr.mxu0 0.0
    %5368 = vmatpush2.msra.mxu0 0.0
    %5369 = vmatprep.subr.mxu0 0.0
    %5370 = vmatpush2.msra.mxu0 0.0
    %5371 = vmatprep.subr.mxu0 0.0
    %5372 = vmatpush2.msra.mxu0 0.0
    %5373 = vmatprep.mubr.f32.mxu0 0.0
    %5374 = vmatmul.mubr.f32.gmra.mxu0 %v5307
    %v5375 = vpop.f32.mrf.mxu0
    %v5376 = vadd.f32 %v5302, %v5375
    %v5377 = vpop.f32.mrf.mxu0
    %5378 = vdwg.mxu0
    %v5379 = vld [vmem:[%s9] sm:$0x1]
    %v5381 = vlaneseq
    %v5382 = vshrl.u32 %v5381, 7
    %v5383 = vsub.s32 0, %v5382
    %v5384 = vrot.slane %v5379, %v5383
    %v5386 = vadd.f32 %v5376, %v5384
    %v5387 = vmax.f32 %v5386, 0.0
    %5389 = vrot.lane.b32.xlu0 %v5214, 32
    %v5390 = vpop.permute.xlu0 %5389
    %v5391 = vsel %vm208, %v5390, 0
    %5393 = vmatprep.subr.mxu0 0.0
    %5394 = vmatpush1.msra.mxu0 0.0
    %5395 = vmatprep.subr.mxu0 0.0
    %5396 = vmatpush1.msra.mxu0 0.0
    %5397 = vmatprep.subr.mxu0 0.0
    %5398 = vmatpush1.msra.mxu0 0.0
    %5399 = vmatprep.subr.mxu0 0.0
    %5400 = vmatpush1.msra.mxu0 0.0
    %5401 = vmatprep.subr.mxu0 0.0
    %5402 = vmatpush1.msra.mxu0 0.0
    %5403 = vmatprep.subr.mxu0 0.0
    %5404 = vmatpush1.msra.mxu0 0.0
    %5405 = vmatprep.subr.mxu0 0.0
    %5406 = vmatpush1.msra.mxu0 0.0
    %5407 = vmatprep.subr.mxu0 0.0
    %5408 = vmatpush1.msra.mxu0 0.0
    %5409 = vmatprep.subr.mxu0 0.0
    %5410 = vmatpush1.msra.mxu0 0.0
    %5411 = vmatprep.subr.mxu0 0.0
    %5412 = vmatpush1.msra.mxu0 0.0
    %5413 = vmatprep.subr.mxu0 0.0
    %5414 = vmatpush1.msra.mxu0 0.0
    %5415 = vmatprep.subr.mxu0 0.0
    %5416 = vmatpush1.msra.mxu0 0.0
    %5417 = vmatprep.subr.mxu0 0.0
    %5418 = vmatpush1.msra.mxu0 %v5230
    %5419 = vmatprep.subr.mxu0 0.0
    %5420 = vmatpush1.msra.mxu0 %v5229
    %5421 = vmatprep.subr.mxu0 0.0
    %5422 = vmatpush1.msra.mxu0 %v5228
    %5423 = vmatprep.subr.mxu0 0.0
    %5424 = vmatpush1.msra.mxu0 %v5227
    %5425 = vmatprep.subr.mxu0 0.0
    %5426 = vmatpush2.msra.mxu0 0.0
    %5427 = vmatprep.subr.mxu0 0.0
    %5428 = vmatpush2.msra.mxu0 0.0
    %5429 = vmatprep.subr.mxu0 0.0
    %5430 = vmatpush2.msra.mxu0 0.0
    %5431 = vmatprep.subr.mxu0 0.0
    %5432 = vmatpush2.msra.mxu0 0.0
    %5433 = vmatprep.subr.mxu0 0.0
    %5434 = vmatpush2.msra.mxu0 0.0
    %5435 = vmatprep.subr.mxu0 0.0
    %5436 = vmatpush2.msra.mxu0 0.0
    %5437 = vmatprep.subr.mxu0 0.0
    %5438 = vmatpush2.msra.mxu0 0.0
    %5439 = vmatprep.subr.mxu0 0.0
    %5440 = vmatpush2.msra.mxu0 0.0
    %5441 = vmatprep.subr.mxu0 0.0
    %5442 = vmatpush2.msra.mxu0 0.0
    %5443 = vmatprep.subr.mxu0 0.0
    %5444 = vmatpush2.msra.mxu0 0.0
    %5445 = vmatprep.subr.mxu0 0.0
    %5446 = vmatpush2.msra.mxu0 0.0
    %5447 = vmatprep.subr.mxu0 0.0
    %5448 = vmatpush2.msra.mxu0 0.0
    %5449 = vmatprep.subr.mxu0 0.0
    %5450 = vmatpush2.msra.mxu0 0.0
    %5451 = vmatprep.subr.mxu0 0.0
    %5452 = vmatpush2.msra.mxu0 0.0
    %5453 = vmatprep.subr.mxu0 0.0
    %5454 = vmatpush2.msra.mxu0 0.0
    %5455 = vmatprep.subr.mxu0 0.0
    %5456 = vmatpush2.msra.mxu0 0.0
    %5457 = vmatprep.mubr.f32.mxu0 0.0
    %5458 = vmatmul.mubr.f32.gmra.mxu0 %v5391
    %v5459 = vpop.f32.mrf.mxu0
    %v5460 = vadd.f32 0.0, %v5459
    %v5461 = vpop.f32.mrf.mxu0
    %5462 = vdwg.mxu0
    %v5464 = vsel %vm208, %v5387, 0
    %5466 = vmatprep.subr.mxu0 0.0
    %5467 = vmatpush1.msra.mxu0 0.0
    %5468 = vmatprep.subr.mxu0 0.0
    %5469 = vmatpush1.msra.mxu0 0.0
    %5470 = vmatprep.subr.mxu0 0.0
    %5471 = vmatpush1.msra.mxu0 0.0
    %5472 = vmatprep.subr.mxu0 0.0
    %5473 = vmatpush1.msra.mxu0 0.0
    %5474 = vmatprep.subr.mxu0 0.0
    %5475 = vmatpush1.msra.mxu0 0.0
    %5476 = vmatprep.subr.mxu0 0.0
    %5477 = vmatpush1.msra.mxu0 0.0
    %5478 = vmatprep.subr.mxu0 0.0
    %5479 = vmatpush1.msra.mxu0 0.0
    %5480 = vmatprep.subr.mxu0 0.0
    %5481 = vmatpush1.msra.mxu0 0.0
    %5482 = vmatprep.subr.mxu0 0.0
    %5483 = vmatpush1.msra.mxu0 0.0
    %5484 = vmatprep.subr.mxu0 0.0
    %5485 = vmatpush1.msra.mxu0 0.0
    %5486 = vmatprep.subr.mxu0 0.0
    %5487 = vmatpush1.msra.mxu0 0.0
    %5488 = vmatprep.subr.mxu0 0.0
    %5489 = vmatpush1.msra.mxu0 0.0
    %5490 = vmatprep.subr.mxu0 0.0
    %5491 = vmatpush1.msra.mxu0 %v5226
    %5492 = vmatprep.subr.mxu0 0.0
    %5493 = vmatpush1.msra.mxu0 %v5225
    %5494 = vmatprep.subr.mxu0 0.0
    %5495 = vmatpush1.msra.mxu0 %v5224
    %5496 = vmatprep.subr.mxu0 0.0
    %5497 = vmatpush1.msra.mxu0 %v5223
    %5498 = vmatprep.subr.mxu0 0.0
    %5499 = vmatpush2.msra.mxu0 0.0
    %5500 = vmatprep.subr.mxu0 0.0
    %5501 = vmatpush2.msra.mxu0 0.0
    %5502 = vmatprep.subr.mxu0 0.0
    %5503 = vmatpush2.msra.mxu0 0.0
    %5504 = vmatprep.subr.mxu0 0.0
    %5505 = vmatpush2.msra.mxu0 0.0
    %5506 = vmatprep.subr.mxu0 0.0
    %5507 = vmatpush2.msra.mxu0 0.0
    %5508 = vmatprep.subr.mxu0 0.0
    %5509 = vmatpush2.msra.mxu0 0.0
    %5510 = vmatprep.subr.mxu0 0.0
    %5511 = vmatpush2.msra.mxu0 0.0
    %5512 = vmatprep.subr.mxu0 0.0
    %5513 = vmatpush2.msra.mxu0 0.0
    %5514 = vmatprep.subr.mxu0 0.0
    %5515 = vmatpush2.msra.mxu0 0.0
    %5516 = vmatprep.subr.mxu0 0.0
    %5517 = vmatpush2.msra.mxu0 0.0
    %5518 = vmatprep.subr.mxu0 0.0
    %5519 = vmatpush2.msra.mxu0 0.0
    %5520 = vmatprep.subr.mxu0 0.0
    %5521 = vmatpush2.msra.mxu0 0.0
    %5522 = vmatprep.subr.mxu0 0.0
    %5523 = vmatpush2.msra.mxu0 0.0
    %5524 = vmatprep.subr.mxu0 0.0
    %5525 = vmatpush2.msra.mxu0 0.0
    %5526 = vmatprep.subr.mxu0 0.0
    %5527 = vmatpush2.msra.mxu0 0.0
    %5528 = vmatprep.subr.mxu0 0.0
    %5529 = vmatpush2.msra.mxu0 0.0
    %5530 = vmatprep.mubr.f32.mxu0 0.0
    %5531 = vmatmul.mubr.f32.gmra.mxu0 %v5464
    %v5532 = vpop.f32.mrf.mxu0
    %v5533 = vadd.f32 %v5460, %v5532
    %v5534 = vpop.f32.mrf.mxu0
    %5535 = vdwg.mxu0
    %v5536 = vld [vmem:[%s11] sm:$0x1]
    %v5538 = vlaneseq
    %v5539 = vshrl.u32 %v5538, 7
    %v5540 = vsub.s32 0, %v5539
    %v5541 = vrot.slane %v5536, %v5540
    %v5543 = vadd.f32 %v5533, %v5541
    %vm5544 = vcmask 25600
    %v5545 = vsel %vm5544, %v5543, -inf
    %5546 = vmax.xlane.f32.xlu0 %v5545
    %v5547 = vpop.xlane.xlu0 %5546
    %v5548 = vsub.f32 %v5543, %v5547
    %v5549 = vmul.f32 %v5548, 1.442695
    %v5550 = vpow.pop %v5549
    %v5551 = vsel %vm5544, %v5550, 0.0
    %5552 = vadd.xlane.f32.xlu0 %v5551
    %v5553 = vpop.xlane.xlu0 %5552
    %v5554 = vlog2.pop %v5553
    %v5555 = vmul.f32 %v5554, 0.6931472
    %v5556 = vsub.f32 %v5548, %v5555
    %5557 = vst.msk [vmem:[#allocation5] sm:$0x3] %vm5544, %v5556
    // Predicated region
    $region54: #{classifier_forward.1} parent=1 // pred_check
      _
    $region55: #{classifier_forward.1} parent=1 // pred_check_branch
      %5559 = sbr.rel (0) target = $region57
    $region56: #{classifier_forward.1} parent=1 // pred_region
      %s5561 = ssub.s32 32, 32
      %5562 = vsyncadd [#allocation3], %s5561
      %s5564 = sshll.u32 [#allocation5], 4
      %s5565 = int_to_ptr.vmem [resolvable:$true] %s5564
      %5567 = dma.vmem_to_hbm [thread:$0]  %s5565, 32, %s12, [#allocation3]
    $region57: #{classifier_forward.1} parent=1 // pred_fallthru
      _
    // Predicated region
    $region58: #{classifier_forward.1} parent=1 // pred_check
      _
    $region59: #{classifier_forward.1} parent=1 // pred_check_branch
      %5569 = sbr.rel (0) target = $region61
    $region60: #{classifier_forward.1} parent=1 // pred_region
      %5570 = dma.done [#allocation3], 32
    $region61: #{classifier_forward.1} parent=1 // pred_fallthru
      _
    %5571 = vsyncpa [#allocation3], 1
    %5572 = vsyncpa [#allocation4], 1

</llo_original>
